<compile_context>
chip_gen: v6e
topology: v6e:2x2x1
jax: 0.10.0
libtpu: 0.0.40
codegen_flags: <defaults>
</compile_context>

<pallas_src>
import functools
import math

import jax
import jax.numpy as jnp
from jax.experimental import pallas as pl
from jax.experimental.pallas import tpu as pltpu

# ---- small config consistent with the module structure (d_head = d_model // n_heads) ----
D_MODEL = 128
N_HEADS = 8
D_HEAD = D_MODEL // N_HEADS          # 16
N_GROUPS = 4
N_KV = N_HEADS // N_GROUPS           # 2 kv heads
GP = N_HEADS // N_KV                 # 4 query heads share each kv head
D_FF = 256
SEQ = 128
BATCH = 2
EPS = 1e-6

D_Q = N_HEADS * D_HEAD               # 128
D_KV = N_KV * D_HEAD                 # 32


def llama_layer_kernel(x_ref, wqkv_ref, bqkv_ref, wo_ref, bo_ref,
                       w1_ref, b1_ref, w2_ref, b2_ref, o_ref, *, bb):
    S, D = x_ref.shape[1], x_ref.shape[2]
    M = bb * S
    x = x_ref[...].reshape(M, D)                                     # (M, D) f32

    # ---- RMSNorm 1 (f32; rsqrt runs on the EUP).  g1 is folded into wqkv/w1. ----
    inv_rms = jax.lax.rsqrt(jnp.mean(x * x, axis=-1, keepdims=True) + EPS)
    xn_bf = (x * inv_rms).astype(jnp.bfloat16)                       # (M, D) bf16

    # ---- fused Q|K|V projection: one bf16 MXU matmul (score scale folded into Wq/bq) ----
    qkv = jnp.dot(xn_bf, wqkv_ref[...],
                  preferred_element_type=jnp.float32) + bqkv_ref[...]   # (M, 192) f32
    q = qkv[:, :D_Q]                         # (M, H*dh), already score-scaled
    k = qkv[:, D_Q:D_Q + D_KV]               # (M, NKV*dh)
    v = qkv[:, D_Q + D_KV:]                  # (M, NKV*dh)

    # ---- group-batched GQA: bb*N_KV batched matmuls with M = GP*S ----
    q_grp, k_grp, v_grp = [], [], []
    for b in range(bb):                      # tiny static loops (bb <= 2, N_KV = 2)
        rows = slice(b * S, (b + 1) * S)
        for g in range(N_KV):
            # the 4 query heads sharing kv head g, stacked along rows -> (GP*S, dh)
            q_grp.append(jnp.concatenate(
                [q[rows, (g * GP + i) * D_HEAD:(g * GP + i + 1) * D_HEAD]
                 for i in range(GP)], axis=0))
            k_grp.append(k[rows, g * D_HEAD:(g + 1) * D_HEAD])          # (S, dh)
            v_grp.append(v[rows, g * D_HEAD:(g + 1) * D_HEAD])          # (S, dh)
    q_s = jnp.stack(q_grp).astype(jnp.bfloat16)                      # (bb*NKV, GP*S, dh)
    k_s = jnp.stack(k_grp).astype(jnp.bfloat16)                      # (bb*NKV, S, dh)
    v_s = jnp.stack(v_grp).astype(jnp.bfloat16)                      # (bb*NKV, S, dh)

    s = jax.lax.dot_general(q_s, k_s, (((2,), (2,)), ((0,), (0,))),
                            preferred_element_type=jnp.float32)      # (bb*NKV, GP*S, S)
    s = s - jnp.max(s, axis=-1, keepdims=True)
    p = jnp.exp(s)
    p = p * pl.reciprocal(jnp.sum(p, axis=-1, keepdims=True), approx=True)
    o_s = jax.lax.dot_general(p.astype(jnp.bfloat16), v_s,
                              (((2,), (1,)), ((0,), (0,))),
                              preferred_element_type=jnp.float32)    # (bb*NKV, GP*S, dh)

    # reassemble (M, H*dh) in the reference channel order, then one output projection
    attn = jnp.concatenate(
        [jnp.concatenate(
            [o_s[b * N_KV + h // GP, (h % GP) * S:(h % GP + 1) * S, :]
             for h in range(N_HEADS)], axis=-1)
         for b in range(bb)], axis=0).astype(jnp.bfloat16)           # (M, H*dh)
    attn_out = jnp.dot(attn, wo_ref[...],
                       preferred_element_type=jnp.float32) + bo_ref[...]

    # residual 1
    x1 = x + attn_out

    # NOTE: the reference computes rms_norm2(x1) here but never uses its result -> skipped.

    # ---- FeedForward on x_norm (exactly as the reference forward wires it) ----
    h1 = jnp.dot(xn_bf, w1_ref[...],
                 preferred_element_type=jnp.float32) + b1_ref[...]   # (M, d_ff) f32
    h1 = h1 * (h1 * jax.nn.sigmoid(h1))                              # x_ff * silu(x_ff)
    ff_out = jnp.dot(h1.astype(jnp.bfloat16), w2_ref[...],
                     preferred_element_type=jnp.float32) + b2_ref[...]

    # residual 2
    o_ref[...] = (x1 + ff_out).reshape(bb, S, D)


def _batch_block():
    """v7x has 2 TensorCores per chip: keep 1 batch per grid step so the 'parallel'
    batch axis is sharded across them.  Single-TC chips (v5e/v6e): fold the whole
    batch into the matmul M dimension and run a single grid step."""
    try:
        kind = jax.devices()[0].device_kind.lower().replace(" ", "")
        if "v7" in kind or "tpu7" in kind:
            return 1
    except Exception:
        pass
    return BATCH


def _full_spec(shape):
    ndim = len(shape)
    return pl.BlockSpec(shape, lambda b: (0,) * ndim)


def llama_layer(x, kparams, bb=None):
    B, S, D = x.shape
    if bb is None:
        bb = _batch_block()
    assert B % bb == 0
    in_specs = [pl.BlockSpec((bb, S, D), lambda b: (b, 0, 0))] + [
        _full_spec(p.shape) for p in kparams]
    out_specs = pl.BlockSpec((bb, S, D), lambda b: (b, 0, 0))
    return pl.pallas_call(
        functools.partial(llama_layer_kernel, bb=bb),
        out_shape=jax.ShapeDtypeStruct((B, S, D), jnp.float32),
        grid_spec=pltpu.PrefetchScalarGridSpec(
            num_scalar_prefetch=0,
            grid=(B // bb,),
            in_specs=in_specs,
            out_specs=out_specs,
        ),
        compiler_params=pltpu.CompilerParams(
            dimension_semantics=("parallel",)),
    )(x, *kparams)


# ---------------- parameter init (deterministic, PyTorch nn.Linear-style) ----------------
def init_linear(key, in_dim, out_dim):
    kw, kb = jax.random.split(key)
    bound = 1.0 / math.sqrt(in_dim)
    w = jax.random.uniform(kw, (out_dim, in_dim), jnp.float32, -bound, bound)
    b = jax.random.uniform(kb, (out_dim,), jnp.float32, -bound, bound)
    return w, b


def make_params(key):
    keys = jax.random.split(key, 6)
    wq, bq = init_linear(keys[0], D_MODEL, N_HEADS * D_HEAD)
    wk, bk = init_linear(keys[1], D_MODEL, N_KV * D_HEAD)
    wv, bv = init_linear(keys[2], D_MODEL, N_KV * D_HEAD)
    wo, bo = init_linear(keys[3], N_HEADS * D_HEAD, D_MODEL)
    w1, b1 = init_linear(keys[4], D_MODEL, D_FF)
    w2, b2 = init_linear(keys[5], D_FF, D_MODEL)
    g1 = jnp.ones((D_MODEL,), jnp.float32)
    return dict(g1=g1, wq=wq, bq=bq, wk=wk, bk=bk, wv=wv, bv=bv,
                wo=wo, bo=bo, w1=w1, b1=b1, w2=w2, b2=b2)


def prepare_kernel_params(p):
    """Kernel-side layout: weights transposed to (in, out), Q|K|V fused into one weight,
    the 1/sqrt(d_head) score scale folded into the Q columns, the RMSNorm scale g1 folded
    into the input-dim rows of wqkv and w1 (its only consumers), weights cast to bf16
    (MXU-native, halves weight DMA); biases stay f32."""
    scale = 1.0 / math.sqrt(D_HEAD)
    g1 = p["g1"][:, None]                                                      # (D, 1)
    wqkv = jnp.concatenate([p["wq"].T * scale, p["wk"].T, p["wv"].T], axis=1)  # (D, 192)
    wqkv = wqkv * g1
    bqkv = jnp.concatenate([p["bq"] * scale, p["bk"], p["bv"]])                # (192,)
    w1 = p["w1"].T * g1                                                        # (D, d_ff)
    return (
        wqkv.astype(jnp.bfloat16), bqkv.reshape(1, -1),
        p["wo"].T.astype(jnp.bfloat16), p["bo"].reshape(1, -1),
        w1.astype(jnp.bfloat16), p["b1"].reshape(1, -1),
        p["w2"].T.astype(jnp.bfloat16), p["b2"].reshape(1, -1),
    )


# ---------------- pure-JAX f32 reference (intended module semantics) ----------------
def reference(x, p):
    rms = jnp.sqrt(jnp.mean(x * x, axis=-1, keepdims=True) + EPS)
    x_norm = (x / rms) * p["g1"]
    q = x_norm @ p["wq"].T + p["bq"]
    k = x_norm @ p["wk"].T + p["bk"]
    v = x_norm @ p["wv"].T + p["bv"]
    B, S, _ = x.shape
    q = q.reshape(B, S, N_HEADS, D_HEAD).transpose(0, 2, 1, 3)
    k = k.reshape(B, S, N_KV, D_HEAD).transpose(0, 2, 1, 3)
    v = v.reshape(B, S, N_KV, D_HEAD).transpose(0, 2, 1, 3)
    k = jnp.repeat(k, GP, axis=1)
    v = jnp.repeat(v, GP, axis=1)
    s = jnp.einsum("bhqd,bhkd->bhqk", q, k) / math.sqrt(D_HEAD)
    att = jax.nn.softmax(s, axis=-1)
    o = jnp.einsum("bhqk,bhkd->bhqd", att, v).transpose(0, 2, 1, 3).reshape(B, S, -1)
    attn_out = o @ p["wo"].T + p["bo"]
    x1 = x + attn_out
    h1 = x_norm @ p["w1"].T + p["b1"]
    h1 = h1 * (h1 * jax.nn.sigmoid(h1))
    return x1 + h1 @ p["w2"].T + p["b2"]


if __name__ == "__main__":
    key = jax.random.PRNGKey(0)
    kx, kp = jax.random.split(key)
    x = jax.random.normal(kx, (BATCH, SEQ, D_MODEL), jnp.float32)
    params = make_params(kp)
    kparams = prepare_kernel_params(params)

    out = llama_layer(x, kparams)
    out = jax.block_until_ready(out)

    ref = reference(x, params)
    assert out.shape == (BATCH, SEQ, D_MODEL)
    max_err = float(jnp.max(jnp.abs(out - ref)))
    # bf16 matmuls + approx reciprocal => compare at bf16-level tolerance
    assert jnp.allclose(out, ref, atol=2e-2, rtol=2e-2), \
        f"mismatch vs pure-JAX reference (max abs err {max_err})"
    print("KERNEL_OK")
</pallas_src>

<mosaic_0001>
module attributes {stable_mosaic.version = 11 : i64} {
  func.func @llama_layer_kernel(%arg0: i32, %arg1: memref<2x128x128xf32, #tpu.memory_space<vmem>>, %arg2: memref<128x192xbf16, #tpu.memory_space<vmem>>, %arg3: memref<1x192xf32, #tpu.memory_space<vmem>>, %arg4: memref<128x128xbf16, #tpu.memory_space<vmem>>, %arg5: memref<1x128xf32, #tpu.memory_space<vmem>>, %arg6: memref<128x256xbf16, #tpu.memory_space<vmem>>, %arg7: memref<1x256xf32, #tpu.memory_space<vmem>>, %arg8: memref<256x128xbf16, #tpu.memory_space<vmem>>, %arg9: memref<1x128xf32, #tpu.memory_space<vmem>>, %arg10: memref<2x128x128xf32, #tpu.memory_space<vmem>>) attributes {dimension_semantics = [#tpu.dimension_semantics<parallel>], iteration_bounds = array<i64: 1>, scalar_prefetch = 0 : i64, scratch_operands = 0 : i64, tpu.core_type = #tpu.core_type<tc>, window_params = [{transform_indices = @transform_0, window_bounds = array<i64: 2, 128, 128>}, {pipeline_mode = #tpu.pipeline_mode<synchronous>, transform_indices = @transform_1, window_bounds = array<i64: 128, 192>}, {pipeline_mode = #tpu.pipeline_mode<synchronous>, transform_indices = @transform_2, window_bounds = array<i64: 1, 192>}, {pipeline_mode = #tpu.pipeline_mode<synchronous>, transform_indices = @transform_3, window_bounds = array<i64: 128, 128>}, {pipeline_mode = #tpu.pipeline_mode<synchronous>, transform_indices = @transform_4, window_bounds = array<i64: 1, 128>}, {pipeline_mode = #tpu.pipeline_mode<synchronous>, transform_indices = @transform_5, window_bounds = array<i64: 128, 256>}, {pipeline_mode = #tpu.pipeline_mode<synchronous>, transform_indices = @transform_6, window_bounds = array<i64: 1, 256>}, {pipeline_mode = #tpu.pipeline_mode<synchronous>, transform_indices = @transform_7, window_bounds = array<i64: 256, 128>}, {pipeline_mode = #tpu.pipeline_mode<synchronous>, transform_indices = @transform_8, window_bounds = array<i64: 1, 128>}, {transform_indices = @transform_9, window_bounds = array<i64: 2, 128, 128>}]} {
    %c0 = arith.constant 0 : index
    %c0_0 = arith.constant 0 : index
    %c0_1 = arith.constant 0 : index
    %0 = vector.load %arg1[%c0, %c0_0, %c0_1] : memref<2x128x128xf32, #tpu.memory_space<vmem>>, vector<2x128x128xf32>
    %1 = vector.shape_cast %0 : vector<2x128x128xf32> to vector<256x128xf32>
    %2 = arith.mulf %1, %1 : vector<256x128xf32>
    %cst = arith.constant dense<0.000000e+00> : vector<256xf32>
    %3 = vector.multi_reduction <add>, %2, %cst [1] : vector<256x128xf32> to vector<256xf32>
    %4 = vector.shape_cast %3 : vector<256xf32> to vector<256x1xf32>
    %cst_2 = arith.constant 1.280000e+02 : f32
    %5 = vector.broadcast %cst_2 : f32 to vector<256x1xf32>
    %6 = arith.divf %4, %5 : vector<256x1xf32>
    %cst_3 = arith.constant 9.99999997E-7 : f32
    %7 = vector.broadcast %cst_3 : f32 to vector<256x1xf32>
    %8 = arith.addf %6, %7 : vector<256x1xf32>
    %9 = math.rsqrt %8 : vector<256x1xf32>
    %10 = vector.broadcast %9 : vector<256x1xf32> to vector<256x128xf32>
    %11 = arith.mulf %1, %10 : vector<256x128xf32>
    %12 = arith.truncf %11 : vector<256x128xf32> to vector<256x128xbf16>
    %c0_4 = arith.constant 0 : index
    %c0_5 = arith.constant 0 : index
    %13 = vector.load %arg2[%c0_4, %c0_5] : memref<128x192xbf16, #tpu.memory_space<vmem>>, vector<128x192xbf16>
    %cst_6 = arith.constant dense<0.000000e+00> : vector<256x192xf32>
    %14 = tpu.matmul %12, %13, %cst_6 {dimension_numbers = #tpu.dot_dimension_numbers<[1], [0], [0], [1], [0, 0, 1, 1], [], []>} : vector<256x128xbf16>, vector<128x192xbf16>, vector<256x192xf32> -> vector<256x192xf32>
    %c0_7 = arith.constant 0 : index
    %c0_8 = arith.constant 0 : index
    %15 = vector.load %arg3[%c0_7, %c0_8] : memref<1x192xf32, #tpu.memory_space<vmem>>, vector<1x192xf32>
    %16 = vector.broadcast %15 : vector<1x192xf32> to vector<256x192xf32>
    %17 = arith.addf %14, %16 : vector<256x192xf32>
    %18 = vector.extract_strided_slice %17 {offsets = [0, 0], sizes = [256, 128], strides = [1, 1]} : vector<256x192xf32> to vector<256x128xf32>
    %19 = vector.extract_strided_slice %17 {offsets = [0, 128], sizes = [256, 32], strides = [1, 1]} : vector<256x192xf32> to vector<256x32xf32>
    %20 = vector.extract_strided_slice %17 {offsets = [0, 160], sizes = [256, 32], strides = [1, 1]} : vector<256x192xf32> to vector<256x32xf32>
    %21 = vector.extract_strided_slice %18 {offsets = [0, 0], sizes = [128, 16], strides = [1, 1]} : vector<256x128xf32> to vector<128x16xf32>
    %22 = vector.extract_strided_slice %18 {offsets = [0, 16], sizes = [128, 16], strides = [1, 1]} : vector<256x128xf32> to vector<128x16xf32>
    %23 = vector.extract_strided_slice %18 {offsets = [0, 32], sizes = [128, 16], strides = [1, 1]} : vector<256x128xf32> to vector<128x16xf32>
    %24 = vector.extract_strided_slice %18 {offsets = [0, 48], sizes = [128, 16], strides = [1, 1]} : vector<256x128xf32> to vector<128x16xf32>
    %25 = tpu.concatenate %21, %22, %23, %24 in 0 : vector<128x16xf32>, vector<128x16xf32>, vector<128x16xf32>, vector<128x16xf32> -> vector<512x16xf32>
    %26 = vector.extract_strided_slice %19 {offsets = [0, 0], sizes = [128, 16], strides = [1, 1]} : vector<256x32xf32> to vector<128x16xf32>
    %27 = vector.extract_strided_slice %20 {offsets = [0, 0], sizes = [128, 16], strides = [1, 1]} : vector<256x32xf32> to vector<128x16xf32>
    %28 = vector.extract_strided_slice %18 {offsets = [0, 64], sizes = [128, 16], strides = [1, 1]} : vector<256x128xf32> to vector<128x16xf32>
    %29 = vector.extract_strided_slice %18 {offsets = [0, 80], sizes = [128, 16], strides = [1, 1]} : vector<256x128xf32> to vector<128x16xf32>
    %30 = vector.extract_strided_slice %18 {offsets = [0, 96], sizes = [128, 16], strides = [1, 1]} : vector<256x128xf32> to vector<128x16xf32>
    %31 = vector.extract_strided_slice %18 {offsets = [0, 112], sizes = [128, 16], strides = [1, 1]} : vector<256x128xf32> to vector<128x16xf32>
    %32 = tpu.concatenate %28, %29, %30, %31 in 0 : vector<128x16xf32>, vector<128x16xf32>, vector<128x16xf32>, vector<128x16xf32> -> vector<512x16xf32>
    %33 = vector.extract_strided_slice %19 {offsets = [0, 16], sizes = [128, 16], strides = [1, 1]} : vector<256x32xf32> to vector<128x16xf32>
    %34 = vector.extract_strided_slice %20 {offsets = [0, 16], sizes = [128, 16], strides = [1, 1]} : vector<256x32xf32> to vector<128x16xf32>
    %35 = vector.extract_strided_slice %18 {offsets = [128, 0], sizes = [128, 16], strides = [1, 1]} : vector<256x128xf32> to vector<128x16xf32>
    %36 = vector.extract_strided_slice %18 {offsets = [128, 16], sizes = [128, 16], strides = [1, 1]} : vector<256x128xf32> to vector<128x16xf32>
    %37 = vector.extract_strided_slice %18 {offsets = [128, 32], sizes = [128, 16], strides = [1, 1]} : vector<256x128xf32> to vector<128x16xf32>
    %38 = vector.extract_strided_slice %18 {offsets = [128, 48], sizes = [128, 16], strides = [1, 1]} : vector<256x128xf32> to vector<128x16xf32>
    %39 = tpu.concatenate %35, %36, %37, %38 in 0 : vector<128x16xf32>, vector<128x16xf32>, vector<128x16xf32>, vector<128x16xf32> -> vector<512x16xf32>
    %40 = vector.extract_strided_slice %19 {offsets = [128, 0], sizes = [128, 16], strides = [1, 1]} : vector<256x32xf32> to vector<128x16xf32>
    %41 = vector.extract_strided_slice %20 {offsets = [128, 0], sizes = [128, 16], strides = [1, 1]} : vector<256x32xf32> to vector<128x16xf32>
    %42 = vector.extract_strided_slice %18 {offsets = [128, 64], sizes = [128, 16], strides = [1, 1]} : vector<256x128xf32> to vector<128x16xf32>
    %43 = vector.extract_strided_slice %18 {offsets = [128, 80], sizes = [128, 16], strides = [1, 1]} : vector<256x128xf32> to vector<128x16xf32>
    %44 = vector.extract_strided_slice %18 {offsets = [128, 96], sizes = [128, 16], strides = [1, 1]} : vector<256x128xf32> to vector<128x16xf32>
    %45 = vector.extract_strided_slice %18 {offsets = [128, 112], sizes = [128, 16], strides = [1, 1]} : vector<256x128xf32> to vector<128x16xf32>
    %46 = tpu.concatenate %42, %43, %44, %45 in 0 : vector<128x16xf32>, vector<128x16xf32>, vector<128x16xf32>, vector<128x16xf32> -> vector<512x16xf32>
    %47 = vector.extract_strided_slice %19 {offsets = [128, 16], sizes = [128, 16], strides = [1, 1]} : vector<256x32xf32> to vector<128x16xf32>
    %48 = vector.extract_strided_slice %20 {offsets = [128, 16], sizes = [128, 16], strides = [1, 1]} : vector<256x32xf32> to vector<128x16xf32>
    %49 = vector.shape_cast %25 : vector<512x16xf32> to vector<1x512x16xf32>
    %50 = vector.shape_cast %32 : vector<512x16xf32> to vector<1x512x16xf32>
    %51 = vector.shape_cast %39 : vector<512x16xf32> to vector<1x512x16xf32>
    %52 = vector.shape_cast %46 : vector<512x16xf32> to vector<1x512x16xf32>
    %53 = tpu.concatenate %49, %50, %51, %52 in 0 : vector<1x512x16xf32>, vector<1x512x16xf32>, vector<1x512x16xf32>, vector<1x512x16xf32> -> vector<4x512x16xf32>
    %54 = arith.truncf %53 : vector<4x512x16xf32> to vector<4x512x16xbf16>
    %55 = vector.shape_cast %26 : vector<128x16xf32> to vector<1x128x16xf32>
    %56 = vector.shape_cast %33 : vector<128x16xf32> to vector<1x128x16xf32>
    %57 = vector.shape_cast %40 : vector<128x16xf32> to vector<1x128x16xf32>
    %58 = vector.shape_cast %47 : vector<128x16xf32> to vector<1x128x16xf32>
    %59 = tpu.concatenate %55, %56, %57, %58 in 0 : vector<1x128x16xf32>, vector<1x128x16xf32>, vector<1x128x16xf32>, vector<1x128x16xf32> -> vector<4x128x16xf32>
    %60 = arith.truncf %59 : vector<4x128x16xf32> to vector<4x128x16xbf16>
    %61 = vector.shape_cast %27 : vector<128x16xf32> to vector<1x128x16xf32>
    %62 = vector.shape_cast %34 : vector<128x16xf32> to vector<1x128x16xf32>
    %63 = vector.shape_cast %41 : vector<128x16xf32> to vector<1x128x16xf32>
    %64 = vector.shape_cast %48 : vector<128x16xf32> to vector<1x128x16xf32>
    %65 = tpu.concatenate %61, %62, %63, %64 in 0 : vector<1x128x16xf32>, vector<1x128x16xf32>, vector<1x128x16xf32>, vector<1x128x16xf32> -> vector<4x128x16xf32>
    %66 = arith.truncf %65 : vector<4x128x16xf32> to vector<4x128x16xbf16>
    %cst_9 = arith.constant dense<0.000000e+00> : vector<4x512x128xf32>
    %67 = tpu.matmul %54, %60, %cst_9 {dimension_numbers = #tpu.dot_dimension_numbers<[2], [2], [1], [1], [0, 0, 0, 1, 1, 1], [0], [0]>} : vector<4x512x16xbf16>, vector<4x128x16xbf16>, vector<4x512x128xf32> -> vector<4x512x128xf32>
    %cst_10 = arith.constant dense<0xFF800000> : vector<4x512xf32>
    %68 = vector.multi_reduction <maximumf>, %67, %cst_10 [2] : vector<4x512x128xf32> to vector<4x512xf32>
    %69 = vector.shape_cast %68 : vector<4x512xf32> to vector<4x512x1xf32>
    %70 = vector.broadcast %69 : vector<4x512x1xf32> to vector<4x512x128xf32>
    %71 = arith.subf %67, %70 : vector<4x512x128xf32>
    %72 = math.exp %71 : vector<4x512x128xf32>
    %cst_11 = arith.constant dense<0.000000e+00> : vector<4x512xf32>
    %73 = vector.multi_reduction <add>, %72, %cst_11 [2] : vector<4x512x128xf32> to vector<4x512xf32>
    %74 = vector.shape_cast %73 : vector<4x512xf32> to vector<4x512x1xf32>
    %75 = tpu.reciprocal %74 {approx = true} : vector<4x512x1xf32> -> vector<4x512x1xf32>
    %76 = vector.broadcast %75 : vector<4x512x1xf32> to vector<4x512x128xf32>
    %77 = arith.mulf %72, %76 : vector<4x512x128xf32>
    %78 = arith.truncf %77 : vector<4x512x128xf32> to vector<4x512x128xbf16>
    %cst_12 = arith.constant dense<0.000000e+00> : vector<4x512x16xf32>
    %79 = tpu.matmul %78, %66, %cst_12 {dimension_numbers = #tpu.dot_dimension_numbers<[2], [1], [1], [2], [0, 0, 0, 1, 1, 2], [0], [0]>} : vector<4x512x128xbf16>, vector<4x128x16xbf16>, vector<4x512x16xf32> -> vector<4x512x16xf32>
    %80 = vector.extract_strided_slice %79 {offsets = [0, 0, 0], sizes = [1, 128, 16], strides = [1, 1, 1]} : vector<4x512x16xf32> to vector<1x128x16xf32>
    %81 = vector.shape_cast %80 : vector<1x128x16xf32> to vector<128x16xf32>
    %82 = vector.extract_strided_slice %79 {offsets = [0, 128, 0], sizes = [1, 128, 16], strides = [1, 1, 1]} : vector<4x512x16xf32> to vector<1x128x16xf32>
    %83 = vector.shape_cast %82 : vector<1x128x16xf32> to vector<128x16xf32>
    %84 = vector.extract_strided_slice %79 {offsets = [0, 256, 0], sizes = [1, 128, 16], strides = [1, 1, 1]} : vector<4x512x16xf32> to vector<1x128x16xf32>
    %85 = vector.shape_cast %84 : vector<1x128x16xf32> to vector<128x16xf32>
    %86 = vector.extract_strided_slice %79 {offsets = [0, 384, 0], sizes = [1, 128, 16], strides = [1, 1, 1]} : vector<4x512x16xf32> to vector<1x128x16xf32>
    %87 = vector.shape_cast %86 : vector<1x128x16xf32> to vector<128x16xf32>
    %88 = vector.extract_strided_slice %79 {offsets = [1, 0, 0], sizes = [1, 128, 16], strides = [1, 1, 1]} : vector<4x512x16xf32> to vector<1x128x16xf32>
    %89 = vector.shape_cast %88 : vector<1x128x16xf32> to vector<128x16xf32>
    %90 = vector.extract_strided_slice %79 {offsets = [1, 128, 0], sizes = [1, 128, 16], strides = [1, 1, 1]} : vector<4x512x16xf32> to vector<1x128x16xf32>
    %91 = vector.shape_cast %90 : vector<1x128x16xf32> to vector<128x16xf32>
    %92 = vector.extract_strided_slice %79 {offsets = [1, 256, 0], sizes = [1, 128, 16], strides = [1, 1, 1]} : vector<4x512x16xf32> to vector<1x128x16xf32>
    %93 = vector.shape_cast %92 : vector<1x128x16xf32> to vector<128x16xf32>
    %94 = vector.extract_strided_slice %79 {offsets = [1, 384, 0], sizes = [1, 128, 16], strides = [1, 1, 1]} : vector<4x512x16xf32> to vector<1x128x16xf32>
    %95 = vector.shape_cast %94 : vector<1x128x16xf32> to vector<128x16xf32>
    %96 = tpu.concatenate %81, %83, %85, %87, %89, %91, %93, %95 in 1 : vector<128x16xf32>, vector<128x16xf32>, vector<128x16xf32>, vector<128x16xf32>, vector<128x16xf32>, vector<128x16xf32>, vector<128x16xf32>, vector<128x16xf32> -> vector<128x128xf32>
    %97 = vector.extract_strided_slice %79 {offsets = [2, 0, 0], sizes = [1, 128, 16], strides = [1, 1, 1]} : vector<4x512x16xf32> to vector<1x128x16xf32>
    %98 = vector.shape_cast %97 : vector<1x128x16xf32> to vector<128x16xf32>
    %99 = vector.extract_strided_slice %79 {offsets = [2, 128, 0], sizes = [1, 128, 16], strides = [1, 1, 1]} : vector<4x512x16xf32> to vector<1x128x16xf32>
    %100 = vector.shape_cast %99 : vector<1x128x16xf32> to vector<128x16xf32>
    %101 = vector.extract_strided_slice %79 {offsets = [2, 256, 0], sizes = [1, 128, 16], strides = [1, 1, 1]} : vector<4x512x16xf32> to vector<1x128x16xf32>
    %102 = vector.shape_cast %101 : vector<1x128x16xf32> to vector<128x16xf32>
    %103 = vector.extract_strided_slice %79 {offsets = [2, 384, 0], sizes = [1, 128, 16], strides = [1, 1, 1]} : vector<4x512x16xf32> to vector<1x128x16xf32>
    %104 = vector.shape_cast %103 : vector<1x128x16xf32> to vector<128x16xf32>
    %105 = vector.extract_strided_slice %79 {offsets = [3, 0, 0], sizes = [1, 128, 16], strides = [1, 1, 1]} : vector<4x512x16xf32> to vector<1x128x16xf32>
    %106 = vector.shape_cast %105 : vector<1x128x16xf32> to vector<128x16xf32>
    %107 = vector.extract_strided_slice %79 {offsets = [3, 128, 0], sizes = [1, 128, 16], strides = [1, 1, 1]} : vector<4x512x16xf32> to vector<1x128x16xf32>
    %108 = vector.shape_cast %107 : vector<1x128x16xf32> to vector<128x16xf32>
    %109 = vector.extract_strided_slice %79 {offsets = [3, 256, 0], sizes = [1, 128, 16], strides = [1, 1, 1]} : vector<4x512x16xf32> to vector<1x128x16xf32>
    %110 = vector.shape_cast %109 : vector<1x128x16xf32> to vector<128x16xf32>
    %111 = vector.extract_strided_slice %79 {offsets = [3, 384, 0], sizes = [1, 128, 16], strides = [1, 1, 1]} : vector<4x512x16xf32> to vector<1x128x16xf32>
    %112 = vector.shape_cast %111 : vector<1x128x16xf32> to vector<128x16xf32>
    %113 = tpu.concatenate %98, %100, %102, %104, %106, %108, %110, %112 in 1 : vector<128x16xf32>, vector<128x16xf32>, vector<128x16xf32>, vector<128x16xf32>, vector<128x16xf32>, vector<128x16xf32>, vector<128x16xf32>, vector<128x16xf32> -> vector<128x128xf32>
    %114 = tpu.concatenate %96, %113 in 0 : vector<128x128xf32>, vector<128x128xf32> -> vector<256x128xf32>
    %115 = arith.truncf %114 : vector<256x128xf32> to vector<256x128xbf16>
    %c0_13 = arith.constant 0 : index
    %c0_14 = arith.constant 0 : index
    %116 = vector.load %arg4[%c0_13, %c0_14] : memref<128x128xbf16, #tpu.memory_space<vmem>>, vector<128x128xbf16>
    %cst_15 = arith.constant dense<0.000000e+00> : vector<256x128xf32>
    %117 = tpu.matmul %115, %116, %cst_15 {dimension_numbers = #tpu.dot_dimension_numbers<[1], [0], [0], [1], [0, 0, 1, 1], [], []>} : vector<256x128xbf16>, vector<128x128xbf16>, vector<256x128xf32> -> vector<256x128xf32>
    %c0_16 = arith.constant 0 : index
    %c0_17 = arith.constant 0 : index
    %118 = vector.load %arg5[%c0_16, %c0_17] : memref<1x128xf32, #tpu.memory_space<vmem>>, vector<1x128xf32>
    %119 = vector.broadcast %118 : vector<1x128xf32> to vector<256x128xf32>
    %120 = arith.addf %117, %119 : vector<256x128xf32>
    %121 = arith.addf %1, %120 : vector<256x128xf32>
    %c0_18 = arith.constant 0 : index
    %c0_19 = arith.constant 0 : index
    %122 = vector.load %arg6[%c0_18, %c0_19] : memref<128x256xbf16, #tpu.memory_space<vmem>>, vector<128x256xbf16>
    %cst_20 = arith.constant dense<0.000000e+00> : vector<256x256xf32>
    %123 = tpu.matmul %12, %122, %cst_20 {dimension_numbers = #tpu.dot_dimension_numbers<[1], [0], [0], [1], [0, 0, 1, 1], [], []>} : vector<256x128xbf16>, vector<128x256xbf16>, vector<256x256xf32> -> vector<256x256xf32>
    %c0_21 = arith.constant 0 : index
    %c0_22 = arith.constant 0 : index
    %124 = vector.load %arg7[%c0_21, %c0_22] : memref<1x256xf32, #tpu.memory_space<vmem>>, vector<1x256xf32>
    %125 = vector.broadcast %124 : vector<1x256xf32> to vector<256x256xf32>
    %126 = arith.addf %123, %125 : vector<256x256xf32>
    %127 = arith.negf %126 : vector<256x256xf32>
    %128 = math.exp %127 : vector<256x256xf32>
    %cst_23 = arith.constant 1.000000e+00 : f32
    %129 = vector.broadcast %cst_23 : f32 to vector<256x256xf32>
    %130 = arith.addf %129, %128 : vector<256x256xf32>
    %131 = arith.divf %129, %130 : vector<256x256xf32>
    %132 = arith.mulf %126, %131 : vector<256x256xf32>
    %133 = arith.mulf %126, %132 : vector<256x256xf32>
    %134 = arith.truncf %133 : vector<256x256xf32> to vector<256x256xbf16>
    %c0_24 = arith.constant 0 : index
    %c0_25 = arith.constant 0 : index
    %135 = vector.load %arg8[%c0_24, %c0_25] : memref<256x128xbf16, #tpu.memory_space<vmem>>, vector<256x128xbf16>
    %cst_26 = arith.constant dense<0.000000e+00> : vector<256x128xf32>
    %136 = tpu.matmul %134, %135, %cst_26 {dimension_numbers = #tpu.dot_dimension_numbers<[1], [0], [0], [1], [0, 0, 1, 1], [], []>} : vector<256x256xbf16>, vector<256x128xbf16>, vector<256x128xf32> -> vector<256x128xf32>
    %c0_27 = arith.constant 0 : index
    %c0_28 = arith.constant 0 : index
    %137 = vector.load %arg9[%c0_27, %c0_28] : memref<1x128xf32, #tpu.memory_space<vmem>>, vector<1x128xf32>
    %138 = vector.broadcast %137 : vector<1x128xf32> to vector<256x128xf32>
    %139 = arith.addf %136, %138 : vector<256x128xf32>
    %140 = arith.addf %121, %139 : vector<256x128xf32>
    %141 = vector.shape_cast %140 : vector<256x128xf32> to vector<2x128x128xf32>
    %c0_29 = arith.constant 0 : index
    %c0_30 = arith.constant 0 : index
    %c0_31 = arith.constant 0 : index
    %142 = vector.load %arg10[%c0_29, %c0_30, %c0_31] : memref<2x128x128xf32, #tpu.memory_space<vmem>>, vector<2x128x128xf32>
    tpu.vector_store %arg10[%c0_29, %c0_30, %c0_31], %141 {strides = array<i32>} : memref<2x128x128xf32, #tpu.memory_space<vmem>>, vector<2x128x128xf32>,
    return
  }
  func.func @transform_0(%arg0: i32) -> (i32, i32, i32) {
    %c0_i32 = arith.constant 0 : i32
    %c0_i32_0 = arith.constant 0 : i32
    %c0_i32_1 = arith.constant 0 : i32
    return %arg0, %c0_i32, %c0_i32_0 : i32, i32, i32
  }
  func.func @transform_1(%arg0: i32) -> (i32, i32) {
    %c0_i32 = arith.constant 0 : i32
    %c0_i32_0 = arith.constant 0 : i32
    %c0_i32_1 = arith.constant 0 : i32
    return %c0_i32, %c0_i32_0 : i32, i32
  }
  func.func @transform_2(%arg0: i32) -> (i32, i32) {
    %c0_i32 = arith.constant 0 : i32
    %c0_i32_0 = arith.constant 0 : i32
    %c0_i32_1 = arith.constant 0 : i32
    return %c0_i32, %c0_i32_0 : i32, i32
  }
  func.func @transform_3(%arg0: i32) -> (i32, i32) {
    %c0_i32 = arith.constant 0 : i32
    %c0_i32_0 = arith.constant 0 : i32
    %c0_i32_1 = arith.constant 0 : i32
    return %c0_i32, %c0_i32_0 : i32, i32
  }
  func.func @transform_4(%arg0: i32) -> (i32, i32) {
    %c0_i32 = arith.constant 0 : i32
    %c0_i32_0 = arith.constant 0 : i32
    %c0_i32_1 = arith.constant 0 : i32
    return %c0_i32, %c0_i32_0 : i32, i32
  }
  func.func @transform_5(%arg0: i32) -> (i32, i32) {
    %c0_i32 = arith.constant 0 : i32
    %c0_i32_0 = arith.constant 0 : i32
    %c0_i32_1 = arith.constant 0 : i32
    return %c0_i32, %c0_i32_0 : i32, i32
  }
  func.func @transform_6(%arg0: i32) -> (i32, i32) {
    %c0_i32 = arith.constant 0 : i32
    %c0_i32_0 = arith.constant 0 : i32
    %c0_i32_1 = arith.constant 0 : i32
    return %c0_i32, %c0_i32_0 : i32, i32
  }
  func.func @transform_7(%arg0: i32) -> (i32, i32) {
    %c0_i32 = arith.constant 0 : i32
    %c0_i32_0 = arith.constant 0 : i32
    %c0_i32_1 = arith.constant 0 : i32
    return %c0_i32, %c0_i32_0 : i32, i32
  }
  func.func @transform_8(%arg0: i32) -> (i32, i32) {
    %c0_i32 = arith.constant 0 : i32
    %c0_i32_0 = arith.constant 0 : i32
    %c0_i32_1 = arith.constant 0 : i32
    return %c0_i32, %c0_i32_0 : i32, i32
  }
  func.func @transform_9(%arg0: i32) -> (i32, i32, i32) {
    %c0_i32 = arith.constant 0 : i32
    %c0_i32_0 = arith.constant 0 : i32
    %c0_i32_1 = arith.constant 0 : i32
    return %arg0, %c0_i32, %c0_i32_0 : i32, i32, i32
  }
}

</mosaic_0001>

<llo_original>
// kernel: tpu_custom_call.1
$region0: #{tpu_custom_call.1}
  #allocation0 [shape = 'u32[]', space=smem, size = 0x4, offset = 0x4, fixed_abs, tag = 'smem constant byte address 0x4 - core index']
  #allocation1 [shape = 'u32[144,128]{1,0:T(1,128)}', space=vmem, size = 0x12000, scoped, tag = 'internal scratch']
  %s0 = inlined_call_operand.hbm [shape: f32[2,128,128], index: 0, kind: input, shape index: {}]
  %s1 = inlined_call_operand.vmem [shape: bf16[128,192], index: 1, kind: input, shape index: {}]
  %s2 = inlined_call_operand.vmem [shape: f32[1,192], index: 2, kind: input, shape index: {}]
  %s3 = inlined_call_operand.vmem [shape: bf16[128,128], index: 3, kind: input, shape index: {}]
  %s4 = inlined_call_operand.vmem [shape: f32[1,128], index: 4, kind: input, shape index: {}]
  %s5 = inlined_call_operand.vmem [shape: bf16[128,256], index: 5, kind: input, shape index: {}]
  %s6 = inlined_call_operand.vmem [shape: f32[1,256], index: 6, kind: input, shape index: {}]
  %s7 = inlined_call_operand.hbm [shape: bf16[256,128], index: 7, kind: input, shape index: {}]
  %s8 = inlined_call_operand.vmem [shape: f32[1,128], index: 8, kind: input, shape index: {}]
  %s9 = inlined_call_operand.hbm [shape: f32[2,128,128], index: 9, kind: output, shape index: {}]
  %s10 = sld [smem:[#allocation0]]
  $region54: #{tpu_custom_call.1} parent=0
    _
  %s12 = ssub.s32 1, %s10
  %s13 = scalar_select 0, %s12, %s10
  $region1: #{tpu_custom_call.1} parent=0
    #allocation2 [shape = 'u8[131072]{0}', space=vmem, size = 0x20000, scoped, tag = 'input window, operand 0, single buffered']
    #allocation3 [shape = 's32[1]{0}', space=sflag, size = 0x4, scoped, tag = 'scoped memory for tpu_custom_call.1']
    #allocation4 [shape = 's32[1]{0}', space=sflag, size = 0x4, scoped, tag = 'scoped memory for tpu_custom_call.1']
    #allocation5 [shape = 'u8[65536]{0}', space=vmem, size = 0x10000, scoped, tag = 'input window, operand 7, single buffered']
    #allocation6 [shape = 's32[1]{0}', space=sflag, size = 0x4, scoped, tag = 'scoped memory for tpu_custom_call.1']
    #allocation7 [shape = 'u8[131072]{0}', space=vmem, size = 0x20000, scoped, tag = 'output window, operand 0, single buffered']
    %14 = vsyncpa [#allocation3], 0
    %15 = vsyncpa [#allocation6], 0
    %16 = vsyncpa [#allocation4], 0
    // Predicated region
    $region2: #{tpu_custom_call.1} parent=1 // pred_check
      _
    $region3: #{tpu_custom_call.1} parent=1 // pred_check_branch
      %18 = sbr.rel (0) target = $region5
    $region4: #{tpu_custom_call.1} parent=1 // pred_region
      %s20 = ssub.s32 4096, 4096
      %21 = vsyncadd [#allocation3], %s20
      %s22 = sshll.u32 [#allocation2], 4
      %s23 = int_to_ptr.vmem [resolvable:$true] %s22
      %28 = dma.hbm_to_vmem [thread:$0]  %s0, 4096, %s23, [#allocation3], 128, 128, 8
    $region5: #{tpu_custom_call.1} parent=1 // pred_fallthru
      _
    // Predicated region
    $region6: #{tpu_custom_call.1} parent=1 // pred_check
      _
    $region7: #{tpu_custom_call.1} parent=1 // pred_check_branch
      %30 = sbr.rel (0) target = $region9
    $region8: #{tpu_custom_call.1} parent=1 // pred_region
      _
    $region9: #{tpu_custom_call.1} parent=1 // pred_fallthru
      _
    // Predicated region
    $region10: #{tpu_custom_call.1} parent=1 // pred_check
      _
    $region11: #{tpu_custom_call.1} parent=1 // pred_check_branch
      %32 = sbr.rel (0) target = $region13
    $region12: #{tpu_custom_call.1} parent=1 // pred_region
      _
    $region13: #{tpu_custom_call.1} parent=1 // pred_fallthru
      _
    // Predicated region
    $region14: #{tpu_custom_call.1} parent=1 // pred_check
      _
    $region15: #{tpu_custom_call.1} parent=1 // pred_check_branch
      %34 = sbr.rel (0) target = $region17
    $region16: #{tpu_custom_call.1} parent=1 // pred_region
      _
    $region17: #{tpu_custom_call.1} parent=1 // pred_fallthru
      _
    // Predicated region
    $region18: #{tpu_custom_call.1} parent=1 // pred_check
      _
    $region19: #{tpu_custom_call.1} parent=1 // pred_check_branch
      %36 = sbr.rel (0) target = $region21
    $region20: #{tpu_custom_call.1} parent=1 // pred_region
      _
    $region21: #{tpu_custom_call.1} parent=1 // pred_fallthru
      _
    // Predicated region
    $region22: #{tpu_custom_call.1} parent=1 // pred_check
      _
    $region23: #{tpu_custom_call.1} parent=1 // pred_check_branch
      %38 = sbr.rel (0) target = $region25
    $region24: #{tpu_custom_call.1} parent=1 // pred_region
      _
    $region25: #{tpu_custom_call.1} parent=1 // pred_fallthru
      _
    // Predicated region
    $region26: #{tpu_custom_call.1} parent=1 // pred_check
      _
    $region27: #{tpu_custom_call.1} parent=1 // pred_check_branch
      %40 = sbr.rel (0) target = $region29
    $region28: #{tpu_custom_call.1} parent=1 // pred_region
      _
    $region29: #{tpu_custom_call.1} parent=1 // pred_fallthru
      _
    // Predicated region
    $region30: #{tpu_custom_call.1} parent=1 // pred_check
      _
    $region31: #{tpu_custom_call.1} parent=1 // pred_check_branch
      %42 = sbr.rel (0) target = $region33
    $region32: #{tpu_custom_call.1} parent=1 // pred_region
      %s44 = ssub.s32 2048, 2048
      %45 = vsyncadd [#allocation6], %s44
      %s46 = sshll.u32 [#allocation5], 4
      %s47 = int_to_ptr.vmem [resolvable:$true] %s46
      %52 = dma.hbm_to_vmem [thread:$0]  %s7, 2048, %s47, [#allocation6], 64, 64, 4
    $region33: #{tpu_custom_call.1} parent=1 // pred_fallthru
      _
    // Predicated region
    $region34: #{tpu_custom_call.1} parent=1 // pred_check
      _
    $region35: #{tpu_custom_call.1} parent=1 // pred_check_branch
      %54 = sbr.rel (0) target = $region37
    $region36: #{tpu_custom_call.1} parent=1 // pred_region
      _
    $region37: #{tpu_custom_call.1} parent=1 // pred_fallthru
      _
    // Predicated region
    $region38: #{tpu_custom_call.1} parent=1 // pred_check
      _
    $region39: #{tpu_custom_call.1} parent=1 // pred_check_branch
      %56 = sbr.rel (0) target = $region41
    $region40: #{tpu_custom_call.1} parent=1 // pred_region
      %57 = dma.done [#allocation3], 4096
    $region41: #{tpu_custom_call.1} parent=1 // pred_fallthru
      _
    // Predicated region
    $region42: #{tpu_custom_call.1} parent=1 // pred_check
      _
    $region43: #{tpu_custom_call.1} parent=1 // pred_check_branch
      %59 = sbr.rel (0) target = $region45
    $region44: #{tpu_custom_call.1} parent=1 // pred_region
      %60 = dma.done [#allocation6], 2048
    $region45: #{tpu_custom_call.1} parent=1 // pred_fallthru
      _
    %v62 = vld [vmem:[#allocation2] sm:$0xff]
    %v63 = vld [vmem:[#allocation2 + $0x8] sm:$0xff]
    %v64 = vld [vmem:[#allocation2 + $0x10] sm:$0xff]
    %v65 = vld [vmem:[#allocation2 + $0x18] sm:$0xff]
    %v66 = vld [vmem:[#allocation2 + $0x20] sm:$0xff]
    %v67 = vld [vmem:[#allocation2 + $0x28] sm:$0xff]
    %v68 = vld [vmem:[#allocation2 + $0x30] sm:$0xff]
    %v69 = vld [vmem:[#allocation2 + $0x38] sm:$0xff]
    %v70 = vld [vmem:[#allocation2 + $0x40] sm:$0xff]
    %v71 = vld [vmem:[#allocation2 + $0x48] sm:$0xff]
    %v72 = vld [vmem:[#allocation2 + $0x50] sm:$0xff]
    %v73 = vld [vmem:[#allocation2 + $0x58] sm:$0xff]
    %v74 = vld [vmem:[#allocation2 + $0x60] sm:$0xff]
    %v75 = vld [vmem:[#allocation2 + $0x68] sm:$0xff]
    %v76 = vld [vmem:[#allocation2 + $0x70] sm:$0xff]
    %v77 = vld [vmem:[#allocation2 + $0x78] sm:$0xff]
    %v78 = vld [vmem:[#allocation2 + $0x80] sm:$0xff]
    %v79 = vld [vmem:[#allocation2 + $0x88] sm:$0xff]
    %v80 = vld [vmem:[#allocation2 + $0x90] sm:$0xff]
    %v81 = vld [vmem:[#allocation2 + $0x98] sm:$0xff]
    %v82 = vld [vmem:[#allocation2 + $0xa0] sm:$0xff]
    %v83 = vld [vmem:[#allocation2 + $0xa8] sm:$0xff]
    %v84 = vld [vmem:[#allocation2 + $0xb0] sm:$0xff]
    %v85 = vld [vmem:[#allocation2 + $0xb8] sm:$0xff]
    %v86 = vld [vmem:[#allocation2 + $0xc0] sm:$0xff]
    %v87 = vld [vmem:[#allocation2 + $0xc8] sm:$0xff]
    %v88 = vld [vmem:[#allocation2 + $0xd0] sm:$0xff]
    %v89 = vld [vmem:[#allocation2 + $0xd8] sm:$0xff]
    %v90 = vld [vmem:[#allocation2 + $0xe0] sm:$0xff]
    %v91 = vld [vmem:[#allocation2 + $0xe8] sm:$0xff]
    %v92 = vld [vmem:[#allocation2 + $0xf0] sm:$0xff]
    %v93 = vld [vmem:[#allocation2 + $0xf8] sm:$0xff]
    %v94 = vmul.f32 %v62, %v62
    %v95 = vmul.f32 %v63, %v63
    %v96 = vmul.f32 %v64, %v64
    %v97 = vmul.f32 %v65, %v65
    %v98 = vmul.f32 %v66, %v66
    %v99 = vmul.f32 %v67, %v67
    %v100 = vmul.f32 %v68, %v68
    %v101 = vmul.f32 %v69, %v69
    %v102 = vmul.f32 %v70, %v70
    %v103 = vmul.f32 %v71, %v71
    %v104 = vmul.f32 %v72, %v72
    %v105 = vmul.f32 %v73, %v73
    %v106 = vmul.f32 %v74, %v74
    %v107 = vmul.f32 %v75, %v75
    %v108 = vmul.f32 %v76, %v76
    %v109 = vmul.f32 %v77, %v77
    %v110 = vmul.f32 %v78, %v78
    %v111 = vmul.f32 %v79, %v79
    %v112 = vmul.f32 %v80, %v80
    %v113 = vmul.f32 %v81, %v81
    %v114 = vmul.f32 %v82, %v82
    %v115 = vmul.f32 %v83, %v83
    %v116 = vmul.f32 %v84, %v84
    %v117 = vmul.f32 %v85, %v85
    %v118 = vmul.f32 %v86, %v86
    %v119 = vmul.f32 %v87, %v87
    %v120 = vmul.f32 %v88, %v88
    %v121 = vmul.f32 %v89, %v89
    %v122 = vmul.f32 %v90, %v90
    %v123 = vmul.f32 %v91, %v91
    %v124 = vmul.f32 %v92, %v92
    %v125 = vmul.f32 %v93, %v93
    %126 = vadd.xlane.f32.xlu0 %v94
    %v127 = vpop.xlane.xlu0 %126
    %128 = vadd.xlane.f32.xlu0 %v95
    %v129 = vpop.xlane.xlu0 %128
    %130 = vadd.xlane.f32.xlu0 %v96
    %v131 = vpop.xlane.xlu0 %130
    %132 = vadd.xlane.f32.xlu0 %v97
    %v133 = vpop.xlane.xlu0 %132
    %134 = vadd.xlane.f32.xlu0 %v98
    %v135 = vpop.xlane.xlu0 %134
    %136 = vadd.xlane.f32.xlu0 %v99
    %v137 = vpop.xlane.xlu0 %136
    %138 = vadd.xlane.f32.xlu0 %v100
    %v139 = vpop.xlane.xlu0 %138
    %140 = vadd.xlane.f32.xlu0 %v101
    %v141 = vpop.xlane.xlu0 %140
    %142 = vadd.xlane.f32.xlu0 %v102
    %v143 = vpop.xlane.xlu0 %142
    %144 = vadd.xlane.f32.xlu0 %v103
    %v145 = vpop.xlane.xlu0 %144
    %146 = vadd.xlane.f32.xlu0 %v104
    %v147 = vpop.xlane.xlu0 %146
    %148 = vadd.xlane.f32.xlu0 %v105
    %v149 = vpop.xlane.xlu0 %148
    %150 = vadd.xlane.f32.xlu0 %v106
    %v151 = vpop.xlane.xlu0 %150
    %152 = vadd.xlane.f32.xlu0 %v107
    %v153 = vpop.xlane.xlu0 %152
    %154 = vadd.xlane.f32.xlu0 %v108
    %v155 = vpop.xlane.xlu0 %154
    %156 = vadd.xlane.f32.xlu0 %v109
    %v157 = vpop.xlane.xlu0 %156
    %158 = vadd.xlane.f32.xlu0 %v110
    %v159 = vpop.xlane.xlu0 %158
    %160 = vadd.xlane.f32.xlu0 %v111
    %v161 = vpop.xlane.xlu0 %160
    %162 = vadd.xlane.f32.xlu0 %v112
    %v163 = vpop.xlane.xlu0 %162
    %164 = vadd.xlane.f32.xlu0 %v113
    %v165 = vpop.xlane.xlu0 %164
    %166 = vadd.xlane.f32.xlu0 %v114
    %v167 = vpop.xlane.xlu0 %166
    %168 = vadd.xlane.f32.xlu0 %v115
    %v169 = vpop.xlane.xlu0 %168
    %170 = vadd.xlane.f32.xlu0 %v116
    %v171 = vpop.xlane.xlu0 %170
    %172 = vadd.xlane.f32.xlu0 %v117
    %v173 = vpop.xlane.xlu0 %172
    %174 = vadd.xlane.f32.xlu0 %v118
    %v175 = vpop.xlane.xlu0 %174
    %176 = vadd.xlane.f32.xlu0 %v119
    %v177 = vpop.xlane.xlu0 %176
    %178 = vadd.xlane.f32.xlu0 %v120
    %v179 = vpop.xlane.xlu0 %178
    %180 = vadd.xlane.f32.xlu0 %v121
    %v181 = vpop.xlane.xlu0 %180
    %182 = vadd.xlane.f32.xlu0 %v122
    %v183 = vpop.xlane.xlu0 %182
    %184 = vadd.xlane.f32.xlu0 %v123
    %v185 = vpop.xlane.xlu0 %184
    %186 = vadd.xlane.f32.xlu0 %v124
    %v187 = vpop.xlane.xlu0 %186
    %188 = vadd.xlane.f32.xlu0 %v125
    %v189 = vpop.xlane.xlu0 %188
    %v190 = vrcp.pop 128.0
    %v191 = vmul.f32 %v127, %v190
    %v192 = vmul.f32 %v129, %v190
    %v193 = vmul.f32 %v131, %v190
    %v194 = vmul.f32 %v133, %v190
    %v195 = vmul.f32 %v135, %v190
    %v196 = vmul.f32 %v137, %v190
    %v197 = vmul.f32 %v139, %v190
    %v198 = vmul.f32 %v141, %v190
    %v199 = vmul.f32 %v143, %v190
    %v200 = vmul.f32 %v145, %v190
    %v201 = vmul.f32 %v147, %v190
    %v202 = vmul.f32 %v149, %v190
    %v203 = vmul.f32 %v151, %v190
    %v204 = vmul.f32 %v153, %v190
    %v205 = vmul.f32 %v155, %v190
    %v206 = vmul.f32 %v157, %v190
    %v207 = vmul.f32 %v159, %v190
    %v208 = vmul.f32 %v161, %v190
    %v209 = vmul.f32 %v163, %v190
    %v210 = vmul.f32 %v165, %v190
    %v211 = vmul.f32 %v167, %v190
    %v212 = vmul.f32 %v169, %v190
    %v213 = vmul.f32 %v171, %v190
    %v214 = vmul.f32 %v173, %v190
    %v215 = vmul.f32 %v175, %v190
    %v216 = vmul.f32 %v177, %v190
    %v217 = vmul.f32 %v179, %v190
    %v218 = vmul.f32 %v181, %v190
    %v219 = vmul.f32 %v183, %v190
    %v220 = vmul.f32 %v185, %v190
    %v221 = vmul.f32 %v187, %v190
    %v222 = vmul.f32 %v189, %v190
    %v223 = vadd.f32 %v191, 1e-06
    %v224 = vadd.f32 %v192, 1e-06
    %v225 = vadd.f32 %v193, 1e-06
    %v226 = vadd.f32 %v194, 1e-06
    %v227 = vadd.f32 %v195, 1e-06
    %v228 = vadd.f32 %v196, 1e-06
    %v229 = vadd.f32 %v197, 1e-06
    %v230 = vadd.f32 %v198, 1e-06
    %v231 = vadd.f32 %v199, 1e-06
    %v232 = vadd.f32 %v200, 1e-06
    %v233 = vadd.f32 %v201, 1e-06
    %v234 = vadd.f32 %v202, 1e-06
    %v235 = vadd.f32 %v203, 1e-06
    %v236 = vadd.f32 %v204, 1e-06
    %v237 = vadd.f32 %v205, 1e-06
    %v238 = vadd.f32 %v206, 1e-06
    %v239 = vadd.f32 %v207, 1e-06
    %v240 = vadd.f32 %v208, 1e-06
    %v241 = vadd.f32 %v209, 1e-06
    %v242 = vadd.f32 %v210, 1e-06
    %v243 = vadd.f32 %v211, 1e-06
    %v244 = vadd.f32 %v212, 1e-06
    %v245 = vadd.f32 %v213, 1e-06
    %v246 = vadd.f32 %v214, 1e-06
    %v247 = vadd.f32 %v215, 1e-06
    %v248 = vadd.f32 %v216, 1e-06
    %v249 = vadd.f32 %v217, 1e-06
    %v250 = vadd.f32 %v218, 1e-06
    %v251 = vadd.f32 %v219, 1e-06
    %v252 = vadd.f32 %v220, 1e-06
    %v253 = vadd.f32 %v221, 1e-06
    %v254 = vadd.f32 %v222, 1e-06
    %v255 = vrsqrt.pop %v223
    %v256 = vrsqrt.pop %v224
    %v257 = vrsqrt.pop %v225
    %v258 = vrsqrt.pop %v226
    %v259 = vrsqrt.pop %v227
    %v260 = vrsqrt.pop %v228
    %v261 = vrsqrt.pop %v229
    %v262 = vrsqrt.pop %v230
    %v263 = vrsqrt.pop %v231
    %v264 = vrsqrt.pop %v232
    %v265 = vrsqrt.pop %v233
    %v266 = vrsqrt.pop %v234
    %v267 = vrsqrt.pop %v235
    %v268 = vrsqrt.pop %v236
    %v269 = vrsqrt.pop %v237
    %v270 = vrsqrt.pop %v238
    %v271 = vrsqrt.pop %v239
    %v272 = vrsqrt.pop %v240
    %v273 = vrsqrt.pop %v241
    %v274 = vrsqrt.pop %v242
    %v275 = vrsqrt.pop %v243
    %v276 = vrsqrt.pop %v244
    %v277 = vrsqrt.pop %v245
    %v278 = vrsqrt.pop %v246
    %v279 = vrsqrt.pop %v247
    %v280 = vrsqrt.pop %v248
    %v281 = vrsqrt.pop %v249
    %v282 = vrsqrt.pop %v250
    %v283 = vrsqrt.pop %v251
    %v284 = vrsqrt.pop %v252
    %v285 = vrsqrt.pop %v253
    %v286 = vrsqrt.pop %v254
    %v287 = vmul.f32 %v62, %v255
    %v288 = vmul.f32 %v63, %v256
    %v289 = vmul.f32 %v64, %v257
    %v290 = vmul.f32 %v65, %v258
    %v291 = vmul.f32 %v66, %v259
    %v292 = vmul.f32 %v67, %v260
    %v293 = vmul.f32 %v68, %v261
    %v294 = vmul.f32 %v69, %v262
    %v295 = vmul.f32 %v70, %v263
    %v296 = vmul.f32 %v71, %v264
    %v297 = vmul.f32 %v72, %v265
    %v298 = vmul.f32 %v73, %v266
    %v299 = vmul.f32 %v74, %v267
    %v300 = vmul.f32 %v75, %v268
    %v301 = vmul.f32 %v76, %v269
    %v302 = vmul.f32 %v77, %v270
    %v303 = vmul.f32 %v78, %v271
    %v304 = vmul.f32 %v79, %v272
    %v305 = vmul.f32 %v80, %v273
    %v306 = vmul.f32 %v81, %v274
    %v307 = vmul.f32 %v82, %v275
    %v308 = vmul.f32 %v83, %v276
    %v309 = vmul.f32 %v84, %v277
    %v310 = vmul.f32 %v85, %v278
    %v311 = vmul.f32 %v86, %v279
    %v312 = vmul.f32 %v87, %v280
    %v313 = vmul.f32 %v88, %v281
    %v314 = vmul.f32 %v89, %v282
    %v315 = vmul.f32 %v90, %v283
    %v316 = vmul.f32 %v91, %v284
    %v317 = vmul.f32 %v92, %v285
    %v318 = vmul.f32 %v93, %v286
    %v319 = vpack.c.bf16 %v288, %v287
    %v320 = vpack.c.bf16 %v290, %v289
    %v321 = vpack.c.bf16 %v292, %v291
    %v322 = vpack.c.bf16 %v294, %v293
    %v323 = vpack.c.bf16 %v296, %v295
    %v324 = vpack.c.bf16 %v298, %v297
    %v325 = vpack.c.bf16 %v300, %v299
    %v326 = vpack.c.bf16 %v302, %v301
    %v327 = vpack.c.bf16 %v304, %v303
    %v328 = vpack.c.bf16 %v306, %v305
    %v329 = vpack.c.bf16 %v308, %v307
    %v330 = vpack.c.bf16 %v310, %v309
    %v331 = vpack.c.bf16 %v312, %v311
    %v332 = vpack.c.bf16 %v314, %v313
    %v333 = vpack.c.bf16 %v316, %v315
    %v334 = vpack.c.bf16 %v318, %v317
    %v335 = vld [vmem:[%s1] sm:$0xff]
    %v336 = vld [vmem:[%s1 + $0x8] sm:$0xff]
    %v337 = vld [vmem:[%s1 + $0x10] sm:$0xff]
    %v338 = vld [vmem:[%s1 + $0x18] sm:$0xff]
    %v339 = vld [vmem:[%s1 + $0x20] sm:$0xff]
    %v340 = vld [vmem:[%s1 + $0x28] sm:$0xff]
    %v341 = vld [vmem:[%s1 + $0x30] sm:$0xff]
    %v342 = vld [vmem:[%s1 + $0x38] sm:$0xff]
    %v343 = vld [vmem:[%s1 + $0x40] sm:$0xff]
    %v344 = vld [vmem:[%s1 + $0x48] sm:$0xff]
    %v345 = vld [vmem:[%s1 + $0x50] sm:$0xff]
    %v346 = vld [vmem:[%s1 + $0x58] sm:$0xff]
    %v347 = vld [vmem:[%s1 + $0x60] sm:$0xff]
    %v348 = vld [vmem:[%s1 + $0x68] sm:$0xff]
    %v349 = vld [vmem:[%s1 + $0x70] sm:$0xff]
    %v350 = vld [vmem:[%s1 + $0x78] sm:$0xff]
    %v351 = vld [vmem:[%s2] sm:$0x3]
    %v353 = vlaneseq
    %v354 = vshrl.u32 %v353, 7
    %v355 = vsub.s32 0, %v354
    %v356 = vrot.slane %v351, %v355
    %v357 = vlaneseq
    %v358 = vshrl.u32 %v357, 7
    %v359 = vsub.s32 1, %v358
    %v360 = vrot.slane %v351, %v359
    %v379 = vunpack.c.l.b16 %v335
    %v380 = vunpack.c.h.b16 %v335
    %v381 = vunpack.c.l.b16 %v336
    %v382 = vunpack.c.h.b16 %v336
    %v383 = vunpack.c.l.b16 %v337
    %v384 = vunpack.c.h.b16 %v337
    %v385 = vunpack.c.l.b16 %v338
    %v386 = vunpack.c.h.b16 %v338
    %v387 = vunpack.c.l.b16 %v339
    %v388 = vunpack.c.h.b16 %v339
    %v389 = vunpack.c.l.b16 %v340
    %v390 = vunpack.c.h.b16 %v340
    %v391 = vunpack.c.l.b16 %v341
    %v392 = vunpack.c.h.b16 %v341
    %v393 = vunpack.c.l.b16 %v342
    %v394 = vunpack.c.h.b16 %v342
    %v395 = vunpack.c.l.b16 %v343
    %v396 = vunpack.c.h.b16 %v343
    %v397 = vunpack.c.l.b16 %v344
    %v398 = vunpack.c.h.b16 %v344
    %v399 = vunpack.c.l.b16 %v345
    %v400 = vunpack.c.h.b16 %v345
    %v401 = vunpack.c.l.b16 %v346
    %v402 = vunpack.c.h.b16 %v346
    %v403 = vunpack.c.l.b16 %v347
    %v404 = vunpack.c.h.b16 %v347
    %v405 = vunpack.c.l.b16 %v348
    %v406 = vunpack.c.h.b16 %v348
    %v407 = vunpack.c.l.b16 %v349
    %v408 = vunpack.c.h.b16 %v349
    %v409 = vunpack.c.l.b16 %v350
    %v410 = vunpack.c.h.b16 %v350
    %v411 = vpack.c.b16 %v381, %v379
    %v412 = vpack.c.b16 %v382, %v380
    %v413 = vpack.c.b16 %v385, %v383
    %v414 = vpack.c.b16 %v386, %v384
    %v415 = vpack.c.b16 %v389, %v387
    %v416 = vpack.c.b16 %v390, %v388
    %v417 = vpack.c.b16 %v393, %v391
    %v418 = vpack.c.b16 %v394, %v392
    %v419 = vpack.c.b16 %v397, %v395
    %v420 = vpack.c.b16 %v398, %v396
    %v421 = vpack.c.b16 %v401, %v399
    %v422 = vpack.c.b16 %v402, %v400
    %v423 = vpack.c.b16 %v405, %v403
    %v424 = vpack.c.b16 %v406, %v404
    %v425 = vpack.c.b16 %v409, %v407
    %v426 = vpack.c.b16 %v410, %v408
    %443 = vmatprep.subr.bf16.mxu0 %v426
    %444 = vmatpush1.bf16.msra.mxu0 %v425
    %445 = vmatprep.subr.bf16.mxu0 %v424
    %446 = vmatpush1.bf16.msra.mxu0 %v423
    %447 = vmatprep.subr.bf16.mxu0 %v422
    %448 = vmatpush1.bf16.msra.mxu0 %v421
    %449 = vmatprep.subr.bf16.mxu0 %v420
    %450 = vmatpush1.bf16.msra.mxu0 %v419
    %451 = vmatprep.subr.bf16.mxu0 %v418
    %452 = vmatpush1.bf16.msra.mxu0 %v417
    %453 = vmatprep.subr.bf16.mxu0 %v416
    %454 = vmatpush1.bf16.msra.mxu0 %v415
    %455 = vmatprep.subr.bf16.mxu0 %v414
    %456 = vmatpush1.bf16.msra.mxu0 %v413
    %457 = vmatprep.subr.bf16.mxu0 %v412
    %458 = vmatpush1.bf16.msra.mxu0 %v411
    %459 = vmatprep.subr.bf16.mxu0 0
    %460 = vmatpush2.bf16.msra.mxu0 0
    %461 = vmatprep.subr.bf16.mxu0 0
    %462 = vmatpush2.bf16.msra.mxu0 0
    %463 = vmatprep.subr.bf16.mxu0 0
    %464 = vmatpush2.bf16.msra.mxu0 0
    %465 = vmatprep.subr.bf16.mxu0 0
    %466 = vmatpush2.bf16.msra.mxu0 0
    %467 = vmatprep.subr.bf16.mxu0 0
    %468 = vmatpush2.bf16.msra.mxu0 0
    %469 = vmatprep.subr.bf16.mxu0 0
    %470 = vmatpush2.bf16.msra.mxu0 0
    %471 = vmatprep.subr.bf16.mxu0 0
    %472 = vmatpush2.bf16.msra.mxu0 0
    %473 = vmatprep.subr.bf16.mxu0 0
    %474 = vmatpush2.bf16.msra.mxu0 0
    %475 = vmatprep.mubr.bf16.mxu0 0
    %476 = vmatmul.mubr.bf16.gmra.mxu0 %v319
    %v477 = vpop.f32.mrf.mxu0
    %v478 = vadd.f32 %v356, %v477
    %v479 = vpop.f32.mrf.mxu0
    %v480 = vadd.f32 %v360, %v479
    %v481 = vpop.f32.mrf.mxu0
    %v482 = vadd.f32 %v356, %v481
    %v483 = vpop.f32.mrf.mxu0
    %v484 = vadd.f32 %v360, %v483
    %485 = vmatprep.mubr.bf16.mxu0 0
    %486 = vmatmul.mubr.bf16.gmra.mxu0 %v320
    %v487 = vpop.f32.mrf.mxu0
    %v488 = vadd.f32 %v356, %v487
    %v489 = vpop.f32.mrf.mxu0
    %v490 = vadd.f32 %v360, %v489
    %v491 = vpop.f32.mrf.mxu0
    %v492 = vadd.f32 %v356, %v491
    %v493 = vpop.f32.mrf.mxu0
    %v494 = vadd.f32 %v360, %v493
    %495 = vmatprep.mubr.bf16.mxu0 0
    %496 = vmatmul.mubr.bf16.gmra.mxu0 %v321
    %v497 = vpop.f32.mrf.mxu0
    %v498 = vadd.f32 %v356, %v497
    %v499 = vpop.f32.mrf.mxu0
    %v500 = vadd.f32 %v360, %v499
    %v501 = vpop.f32.mrf.mxu0
    %v502 = vadd.f32 %v356, %v501
    %v503 = vpop.f32.mrf.mxu0
    %v504 = vadd.f32 %v360, %v503
    %505 = vmatprep.mubr.bf16.mxu0 0
    %506 = vmatmul.mubr.bf16.gmra.mxu0 %v322
    %v507 = vpop.f32.mrf.mxu0
    %v508 = vadd.f32 %v356, %v507
    %v509 = vpop.f32.mrf.mxu0
    %v510 = vadd.f32 %v360, %v509
    %v511 = vpop.f32.mrf.mxu0
    %v512 = vadd.f32 %v356, %v511
    %v513 = vpop.f32.mrf.mxu0
    %v514 = vadd.f32 %v360, %v513
    %515 = vmatprep.mubr.bf16.mxu0 0
    %516 = vmatmul.mubr.bf16.gmra.mxu0 %v323
    %v517 = vpop.f32.mrf.mxu0
    %v518 = vadd.f32 %v356, %v517
    %v519 = vpop.f32.mrf.mxu0
    %v520 = vadd.f32 %v360, %v519
    %v521 = vpop.f32.mrf.mxu0
    %v522 = vadd.f32 %v356, %v521
    %v523 = vpop.f32.mrf.mxu0
    %v524 = vadd.f32 %v360, %v523
    %525 = vmatprep.mubr.bf16.mxu0 0
    %526 = vmatmul.mubr.bf16.gmra.mxu0 %v324
    %v527 = vpop.f32.mrf.mxu0
    %v528 = vadd.f32 %v356, %v527
    %v529 = vpop.f32.mrf.mxu0
    %v530 = vadd.f32 %v360, %v529
    %v531 = vpop.f32.mrf.mxu0
    %v532 = vadd.f32 %v356, %v531
    %v533 = vpop.f32.mrf.mxu0
    %v534 = vadd.f32 %v360, %v533
    %535 = vmatprep.mubr.bf16.mxu0 0
    %536 = vmatmul.mubr.bf16.gmra.mxu0 %v325
    %v537 = vpop.f32.mrf.mxu0
    %v538 = vadd.f32 %v356, %v537
    %v539 = vpop.f32.mrf.mxu0
    %v540 = vadd.f32 %v360, %v539
    %v541 = vpop.f32.mrf.mxu0
    %v542 = vadd.f32 %v356, %v541
    %v543 = vpop.f32.mrf.mxu0
    %v544 = vadd.f32 %v360, %v543
    %545 = vmatprep.mubr.bf16.mxu0 0
    %546 = vmatmul.mubr.bf16.gmra.mxu0 %v326
    %v547 = vpop.f32.mrf.mxu0
    %v548 = vadd.f32 %v356, %v547
    %v549 = vpop.f32.mrf.mxu0
    %v550 = vadd.f32 %v360, %v549
    %v551 = vpop.f32.mrf.mxu0
    %v552 = vadd.f32 %v356, %v551
    %v553 = vpop.f32.mrf.mxu0
    %v554 = vadd.f32 %v360, %v553
    %555 = vmatprep.mubr.bf16.mxu0 0
    %556 = vmatmul.mubr.bf16.gmra.mxu0 %v327
    %v557 = vpop.f32.mrf.mxu0
    %v558 = vadd.f32 %v356, %v557
    %v559 = vpop.f32.mrf.mxu0
    %v560 = vadd.f32 %v360, %v559
    %v561 = vpop.f32.mrf.mxu0
    %v562 = vadd.f32 %v356, %v561
    %v563 = vpop.f32.mrf.mxu0
    %v564 = vadd.f32 %v360, %v563
    %565 = vmatprep.mubr.bf16.mxu0 0
    %566 = vmatmul.mubr.bf16.gmra.mxu0 %v328
    %v567 = vpop.f32.mrf.mxu0
    %v568 = vadd.f32 %v356, %v567
    %v569 = vpop.f32.mrf.mxu0
    %v570 = vadd.f32 %v360, %v569
    %v571 = vpop.f32.mrf.mxu0
    %v572 = vadd.f32 %v356, %v571
    %v573 = vpop.f32.mrf.mxu0
    %v574 = vadd.f32 %v360, %v573
    %575 = vmatprep.mubr.bf16.mxu0 0
    %576 = vmatmul.mubr.bf16.gmra.mxu0 %v329
    %v577 = vpop.f32.mrf.mxu0
    %v578 = vadd.f32 %v356, %v577
    %v579 = vpop.f32.mrf.mxu0
    %v580 = vadd.f32 %v360, %v579
    %v581 = vpop.f32.mrf.mxu0
    %v582 = vadd.f32 %v356, %v581
    %v583 = vpop.f32.mrf.mxu0
    %v584 = vadd.f32 %v360, %v583
    %585 = vmatprep.mubr.bf16.mxu0 0
    %586 = vmatmul.mubr.bf16.gmra.mxu0 %v330
    %v587 = vpop.f32.mrf.mxu0
    %v588 = vadd.f32 %v356, %v587
    %v589 = vpop.f32.mrf.mxu0
    %v590 = vadd.f32 %v360, %v589
    %v591 = vpop.f32.mrf.mxu0
    %v592 = vadd.f32 %v356, %v591
    %v593 = vpop.f32.mrf.mxu0
    %v594 = vadd.f32 %v360, %v593
    %595 = vmatprep.mubr.bf16.mxu0 0
    %596 = vmatmul.mubr.bf16.gmra.mxu0 %v331
    %v597 = vpop.f32.mrf.mxu0
    %v598 = vadd.f32 %v356, %v597
    %v599 = vpop.f32.mrf.mxu0
    %v600 = vadd.f32 %v360, %v599
    %v601 = vpop.f32.mrf.mxu0
    %v602 = vadd.f32 %v356, %v601
    %v603 = vpop.f32.mrf.mxu0
    %v604 = vadd.f32 %v360, %v603
    %605 = vmatprep.mubr.bf16.mxu0 0
    %606 = vmatmul.mubr.bf16.gmra.mxu0 %v332
    %v607 = vpop.f32.mrf.mxu0
    %v608 = vadd.f32 %v356, %v607
    %v609 = vpop.f32.mrf.mxu0
    %v610 = vadd.f32 %v360, %v609
    %v611 = vpop.f32.mrf.mxu0
    %v612 = vadd.f32 %v356, %v611
    %v613 = vpop.f32.mrf.mxu0
    %v614 = vadd.f32 %v360, %v613
    %615 = vmatprep.mubr.bf16.mxu0 0
    %616 = vmatmul.mubr.bf16.gmra.mxu0 %v333
    %v617 = vpop.f32.mrf.mxu0
    %v618 = vadd.f32 %v356, %v617
    %v619 = vpop.f32.mrf.mxu0
    %v620 = vadd.f32 %v360, %v619
    %v621 = vpop.f32.mrf.mxu0
    %v622 = vadd.f32 %v356, %v621
    %v623 = vpop.f32.mrf.mxu0
    %v624 = vadd.f32 %v360, %v623
    %625 = vmatprep.mubr.bf16.mxu0 0
    %626 = vmatmul.mubr.bf16.gmra.mxu0 %v334
    %v627 = vpop.f32.mrf.mxu0
    %v628 = vadd.f32 %v356, %v627
    %v629 = vpop.f32.mrf.mxu0
    %v630 = vadd.f32 %v360, %v629
    %v631 = vpop.f32.mrf.mxu0
    %v632 = vadd.f32 %v356, %v631
    %v633 = vpop.f32.mrf.mxu0
    %v634 = vadd.f32 %v360, %v633
    %635 = vdwg.mxu0
    %652 = vrot.lane.b32.xlu0 %v478, 112
    %v653 = vpop.permute.xlu0 %652
    %654 = vrot.lane.b32.xlu0 %v482, 112
    %v655 = vpop.permute.xlu0 %654
    %656 = vrot.lane.b32.xlu0 %v488, 112
    %v657 = vpop.permute.xlu0 %656
    %658 = vrot.lane.b32.xlu0 %v492, 112
    %v659 = vpop.permute.xlu0 %658
    %660 = vrot.lane.b32.xlu0 %v498, 112
    %v661 = vpop.permute.xlu0 %660
    %662 = vrot.lane.b32.xlu0 %v502, 112
    %v663 = vpop.permute.xlu0 %662
    %664 = vrot.lane.b32.xlu0 %v508, 112
    %v665 = vpop.permute.xlu0 %664
    %666 = vrot.lane.b32.xlu0 %v512, 112
    %v667 = vpop.permute.xlu0 %666
    %668 = vrot.lane.b32.xlu0 %v518, 112
    %v669 = vpop.permute.xlu0 %668
    %670 = vrot.lane.b32.xlu0 %v522, 112
    %v671 = vpop.permute.xlu0 %670
    %672 = vrot.lane.b32.xlu0 %v528, 112
    %v673 = vpop.permute.xlu0 %672
    %674 = vrot.lane.b32.xlu0 %v532, 112
    %v675 = vpop.permute.xlu0 %674
    %676 = vrot.lane.b32.xlu0 %v538, 112
    %v677 = vpop.permute.xlu0 %676
    %678 = vrot.lane.b32.xlu0 %v542, 112
    %v679 = vpop.permute.xlu0 %678
    %680 = vrot.lane.b32.xlu0 %v548, 112
    %v681 = vpop.permute.xlu0 %680
    %682 = vrot.lane.b32.xlu0 %v552, 112
    %v683 = vpop.permute.xlu0 %682
    %700 = vrot.lane.b32.xlu0 %v478, 96
    %v701 = vpop.permute.xlu0 %700
    %702 = vrot.lane.b32.xlu0 %v482, 96
    %v703 = vpop.permute.xlu0 %702
    %704 = vrot.lane.b32.xlu0 %v488, 96
    %v705 = vpop.permute.xlu0 %704
    %706 = vrot.lane.b32.xlu0 %v492, 96
    %v707 = vpop.permute.xlu0 %706
    %708 = vrot.lane.b32.xlu0 %v498, 96
    %v709 = vpop.permute.xlu0 %708
    %710 = vrot.lane.b32.xlu0 %v502, 96
    %v711 = vpop.permute.xlu0 %710
    %712 = vrot.lane.b32.xlu0 %v508, 96
    %v713 = vpop.permute.xlu0 %712
    %714 = vrot.lane.b32.xlu0 %v512, 96
    %v715 = vpop.permute.xlu0 %714
    %716 = vrot.lane.b32.xlu0 %v518, 96
    %v717 = vpop.permute.xlu0 %716
    %718 = vrot.lane.b32.xlu0 %v522, 96
    %v719 = vpop.permute.xlu0 %718
    %720 = vrot.lane.b32.xlu0 %v528, 96
    %v721 = vpop.permute.xlu0 %720
    %722 = vrot.lane.b32.xlu0 %v532, 96
    %v723 = vpop.permute.xlu0 %722
    %724 = vrot.lane.b32.xlu0 %v538, 96
    %v725 = vpop.permute.xlu0 %724
    %726 = vrot.lane.b32.xlu0 %v542, 96
    %v727 = vpop.permute.xlu0 %726
    %728 = vrot.lane.b32.xlu0 %v548, 96
    %v729 = vpop.permute.xlu0 %728
    %730 = vrot.lane.b32.xlu0 %v552, 96
    %v731 = vpop.permute.xlu0 %730
    %748 = vrot.lane.b32.xlu0 %v478, 80
    %v749 = vpop.permute.xlu0 %748
    %750 = vrot.lane.b32.xlu0 %v482, 80
    %v751 = vpop.permute.xlu0 %750
    %752 = vrot.lane.b32.xlu0 %v488, 80
    %v753 = vpop.permute.xlu0 %752
    %754 = vrot.lane.b32.xlu0 %v492, 80
    %v755 = vpop.permute.xlu0 %754
    %756 = vrot.lane.b32.xlu0 %v498, 80
    %v757 = vpop.permute.xlu0 %756
    %758 = vrot.lane.b32.xlu0 %v502, 80
    %v759 = vpop.permute.xlu0 %758
    %760 = vrot.lane.b32.xlu0 %v508, 80
    %v761 = vpop.permute.xlu0 %760
    %762 = vrot.lane.b32.xlu0 %v512, 80
    %v763 = vpop.permute.xlu0 %762
    %764 = vrot.lane.b32.xlu0 %v518, 80
    %v765 = vpop.permute.xlu0 %764
    %766 = vrot.lane.b32.xlu0 %v522, 80
    %v767 = vpop.permute.xlu0 %766
    %768 = vrot.lane.b32.xlu0 %v528, 80
    %v769 = vpop.permute.xlu0 %768
    %770 = vrot.lane.b32.xlu0 %v532, 80
    %v771 = vpop.permute.xlu0 %770
    %772 = vrot.lane.b32.xlu0 %v538, 80
    %v773 = vpop.permute.xlu0 %772
    %774 = vrot.lane.b32.xlu0 %v542, 80
    %v775 = vpop.permute.xlu0 %774
    %776 = vrot.lane.b32.xlu0 %v548, 80
    %v777 = vpop.permute.xlu0 %776
    %778 = vrot.lane.b32.xlu0 %v552, 80
    %v779 = vpop.permute.xlu0 %778
    %812 = vrot.lane.b32.xlu0 %v558, 112
    %v813 = vpop.permute.xlu0 %812
    %814 = vrot.lane.b32.xlu0 %v562, 112
    %v815 = vpop.permute.xlu0 %814
    %816 = vrot.lane.b32.xlu0 %v568, 112
    %v817 = vpop.permute.xlu0 %816
    %818 = vrot.lane.b32.xlu0 %v572, 112
    %v819 = vpop.permute.xlu0 %818
    %820 = vrot.lane.b32.xlu0 %v578, 112
    %v821 = vpop.permute.xlu0 %820
    %822 = vrot.lane.b32.xlu0 %v582, 112
    %v823 = vpop.permute.xlu0 %822
    %824 = vrot.lane.b32.xlu0 %v588, 112
    %v825 = vpop.permute.xlu0 %824
    %826 = vrot.lane.b32.xlu0 %v592, 112
    %v827 = vpop.permute.xlu0 %826
    %828 = vrot.lane.b32.xlu0 %v598, 112
    %v829 = vpop.permute.xlu0 %828
    %830 = vrot.lane.b32.xlu0 %v602, 112
    %v831 = vpop.permute.xlu0 %830
    %832 = vrot.lane.b32.xlu0 %v608, 112
    %v833 = vpop.permute.xlu0 %832
    %834 = vrot.lane.b32.xlu0 %v612, 112
    %v835 = vpop.permute.xlu0 %834
    %836 = vrot.lane.b32.xlu0 %v618, 112
    %v837 = vpop.permute.xlu0 %836
    %838 = vrot.lane.b32.xlu0 %v622, 112
    %v839 = vpop.permute.xlu0 %838
    %840 = vrot.lane.b32.xlu0 %v628, 112
    %v841 = vpop.permute.xlu0 %840
    %842 = vrot.lane.b32.xlu0 %v632, 112
    %v843 = vpop.permute.xlu0 %842
    %860 = vrot.lane.b32.xlu0 %v558, 96
    %v861 = vpop.permute.xlu0 %860
    %862 = vrot.lane.b32.xlu0 %v562, 96
    %v863 = vpop.permute.xlu0 %862
    %864 = vrot.lane.b32.xlu0 %v568, 96
    %v865 = vpop.permute.xlu0 %864
    %866 = vrot.lane.b32.xlu0 %v572, 96
    %v867 = vpop.permute.xlu0 %866
    %868 = vrot.lane.b32.xlu0 %v578, 96
    %v869 = vpop.permute.xlu0 %868
    %870 = vrot.lane.b32.xlu0 %v582, 96
    %v871 = vpop.permute.xlu0 %870
    %872 = vrot.lane.b32.xlu0 %v588, 96
    %v873 = vpop.permute.xlu0 %872
    %874 = vrot.lane.b32.xlu0 %v592, 96
    %v875 = vpop.permute.xlu0 %874
    %876 = vrot.lane.b32.xlu0 %v598, 96
    %v877 = vpop.permute.xlu0 %876
    %878 = vrot.lane.b32.xlu0 %v602, 96
    %v879 = vpop.permute.xlu0 %878
    %880 = vrot.lane.b32.xlu0 %v608, 96
    %v881 = vpop.permute.xlu0 %880
    %882 = vrot.lane.b32.xlu0 %v612, 96
    %v883 = vpop.permute.xlu0 %882
    %884 = vrot.lane.b32.xlu0 %v618, 96
    %v885 = vpop.permute.xlu0 %884
    %886 = vrot.lane.b32.xlu0 %v622, 96
    %v887 = vpop.permute.xlu0 %886
    %888 = vrot.lane.b32.xlu0 %v628, 96
    %v889 = vpop.permute.xlu0 %888
    %890 = vrot.lane.b32.xlu0 %v632, 96
    %v891 = vpop.permute.xlu0 %890
    %908 = vrot.lane.b32.xlu0 %v558, 80
    %v909 = vpop.permute.xlu0 %908
    %910 = vrot.lane.b32.xlu0 %v562, 80
    %v911 = vpop.permute.xlu0 %910
    %912 = vrot.lane.b32.xlu0 %v568, 80
    %v913 = vpop.permute.xlu0 %912
    %914 = vrot.lane.b32.xlu0 %v572, 80
    %v915 = vpop.permute.xlu0 %914
    %916 = vrot.lane.b32.xlu0 %v578, 80
    %v917 = vpop.permute.xlu0 %916
    %918 = vrot.lane.b32.xlu0 %v582, 80
    %v919 = vpop.permute.xlu0 %918
    %920 = vrot.lane.b32.xlu0 %v588, 80
    %v921 = vpop.permute.xlu0 %920
    %922 = vrot.lane.b32.xlu0 %v592, 80
    %v923 = vpop.permute.xlu0 %922
    %924 = vrot.lane.b32.xlu0 %v598, 80
    %v925 = vpop.permute.xlu0 %924
    %926 = vrot.lane.b32.xlu0 %v602, 80
    %v927 = vpop.permute.xlu0 %926
    %928 = vrot.lane.b32.xlu0 %v608, 80
    %v929 = vpop.permute.xlu0 %928
    %930 = vrot.lane.b32.xlu0 %v612, 80
    %v931 = vpop.permute.xlu0 %930
    %932 = vrot.lane.b32.xlu0 %v618, 80
    %v933 = vpop.permute.xlu0 %932
    %934 = vrot.lane.b32.xlu0 %v622, 80
    %v935 = vpop.permute.xlu0 %934
    %936 = vrot.lane.b32.xlu0 %v628, 80
    %v937 = vpop.permute.xlu0 %936
    %938 = vrot.lane.b32.xlu0 %v632, 80
    %v939 = vpop.permute.xlu0 %938
    %956 = vrot.lane.b32.xlu0 %v478, 64
    %v957 = vpop.permute.xlu0 %956
    %958 = vrot.lane.b32.xlu0 %v482, 64
    %v959 = vpop.permute.xlu0 %958
    %960 = vrot.lane.b32.xlu0 %v488, 64
    %v961 = vpop.permute.xlu0 %960
    %962 = vrot.lane.b32.xlu0 %v492, 64
    %v963 = vpop.permute.xlu0 %962
    %964 = vrot.lane.b32.xlu0 %v498, 64
    %v965 = vpop.permute.xlu0 %964
    %966 = vrot.lane.b32.xlu0 %v502, 64
    %v967 = vpop.permute.xlu0 %966
    %968 = vrot.lane.b32.xlu0 %v508, 64
    %v969 = vpop.permute.xlu0 %968
    %970 = vrot.lane.b32.xlu0 %v512, 64
    %v971 = vpop.permute.xlu0 %970
    %972 = vrot.lane.b32.xlu0 %v518, 64
    %v973 = vpop.permute.xlu0 %972
    %974 = vrot.lane.b32.xlu0 %v522, 64
    %v975 = vpop.permute.xlu0 %974
    %976 = vrot.lane.b32.xlu0 %v528, 64
    %v977 = vpop.permute.xlu0 %976
    %978 = vrot.lane.b32.xlu0 %v532, 64
    %v979 = vpop.permute.xlu0 %978
    %980 = vrot.lane.b32.xlu0 %v538, 64
    %v981 = vpop.permute.xlu0 %980
    %982 = vrot.lane.b32.xlu0 %v542, 64
    %v983 = vpop.permute.xlu0 %982
    %984 = vrot.lane.b32.xlu0 %v548, 64
    %v985 = vpop.permute.xlu0 %984
    %986 = vrot.lane.b32.xlu0 %v552, 64
    %v987 = vpop.permute.xlu0 %986
    %988 = vrot.lane.b32.xlu0 %v653, 64
    %v989 = vpop.permute.xlu0 %988
    %990 = vrot.lane.b32.xlu0 %v655, 64
    %v991 = vpop.permute.xlu0 %990
    %992 = vrot.lane.b32.xlu0 %v657, 64
    %v993 = vpop.permute.xlu0 %992
    %994 = vrot.lane.b32.xlu0 %v659, 64
    %v995 = vpop.permute.xlu0 %994
    %996 = vrot.lane.b32.xlu0 %v661, 64
    %v997 = vpop.permute.xlu0 %996
    %998 = vrot.lane.b32.xlu0 %v663, 64
    %v999 = vpop.permute.xlu0 %998
    %1000 = vrot.lane.b32.xlu0 %v665, 64
    %v1001 = vpop.permute.xlu0 %1000
    %1002 = vrot.lane.b32.xlu0 %v667, 64
    %v1003 = vpop.permute.xlu0 %1002
    %1004 = vrot.lane.b32.xlu0 %v669, 64
    %v1005 = vpop.permute.xlu0 %1004
    %1006 = vrot.lane.b32.xlu0 %v671, 64
    %v1007 = vpop.permute.xlu0 %1006
    %1008 = vrot.lane.b32.xlu0 %v673, 64
    %v1009 = vpop.permute.xlu0 %1008
    %1010 = vrot.lane.b32.xlu0 %v675, 64
    %v1011 = vpop.permute.xlu0 %1010
    %1012 = vrot.lane.b32.xlu0 %v677, 64
    %v1013 = vpop.permute.xlu0 %1012
    %1014 = vrot.lane.b32.xlu0 %v679, 64
    %v1015 = vpop.permute.xlu0 %1014
    %1016 = vrot.lane.b32.xlu0 %v681, 64
    %v1017 = vpop.permute.xlu0 %1016
    %1018 = vrot.lane.b32.xlu0 %v683, 64
    %v1019 = vpop.permute.xlu0 %1018
    %1020 = vrot.lane.b32.xlu0 %v701, 64
    %v1021 = vpop.permute.xlu0 %1020
    %1022 = vrot.lane.b32.xlu0 %v703, 64
    %v1023 = vpop.permute.xlu0 %1022
    %1024 = vrot.lane.b32.xlu0 %v705, 64
    %v1025 = vpop.permute.xlu0 %1024
    %1026 = vrot.lane.b32.xlu0 %v707, 64
    %v1027 = vpop.permute.xlu0 %1026
    %1028 = vrot.lane.b32.xlu0 %v709, 64
    %v1029 = vpop.permute.xlu0 %1028
    %1030 = vrot.lane.b32.xlu0 %v711, 64
    %v1031 = vpop.permute.xlu0 %1030
    %1032 = vrot.lane.b32.xlu0 %v713, 64
    %v1033 = vpop.permute.xlu0 %1032
    %1034 = vrot.lane.b32.xlu0 %v715, 64
    %v1035 = vpop.permute.xlu0 %1034
    %1036 = vrot.lane.b32.xlu0 %v717, 64
    %v1037 = vpop.permute.xlu0 %1036
    %1038 = vrot.lane.b32.xlu0 %v719, 64
    %v1039 = vpop.permute.xlu0 %1038
    %1040 = vrot.lane.b32.xlu0 %v721, 64
    %v1041 = vpop.permute.xlu0 %1040
    %1042 = vrot.lane.b32.xlu0 %v723, 64
    %v1043 = vpop.permute.xlu0 %1042
    %1044 = vrot.lane.b32.xlu0 %v725, 64
    %v1045 = vpop.permute.xlu0 %1044
    %1046 = vrot.lane.b32.xlu0 %v727, 64
    %v1047 = vpop.permute.xlu0 %1046
    %1048 = vrot.lane.b32.xlu0 %v729, 64
    %v1049 = vpop.permute.xlu0 %1048
    %1050 = vrot.lane.b32.xlu0 %v731, 64
    %v1051 = vpop.permute.xlu0 %1050
    %1052 = vrot.lane.b32.xlu0 %v749, 64
    %v1053 = vpop.permute.xlu0 %1052
    %1054 = vrot.lane.b32.xlu0 %v751, 64
    %v1055 = vpop.permute.xlu0 %1054
    %1056 = vrot.lane.b32.xlu0 %v753, 64
    %v1057 = vpop.permute.xlu0 %1056
    %1058 = vrot.lane.b32.xlu0 %v755, 64
    %v1059 = vpop.permute.xlu0 %1058
    %1060 = vrot.lane.b32.xlu0 %v757, 64
    %v1061 = vpop.permute.xlu0 %1060
    %1062 = vrot.lane.b32.xlu0 %v759, 64
    %v1063 = vpop.permute.xlu0 %1062
    %1064 = vrot.lane.b32.xlu0 %v761, 64
    %v1065 = vpop.permute.xlu0 %1064
    %1066 = vrot.lane.b32.xlu0 %v763, 64
    %v1067 = vpop.permute.xlu0 %1066
    %1068 = vrot.lane.b32.xlu0 %v765, 64
    %v1069 = vpop.permute.xlu0 %1068
    %1070 = vrot.lane.b32.xlu0 %v767, 64
    %v1071 = vpop.permute.xlu0 %1070
    %1072 = vrot.lane.b32.xlu0 %v769, 64
    %v1073 = vpop.permute.xlu0 %1072
    %1074 = vrot.lane.b32.xlu0 %v771, 64
    %v1075 = vpop.permute.xlu0 %1074
    %1076 = vrot.lane.b32.xlu0 %v773, 64
    %v1077 = vpop.permute.xlu0 %1076
    %1078 = vrot.lane.b32.xlu0 %v775, 64
    %v1079 = vpop.permute.xlu0 %1078
    %1080 = vrot.lane.b32.xlu0 %v777, 64
    %v1081 = vpop.permute.xlu0 %1080
    %1082 = vrot.lane.b32.xlu0 %v779, 64
    %v1083 = vpop.permute.xlu0 %1082
    %1148 = vrot.lane.b32.xlu0 %v558, 64
    %v1149 = vpop.permute.xlu0 %1148
    %1150 = vrot.lane.b32.xlu0 %v562, 64
    %v1151 = vpop.permute.xlu0 %1150
    %1152 = vrot.lane.b32.xlu0 %v568, 64
    %v1153 = vpop.permute.xlu0 %1152
    %1154 = vrot.lane.b32.xlu0 %v572, 64
    %v1155 = vpop.permute.xlu0 %1154
    %1156 = vrot.lane.b32.xlu0 %v578, 64
    %v1157 = vpop.permute.xlu0 %1156
    %1158 = vrot.lane.b32.xlu0 %v582, 64
    %v1159 = vpop.permute.xlu0 %1158
    %1160 = vrot.lane.b32.xlu0 %v588, 64
    %v1161 = vpop.permute.xlu0 %1160
    %1162 = vrot.lane.b32.xlu0 %v592, 64
    %v1163 = vpop.permute.xlu0 %1162
    %1164 = vrot.lane.b32.xlu0 %v598, 64
    %v1165 = vpop.permute.xlu0 %1164
    %1166 = vrot.lane.b32.xlu0 %v602, 64
    %v1167 = vpop.permute.xlu0 %1166
    %1168 = vrot.lane.b32.xlu0 %v608, 64
    %v1169 = vpop.permute.xlu0 %1168
    %1170 = vrot.lane.b32.xlu0 %v612, 64
    %v1171 = vpop.permute.xlu0 %1170
    %1172 = vrot.lane.b32.xlu0 %v618, 64
    %v1173 = vpop.permute.xlu0 %1172
    %1174 = vrot.lane.b32.xlu0 %v622, 64
    %v1175 = vpop.permute.xlu0 %1174
    %1176 = vrot.lane.b32.xlu0 %v628, 64
    %v1177 = vpop.permute.xlu0 %1176
    %1178 = vrot.lane.b32.xlu0 %v632, 64
    %v1179 = vpop.permute.xlu0 %1178
    %1180 = vrot.lane.b32.xlu0 %v813, 64
    %v1181 = vpop.permute.xlu0 %1180
    %1182 = vrot.lane.b32.xlu0 %v815, 64
    %v1183 = vpop.permute.xlu0 %1182
    %1184 = vrot.lane.b32.xlu0 %v817, 64
    %v1185 = vpop.permute.xlu0 %1184
    %1186 = vrot.lane.b32.xlu0 %v819, 64
    %v1187 = vpop.permute.xlu0 %1186
    %1188 = vrot.lane.b32.xlu0 %v821, 64
    %v1189 = vpop.permute.xlu0 %1188
    %1190 = vrot.lane.b32.xlu0 %v823, 64
    %v1191 = vpop.permute.xlu0 %1190
    %1192 = vrot.lane.b32.xlu0 %v825, 64
    %v1193 = vpop.permute.xlu0 %1192
    %1194 = vrot.lane.b32.xlu0 %v827, 64
    %v1195 = vpop.permute.xlu0 %1194
    %1196 = vrot.lane.b32.xlu0 %v829, 64
    %v1197 = vpop.permute.xlu0 %1196
    %1198 = vrot.lane.b32.xlu0 %v831, 64
    %v1199 = vpop.permute.xlu0 %1198
    %1200 = vrot.lane.b32.xlu0 %v833, 64
    %v1201 = vpop.permute.xlu0 %1200
    %1202 = vrot.lane.b32.xlu0 %v835, 64
    %v1203 = vpop.permute.xlu0 %1202
    %1204 = vrot.lane.b32.xlu0 %v837, 64
    %v1205 = vpop.permute.xlu0 %1204
    %1206 = vrot.lane.b32.xlu0 %v839, 64
    %v1207 = vpop.permute.xlu0 %1206
    %1208 = vrot.lane.b32.xlu0 %v841, 64
    %v1209 = vpop.permute.xlu0 %1208
    %1210 = vrot.lane.b32.xlu0 %v843, 64
    %v1211 = vpop.permute.xlu0 %1210
    %1212 = vrot.lane.b32.xlu0 %v861, 64
    %v1213 = vpop.permute.xlu0 %1212
    %1214 = vrot.lane.b32.xlu0 %v863, 64
    %v1215 = vpop.permute.xlu0 %1214
    %1216 = vrot.lane.b32.xlu0 %v865, 64
    %v1217 = vpop.permute.xlu0 %1216
    %1218 = vrot.lane.b32.xlu0 %v867, 64
    %v1219 = vpop.permute.xlu0 %1218
    %1220 = vrot.lane.b32.xlu0 %v869, 64
    %v1221 = vpop.permute.xlu0 %1220
    %1222 = vrot.lane.b32.xlu0 %v871, 64
    %v1223 = vpop.permute.xlu0 %1222
    %1224 = vrot.lane.b32.xlu0 %v873, 64
    %v1225 = vpop.permute.xlu0 %1224
    %1226 = vrot.lane.b32.xlu0 %v875, 64
    %v1227 = vpop.permute.xlu0 %1226
    %1228 = vrot.lane.b32.xlu0 %v877, 64
    %v1229 = vpop.permute.xlu0 %1228
    %1230 = vrot.lane.b32.xlu0 %v879, 64
    %v1231 = vpop.permute.xlu0 %1230
    %1232 = vrot.lane.b32.xlu0 %v881, 64
    %v1233 = vpop.permute.xlu0 %1232
    %1234 = vrot.lane.b32.xlu0 %v883, 64
    %v1235 = vpop.permute.xlu0 %1234
    %1236 = vrot.lane.b32.xlu0 %v885, 64
    %v1237 = vpop.permute.xlu0 %1236
    %1238 = vrot.lane.b32.xlu0 %v887, 64
    %v1239 = vpop.permute.xlu0 %1238
    %1240 = vrot.lane.b32.xlu0 %v889, 64
    %v1241 = vpop.permute.xlu0 %1240
    %1242 = vrot.lane.b32.xlu0 %v891, 64
    %v1243 = vpop.permute.xlu0 %1242
    %1244 = vrot.lane.b32.xlu0 %v909, 64
    %v1245 = vpop.permute.xlu0 %1244
    %1246 = vrot.lane.b32.xlu0 %v911, 64
    %v1247 = vpop.permute.xlu0 %1246
    %1248 = vrot.lane.b32.xlu0 %v913, 64
    %v1249 = vpop.permute.xlu0 %1248
    %1250 = vrot.lane.b32.xlu0 %v915, 64
    %v1251 = vpop.permute.xlu0 %1250
    %1252 = vrot.lane.b32.xlu0 %v917, 64
    %v1253 = vpop.permute.xlu0 %1252
    %1254 = vrot.lane.b32.xlu0 %v919, 64
    %v1255 = vpop.permute.xlu0 %1254
    %1256 = vrot.lane.b32.xlu0 %v921, 64
    %v1257 = vpop.permute.xlu0 %1256
    %1258 = vrot.lane.b32.xlu0 %v923, 64
    %v1259 = vpop.permute.xlu0 %1258
    %1260 = vrot.lane.b32.xlu0 %v925, 64
    %v1261 = vpop.permute.xlu0 %1260
    %1262 = vrot.lane.b32.xlu0 %v927, 64
    %v1263 = vpop.permute.xlu0 %1262
    %1264 = vrot.lane.b32.xlu0 %v929, 64
    %v1265 = vpop.permute.xlu0 %1264
    %1266 = vrot.lane.b32.xlu0 %v931, 64
    %v1267 = vpop.permute.xlu0 %1266
    %1268 = vrot.lane.b32.xlu0 %v933, 64
    %v1269 = vpop.permute.xlu0 %1268
    %1270 = vrot.lane.b32.xlu0 %v935, 64
    %v1271 = vpop.permute.xlu0 %1270
    %1272 = vrot.lane.b32.xlu0 %v937, 64
    %v1273 = vpop.permute.xlu0 %1272
    %1274 = vrot.lane.b32.xlu0 %v939, 64
    %v1275 = vpop.permute.xlu0 %1274
    %v1340 = vpack.c.bf16 %v482, %v478
    %v1341 = vpack.c.bf16 %v492, %v488
    %v1342 = vpack.c.bf16 %v502, %v498
    %v1343 = vpack.c.bf16 %v512, %v508
    %v1344 = vpack.c.bf16 %v522, %v518
    %v1345 = vpack.c.bf16 %v532, %v528
    %v1346 = vpack.c.bf16 %v542, %v538
    %v1347 = vpack.c.bf16 %v552, %v548
    %v1348 = vpack.c.bf16 %v655, %v653
    %v1349 = vpack.c.bf16 %v659, %v657
    %v1350 = vpack.c.bf16 %v663, %v661
    %v1351 = vpack.c.bf16 %v667, %v665
    %v1352 = vpack.c.bf16 %v671, %v669
    %v1353 = vpack.c.bf16 %v675, %v673
    %v1354 = vpack.c.bf16 %v679, %v677
    %v1355 = vpack.c.bf16 %v683, %v681
    %v1356 = vpack.c.bf16 %v703, %v701
    %v1357 = vpack.c.bf16 %v707, %v705
    %v1358 = vpack.c.bf16 %v711, %v709
    %v1359 = vpack.c.bf16 %v715, %v713
    %v1360 = vpack.c.bf16 %v719, %v717
    %v1361 = vpack.c.bf16 %v723, %v721
    %v1362 = vpack.c.bf16 %v727, %v725
    %v1363 = vpack.c.bf16 %v731, %v729
    %v1364 = vpack.c.bf16 %v751, %v749
    %v1365 = vpack.c.bf16 %v755, %v753
    %v1366 = vpack.c.bf16 %v759, %v757
    %v1367 = vpack.c.bf16 %v763, %v761
    %v1368 = vpack.c.bf16 %v767, %v765
    %v1369 = vpack.c.bf16 %v771, %v769
    %v1370 = vpack.c.bf16 %v775, %v773
    %v1371 = vpack.c.bf16 %v779, %v777
    %v1372 = vpack.c.bf16 %v959, %v957
    %v1373 = vpack.c.bf16 %v963, %v961
    %v1374 = vpack.c.bf16 %v967, %v965
    %v1375 = vpack.c.bf16 %v971, %v969
    %v1376 = vpack.c.bf16 %v975, %v973
    %v1377 = vpack.c.bf16 %v979, %v977
    %v1378 = vpack.c.bf16 %v983, %v981
    %v1379 = vpack.c.bf16 %v987, %v985
    %v1380 = vpack.c.bf16 %v991, %v989
    %v1381 = vpack.c.bf16 %v995, %v993
    %v1382 = vpack.c.bf16 %v999, %v997
    %v1383 = vpack.c.bf16 %v1003, %v1001
    %v1384 = vpack.c.bf16 %v1007, %v1005
    %v1385 = vpack.c.bf16 %v1011, %v1009
    %v1386 = vpack.c.bf16 %v1015, %v1013
    %v1387 = vpack.c.bf16 %v1019, %v1017
    %v1388 = vpack.c.bf16 %v1023, %v1021
    %v1389 = vpack.c.bf16 %v1027, %v1025
    %v1390 = vpack.c.bf16 %v1031, %v1029
    %v1391 = vpack.c.bf16 %v1035, %v1033
    %v1392 = vpack.c.bf16 %v1039, %v1037
    %v1393 = vpack.c.bf16 %v1043, %v1041
    %v1394 = vpack.c.bf16 %v1047, %v1045
    %v1395 = vpack.c.bf16 %v1051, %v1049
    %v1396 = vpack.c.bf16 %v1055, %v1053
    %v1397 = vpack.c.bf16 %v1059, %v1057
    %v1398 = vpack.c.bf16 %v1063, %v1061
    %v1399 = vpack.c.bf16 %v1067, %v1065
    %v1400 = vpack.c.bf16 %v1071, %v1069
    %v1401 = vpack.c.bf16 %v1075, %v1073
    %v1402 = vpack.c.bf16 %v1079, %v1077
    %v1403 = vpack.c.bf16 %v1083, %v1081
    %v1404 = vpack.c.bf16 %v562, %v558
    %v1405 = vpack.c.bf16 %v572, %v568
    %v1406 = vpack.c.bf16 %v582, %v578
    %v1407 = vpack.c.bf16 %v592, %v588
    %v1408 = vpack.c.bf16 %v602, %v598
    %v1409 = vpack.c.bf16 %v612, %v608
    %v1410 = vpack.c.bf16 %v622, %v618
    %v1411 = vpack.c.bf16 %v632, %v628
    %v1412 = vpack.c.bf16 %v815, %v813
    %v1413 = vpack.c.bf16 %v819, %v817
    %v1414 = vpack.c.bf16 %v823, %v821
    %v1415 = vpack.c.bf16 %v827, %v825
    %v1416 = vpack.c.bf16 %v831, %v829
    %v1417 = vpack.c.bf16 %v835, %v833
    %v1418 = vpack.c.bf16 %v839, %v837
    %v1419 = vpack.c.bf16 %v843, %v841
    %v1420 = vpack.c.bf16 %v863, %v861
    %v1421 = vpack.c.bf16 %v867, %v865
    %v1422 = vpack.c.bf16 %v871, %v869
    %v1423 = vpack.c.bf16 %v875, %v873
    %v1424 = vpack.c.bf16 %v879, %v877
    %v1425 = vpack.c.bf16 %v883, %v881
    %v1426 = vpack.c.bf16 %v887, %v885
    %v1427 = vpack.c.bf16 %v891, %v889
    %v1428 = vpack.c.bf16 %v911, %v909
    %v1429 = vpack.c.bf16 %v915, %v913
    %v1430 = vpack.c.bf16 %v919, %v917
    %v1431 = vpack.c.bf16 %v923, %v921
    %v1432 = vpack.c.bf16 %v927, %v925
    %v1433 = vpack.c.bf16 %v931, %v929
    %v1434 = vpack.c.bf16 %v935, %v933
    %v1435 = vpack.c.bf16 %v939, %v937
    %v1436 = vpack.c.bf16 %v1151, %v1149
    %v1437 = vpack.c.bf16 %v1155, %v1153
    %v1438 = vpack.c.bf16 %v1159, %v1157
    %v1439 = vpack.c.bf16 %v1163, %v1161
    %v1440 = vpack.c.bf16 %v1167, %v1165
    %v1441 = vpack.c.bf16 %v1171, %v1169
    %v1442 = vpack.c.bf16 %v1175, %v1173
    %v1443 = vpack.c.bf16 %v1179, %v1177
    %v1444 = vpack.c.bf16 %v1183, %v1181
    %v1445 = vpack.c.bf16 %v1187, %v1185
    %v1446 = vpack.c.bf16 %v1191, %v1189
    %v1447 = vpack.c.bf16 %v1195, %v1193
    %v1448 = vpack.c.bf16 %v1199, %v1197
    %v1449 = vpack.c.bf16 %v1203, %v1201
    %v1450 = vpack.c.bf16 %v1207, %v1205
    %v1451 = vpack.c.bf16 %v1211, %v1209
    %v1452 = vpack.c.bf16 %v1215, %v1213
    %v1453 = vpack.c.bf16 %v1219, %v1217
    %v1454 = vpack.c.bf16 %v1223, %v1221
    %v1455 = vpack.c.bf16 %v1227, %v1225
    %v1456 = vpack.c.bf16 %v1231, %v1229
    %v1457 = vpack.c.bf16 %v1235, %v1233
    %v1458 = vpack.c.bf16 %v1239, %v1237
    %v1459 = vpack.c.bf16 %v1243, %v1241
    %v1460 = vpack.c.bf16 %v1247, %v1245
    %v1461 = vpack.c.bf16 %v1251, %v1249
    %v1462 = vpack.c.bf16 %v1255, %v1253
    %v1463 = vpack.c.bf16 %v1259, %v1257
    %v1464 = vpack.c.bf16 %v1263, %v1261
    %v1465 = vpack.c.bf16 %v1267, %v1265
    %v1466 = vpack.c.bf16 %v1271, %v1269
    %v1467 = vpack.c.bf16 %v1275, %v1273
    %1484 = vrot.lane.b32.xlu0 %v480, 112
    %v1485 = vpop.permute.xlu0 %1484
    %1486 = vrot.lane.b32.xlu0 %v484, 112
    %v1487 = vpop.permute.xlu0 %1486
    %1488 = vrot.lane.b32.xlu0 %v490, 112
    %v1489 = vpop.permute.xlu0 %1488
    %1490 = vrot.lane.b32.xlu0 %v494, 112
    %v1491 = vpop.permute.xlu0 %1490
    %1492 = vrot.lane.b32.xlu0 %v500, 112
    %v1493 = vpop.permute.xlu0 %1492
    %1494 = vrot.lane.b32.xlu0 %v504, 112
    %v1495 = vpop.permute.xlu0 %1494
    %1496 = vrot.lane.b32.xlu0 %v510, 112
    %v1497 = vpop.permute.xlu0 %1496
    %1498 = vrot.lane.b32.xlu0 %v514, 112
    %v1499 = vpop.permute.xlu0 %1498
    %1500 = vrot.lane.b32.xlu0 %v520, 112
    %v1501 = vpop.permute.xlu0 %1500
    %1502 = vrot.lane.b32.xlu0 %v524, 112
    %v1503 = vpop.permute.xlu0 %1502
    %1504 = vrot.lane.b32.xlu0 %v530, 112
    %v1505 = vpop.permute.xlu0 %1504
    %1506 = vrot.lane.b32.xlu0 %v534, 112
    %v1507 = vpop.permute.xlu0 %1506
    %1508 = vrot.lane.b32.xlu0 %v540, 112
    %v1509 = vpop.permute.xlu0 %1508
    %1510 = vrot.lane.b32.xlu0 %v544, 112
    %v1511 = vpop.permute.xlu0 %1510
    %1512 = vrot.lane.b32.xlu0 %v550, 112
    %v1513 = vpop.permute.xlu0 %1512
    %1514 = vrot.lane.b32.xlu0 %v554, 112
    %v1515 = vpop.permute.xlu0 %1514
    %1548 = vrot.lane.b32.xlu0 %v560, 112
    %v1549 = vpop.permute.xlu0 %1548
    %1550 = vrot.lane.b32.xlu0 %v564, 112
    %v1551 = vpop.permute.xlu0 %1550
    %1552 = vrot.lane.b32.xlu0 %v570, 112
    %v1553 = vpop.permute.xlu0 %1552
    %1554 = vrot.lane.b32.xlu0 %v574, 112
    %v1555 = vpop.permute.xlu0 %1554
    %1556 = vrot.lane.b32.xlu0 %v580, 112
    %v1557 = vpop.permute.xlu0 %1556
    %1558 = vrot.lane.b32.xlu0 %v584, 112
    %v1559 = vpop.permute.xlu0 %1558
    %1560 = vrot.lane.b32.xlu0 %v590, 112
    %v1561 = vpop.permute.xlu0 %1560
    %1562 = vrot.lane.b32.xlu0 %v594, 112
    %v1563 = vpop.permute.xlu0 %1562
    %1564 = vrot.lane.b32.xlu0 %v600, 112
    %v1565 = vpop.permute.xlu0 %1564
    %1566 = vrot.lane.b32.xlu0 %v604, 112
    %v1567 = vpop.permute.xlu0 %1566
    %1568 = vrot.lane.b32.xlu0 %v610, 112
    %v1569 = vpop.permute.xlu0 %1568
    %1570 = vrot.lane.b32.xlu0 %v614, 112
    %v1571 = vpop.permute.xlu0 %1570
    %1572 = vrot.lane.b32.xlu0 %v620, 112
    %v1573 = vpop.permute.xlu0 %1572
    %1574 = vrot.lane.b32.xlu0 %v624, 112
    %v1575 = vpop.permute.xlu0 %1574
    %1576 = vrot.lane.b32.xlu0 %v630, 112
    %v1577 = vpop.permute.xlu0 %1576
    %1578 = vrot.lane.b32.xlu0 %v634, 112
    %v1579 = vpop.permute.xlu0 %1578
    %v1596 = vpack.c.bf16 %v484, %v480
    %v1597 = vpack.c.bf16 %v494, %v490
    %v1598 = vpack.c.bf16 %v504, %v500
    %v1599 = vpack.c.bf16 %v514, %v510
    %v1600 = vpack.c.bf16 %v524, %v520
    %v1601 = vpack.c.bf16 %v534, %v530
    %v1602 = vpack.c.bf16 %v544, %v540
    %v1603 = vpack.c.bf16 %v554, %v550
    %v1604 = vpack.c.bf16 %v1487, %v1485
    %v1605 = vpack.c.bf16 %v1491, %v1489
    %v1606 = vpack.c.bf16 %v1495, %v1493
    %v1607 = vpack.c.bf16 %v1499, %v1497
    %v1608 = vpack.c.bf16 %v1503, %v1501
    %v1609 = vpack.c.bf16 %v1507, %v1505
    %v1610 = vpack.c.bf16 %v1511, %v1509
    %v1611 = vpack.c.bf16 %v1515, %v1513
    %v1612 = vpack.c.bf16 %v564, %v560
    %v1613 = vpack.c.bf16 %v574, %v570
    %v1614 = vpack.c.bf16 %v584, %v580
    %v1615 = vpack.c.bf16 %v594, %v590
    %v1616 = vpack.c.bf16 %v604, %v600
    %v1617 = vpack.c.bf16 %v614, %v610
    %v1618 = vpack.c.bf16 %v624, %v620
    %v1619 = vpack.c.bf16 %v634, %v630
    %v1620 = vpack.c.bf16 %v1551, %v1549
    %v1621 = vpack.c.bf16 %v1555, %v1553
    %v1622 = vpack.c.bf16 %v1559, %v1557
    %v1623 = vpack.c.bf16 %v1563, %v1561
    %v1624 = vpack.c.bf16 %v1567, %v1565
    %v1625 = vpack.c.bf16 %v1571, %v1569
    %v1626 = vpack.c.bf16 %v1575, %v1573
    %v1627 = vpack.c.bf16 %v1579, %v1577
    %vm1628 = vcmask 130048
    %v1630 = vsel %vm1628, %v1340, 0
    %v1633 = vsel %vm1628, %v1341, 0
    %v1636 = vsel %vm1628, %v1342, 0
    %v1639 = vsel %vm1628, %v1343, 0
    %v1642 = vsel %vm1628, %v1344, 0
    %v1645 = vsel %vm1628, %v1345, 0
    %v1648 = vsel %vm1628, %v1346, 0
    %v1651 = vsel %vm1628, %v1347, 0
    %v1654 = vsel %vm1628, %v1348, 0
    %v1657 = vsel %vm1628, %v1349, 0
    %v1660 = vsel %vm1628, %v1350, 0
    %v1663 = vsel %vm1628, %v1351, 0
    %v1666 = vsel %vm1628, %v1352, 0
    %v1669 = vsel %vm1628, %v1353, 0
    %v1672 = vsel %vm1628, %v1354, 0
    %v1675 = vsel %vm1628, %v1355, 0
    %v1678 = vsel %vm1628, %v1356, 0
    %v1681 = vsel %vm1628, %v1357, 0
    %v1684 = vsel %vm1628, %v1358, 0
    %v1687 = vsel %vm1628, %v1359, 0
    %v1690 = vsel %vm1628, %v1360, 0
    %v1693 = vsel %vm1628, %v1361, 0
    %v1696 = vsel %vm1628, %v1362, 0
    %v1699 = vsel %vm1628, %v1363, 0
    %v1702 = vsel %vm1628, %v1364, 0
    %v1705 = vsel %vm1628, %v1365, 0
    %v1708 = vsel %vm1628, %v1366, 0
    %v1711 = vsel %vm1628, %v1367, 0
    %v1714 = vsel %vm1628, %v1368, 0
    %v1717 = vsel %vm1628, %v1369, 0
    %v1720 = vsel %vm1628, %v1370, 0
    %v1723 = vsel %vm1628, %v1371, 0
    %v1726 = vsel %vm1628, %v1596, 0
    %v1729 = vsel %vm1628, %v1597, 0
    %v1732 = vsel %vm1628, %v1598, 0
    %v1735 = vsel %vm1628, %v1599, 0
    %v1738 = vsel %vm1628, %v1600, 0
    %v1741 = vsel %vm1628, %v1601, 0
    %v1744 = vsel %vm1628, %v1602, 0
    %v1747 = vsel %vm1628, %v1603, 0
    %1749 = vmatprep.subr.bf16.mxu0 0
    %1750 = vmatpush1.bf16.xpose.msra.mxu0 %v1747
    %1751 = vmatprep.subr.bf16.mxu0 0
    %1752 = vmatpush1.bf16.xpose.msra.mxu0 %v1744
    %1753 = vmatprep.subr.bf16.mxu0 0
    %1754 = vmatpush1.bf16.xpose.msra.mxu0 %v1741
    %1755 = vmatprep.subr.bf16.mxu0 0
    %1756 = vmatpush1.bf16.xpose.msra.mxu0 %v1738
    %1757 = vmatprep.subr.bf16.mxu0 0
    %1758 = vmatpush1.bf16.xpose.msra.mxu0 %v1735
    %1759 = vmatprep.subr.bf16.mxu0 0
    %1760 = vmatpush1.bf16.xpose.msra.mxu0 %v1732
    %1761 = vmatprep.subr.bf16.mxu0 0
    %1762 = vmatpush1.bf16.xpose.msra.mxu0 %v1729
    %1763 = vmatprep.subr.bf16.mxu0 0
    %1764 = vmatpush1.bf16.xpose.msra.mxu0 %v1726
    %1765 = vmatprep.subr.bf16.mxu0 0
    %1766 = vmatpush2.bf16.xpose.msra.mxu0 0
    %1767 = vmatprep.subr.bf16.mxu0 0
    %1768 = vmatpush2.bf16.xpose.msra.mxu0 0
    %1769 = vmatprep.subr.bf16.mxu0 0
    %1770 = vmatpush2.bf16.xpose.msra.mxu0 0
    %1771 = vmatprep.subr.bf16.mxu0 0
    %1772 = vmatpush2.bf16.xpose.msra.mxu0 0
    %1773 = vmatprep.subr.bf16.mxu0 0
    %1774 = vmatpush2.bf16.xpose.msra.mxu0 0
    %1775 = vmatprep.subr.bf16.mxu0 0
    %1776 = vmatpush2.bf16.xpose.msra.mxu0 0
    %1777 = vmatprep.subr.bf16.mxu0 0
    %1778 = vmatpush2.bf16.xpose.msra.mxu0 0
    %1779 = vmatprep.subr.bf16.mxu0 0
    %1780 = vmatpush2.bf16.xpose.msra.mxu0 0
    %1781 = vmatprep.mubr.bf16.mxu0 0
    %1782 = vmatmul.mubr.bf16.gmra.mxu0 %v1630
    %v1783 = vpop.f32.mrf.mxu0
    %v1784 = vadd.f32 0.0, %v1783
    %v1785 = vpop.f32.mrf.mxu0
    %v1786 = vpop.f32.mrf.mxu0
    %v1787 = vadd.f32 0.0, %v1786
    %v1788 = vpop.f32.mrf.mxu0
    %1789 = vmatprep.mubr.bf16.mxu0 0
    %1790 = vmatmul.mubr.bf16.gmra.mxu0 %v1633
    %v1791 = vpop.f32.mrf.mxu0
    %v1792 = vadd.f32 0.0, %v1791
    %v1793 = vpop.f32.mrf.mxu0
    %v1794 = vpop.f32.mrf.mxu0
    %v1795 = vadd.f32 0.0, %v1794
    %v1796 = vpop.f32.mrf.mxu0
    %1797 = vmatprep.mubr.bf16.mxu0 0
    %1798 = vmatmul.mubr.bf16.gmra.mxu0 %v1636
    %v1799 = vpop.f32.mrf.mxu0
    %v1800 = vadd.f32 0.0, %v1799
    %v1801 = vpop.f32.mrf.mxu0
    %v1802 = vpop.f32.mrf.mxu0
    %v1803 = vadd.f32 0.0, %v1802
    %v1804 = vpop.f32.mrf.mxu0
    %1805 = vmatprep.mubr.bf16.mxu0 0
    %1806 = vmatmul.mubr.bf16.gmra.mxu0 %v1639
    %v1807 = vpop.f32.mrf.mxu0
    %v1808 = vadd.f32 0.0, %v1807
    %v1809 = vpop.f32.mrf.mxu0
    %v1810 = vpop.f32.mrf.mxu0
    %v1811 = vadd.f32 0.0, %v1810
    %v1812 = vpop.f32.mrf.mxu0
    %1813 = vmatprep.mubr.bf16.mxu0 0
    %1814 = vmatmul.mubr.bf16.gmra.mxu0 %v1642
    %v1815 = vpop.f32.mrf.mxu0
    %v1816 = vadd.f32 0.0, %v1815
    %v1817 = vpop.f32.mrf.mxu0
    %v1818 = vpop.f32.mrf.mxu0
    %v1819 = vadd.f32 0.0, %v1818
    %v1820 = vpop.f32.mrf.mxu0
    %1821 = vmatprep.mubr.bf16.mxu0 0
    %1822 = vmatmul.mubr.bf16.gmra.mxu0 %v1645
    %v1823 = vpop.f32.mrf.mxu0
    %v1824 = vadd.f32 0.0, %v1823
    %v1825 = vpop.f32.mrf.mxu0
    %v1826 = vpop.f32.mrf.mxu0
    %v1827 = vadd.f32 0.0, %v1826
    %v1828 = vpop.f32.mrf.mxu0
    %1829 = vmatprep.mubr.bf16.mxu0 0
    %1830 = vmatmul.mubr.bf16.gmra.mxu0 %v1648
    %v1831 = vpop.f32.mrf.mxu0
    %v1832 = vadd.f32 0.0, %v1831
    %v1833 = vpop.f32.mrf.mxu0
    %v1834 = vpop.f32.mrf.mxu0
    %v1835 = vadd.f32 0.0, %v1834
    %v1836 = vpop.f32.mrf.mxu0
    %1837 = vmatprep.mubr.bf16.mxu0 0
    %1838 = vmatmul.mubr.bf16.gmra.mxu0 %v1651
    %v1839 = vpop.f32.mrf.mxu0
    %v1840 = vadd.f32 0.0, %v1839
    %v1841 = vpop.f32.mrf.mxu0
    %v1842 = vpop.f32.mrf.mxu0
    %v1843 = vadd.f32 0.0, %v1842
    %v1844 = vpop.f32.mrf.mxu0
    %1845 = vmatprep.mubr.bf16.mxu0 0
    %1846 = vmatmul.mubr.bf16.gmra.mxu0 %v1654
    %v1847 = vpop.f32.mrf.mxu0
    %v1848 = vadd.f32 0.0, %v1847
    %v1849 = vpop.f32.mrf.mxu0
    %v1850 = vpop.f32.mrf.mxu0
    %v1851 = vadd.f32 0.0, %v1850
    %v1852 = vpop.f32.mrf.mxu0
    %1853 = vmatprep.mubr.bf16.mxu0 0
    %1854 = vmatmul.mubr.bf16.gmra.mxu0 %v1657
    %v1855 = vpop.f32.mrf.mxu0
    %v1856 = vadd.f32 0.0, %v1855
    %v1857 = vpop.f32.mrf.mxu0
    %v1858 = vpop.f32.mrf.mxu0
    %v1859 = vadd.f32 0.0, %v1858
    %v1860 = vpop.f32.mrf.mxu0
    %1861 = vmatprep.mubr.bf16.mxu0 0
    %1862 = vmatmul.mubr.bf16.gmra.mxu0 %v1660
    %v1863 = vpop.f32.mrf.mxu0
    %v1864 = vadd.f32 0.0, %v1863
    %v1865 = vpop.f32.mrf.mxu0
    %v1866 = vpop.f32.mrf.mxu0
    %v1867 = vadd.f32 0.0, %v1866
    %v1868 = vpop.f32.mrf.mxu0
    %1869 = vmatprep.mubr.bf16.mxu0 0
    %1870 = vmatmul.mubr.bf16.gmra.mxu0 %v1663
    %v1871 = vpop.f32.mrf.mxu0
    %v1872 = vadd.f32 0.0, %v1871
    %v1873 = vpop.f32.mrf.mxu0
    %v1874 = vpop.f32.mrf.mxu0
    %v1875 = vadd.f32 0.0, %v1874
    %v1876 = vpop.f32.mrf.mxu0
    %1877 = vmatprep.mubr.bf16.mxu0 0
    %1878 = vmatmul.mubr.bf16.gmra.mxu0 %v1666
    %v1879 = vpop.f32.mrf.mxu0
    %v1880 = vadd.f32 0.0, %v1879
    %v1881 = vpop.f32.mrf.mxu0
    %v1882 = vpop.f32.mrf.mxu0
    %v1883 = vadd.f32 0.0, %v1882
    %v1884 = vpop.f32.mrf.mxu0
    %1885 = vmatprep.mubr.bf16.mxu0 0
    %1886 = vmatmul.mubr.bf16.gmra.mxu0 %v1669
    %v1887 = vpop.f32.mrf.mxu0
    %v1888 = vadd.f32 0.0, %v1887
    %v1889 = vpop.f32.mrf.mxu0
    %v1890 = vpop.f32.mrf.mxu0
    %v1891 = vadd.f32 0.0, %v1890
    %v1892 = vpop.f32.mrf.mxu0
    %1893 = vmatprep.mubr.bf16.mxu0 0
    %1894 = vmatmul.mubr.bf16.gmra.mxu0 %v1672
    %v1895 = vpop.f32.mrf.mxu0
    %v1896 = vadd.f32 0.0, %v1895
    %v1897 = vpop.f32.mrf.mxu0
    %v1898 = vpop.f32.mrf.mxu0
    %v1899 = vadd.f32 0.0, %v1898
    %v1900 = vpop.f32.mrf.mxu0
    %1901 = vmatprep.mubr.bf16.mxu0 0
    %1902 = vmatmul.mubr.bf16.gmra.mxu0 %v1675
    %v1903 = vpop.f32.mrf.mxu0
    %v1904 = vadd.f32 0.0, %v1903
    %v1905 = vpop.f32.mrf.mxu0
    %v1906 = vpop.f32.mrf.mxu0
    %v1907 = vadd.f32 0.0, %v1906
    %v1908 = vpop.f32.mrf.mxu0
    %1909 = vmatprep.mubr.bf16.mxu0 0
    %1910 = vmatmul.mubr.bf16.gmra.mxu0 %v1678
    %v1911 = vpop.f32.mrf.mxu0
    %v1912 = vadd.f32 0.0, %v1911
    %v1913 = vpop.f32.mrf.mxu0
    %v1914 = vpop.f32.mrf.mxu0
    %v1915 = vadd.f32 0.0, %v1914
    %v1916 = vpop.f32.mrf.mxu0
    %1917 = vmatprep.mubr.bf16.mxu0 0
    %1918 = vmatmul.mubr.bf16.gmra.mxu0 %v1681
    %v1919 = vpop.f32.mrf.mxu0
    %v1920 = vadd.f32 0.0, %v1919
    %v1921 = vpop.f32.mrf.mxu0
    %v1922 = vpop.f32.mrf.mxu0
    %v1923 = vadd.f32 0.0, %v1922
    %v1924 = vpop.f32.mrf.mxu0
    %1925 = vmatprep.mubr.bf16.mxu0 0
    %1926 = vmatmul.mubr.bf16.gmra.mxu0 %v1684
    %v1927 = vpop.f32.mrf.mxu0
    %v1928 = vadd.f32 0.0, %v1927
    %v1929 = vpop.f32.mrf.mxu0
    %v1930 = vpop.f32.mrf.mxu0
    %v1931 = vadd.f32 0.0, %v1930
    %v1932 = vpop.f32.mrf.mxu0
    %1933 = vmatprep.mubr.bf16.mxu0 0
    %1934 = vmatmul.mubr.bf16.gmra.mxu0 %v1687
    %v1935 = vpop.f32.mrf.mxu0
    %v1936 = vadd.f32 0.0, %v1935
    %v1937 = vpop.f32.mrf.mxu0
    %v1938 = vpop.f32.mrf.mxu0
    %v1939 = vadd.f32 0.0, %v1938
    %v1940 = vpop.f32.mrf.mxu0
    %1941 = vmatprep.mubr.bf16.mxu0 0
    %1942 = vmatmul.mubr.bf16.gmra.mxu0 %v1690
    %v1943 = vpop.f32.mrf.mxu0
    %v1944 = vadd.f32 0.0, %v1943
    %v1945 = vpop.f32.mrf.mxu0
    %v1946 = vpop.f32.mrf.mxu0
    %v1947 = vadd.f32 0.0, %v1946
    %v1948 = vpop.f32.mrf.mxu0
    %1949 = vmatprep.mubr.bf16.mxu0 0
    %1950 = vmatmul.mubr.bf16.gmra.mxu0 %v1693
    %v1951 = vpop.f32.mrf.mxu0
    %v1952 = vadd.f32 0.0, %v1951
    %v1953 = vpop.f32.mrf.mxu0
    %v1954 = vpop.f32.mrf.mxu0
    %v1955 = vadd.f32 0.0, %v1954
    %v1956 = vpop.f32.mrf.mxu0
    %1957 = vmatprep.mubr.bf16.mxu0 0
    %1958 = vmatmul.mubr.bf16.gmra.mxu0 %v1696
    %v1959 = vpop.f32.mrf.mxu0
    %v1960 = vadd.f32 0.0, %v1959
    %v1961 = vpop.f32.mrf.mxu0
    %v1962 = vpop.f32.mrf.mxu0
    %v1963 = vadd.f32 0.0, %v1962
    %v1964 = vpop.f32.mrf.mxu0
    %1965 = vmatprep.mubr.bf16.mxu0 0
    %1966 = vmatmul.mubr.bf16.gmra.mxu0 %v1699
    %v1967 = vpop.f32.mrf.mxu0
    %v1968 = vadd.f32 0.0, %v1967
    %v1969 = vpop.f32.mrf.mxu0
    %v1970 = vpop.f32.mrf.mxu0
    %v1971 = vadd.f32 0.0, %v1970
    %v1972 = vpop.f32.mrf.mxu0
    %1973 = vmatprep.mubr.bf16.mxu0 0
    %1974 = vmatmul.mubr.bf16.gmra.mxu0 %v1702
    %v1975 = vpop.f32.mrf.mxu0
    %v1976 = vadd.f32 0.0, %v1975
    %v1977 = vpop.f32.mrf.mxu0
    %v1978 = vpop.f32.mrf.mxu0
    %v1979 = vadd.f32 0.0, %v1978
    %v1980 = vpop.f32.mrf.mxu0
    %1981 = vmatprep.mubr.bf16.mxu0 0
    %1982 = vmatmul.mubr.bf16.gmra.mxu0 %v1705
    %v1983 = vpop.f32.mrf.mxu0
    %v1984 = vadd.f32 0.0, %v1983
    %v1985 = vpop.f32.mrf.mxu0
    %v1986 = vpop.f32.mrf.mxu0
    %v1987 = vadd.f32 0.0, %v1986
    %v1988 = vpop.f32.mrf.mxu0
    %1989 = vmatprep.mubr.bf16.mxu0 0
    %1990 = vmatmul.mubr.bf16.gmra.mxu0 %v1708
    %v1991 = vpop.f32.mrf.mxu0
    %v1992 = vadd.f32 0.0, %v1991
    %v1993 = vpop.f32.mrf.mxu0
    %v1994 = vpop.f32.mrf.mxu0
    %v1995 = vadd.f32 0.0, %v1994
    %v1996 = vpop.f32.mrf.mxu0
    %1997 = vmatprep.mubr.bf16.mxu0 0
    %1998 = vmatmul.mubr.bf16.gmra.mxu0 %v1711
    %v1999 = vpop.f32.mrf.mxu0
    %v2000 = vadd.f32 0.0, %v1999
    %v2001 = vpop.f32.mrf.mxu0
    %v2002 = vpop.f32.mrf.mxu0
    %v2003 = vadd.f32 0.0, %v2002
    %v2004 = vpop.f32.mrf.mxu0
    %2005 = vmatprep.mubr.bf16.mxu0 0
    %2006 = vmatmul.mubr.bf16.gmra.mxu0 %v1714
    %v2007 = vpop.f32.mrf.mxu0
    %v2008 = vadd.f32 0.0, %v2007
    %v2009 = vpop.f32.mrf.mxu0
    %v2010 = vpop.f32.mrf.mxu0
    %v2011 = vadd.f32 0.0, %v2010
    %v2012 = vpop.f32.mrf.mxu0
    %2013 = vmatprep.mubr.bf16.mxu0 0
    %2014 = vmatmul.mubr.bf16.gmra.mxu0 %v1717
    %v2015 = vpop.f32.mrf.mxu0
    %v2016 = vadd.f32 0.0, %v2015
    %v2017 = vpop.f32.mrf.mxu0
    %v2018 = vpop.f32.mrf.mxu0
    %v2019 = vadd.f32 0.0, %v2018
    %v2020 = vpop.f32.mrf.mxu0
    %2021 = vmatprep.mubr.bf16.mxu0 0
    %2022 = vmatmul.mubr.bf16.gmra.mxu0 %v1720
    %v2023 = vpop.f32.mrf.mxu0
    %v2024 = vadd.f32 0.0, %v2023
    %v2025 = vpop.f32.mrf.mxu0
    %v2026 = vpop.f32.mrf.mxu0
    %v2027 = vadd.f32 0.0, %v2026
    %v2028 = vpop.f32.mrf.mxu0
    %2029 = vmatprep.mubr.bf16.mxu0 0
    %2030 = vmatmul.mubr.bf16.gmra.mxu0 %v1723
    %v2031 = vpop.f32.mrf.mxu0
    %v2032 = vadd.f32 0.0, %v2031
    %v2033 = vpop.f32.mrf.mxu0
    %v2034 = vpop.f32.mrf.mxu0
    %v2035 = vadd.f32 0.0, %v2034
    %v2036 = vpop.f32.mrf.mxu0
    %2037 = vdwg.mxu0
    %v2039 = vsel %vm1628, %v1372, 0
    %v2042 = vsel %vm1628, %v1373, 0
    %v2045 = vsel %vm1628, %v1374, 0
    %v2048 = vsel %vm1628, %v1375, 0
    %v2051 = vsel %vm1628, %v1376, 0
    %v2054 = vsel %vm1628, %v1377, 0
    %v2057 = vsel %vm1628, %v1378, 0
    %v2060 = vsel %vm1628, %v1379, 0
    %v2063 = vsel %vm1628, %v1380, 0
    %v2066 = vsel %vm1628, %v1381, 0
    %v2069 = vsel %vm1628, %v1382, 0
    %v2072 = vsel %vm1628, %v1383, 0
    %v2075 = vsel %vm1628, %v1384, 0
    %v2078 = vsel %vm1628, %v1385, 0
    %v2081 = vsel %vm1628, %v1386, 0
    %v2084 = vsel %vm1628, %v1387, 0
    %v2087 = vsel %vm1628, %v1388, 0
    %v2090 = vsel %vm1628, %v1389, 0
    %v2093 = vsel %vm1628, %v1390, 0
    %v2096 = vsel %vm1628, %v1391, 0
    %v2099 = vsel %vm1628, %v1392, 0
    %v2102 = vsel %vm1628, %v1393, 0
    %v2105 = vsel %vm1628, %v1394, 0
    %v2108 = vsel %vm1628, %v1395, 0
    %v2111 = vsel %vm1628, %v1396, 0
    %v2114 = vsel %vm1628, %v1397, 0
    %v2117 = vsel %vm1628, %v1398, 0
    %v2120 = vsel %vm1628, %v1399, 0
    %v2123 = vsel %vm1628, %v1400, 0
    %v2126 = vsel %vm1628, %v1401, 0
    %v2129 = vsel %vm1628, %v1402, 0
    %v2132 = vsel %vm1628, %v1403, 0
    %v2135 = vsel %vm1628, %v1604, 0
    %v2138 = vsel %vm1628, %v1605, 0
    %v2141 = vsel %vm1628, %v1606, 0
    %v2144 = vsel %vm1628, %v1607, 0
    %v2147 = vsel %vm1628, %v1608, 0
    %v2150 = vsel %vm1628, %v1609, 0
    %v2153 = vsel %vm1628, %v1610, 0
    %v2156 = vsel %vm1628, %v1611, 0
    %2158 = vmatprep.subr.bf16.mxu0 0
    %2159 = vmatpush1.bf16.xpose.msra.mxu0 %v2156
    %2160 = vmatprep.subr.bf16.mxu0 0
    %2161 = vmatpush1.bf16.xpose.msra.mxu0 %v2153
    %2162 = vmatprep.subr.bf16.mxu0 0
    %2163 = vmatpush1.bf16.xpose.msra.mxu0 %v2150
    %2164 = vmatprep.subr.bf16.mxu0 0
    %2165 = vmatpush1.bf16.xpose.msra.mxu0 %v2147
    %2166 = vmatprep.subr.bf16.mxu0 0
    %2167 = vmatpush1.bf16.xpose.msra.mxu0 %v2144
    %2168 = vmatprep.subr.bf16.mxu0 0
    %2169 = vmatpush1.bf16.xpose.msra.mxu0 %v2141
    %2170 = vmatprep.subr.bf16.mxu0 0
    %2171 = vmatpush1.bf16.xpose.msra.mxu0 %v2138
    %2172 = vmatprep.subr.bf16.mxu0 0
    %2173 = vmatpush1.bf16.xpose.msra.mxu0 %v2135
    %2174 = vmatprep.subr.bf16.mxu0 0
    %2175 = vmatpush2.bf16.xpose.msra.mxu0 0
    %2176 = vmatprep.subr.bf16.mxu0 0
    %2177 = vmatpush2.bf16.xpose.msra.mxu0 0
    %2178 = vmatprep.subr.bf16.mxu0 0
    %2179 = vmatpush2.bf16.xpose.msra.mxu0 0
    %2180 = vmatprep.subr.bf16.mxu0 0
    %2181 = vmatpush2.bf16.xpose.msra.mxu0 0
    %2182 = vmatprep.subr.bf16.mxu0 0
    %2183 = vmatpush2.bf16.xpose.msra.mxu0 0
    %2184 = vmatprep.subr.bf16.mxu0 0
    %2185 = vmatpush2.bf16.xpose.msra.mxu0 0
    %2186 = vmatprep.subr.bf16.mxu0 0
    %2187 = vmatpush2.bf16.xpose.msra.mxu0 0
    %2188 = vmatprep.subr.bf16.mxu0 0
    %2189 = vmatpush2.bf16.xpose.msra.mxu0 0
    %2190 = vmatprep.mubr.bf16.mxu0 0
    %2191 = vmatmul.mubr.bf16.gmra.mxu0 %v2039
    %v2192 = vpop.f32.mrf.mxu0
    %v2193 = vadd.f32 0.0, %v2192
    %v2194 = vpop.f32.mrf.mxu0
    %v2195 = vpop.f32.mrf.mxu0
    %v2196 = vadd.f32 0.0, %v2195
    %v2197 = vpop.f32.mrf.mxu0
    %2198 = vmatprep.mubr.bf16.mxu0 0
    %2199 = vmatmul.mubr.bf16.gmra.mxu0 %v2042
    %v2200 = vpop.f32.mrf.mxu0
    %v2201 = vadd.f32 0.0, %v2200
    %v2202 = vpop.f32.mrf.mxu0
    %v2203 = vpop.f32.mrf.mxu0
    %v2204 = vadd.f32 0.0, %v2203
    %v2205 = vpop.f32.mrf.mxu0
    %2206 = vmatprep.mubr.bf16.mxu0 0
    %2207 = vmatmul.mubr.bf16.gmra.mxu0 %v2045
    %v2208 = vpop.f32.mrf.mxu0
    %v2209 = vadd.f32 0.0, %v2208
    %v2210 = vpop.f32.mrf.mxu0
    %v2211 = vpop.f32.mrf.mxu0
    %v2212 = vadd.f32 0.0, %v2211
    %v2213 = vpop.f32.mrf.mxu0
    %2214 = vmatprep.mubr.bf16.mxu0 0
    %2215 = vmatmul.mubr.bf16.gmra.mxu0 %v2048
    %v2216 = vpop.f32.mrf.mxu0
    %v2217 = vadd.f32 0.0, %v2216
    %v2218 = vpop.f32.mrf.mxu0
    %v2219 = vpop.f32.mrf.mxu0
    %v2220 = vadd.f32 0.0, %v2219
    %v2221 = vpop.f32.mrf.mxu0
    %2222 = vmatprep.mubr.bf16.mxu0 0
    %2223 = vmatmul.mubr.bf16.gmra.mxu0 %v2051
    %v2224 = vpop.f32.mrf.mxu0
    %v2225 = vadd.f32 0.0, %v2224
    %v2226 = vpop.f32.mrf.mxu0
    %v2227 = vpop.f32.mrf.mxu0
    %v2228 = vadd.f32 0.0, %v2227
    %v2229 = vpop.f32.mrf.mxu0
    %2230 = vmatprep.mubr.bf16.mxu0 0
    %2231 = vmatmul.mubr.bf16.gmra.mxu0 %v2054
    %v2232 = vpop.f32.mrf.mxu0
    %v2233 = vadd.f32 0.0, %v2232
    %v2234 = vpop.f32.mrf.mxu0
    %v2235 = vpop.f32.mrf.mxu0
    %v2236 = vadd.f32 0.0, %v2235
    %v2237 = vpop.f32.mrf.mxu0
    %2238 = vmatprep.mubr.bf16.mxu0 0
    %2239 = vmatmul.mubr.bf16.gmra.mxu0 %v2057
    %v2240 = vpop.f32.mrf.mxu0
    %v2241 = vadd.f32 0.0, %v2240
    %v2242 = vpop.f32.mrf.mxu0
    %v2243 = vpop.f32.mrf.mxu0
    %v2244 = vadd.f32 0.0, %v2243
    %v2245 = vpop.f32.mrf.mxu0
    %2246 = vmatprep.mubr.bf16.mxu0 0
    %2247 = vmatmul.mubr.bf16.gmra.mxu0 %v2060
    %v2248 = vpop.f32.mrf.mxu0
    %v2249 = vadd.f32 0.0, %v2248
    %v2250 = vpop.f32.mrf.mxu0
    %v2251 = vpop.f32.mrf.mxu0
    %v2252 = vadd.f32 0.0, %v2251
    %v2253 = vpop.f32.mrf.mxu0
    %2254 = vmatprep.mubr.bf16.mxu0 0
    %2255 = vmatmul.mubr.bf16.gmra.mxu0 %v2063
    %v2256 = vpop.f32.mrf.mxu0
    %v2257 = vadd.f32 0.0, %v2256
    %v2258 = vpop.f32.mrf.mxu0
    %v2259 = vpop.f32.mrf.mxu0
    %v2260 = vadd.f32 0.0, %v2259
    %v2261 = vpop.f32.mrf.mxu0
    %2262 = vmatprep.mubr.bf16.mxu0 0
    %2263 = vmatmul.mubr.bf16.gmra.mxu0 %v2066
    %v2264 = vpop.f32.mrf.mxu0
    %v2265 = vadd.f32 0.0, %v2264
    %v2266 = vpop.f32.mrf.mxu0
    %v2267 = vpop.f32.mrf.mxu0
    %v2268 = vadd.f32 0.0, %v2267
    %v2269 = vpop.f32.mrf.mxu0
    %2270 = vmatprep.mubr.bf16.mxu0 0
    %2271 = vmatmul.mubr.bf16.gmra.mxu0 %v2069
    %v2272 = vpop.f32.mrf.mxu0
    %v2273 = vadd.f32 0.0, %v2272
    %v2274 = vpop.f32.mrf.mxu0
    %v2275 = vpop.f32.mrf.mxu0
    %v2276 = vadd.f32 0.0, %v2275
    %v2277 = vpop.f32.mrf.mxu0
    %2278 = vmatprep.mubr.bf16.mxu0 0
    %2279 = vmatmul.mubr.bf16.gmra.mxu0 %v2072
    %v2280 = vpop.f32.mrf.mxu0
    %v2281 = vadd.f32 0.0, %v2280
    %v2282 = vpop.f32.mrf.mxu0
    %v2283 = vpop.f32.mrf.mxu0
    %v2284 = vadd.f32 0.0, %v2283
    %v2285 = vpop.f32.mrf.mxu0
    %2286 = vmatprep.mubr.bf16.mxu0 0
    %2287 = vmatmul.mubr.bf16.gmra.mxu0 %v2075
    %v2288 = vpop.f32.mrf.mxu0
    %v2289 = vadd.f32 0.0, %v2288
    %v2290 = vpop.f32.mrf.mxu0
    %v2291 = vpop.f32.mrf.mxu0
    %v2292 = vadd.f32 0.0, %v2291
    %v2293 = vpop.f32.mrf.mxu0
    %2294 = vmatprep.mubr.bf16.mxu0 0
    %2295 = vmatmul.mubr.bf16.gmra.mxu0 %v2078
    %v2296 = vpop.f32.mrf.mxu0
    %v2297 = vadd.f32 0.0, %v2296
    %v2298 = vpop.f32.mrf.mxu0
    %v2299 = vpop.f32.mrf.mxu0
    %v2300 = vadd.f32 0.0, %v2299
    %v2301 = vpop.f32.mrf.mxu0
    %2302 = vmatprep.mubr.bf16.mxu0 0
    %2303 = vmatmul.mubr.bf16.gmra.mxu0 %v2081
    %v2304 = vpop.f32.mrf.mxu0
    %v2305 = vadd.f32 0.0, %v2304
    %v2306 = vpop.f32.mrf.mxu0
    %v2307 = vpop.f32.mrf.mxu0
    %v2308 = vadd.f32 0.0, %v2307
    %v2309 = vpop.f32.mrf.mxu0
    %2310 = vmatprep.mubr.bf16.mxu0 0
    %2311 = vmatmul.mubr.bf16.gmra.mxu0 %v2084
    %v2312 = vpop.f32.mrf.mxu0
    %v2313 = vadd.f32 0.0, %v2312
    %v2314 = vpop.f32.mrf.mxu0
    %v2315 = vpop.f32.mrf.mxu0
    %v2316 = vadd.f32 0.0, %v2315
    %v2317 = vpop.f32.mrf.mxu0
    %2318 = vmatprep.mubr.bf16.mxu0 0
    %2319 = vmatmul.mubr.bf16.gmra.mxu0 %v2087
    %v2320 = vpop.f32.mrf.mxu0
    %v2321 = vadd.f32 0.0, %v2320
    %v2322 = vpop.f32.mrf.mxu0
    %v2323 = vpop.f32.mrf.mxu0
    %v2324 = vadd.f32 0.0, %v2323
    %v2325 = vpop.f32.mrf.mxu0
    %2326 = vmatprep.mubr.bf16.mxu0 0
    %2327 = vmatmul.mubr.bf16.gmra.mxu0 %v2090
    %v2328 = vpop.f32.mrf.mxu0
    %v2329 = vadd.f32 0.0, %v2328
    %v2330 = vpop.f32.mrf.mxu0
    %v2331 = vpop.f32.mrf.mxu0
    %v2332 = vadd.f32 0.0, %v2331
    %v2333 = vpop.f32.mrf.mxu0
    %2334 = vmatprep.mubr.bf16.mxu0 0
    %2335 = vmatmul.mubr.bf16.gmra.mxu0 %v2093
    %v2336 = vpop.f32.mrf.mxu0
    %v2337 = vadd.f32 0.0, %v2336
    %v2338 = vpop.f32.mrf.mxu0
    %v2339 = vpop.f32.mrf.mxu0
    %v2340 = vadd.f32 0.0, %v2339
    %v2341 = vpop.f32.mrf.mxu0
    %2342 = vmatprep.mubr.bf16.mxu0 0
    %2343 = vmatmul.mubr.bf16.gmra.mxu0 %v2096
    %v2344 = vpop.f32.mrf.mxu0
    %v2345 = vadd.f32 0.0, %v2344
    %v2346 = vpop.f32.mrf.mxu0
    %v2347 = vpop.f32.mrf.mxu0
    %v2348 = vadd.f32 0.0, %v2347
    %v2349 = vpop.f32.mrf.mxu0
    %2350 = vmatprep.mubr.bf16.mxu0 0
    %2351 = vmatmul.mubr.bf16.gmra.mxu0 %v2099
    %v2352 = vpop.f32.mrf.mxu0
    %v2353 = vadd.f32 0.0, %v2352
    %v2354 = vpop.f32.mrf.mxu0
    %v2355 = vpop.f32.mrf.mxu0
    %v2356 = vadd.f32 0.0, %v2355
    %v2357 = vpop.f32.mrf.mxu0
    %2358 = vmatprep.mubr.bf16.mxu0 0
    %2359 = vmatmul.mubr.bf16.gmra.mxu0 %v2102
    %v2360 = vpop.f32.mrf.mxu0
    %v2361 = vadd.f32 0.0, %v2360
    %v2362 = vpop.f32.mrf.mxu0
    %v2363 = vpop.f32.mrf.mxu0
    %v2364 = vadd.f32 0.0, %v2363
    %v2365 = vpop.f32.mrf.mxu0
    %2366 = vmatprep.mubr.bf16.mxu0 0
    %2367 = vmatmul.mubr.bf16.gmra.mxu0 %v2105
    %v2368 = vpop.f32.mrf.mxu0
    %v2369 = vadd.f32 0.0, %v2368
    %v2370 = vpop.f32.mrf.mxu0
    %v2371 = vpop.f32.mrf.mxu0
    %v2372 = vadd.f32 0.0, %v2371
    %v2373 = vpop.f32.mrf.mxu0
    %2374 = vmatprep.mubr.bf16.mxu0 0
    %2375 = vmatmul.mubr.bf16.gmra.mxu0 %v2108
    %v2376 = vpop.f32.mrf.mxu0
    %v2377 = vadd.f32 0.0, %v2376
    %v2378 = vpop.f32.mrf.mxu0
    %v2379 = vpop.f32.mrf.mxu0
    %v2380 = vadd.f32 0.0, %v2379
    %v2381 = vpop.f32.mrf.mxu0
    %2382 = vmatprep.mubr.bf16.mxu0 0
    %2383 = vmatmul.mubr.bf16.gmra.mxu0 %v2111
    %v2384 = vpop.f32.mrf.mxu0
    %v2385 = vadd.f32 0.0, %v2384
    %v2386 = vpop.f32.mrf.mxu0
    %v2387 = vpop.f32.mrf.mxu0
    %v2388 = vadd.f32 0.0, %v2387
    %v2389 = vpop.f32.mrf.mxu0
    %2390 = vmatprep.mubr.bf16.mxu0 0
    %2391 = vmatmul.mubr.bf16.gmra.mxu0 %v2114
    %v2392 = vpop.f32.mrf.mxu0
    %v2393 = vadd.f32 0.0, %v2392
    %v2394 = vpop.f32.mrf.mxu0
    %v2395 = vpop.f32.mrf.mxu0
    %v2396 = vadd.f32 0.0, %v2395
    %v2397 = vpop.f32.mrf.mxu0
    %2398 = vmatprep.mubr.bf16.mxu0 0
    %2399 = vmatmul.mubr.bf16.gmra.mxu0 %v2117
    %v2400 = vpop.f32.mrf.mxu0
    %v2401 = vadd.f32 0.0, %v2400
    %v2402 = vpop.f32.mrf.mxu0
    %v2403 = vpop.f32.mrf.mxu0
    %v2404 = vadd.f32 0.0, %v2403
    %v2405 = vpop.f32.mrf.mxu0
    %2406 = vmatprep.mubr.bf16.mxu0 0
    %2407 = vmatmul.mubr.bf16.gmra.mxu0 %v2120
    %v2408 = vpop.f32.mrf.mxu0
    %v2409 = vadd.f32 0.0, %v2408
    %v2410 = vpop.f32.mrf.mxu0
    %v2411 = vpop.f32.mrf.mxu0
    %v2412 = vadd.f32 0.0, %v2411
    %v2413 = vpop.f32.mrf.mxu0
    %2414 = vmatprep.mubr.bf16.mxu0 0
    %2415 = vmatmul.mubr.bf16.gmra.mxu0 %v2123
    %v2416 = vpop.f32.mrf.mxu0
    %v2417 = vadd.f32 0.0, %v2416
    %v2418 = vpop.f32.mrf.mxu0
    %v2419 = vpop.f32.mrf.mxu0
    %v2420 = vadd.f32 0.0, %v2419
    %v2421 = vpop.f32.mrf.mxu0
    %2422 = vmatprep.mubr.bf16.mxu0 0
    %2423 = vmatmul.mubr.bf16.gmra.mxu0 %v2126
    %v2424 = vpop.f32.mrf.mxu0
    %v2425 = vadd.f32 0.0, %v2424
    %v2426 = vpop.f32.mrf.mxu0
    %v2427 = vpop.f32.mrf.mxu0
    %v2428 = vadd.f32 0.0, %v2427
    %v2429 = vpop.f32.mrf.mxu0
    %2430 = vmatprep.mubr.bf16.mxu0 0
    %2431 = vmatmul.mubr.bf16.gmra.mxu0 %v2129
    %v2432 = vpop.f32.mrf.mxu0
    %v2433 = vadd.f32 0.0, %v2432
    %v2434 = vpop.f32.mrf.mxu0
    %v2435 = vpop.f32.mrf.mxu0
    %v2436 = vadd.f32 0.0, %v2435
    %v2437 = vpop.f32.mrf.mxu0
    %2438 = vmatprep.mubr.bf16.mxu0 0
    %2439 = vmatmul.mubr.bf16.gmra.mxu0 %v2132
    %v2440 = vpop.f32.mrf.mxu0
    %v2441 = vadd.f32 0.0, %v2440
    %v2442 = vpop.f32.mrf.mxu0
    %v2443 = vpop.f32.mrf.mxu0
    %v2444 = vadd.f32 0.0, %v2443
    %v2445 = vpop.f32.mrf.mxu0
    %2446 = vdwg.mxu0
    %v2448 = vsel %vm1628, %v1404, 0
    %v2451 = vsel %vm1628, %v1405, 0
    %v2454 = vsel %vm1628, %v1406, 0
    %v2457 = vsel %vm1628, %v1407, 0
    %v2460 = vsel %vm1628, %v1408, 0
    %v2463 = vsel %vm1628, %v1409, 0
    %v2466 = vsel %vm1628, %v1410, 0
    %v2469 = vsel %vm1628, %v1411, 0
    %v2472 = vsel %vm1628, %v1412, 0
    %v2475 = vsel %vm1628, %v1413, 0
    %v2478 = vsel %vm1628, %v1414, 0
    %v2481 = vsel %vm1628, %v1415, 0
    %v2484 = vsel %vm1628, %v1416, 0
    %v2487 = vsel %vm1628, %v1417, 0
    %v2490 = vsel %vm1628, %v1418, 0
    %v2493 = vsel %vm1628, %v1419, 0
    %v2496 = vsel %vm1628, %v1420, 0
    %v2499 = vsel %vm1628, %v1421, 0
    %v2502 = vsel %vm1628, %v1422, 0
    %v2505 = vsel %vm1628, %v1423, 0
    %v2508 = vsel %vm1628, %v1424, 0
    %v2511 = vsel %vm1628, %v1425, 0
    %v2514 = vsel %vm1628, %v1426, 0
    %v2517 = vsel %vm1628, %v1427, 0
    %v2520 = vsel %vm1628, %v1428, 0
    %v2523 = vsel %vm1628, %v1429, 0
    %v2526 = vsel %vm1628, %v1430, 0
    %v2529 = vsel %vm1628, %v1431, 0
    %v2532 = vsel %vm1628, %v1432, 0
    %v2535 = vsel %vm1628, %v1433, 0
    %v2538 = vsel %vm1628, %v1434, 0
    %v2541 = vsel %vm1628, %v1435, 0
    %v2544 = vsel %vm1628, %v1612, 0
    %v2547 = vsel %vm1628, %v1613, 0
    %v2550 = vsel %vm1628, %v1614, 0
    %v2553 = vsel %vm1628, %v1615, 0
    %v2556 = vsel %vm1628, %v1616, 0
    %v2559 = vsel %vm1628, %v1617, 0
    %v2562 = vsel %vm1628, %v1618, 0
    %v2565 = vsel %vm1628, %v1619, 0
    %2567 = vmatprep.subr.bf16.mxu0 0
    %2568 = vmatpush1.bf16.xpose.msra.mxu0 %v2565
    %2569 = vmatprep.subr.bf16.mxu0 0
    %2570 = vmatpush1.bf16.xpose.msra.mxu0 %v2562
    %2571 = vmatprep.subr.bf16.mxu0 0
    %2572 = vmatpush1.bf16.xpose.msra.mxu0 %v2559
    %2573 = vmatprep.subr.bf16.mxu0 0
    %2574 = vmatpush1.bf16.xpose.msra.mxu0 %v2556
    %2575 = vmatprep.subr.bf16.mxu0 0
    %2576 = vmatpush1.bf16.xpose.msra.mxu0 %v2553
    %2577 = vmatprep.subr.bf16.mxu0 0
    %2578 = vmatpush1.bf16.xpose.msra.mxu0 %v2550
    %2579 = vmatprep.subr.bf16.mxu0 0
    %2580 = vmatpush1.bf16.xpose.msra.mxu0 %v2547
    %2581 = vmatprep.subr.bf16.mxu0 0
    %2582 = vmatpush1.bf16.xpose.msra.mxu0 %v2544
    %2583 = vmatprep.subr.bf16.mxu0 0
    %2584 = vmatpush2.bf16.xpose.msra.mxu0 0
    %2585 = vmatprep.subr.bf16.mxu0 0
    %2586 = vmatpush2.bf16.xpose.msra.mxu0 0
    %2587 = vmatprep.subr.bf16.mxu0 0
    %2588 = vmatpush2.bf16.xpose.msra.mxu0 0
    %2589 = vmatprep.subr.bf16.mxu0 0
    %2590 = vmatpush2.bf16.xpose.msra.mxu0 0
    %2591 = vmatprep.subr.bf16.mxu0 0
    %2592 = vmatpush2.bf16.xpose.msra.mxu0 0
    %2593 = vmatprep.subr.bf16.mxu0 0
    %2594 = vmatpush2.bf16.xpose.msra.mxu0 0
    %2595 = vmatprep.subr.bf16.mxu0 0
    %2596 = vmatpush2.bf16.xpose.msra.mxu0 0
    %2597 = vmatprep.subr.bf16.mxu0 0
    %2598 = vmatpush2.bf16.xpose.msra.mxu0 0
    %2599 = vmatprep.mubr.bf16.mxu0 0
    %2600 = vmatmul.mubr.bf16.gmra.mxu0 %v2448
    %v2601 = vpop.f32.mrf.mxu0
    %v2602 = vadd.f32 0.0, %v2601
    %v2603 = vpop.f32.mrf.mxu0
    %v2604 = vpop.f32.mrf.mxu0
    %v2605 = vadd.f32 0.0, %v2604
    %v2606 = vpop.f32.mrf.mxu0
    %2607 = vmatprep.mubr.bf16.mxu0 0
    %2608 = vmatmul.mubr.bf16.gmra.mxu0 %v2451
    %v2609 = vpop.f32.mrf.mxu0
    %v2610 = vadd.f32 0.0, %v2609
    %v2611 = vpop.f32.mrf.mxu0
    %v2612 = vpop.f32.mrf.mxu0
    %v2613 = vadd.f32 0.0, %v2612
    %v2614 = vpop.f32.mrf.mxu0
    %2615 = vmatprep.mubr.bf16.mxu0 0
    %2616 = vmatmul.mubr.bf16.gmra.mxu0 %v2454
    %v2617 = vpop.f32.mrf.mxu0
    %v2618 = vadd.f32 0.0, %v2617
    %v2619 = vpop.f32.mrf.mxu0
    %v2620 = vpop.f32.mrf.mxu0
    %v2621 = vadd.f32 0.0, %v2620
    %v2622 = vpop.f32.mrf.mxu0
    %2623 = vmatprep.mubr.bf16.mxu0 0
    %2624 = vmatmul.mubr.bf16.gmra.mxu0 %v2457
    %v2625 = vpop.f32.mrf.mxu0
    %v2626 = vadd.f32 0.0, %v2625
    %v2627 = vpop.f32.mrf.mxu0
    %v2628 = vpop.f32.mrf.mxu0
    %v2629 = vadd.f32 0.0, %v2628
    %v2630 = vpop.f32.mrf.mxu0
    %2631 = vmatprep.mubr.bf16.mxu0 0
    %2632 = vmatmul.mubr.bf16.gmra.mxu0 %v2460
    %v2633 = vpop.f32.mrf.mxu0
    %v2634 = vadd.f32 0.0, %v2633
    %v2635 = vpop.f32.mrf.mxu0
    %v2636 = vpop.f32.mrf.mxu0
    %v2637 = vadd.f32 0.0, %v2636
    %v2638 = vpop.f32.mrf.mxu0
    %2639 = vmatprep.mubr.bf16.mxu0 0
    %2640 = vmatmul.mubr.bf16.gmra.mxu0 %v2463
    %v2641 = vpop.f32.mrf.mxu0
    %v2642 = vadd.f32 0.0, %v2641
    %v2643 = vpop.f32.mrf.mxu0
    %v2644 = vpop.f32.mrf.mxu0
    %v2645 = vadd.f32 0.0, %v2644
    %v2646 = vpop.f32.mrf.mxu0
    %2647 = vmatprep.mubr.bf16.mxu0 0
    %2648 = vmatmul.mubr.bf16.gmra.mxu0 %v2466
    %v2649 = vpop.f32.mrf.mxu0
    %v2650 = vadd.f32 0.0, %v2649
    %v2651 = vpop.f32.mrf.mxu0
    %v2652 = vpop.f32.mrf.mxu0
    %v2653 = vadd.f32 0.0, %v2652
    %v2654 = vpop.f32.mrf.mxu0
    %2655 = vmatprep.mubr.bf16.mxu0 0
    %2656 = vmatmul.mubr.bf16.gmra.mxu0 %v2469
    %v2657 = vpop.f32.mrf.mxu0
    %v2658 = vadd.f32 0.0, %v2657
    %v2659 = vpop.f32.mrf.mxu0
    %v2660 = vpop.f32.mrf.mxu0
    %v2661 = vadd.f32 0.0, %v2660
    %v2662 = vpop.f32.mrf.mxu0
    %2663 = vmatprep.mubr.bf16.mxu0 0
    %2664 = vmatmul.mubr.bf16.gmra.mxu0 %v2472
    %v2665 = vpop.f32.mrf.mxu0
    %v2666 = vadd.f32 0.0, %v2665
    %v2667 = vpop.f32.mrf.mxu0
    %v2668 = vpop.f32.mrf.mxu0
    %v2669 = vadd.f32 0.0, %v2668
    %v2670 = vpop.f32.mrf.mxu0
    %2671 = vmatprep.mubr.bf16.mxu0 0
    %2672 = vmatmul.mubr.bf16.gmra.mxu0 %v2475
    %v2673 = vpop.f32.mrf.mxu0
    %v2674 = vadd.f32 0.0, %v2673
    %v2675 = vpop.f32.mrf.mxu0
    %v2676 = vpop.f32.mrf.mxu0
    %v2677 = vadd.f32 0.0, %v2676
    %v2678 = vpop.f32.mrf.mxu0
    %2679 = vmatprep.mubr.bf16.mxu0 0
    %2680 = vmatmul.mubr.bf16.gmra.mxu0 %v2478
    %v2681 = vpop.f32.mrf.mxu0
    %v2682 = vadd.f32 0.0, %v2681
    %v2683 = vpop.f32.mrf.mxu0
    %v2684 = vpop.f32.mrf.mxu0
    %v2685 = vadd.f32 0.0, %v2684
    %v2686 = vpop.f32.mrf.mxu0
    %2687 = vmatprep.mubr.bf16.mxu0 0
    %2688 = vmatmul.mubr.bf16.gmra.mxu0 %v2481
    %v2689 = vpop.f32.mrf.mxu0
    %v2690 = vadd.f32 0.0, %v2689
    %v2691 = vpop.f32.mrf.mxu0
    %v2692 = vpop.f32.mrf.mxu0
    %v2693 = vadd.f32 0.0, %v2692
    %v2694 = vpop.f32.mrf.mxu0
    %2695 = vmatprep.mubr.bf16.mxu0 0
    %2696 = vmatmul.mubr.bf16.gmra.mxu0 %v2484
    %v2697 = vpop.f32.mrf.mxu0
    %v2698 = vadd.f32 0.0, %v2697
    %v2699 = vpop.f32.mrf.mxu0
    %v2700 = vpop.f32.mrf.mxu0
    %v2701 = vadd.f32 0.0, %v2700
    %v2702 = vpop.f32.mrf.mxu0
    %2703 = vmatprep.mubr.bf16.mxu0 0
    %2704 = vmatmul.mubr.bf16.gmra.mxu0 %v2487
    %v2705 = vpop.f32.mrf.mxu0
    %v2706 = vadd.f32 0.0, %v2705
    %v2707 = vpop.f32.mrf.mxu0
    %v2708 = vpop.f32.mrf.mxu0
    %v2709 = vadd.f32 0.0, %v2708
    %v2710 = vpop.f32.mrf.mxu0
    %2711 = vmatprep.mubr.bf16.mxu0 0
    %2712 = vmatmul.mubr.bf16.gmra.mxu0 %v2490
    %v2713 = vpop.f32.mrf.mxu0
    %v2714 = vadd.f32 0.0, %v2713
    %v2715 = vpop.f32.mrf.mxu0
    %v2716 = vpop.f32.mrf.mxu0
    %v2717 = vadd.f32 0.0, %v2716
    %v2718 = vpop.f32.mrf.mxu0
    %2719 = vmatprep.mubr.bf16.mxu0 0
    %2720 = vmatmul.mubr.bf16.gmra.mxu0 %v2493
    %v2721 = vpop.f32.mrf.mxu0
    %v2722 = vadd.f32 0.0, %v2721
    %v2723 = vpop.f32.mrf.mxu0
    %v2724 = vpop.f32.mrf.mxu0
    %v2725 = vadd.f32 0.0, %v2724
    %v2726 = vpop.f32.mrf.mxu0
    %2727 = vmatprep.mubr.bf16.mxu0 0
    %2728 = vmatmul.mubr.bf16.gmra.mxu0 %v2496
    %v2729 = vpop.f32.mrf.mxu0
    %v2730 = vadd.f32 0.0, %v2729
    %v2731 = vpop.f32.mrf.mxu0
    %v2732 = vpop.f32.mrf.mxu0
    %v2733 = vadd.f32 0.0, %v2732
    %v2734 = vpop.f32.mrf.mxu0
    %2735 = vmatprep.mubr.bf16.mxu0 0
    %2736 = vmatmul.mubr.bf16.gmra.mxu0 %v2499
    %v2737 = vpop.f32.mrf.mxu0
    %v2738 = vadd.f32 0.0, %v2737
    %v2739 = vpop.f32.mrf.mxu0
    %v2740 = vpop.f32.mrf.mxu0
    %v2741 = vadd.f32 0.0, %v2740
    %v2742 = vpop.f32.mrf.mxu0
    %2743 = vmatprep.mubr.bf16.mxu0 0
    %2744 = vmatmul.mubr.bf16.gmra.mxu0 %v2502
    %v2745 = vpop.f32.mrf.mxu0
    %v2746 = vadd.f32 0.0, %v2745
    %v2747 = vpop.f32.mrf.mxu0
    %v2748 = vpop.f32.mrf.mxu0
    %v2749 = vadd.f32 0.0, %v2748
    %v2750 = vpop.f32.mrf.mxu0
    %2751 = vmatprep.mubr.bf16.mxu0 0
    %2752 = vmatmul.mubr.bf16.gmra.mxu0 %v2505
    %v2753 = vpop.f32.mrf.mxu0
    %v2754 = vadd.f32 0.0, %v2753
    %v2755 = vpop.f32.mrf.mxu0
    %v2756 = vpop.f32.mrf.mxu0
    %v2757 = vadd.f32 0.0, %v2756
    %v2758 = vpop.f32.mrf.mxu0
    %2759 = vmatprep.mubr.bf16.mxu0 0
    %2760 = vmatmul.mubr.bf16.gmra.mxu0 %v2508
    %v2761 = vpop.f32.mrf.mxu0
    %v2762 = vadd.f32 0.0, %v2761
    %v2763 = vpop.f32.mrf.mxu0
    %v2764 = vpop.f32.mrf.mxu0
    %v2765 = vadd.f32 0.0, %v2764
    %v2766 = vpop.f32.mrf.mxu0
    %2767 = vmatprep.mubr.bf16.mxu0 0
    %2768 = vmatmul.mubr.bf16.gmra.mxu0 %v2511
    %v2769 = vpop.f32.mrf.mxu0
    %v2770 = vadd.f32 0.0, %v2769
    %v2771 = vpop.f32.mrf.mxu0
    %v2772 = vpop.f32.mrf.mxu0
    %v2773 = vadd.f32 0.0, %v2772
    %v2774 = vpop.f32.mrf.mxu0
    %2775 = vmatprep.mubr.bf16.mxu0 0
    %2776 = vmatmul.mubr.bf16.gmra.mxu0 %v2514
    %v2777 = vpop.f32.mrf.mxu0
    %v2778 = vadd.f32 0.0, %v2777
    %v2779 = vpop.f32.mrf.mxu0
    %v2780 = vpop.f32.mrf.mxu0
    %v2781 = vadd.f32 0.0, %v2780
    %v2782 = vpop.f32.mrf.mxu0
    %2783 = vmatprep.mubr.bf16.mxu0 0
    %2784 = vmatmul.mubr.bf16.gmra.mxu0 %v2517
    %v2785 = vpop.f32.mrf.mxu0
    %v2786 = vadd.f32 0.0, %v2785
    %v2787 = vpop.f32.mrf.mxu0
    %v2788 = vpop.f32.mrf.mxu0
    %v2789 = vadd.f32 0.0, %v2788
    %v2790 = vpop.f32.mrf.mxu0
    %2791 = vmatprep.mubr.bf16.mxu0 0
    %2792 = vmatmul.mubr.bf16.gmra.mxu0 %v2520
    %v2793 = vpop.f32.mrf.mxu0
    %v2794 = vadd.f32 0.0, %v2793
    %v2795 = vpop.f32.mrf.mxu0
    %v2796 = vpop.f32.mrf.mxu0
    %v2797 = vadd.f32 0.0, %v2796
    %v2798 = vpop.f32.mrf.mxu0
    %2799 = vmatprep.mubr.bf16.mxu0 0
    %2800 = vmatmul.mubr.bf16.gmra.mxu0 %v2523
    %v2801 = vpop.f32.mrf.mxu0
    %v2802 = vadd.f32 0.0, %v2801
    %v2803 = vpop.f32.mrf.mxu0
    %v2804 = vpop.f32.mrf.mxu0
    %v2805 = vadd.f32 0.0, %v2804
    %v2806 = vpop.f32.mrf.mxu0
    %2807 = vmatprep.mubr.bf16.mxu0 0
    %2808 = vmatmul.mubr.bf16.gmra.mxu0 %v2526
    %v2809 = vpop.f32.mrf.mxu0
    %v2810 = vadd.f32 0.0, %v2809
    %v2811 = vpop.f32.mrf.mxu0
    %v2812 = vpop.f32.mrf.mxu0
    %v2813 = vadd.f32 0.0, %v2812
    %v2814 = vpop.f32.mrf.mxu0
    %2815 = vmatprep.mubr.bf16.mxu0 0
    %2816 = vmatmul.mubr.bf16.gmra.mxu0 %v2529
    %v2817 = vpop.f32.mrf.mxu0
    %v2818 = vadd.f32 0.0, %v2817
    %v2819 = vpop.f32.mrf.mxu0
    %v2820 = vpop.f32.mrf.mxu0
    %v2821 = vadd.f32 0.0, %v2820
    %v2822 = vpop.f32.mrf.mxu0
    %2823 = vmatprep.mubr.bf16.mxu0 0
    %2824 = vmatmul.mubr.bf16.gmra.mxu0 %v2532
    %v2825 = vpop.f32.mrf.mxu0
    %v2826 = vadd.f32 0.0, %v2825
    %v2827 = vpop.f32.mrf.mxu0
    %v2828 = vpop.f32.mrf.mxu0
    %v2829 = vadd.f32 0.0, %v2828
    %v2830 = vpop.f32.mrf.mxu0
    %2831 = vmatprep.mubr.bf16.mxu0 0
    %2832 = vmatmul.mubr.bf16.gmra.mxu0 %v2535
    %v2833 = vpop.f32.mrf.mxu0
    %v2834 = vadd.f32 0.0, %v2833
    %v2835 = vpop.f32.mrf.mxu0
    %v2836 = vpop.f32.mrf.mxu0
    %v2837 = vadd.f32 0.0, %v2836
    %v2838 = vpop.f32.mrf.mxu0
    %2839 = vmatprep.mubr.bf16.mxu0 0
    %2840 = vmatmul.mubr.bf16.gmra.mxu0 %v2538
    %v2841 = vpop.f32.mrf.mxu0
    %v2842 = vadd.f32 0.0, %v2841
    %v2843 = vpop.f32.mrf.mxu0
    %v2844 = vpop.f32.mrf.mxu0
    %v2845 = vadd.f32 0.0, %v2844
    %v2846 = vpop.f32.mrf.mxu0
    %2847 = vmatprep.mubr.bf16.mxu0 0
    %2848 = vmatmul.mubr.bf16.gmra.mxu0 %v2541
    %v2849 = vpop.f32.mrf.mxu0
    %v2850 = vadd.f32 0.0, %v2849
    %v2851 = vpop.f32.mrf.mxu0
    %v2852 = vpop.f32.mrf.mxu0
    %v2853 = vadd.f32 0.0, %v2852
    %v2854 = vpop.f32.mrf.mxu0
    %2855 = vdwg.mxu0
    %v2857 = vsel %vm1628, %v1436, 0
    %v2860 = vsel %vm1628, %v1437, 0
    %v2863 = vsel %vm1628, %v1438, 0
    %v2866 = vsel %vm1628, %v1439, 0
    %v2869 = vsel %vm1628, %v1440, 0
    %v2872 = vsel %vm1628, %v1441, 0
    %v2875 = vsel %vm1628, %v1442, 0
    %v2878 = vsel %vm1628, %v1443, 0
    %v2881 = vsel %vm1628, %v1444, 0
    %v2884 = vsel %vm1628, %v1445, 0
    %v2887 = vsel %vm1628, %v1446, 0
    %v2890 = vsel %vm1628, %v1447, 0
    %v2893 = vsel %vm1628, %v1448, 0
    %v2896 = vsel %vm1628, %v1449, 0
    %v2899 = vsel %vm1628, %v1450, 0
    %v2902 = vsel %vm1628, %v1451, 0
    %v2905 = vsel %vm1628, %v1452, 0
    %v2908 = vsel %vm1628, %v1453, 0
    %v2911 = vsel %vm1628, %v1454, 0
    %v2914 = vsel %vm1628, %v1455, 0
    %v2917 = vsel %vm1628, %v1456, 0
    %v2920 = vsel %vm1628, %v1457, 0
    %v2923 = vsel %vm1628, %v1458, 0
    %v2926 = vsel %vm1628, %v1459, 0
    %v2929 = vsel %vm1628, %v1460, 0
    %v2932 = vsel %vm1628, %v1461, 0
    %v2935 = vsel %vm1628, %v1462, 0
    %v2938 = vsel %vm1628, %v1463, 0
    %v2941 = vsel %vm1628, %v1464, 0
    %v2944 = vsel %vm1628, %v1465, 0
    %v2947 = vsel %vm1628, %v1466, 0
    %v2950 = vsel %vm1628, %v1467, 0
    %v2953 = vsel %vm1628, %v1620, 0
    %v2956 = vsel %vm1628, %v1621, 0
    %v2959 = vsel %vm1628, %v1622, 0
    %v2962 = vsel %vm1628, %v1623, 0
    %v2965 = vsel %vm1628, %v1624, 0
    %v2968 = vsel %vm1628, %v1625, 0
    %v2971 = vsel %vm1628, %v1626, 0
    %v2974 = vsel %vm1628, %v1627, 0
    %2976 = vmatprep.subr.bf16.mxu0 0
    %2977 = vmatpush1.bf16.xpose.msra.mxu0 %v2974
    %2978 = vmatprep.subr.bf16.mxu0 0
    %2979 = vmatpush1.bf16.xpose.msra.mxu0 %v2971
    %2980 = vmatprep.subr.bf16.mxu0 0
    %2981 = vmatpush1.bf16.xpose.msra.mxu0 %v2968
    %2982 = vmatprep.subr.bf16.mxu0 0
    %2983 = vmatpush1.bf16.xpose.msra.mxu0 %v2965
    %2984 = vmatprep.subr.bf16.mxu0 0
    %2985 = vmatpush1.bf16.xpose.msra.mxu0 %v2962
    %2986 = vmatprep.subr.bf16.mxu0 0
    %2987 = vmatpush1.bf16.xpose.msra.mxu0 %v2959
    %2988 = vmatprep.subr.bf16.mxu0 0
    %2989 = vmatpush1.bf16.xpose.msra.mxu0 %v2956
    %2990 = vmatprep.subr.bf16.mxu0 0
    %2991 = vmatpush1.bf16.xpose.msra.mxu0 %v2953
    %2992 = vmatprep.subr.bf16.mxu0 0
    %2993 = vmatpush2.bf16.xpose.msra.mxu0 0
    %2994 = vmatprep.subr.bf16.mxu0 0
    %2995 = vmatpush2.bf16.xpose.msra.mxu0 0
    %2996 = vmatprep.subr.bf16.mxu0 0
    %2997 = vmatpush2.bf16.xpose.msra.mxu0 0
    %2998 = vmatprep.subr.bf16.mxu0 0
    %2999 = vmatpush2.bf16.xpose.msra.mxu0 0
    %3000 = vmatprep.subr.bf16.mxu0 0
    %3001 = vmatpush2.bf16.xpose.msra.mxu0 0
    %3002 = vmatprep.subr.bf16.mxu0 0
    %3003 = vmatpush2.bf16.xpose.msra.mxu0 0
    %3004 = vmatprep.subr.bf16.mxu0 0
    %3005 = vmatpush2.bf16.xpose.msra.mxu0 0
    %3006 = vmatprep.subr.bf16.mxu0 0
    %3007 = vmatpush2.bf16.xpose.msra.mxu0 0
    %3008 = vmatprep.mubr.bf16.mxu0 0
    %3009 = vmatmul.mubr.bf16.gmra.mxu0 %v2857
    %v3010 = vpop.f32.mrf.mxu0
    %v3011 = vadd.f32 0.0, %v3010
    %v3012 = vpop.f32.mrf.mxu0
    %v3013 = vpop.f32.mrf.mxu0
    %v3014 = vadd.f32 0.0, %v3013
    %v3015 = vpop.f32.mrf.mxu0
    %3016 = vmatprep.mubr.bf16.mxu0 0
    %3017 = vmatmul.mubr.bf16.gmra.mxu0 %v2860
    %v3018 = vpop.f32.mrf.mxu0
    %v3019 = vadd.f32 0.0, %v3018
    %v3020 = vpop.f32.mrf.mxu0
    %v3021 = vpop.f32.mrf.mxu0
    %v3022 = vadd.f32 0.0, %v3021
    %v3023 = vpop.f32.mrf.mxu0
    %3024 = vmatprep.mubr.bf16.mxu0 0
    %3025 = vmatmul.mubr.bf16.gmra.mxu0 %v2863
    %v3026 = vpop.f32.mrf.mxu0
    %v3027 = vadd.f32 0.0, %v3026
    %v3028 = vpop.f32.mrf.mxu0
    %v3029 = vpop.f32.mrf.mxu0
    %v3030 = vadd.f32 0.0, %v3029
    %v3031 = vpop.f32.mrf.mxu0
    %3032 = vmatprep.mubr.bf16.mxu0 0
    %3033 = vmatmul.mubr.bf16.gmra.mxu0 %v2866
    %v3034 = vpop.f32.mrf.mxu0
    %v3035 = vadd.f32 0.0, %v3034
    %v3036 = vpop.f32.mrf.mxu0
    %v3037 = vpop.f32.mrf.mxu0
    %v3038 = vadd.f32 0.0, %v3037
    %v3039 = vpop.f32.mrf.mxu0
    %3040 = vmatprep.mubr.bf16.mxu0 0
    %3041 = vmatmul.mubr.bf16.gmra.mxu0 %v2869
    %v3042 = vpop.f32.mrf.mxu0
    %v3043 = vadd.f32 0.0, %v3042
    %v3044 = vpop.f32.mrf.mxu0
    %v3045 = vpop.f32.mrf.mxu0
    %v3046 = vadd.f32 0.0, %v3045
    %v3047 = vpop.f32.mrf.mxu0
    %3048 = vmatprep.mubr.bf16.mxu0 0
    %3049 = vmatmul.mubr.bf16.gmra.mxu0 %v2872
    %v3050 = vpop.f32.mrf.mxu0
    %v3051 = vadd.f32 0.0, %v3050
    %v3052 = vpop.f32.mrf.mxu0
    %v3053 = vpop.f32.mrf.mxu0
    %v3054 = vadd.f32 0.0, %v3053
    %v3055 = vpop.f32.mrf.mxu0
    %3056 = vmatprep.mubr.bf16.mxu0 0
    %3057 = vmatmul.mubr.bf16.gmra.mxu0 %v2875
    %v3058 = vpop.f32.mrf.mxu0
    %v3059 = vadd.f32 0.0, %v3058
    %v3060 = vpop.f32.mrf.mxu0
    %v3061 = vpop.f32.mrf.mxu0
    %v3062 = vadd.f32 0.0, %v3061
    %v3063 = vpop.f32.mrf.mxu0
    %3064 = vmatprep.mubr.bf16.mxu0 0
    %3065 = vmatmul.mubr.bf16.gmra.mxu0 %v2878
    %v3066 = vpop.f32.mrf.mxu0
    %v3067 = vadd.f32 0.0, %v3066
    %v3068 = vpop.f32.mrf.mxu0
    %v3069 = vpop.f32.mrf.mxu0
    %v3070 = vadd.f32 0.0, %v3069
    %v3071 = vpop.f32.mrf.mxu0
    %3072 = vmatprep.mubr.bf16.mxu0 0
    %3073 = vmatmul.mubr.bf16.gmra.mxu0 %v2881
    %v3074 = vpop.f32.mrf.mxu0
    %v3075 = vadd.f32 0.0, %v3074
    %v3076 = vpop.f32.mrf.mxu0
    %v3077 = vpop.f32.mrf.mxu0
    %v3078 = vadd.f32 0.0, %v3077
    %v3079 = vpop.f32.mrf.mxu0
    %3080 = vmatprep.mubr.bf16.mxu0 0
    %3081 = vmatmul.mubr.bf16.gmra.mxu0 %v2884
    %v3082 = vpop.f32.mrf.mxu0
    %v3083 = vadd.f32 0.0, %v3082
    %v3084 = vpop.f32.mrf.mxu0
    %v3085 = vpop.f32.mrf.mxu0
    %v3086 = vadd.f32 0.0, %v3085
    %v3087 = vpop.f32.mrf.mxu0
    %3088 = vmatprep.mubr.bf16.mxu0 0
    %3089 = vmatmul.mubr.bf16.gmra.mxu0 %v2887
    %v3090 = vpop.f32.mrf.mxu0
    %v3091 = vadd.f32 0.0, %v3090
    %v3092 = vpop.f32.mrf.mxu0
    %v3093 = vpop.f32.mrf.mxu0
    %v3094 = vadd.f32 0.0, %v3093
    %v3095 = vpop.f32.mrf.mxu0
    %3096 = vmatprep.mubr.bf16.mxu0 0
    %3097 = vmatmul.mubr.bf16.gmra.mxu0 %v2890
    %v3098 = vpop.f32.mrf.mxu0
    %v3099 = vadd.f32 0.0, %v3098
    %v3100 = vpop.f32.mrf.mxu0
    %v3101 = vpop.f32.mrf.mxu0
    %v3102 = vadd.f32 0.0, %v3101
    %v3103 = vpop.f32.mrf.mxu0
    %3104 = vmatprep.mubr.bf16.mxu0 0
    %3105 = vmatmul.mubr.bf16.gmra.mxu0 %v2893
    %v3106 = vpop.f32.mrf.mxu0
    %v3107 = vadd.f32 0.0, %v3106
    %v3108 = vpop.f32.mrf.mxu0
    %v3109 = vpop.f32.mrf.mxu0
    %v3110 = vadd.f32 0.0, %v3109
    %v3111 = vpop.f32.mrf.mxu0
    %3112 = vmatprep.mubr.bf16.mxu0 0
    %3113 = vmatmul.mubr.bf16.gmra.mxu0 %v2896
    %v3114 = vpop.f32.mrf.mxu0
    %v3115 = vadd.f32 0.0, %v3114
    %v3116 = vpop.f32.mrf.mxu0
    %v3117 = vpop.f32.mrf.mxu0
    %v3118 = vadd.f32 0.0, %v3117
    %v3119 = vpop.f32.mrf.mxu0
    %3120 = vmatprep.mubr.bf16.mxu0 0
    %3121 = vmatmul.mubr.bf16.gmra.mxu0 %v2899
    %v3122 = vpop.f32.mrf.mxu0
    %v3123 = vadd.f32 0.0, %v3122
    %v3124 = vpop.f32.mrf.mxu0
    %v3125 = vpop.f32.mrf.mxu0
    %v3126 = vadd.f32 0.0, %v3125
    %v3127 = vpop.f32.mrf.mxu0
    %3128 = vmatprep.mubr.bf16.mxu0 0
    %3129 = vmatmul.mubr.bf16.gmra.mxu0 %v2902
    %v3130 = vpop.f32.mrf.mxu0
    %v3131 = vadd.f32 0.0, %v3130
    %v3132 = vpop.f32.mrf.mxu0
    %v3133 = vpop.f32.mrf.mxu0
    %v3134 = vadd.f32 0.0, %v3133
    %v3135 = vpop.f32.mrf.mxu0
    %3136 = vmatprep.mubr.bf16.mxu0 0
    %3137 = vmatmul.mubr.bf16.gmra.mxu0 %v2905
    %v3138 = vpop.f32.mrf.mxu0
    %v3139 = vadd.f32 0.0, %v3138
    %v3140 = vpop.f32.mrf.mxu0
    %v3141 = vpop.f32.mrf.mxu0
    %v3142 = vadd.f32 0.0, %v3141
    %v3143 = vpop.f32.mrf.mxu0
    %3144 = vmatprep.mubr.bf16.mxu0 0
    %3145 = vmatmul.mubr.bf16.gmra.mxu0 %v2908
    %v3146 = vpop.f32.mrf.mxu0
    %v3147 = vadd.f32 0.0, %v3146
    %v3148 = vpop.f32.mrf.mxu0
    %v3149 = vpop.f32.mrf.mxu0
    %v3150 = vadd.f32 0.0, %v3149
    %v3151 = vpop.f32.mrf.mxu0
    %3152 = vmatprep.mubr.bf16.mxu0 0
    %3153 = vmatmul.mubr.bf16.gmra.mxu0 %v2911
    %v3154 = vpop.f32.mrf.mxu0
    %v3155 = vadd.f32 0.0, %v3154
    %v3156 = vpop.f32.mrf.mxu0
    %v3157 = vpop.f32.mrf.mxu0
    %v3158 = vadd.f32 0.0, %v3157
    %v3159 = vpop.f32.mrf.mxu0
    %3160 = vmatprep.mubr.bf16.mxu0 0
    %3161 = vmatmul.mubr.bf16.gmra.mxu0 %v2914
    %v3162 = vpop.f32.mrf.mxu0
    %v3163 = vadd.f32 0.0, %v3162
    %v3164 = vpop.f32.mrf.mxu0
    %v3165 = vpop.f32.mrf.mxu0
    %v3166 = vadd.f32 0.0, %v3165
    %v3167 = vpop.f32.mrf.mxu0
    %3168 = vmatprep.mubr.bf16.mxu0 0
    %3169 = vmatmul.mubr.bf16.gmra.mxu0 %v2917
    %v3170 = vpop.f32.mrf.mxu0
    %v3171 = vadd.f32 0.0, %v3170
    %v3172 = vpop.f32.mrf.mxu0
    %v3173 = vpop.f32.mrf.mxu0
    %v3174 = vadd.f32 0.0, %v3173
    %v3175 = vpop.f32.mrf.mxu0
    %3176 = vmatprep.mubr.bf16.mxu0 0
    %3177 = vmatmul.mubr.bf16.gmra.mxu0 %v2920
    %v3178 = vpop.f32.mrf.mxu0
    %v3179 = vadd.f32 0.0, %v3178
    %v3180 = vpop.f32.mrf.mxu0
    %v3181 = vpop.f32.mrf.mxu0
    %v3182 = vadd.f32 0.0, %v3181
    %v3183 = vpop.f32.mrf.mxu0
    %3184 = vmatprep.mubr.bf16.mxu0 0
    %3185 = vmatmul.mubr.bf16.gmra.mxu0 %v2923
    %v3186 = vpop.f32.mrf.mxu0
    %v3187 = vadd.f32 0.0, %v3186
    %v3188 = vpop.f32.mrf.mxu0
    %v3189 = vpop.f32.mrf.mxu0
    %v3190 = vadd.f32 0.0, %v3189
    %v3191 = vpop.f32.mrf.mxu0
    %3192 = vmatprep.mubr.bf16.mxu0 0
    %3193 = vmatmul.mubr.bf16.gmra.mxu0 %v2926
    %v3194 = vpop.f32.mrf.mxu0
    %v3195 = vadd.f32 0.0, %v3194
    %v3196 = vpop.f32.mrf.mxu0
    %v3197 = vpop.f32.mrf.mxu0
    %v3198 = vadd.f32 0.0, %v3197
    %v3199 = vpop.f32.mrf.mxu0
    %3200 = vmatprep.mubr.bf16.mxu0 0
    %3201 = vmatmul.mubr.bf16.gmra.mxu0 %v2929
    %v3202 = vpop.f32.mrf.mxu0
    %v3203 = vadd.f32 0.0, %v3202
    %v3204 = vpop.f32.mrf.mxu0
    %v3205 = vpop.f32.mrf.mxu0
    %v3206 = vadd.f32 0.0, %v3205
    %v3207 = vpop.f32.mrf.mxu0
    %3208 = vmatprep.mubr.bf16.mxu0 0
    %3209 = vmatmul.mubr.bf16.gmra.mxu0 %v2932
    %v3210 = vpop.f32.mrf.mxu0
    %v3211 = vadd.f32 0.0, %v3210
    %v3212 = vpop.f32.mrf.mxu0
    %v3213 = vpop.f32.mrf.mxu0
    %v3214 = vadd.f32 0.0, %v3213
    %v3215 = vpop.f32.mrf.mxu0
    %3216 = vmatprep.mubr.bf16.mxu0 0
    %3217 = vmatmul.mubr.bf16.gmra.mxu0 %v2935
    %v3218 = vpop.f32.mrf.mxu0
    %v3219 = vadd.f32 0.0, %v3218
    %v3220 = vpop.f32.mrf.mxu0
    %v3221 = vpop.f32.mrf.mxu0
    %v3222 = vadd.f32 0.0, %v3221
    %v3223 = vpop.f32.mrf.mxu0
    %3224 = vmatprep.mubr.bf16.mxu0 0
    %3225 = vmatmul.mubr.bf16.gmra.mxu0 %v2938
    %v3226 = vpop.f32.mrf.mxu0
    %v3227 = vadd.f32 0.0, %v3226
    %v3228 = vpop.f32.mrf.mxu0
    %v3229 = vpop.f32.mrf.mxu0
    %v3230 = vadd.f32 0.0, %v3229
    %v3231 = vpop.f32.mrf.mxu0
    %3232 = vmatprep.mubr.bf16.mxu0 0
    %3233 = vmatmul.mubr.bf16.gmra.mxu0 %v2941
    %v3234 = vpop.f32.mrf.mxu0
    %v3235 = vadd.f32 0.0, %v3234
    %v3236 = vpop.f32.mrf.mxu0
    %v3237 = vpop.f32.mrf.mxu0
    %v3238 = vadd.f32 0.0, %v3237
    %v3239 = vpop.f32.mrf.mxu0
    %3240 = vmatprep.mubr.bf16.mxu0 0
    %3241 = vmatmul.mubr.bf16.gmra.mxu0 %v2944
    %v3242 = vpop.f32.mrf.mxu0
    %v3243 = vadd.f32 0.0, %v3242
    %v3244 = vpop.f32.mrf.mxu0
    %v3245 = vpop.f32.mrf.mxu0
    %v3246 = vadd.f32 0.0, %v3245
    %v3247 = vpop.f32.mrf.mxu0
    %3248 = vmatprep.mubr.bf16.mxu0 0
    %3249 = vmatmul.mubr.bf16.gmra.mxu0 %v2947
    %v3250 = vpop.f32.mrf.mxu0
    %v3251 = vadd.f32 0.0, %v3250
    %v3252 = vpop.f32.mrf.mxu0
    %v3253 = vpop.f32.mrf.mxu0
    %v3254 = vadd.f32 0.0, %v3253
    %v3255 = vpop.f32.mrf.mxu0
    %3256 = vmatprep.mubr.bf16.mxu0 0
    %3257 = vmatmul.mubr.bf16.gmra.mxu0 %v2950
    %v3258 = vpop.f32.mrf.mxu0
    %v3259 = vadd.f32 0.0, %v3258
    %v3260 = vpop.f32.mrf.mxu0
    %v3261 = vpop.f32.mrf.mxu0
    %v3262 = vadd.f32 0.0, %v3261
    %v3263 = vpop.f32.mrf.mxu0
    %3264 = vdwg.mxu0
    %3265 = vmax.xlane.f32.xlu0 %v1784
    %v3266 = vpop.xlane.xlu0 %3265
    %3267 = vmax.xlane.f32.xlu0 %v1787
    %v3268 = vpop.xlane.xlu0 %3267
    %3269 = vmax.xlane.f32.xlu0 %v1792
    %v3270 = vpop.xlane.xlu0 %3269
    %3271 = vmax.xlane.f32.xlu0 %v1795
    %v3272 = vpop.xlane.xlu0 %3271
    %3273 = vmax.xlane.f32.xlu0 %v1800
    %v3274 = vpop.xlane.xlu0 %3273
    %3275 = vmax.xlane.f32.xlu0 %v1803
    %v3276 = vpop.xlane.xlu0 %3275
    %3277 = vmax.xlane.f32.xlu0 %v1808
    %v3278 = vpop.xlane.xlu0 %3277
    %3279 = vmax.xlane.f32.xlu0 %v1811
    %v3280 = vpop.xlane.xlu0 %3279
    %3281 = vmax.xlane.f32.xlu0 %v1816
    %v3282 = vpop.xlane.xlu0 %3281
    %3283 = vmax.xlane.f32.xlu0 %v1819
    %v3284 = vpop.xlane.xlu0 %3283
    %3285 = vmax.xlane.f32.xlu0 %v1824
    %v3286 = vpop.xlane.xlu0 %3285
    %3287 = vmax.xlane.f32.xlu0 %v1827
    %v3288 = vpop.xlane.xlu0 %3287
    %3289 = vmax.xlane.f32.xlu0 %v1832
    %v3290 = vpop.xlane.xlu0 %3289
    %3291 = vmax.xlane.f32.xlu0 %v1835
    %v3292 = vpop.xlane.xlu0 %3291
    %3293 = vmax.xlane.f32.xlu0 %v1840
    %v3294 = vpop.xlane.xlu0 %3293
    %3295 = vmax.xlane.f32.xlu0 %v1843
    %v3296 = vpop.xlane.xlu0 %3295
    %3297 = vmax.xlane.f32.xlu0 %v1848
    %v3298 = vpop.xlane.xlu0 %3297
    %3299 = vmax.xlane.f32.xlu0 %v1851
    %v3300 = vpop.xlane.xlu0 %3299
    %3301 = vmax.xlane.f32.xlu0 %v1856
    %v3302 = vpop.xlane.xlu0 %3301
    %3303 = vmax.xlane.f32.xlu0 %v1859
    %v3304 = vpop.xlane.xlu0 %3303
    %3305 = vmax.xlane.f32.xlu0 %v1864
    %v3306 = vpop.xlane.xlu0 %3305
    %3307 = vmax.xlane.f32.xlu0 %v1867
    %v3308 = vpop.xlane.xlu0 %3307
    %3309 = vmax.xlane.f32.xlu0 %v1872
    %v3310 = vpop.xlane.xlu0 %3309
    %3311 = vmax.xlane.f32.xlu0 %v1875
    %v3312 = vpop.xlane.xlu0 %3311
    %3313 = vmax.xlane.f32.xlu0 %v1880
    %v3314 = vpop.xlane.xlu0 %3313
    %3315 = vmax.xlane.f32.xlu0 %v1883
    %v3316 = vpop.xlane.xlu0 %3315
    %3317 = vmax.xlane.f32.xlu0 %v1888
    %v3318 = vpop.xlane.xlu0 %3317
    %3319 = vmax.xlane.f32.xlu0 %v1891
    %v3320 = vpop.xlane.xlu0 %3319
    %3321 = vmax.xlane.f32.xlu0 %v1896
    %v3322 = vpop.xlane.xlu0 %3321
    %3323 = vmax.xlane.f32.xlu0 %v1899
    %v3324 = vpop.xlane.xlu0 %3323
    %3325 = vmax.xlane.f32.xlu0 %v1904
    %v3326 = vpop.xlane.xlu0 %3325
    %3327 = vmax.xlane.f32.xlu0 %v1907
    %v3328 = vpop.xlane.xlu0 %3327
    %3329 = vmax.xlane.f32.xlu0 %v1912
    %v3330 = vpop.xlane.xlu0 %3329
    %3331 = vmax.xlane.f32.xlu0 %v1915
    %v3332 = vpop.xlane.xlu0 %3331
    %3333 = vmax.xlane.f32.xlu0 %v1920
    %v3334 = vpop.xlane.xlu0 %3333
    %3335 = vmax.xlane.f32.xlu0 %v1923
    %v3336 = vpop.xlane.xlu0 %3335
    %3337 = vmax.xlane.f32.xlu0 %v1928
    %v3338 = vpop.xlane.xlu0 %3337
    %3339 = vmax.xlane.f32.xlu0 %v1931
    %v3340 = vpop.xlane.xlu0 %3339
    %3341 = vmax.xlane.f32.xlu0 %v1936
    %v3342 = vpop.xlane.xlu0 %3341
    %3343 = vmax.xlane.f32.xlu0 %v1939
    %v3344 = vpop.xlane.xlu0 %3343
    %3345 = vmax.xlane.f32.xlu0 %v1944
    %v3346 = vpop.xlane.xlu0 %3345
    %3347 = vmax.xlane.f32.xlu0 %v1947
    %v3348 = vpop.xlane.xlu0 %3347
    %3349 = vmax.xlane.f32.xlu0 %v1952
    %v3350 = vpop.xlane.xlu0 %3349
    %3351 = vmax.xlane.f32.xlu0 %v1955
    %v3352 = vpop.xlane.xlu0 %3351
    %3353 = vmax.xlane.f32.xlu0 %v1960
    %v3354 = vpop.xlane.xlu0 %3353
    %3355 = vmax.xlane.f32.xlu0 %v1963
    %v3356 = vpop.xlane.xlu0 %3355
    %3357 = vmax.xlane.f32.xlu0 %v1968
    %v3358 = vpop.xlane.xlu0 %3357
    %3359 = vmax.xlane.f32.xlu0 %v1971
    %v3360 = vpop.xlane.xlu0 %3359
    %3361 = vmax.xlane.f32.xlu0 %v1976
    %v3362 = vpop.xlane.xlu0 %3361
    %3363 = vmax.xlane.f32.xlu0 %v1979
    %v3364 = vpop.xlane.xlu0 %3363
    %3365 = vmax.xlane.f32.xlu0 %v1984
    %v3366 = vpop.xlane.xlu0 %3365
    %3367 = vmax.xlane.f32.xlu0 %v1987
    %v3368 = vpop.xlane.xlu0 %3367
    %3369 = vmax.xlane.f32.xlu0 %v1992
    %v3370 = vpop.xlane.xlu0 %3369
    %3371 = vmax.xlane.f32.xlu0 %v1995
    %v3372 = vpop.xlane.xlu0 %3371
    %3373 = vmax.xlane.f32.xlu0 %v2000
    %v3374 = vpop.xlane.xlu0 %3373
    %3375 = vmax.xlane.f32.xlu0 %v2003
    %v3376 = vpop.xlane.xlu0 %3375
    %3377 = vmax.xlane.f32.xlu0 %v2008
    %v3378 = vpop.xlane.xlu0 %3377
    %3379 = vmax.xlane.f32.xlu0 %v2011
    %v3380 = vpop.xlane.xlu0 %3379
    %3381 = vmax.xlane.f32.xlu0 %v2016
    %v3382 = vpop.xlane.xlu0 %3381
    %3383 = vmax.xlane.f32.xlu0 %v2019
    %v3384 = vpop.xlane.xlu0 %3383
    %3385 = vmax.xlane.f32.xlu0 %v2024
    %v3386 = vpop.xlane.xlu0 %3385
    %3387 = vmax.xlane.f32.xlu0 %v2027
    %v3388 = vpop.xlane.xlu0 %3387
    %3389 = vmax.xlane.f32.xlu0 %v2032
    %v3390 = vpop.xlane.xlu0 %3389
    %3391 = vmax.xlane.f32.xlu0 %v2035
    %v3392 = vpop.xlane.xlu0 %3391
    %3393 = vmax.xlane.f32.xlu0 %v2193
    %v3394 = vpop.xlane.xlu0 %3393
    %3395 = vmax.xlane.f32.xlu0 %v2196
    %v3396 = vpop.xlane.xlu0 %3395
    %3397 = vmax.xlane.f32.xlu0 %v2201
    %v3398 = vpop.xlane.xlu0 %3397
    %3399 = vmax.xlane.f32.xlu0 %v2204
    %v3400 = vpop.xlane.xlu0 %3399
    %3401 = vmax.xlane.f32.xlu0 %v2209
    %v3402 = vpop.xlane.xlu0 %3401
    %3403 = vmax.xlane.f32.xlu0 %v2212
    %v3404 = vpop.xlane.xlu0 %3403
    %3405 = vmax.xlane.f32.xlu0 %v2217
    %v3406 = vpop.xlane.xlu0 %3405
    %3407 = vmax.xlane.f32.xlu0 %v2220
    %v3408 = vpop.xlane.xlu0 %3407
    %3409 = vmax.xlane.f32.xlu0 %v2225
    %v3410 = vpop.xlane.xlu0 %3409
    %3411 = vmax.xlane.f32.xlu0 %v2228
    %v3412 = vpop.xlane.xlu0 %3411
    %3413 = vmax.xlane.f32.xlu0 %v2233
    %v3414 = vpop.xlane.xlu0 %3413
    %3415 = vmax.xlane.f32.xlu0 %v2236
    %v3416 = vpop.xlane.xlu0 %3415
    %3417 = vmax.xlane.f32.xlu0 %v2241
    %v3418 = vpop.xlane.xlu0 %3417
    %3419 = vmax.xlane.f32.xlu0 %v2244
    %v3420 = vpop.xlane.xlu0 %3419
    %3421 = vmax.xlane.f32.xlu0 %v2249
    %v3422 = vpop.xlane.xlu0 %3421
    %3423 = vmax.xlane.f32.xlu0 %v2252
    %v3424 = vpop.xlane.xlu0 %3423
    %3425 = vmax.xlane.f32.xlu0 %v2257
    %v3426 = vpop.xlane.xlu0 %3425
    %3427 = vmax.xlane.f32.xlu0 %v2260
    %v3428 = vpop.xlane.xlu0 %3427
    %3429 = vmax.xlane.f32.xlu0 %v2265
    %v3430 = vpop.xlane.xlu0 %3429
    %3431 = vmax.xlane.f32.xlu0 %v2268
    %v3432 = vpop.xlane.xlu0 %3431
    %3433 = vmax.xlane.f32.xlu0 %v2273
    %v3434 = vpop.xlane.xlu0 %3433
    %3435 = vmax.xlane.f32.xlu0 %v2276
    %v3436 = vpop.xlane.xlu0 %3435
    %3437 = vmax.xlane.f32.xlu0 %v2281
    %v3438 = vpop.xlane.xlu0 %3437
    %3439 = vmax.xlane.f32.xlu0 %v2284
    %v3440 = vpop.xlane.xlu0 %3439
    %3441 = vmax.xlane.f32.xlu0 %v2289
    %v3442 = vpop.xlane.xlu0 %3441
    %3443 = vmax.xlane.f32.xlu0 %v2292
    %v3444 = vpop.xlane.xlu0 %3443
    %3445 = vmax.xlane.f32.xlu0 %v2297
    %v3446 = vpop.xlane.xlu0 %3445
    %3447 = vmax.xlane.f32.xlu0 %v2300
    %v3448 = vpop.xlane.xlu0 %3447
    %3449 = vmax.xlane.f32.xlu0 %v2305
    %v3450 = vpop.xlane.xlu0 %3449
    %3451 = vmax.xlane.f32.xlu0 %v2308
    %v3452 = vpop.xlane.xlu0 %3451
    %3453 = vmax.xlane.f32.xlu0 %v2313
    %v3454 = vpop.xlane.xlu0 %3453
    %3455 = vmax.xlane.f32.xlu0 %v2316
    %v3456 = vpop.xlane.xlu0 %3455
    %3457 = vmax.xlane.f32.xlu0 %v2321
    %v3458 = vpop.xlane.xlu0 %3457
    %3459 = vmax.xlane.f32.xlu0 %v2324
    %v3460 = vpop.xlane.xlu0 %3459
    %3461 = vmax.xlane.f32.xlu0 %v2329
    %v3462 = vpop.xlane.xlu0 %3461
    %3463 = vmax.xlane.f32.xlu0 %v2332
    %v3464 = vpop.xlane.xlu0 %3463
    %3465 = vmax.xlane.f32.xlu0 %v2337
    %v3466 = vpop.xlane.xlu0 %3465
    %3467 = vmax.xlane.f32.xlu0 %v2340
    %v3468 = vpop.xlane.xlu0 %3467
    %3469 = vmax.xlane.f32.xlu0 %v2345
    %v3470 = vpop.xlane.xlu0 %3469
    %3471 = vmax.xlane.f32.xlu0 %v2348
    %v3472 = vpop.xlane.xlu0 %3471
    %3473 = vmax.xlane.f32.xlu0 %v2353
    %v3474 = vpop.xlane.xlu0 %3473
    %3475 = vmax.xlane.f32.xlu0 %v2356
    %v3476 = vpop.xlane.xlu0 %3475
    %3477 = vmax.xlane.f32.xlu0 %v2361
    %v3478 = vpop.xlane.xlu0 %3477
    %3479 = vmax.xlane.f32.xlu0 %v2364
    %v3480 = vpop.xlane.xlu0 %3479
    %3481 = vmax.xlane.f32.xlu0 %v2369
    %v3482 = vpop.xlane.xlu0 %3481
    %3483 = vmax.xlane.f32.xlu0 %v2372
    %v3484 = vpop.xlane.xlu0 %3483
    %3485 = vmax.xlane.f32.xlu0 %v2377
    %v3486 = vpop.xlane.xlu0 %3485
    %3487 = vmax.xlane.f32.xlu0 %v2380
    %v3488 = vpop.xlane.xlu0 %3487
    %3489 = vmax.xlane.f32.xlu0 %v2385
    %v3490 = vpop.xlane.xlu0 %3489
    %3491 = vmax.xlane.f32.xlu0 %v2388
    %v3492 = vpop.xlane.xlu0 %3491
    %3493 = vmax.xlane.f32.xlu0 %v2393
    %v3494 = vpop.xlane.xlu0 %3493
    %3495 = vmax.xlane.f32.xlu0 %v2396
    %v3496 = vpop.xlane.xlu0 %3495
    %3497 = vmax.xlane.f32.xlu0 %v2401
    %v3498 = vpop.xlane.xlu0 %3497
    %3499 = vmax.xlane.f32.xlu0 %v2404
    %v3500 = vpop.xlane.xlu0 %3499
    %3501 = vmax.xlane.f32.xlu0 %v2409
    %v3502 = vpop.xlane.xlu0 %3501
    %3503 = vmax.xlane.f32.xlu0 %v2412
    %v3504 = vpop.xlane.xlu0 %3503
    %3505 = vmax.xlane.f32.xlu0 %v2417
    %v3506 = vpop.xlane.xlu0 %3505
    %3507 = vmax.xlane.f32.xlu0 %v2420
    %v3508 = vpop.xlane.xlu0 %3507
    %3509 = vmax.xlane.f32.xlu0 %v2425
    %v3510 = vpop.xlane.xlu0 %3509
    %3511 = vmax.xlane.f32.xlu0 %v2428
    %v3512 = vpop.xlane.xlu0 %3511
    %3513 = vmax.xlane.f32.xlu0 %v2433
    %v3514 = vpop.xlane.xlu0 %3513
    %3515 = vmax.xlane.f32.xlu0 %v2436
    %v3516 = vpop.xlane.xlu0 %3515
    %3517 = vmax.xlane.f32.xlu0 %v2441
    %v3518 = vpop.xlane.xlu0 %3517
    %3519 = vmax.xlane.f32.xlu0 %v2444
    %v3520 = vpop.xlane.xlu0 %3519
    %3521 = vmax.xlane.f32.xlu0 %v2602
    %v3522 = vpop.xlane.xlu0 %3521
    %3523 = vmax.xlane.f32.xlu0 %v2605
    %v3524 = vpop.xlane.xlu0 %3523
    %3525 = vmax.xlane.f32.xlu0 %v2610
    %v3526 = vpop.xlane.xlu0 %3525
    %3527 = vmax.xlane.f32.xlu0 %v2613
    %v3528 = vpop.xlane.xlu0 %3527
    %3529 = vmax.xlane.f32.xlu0 %v2618
    %v3530 = vpop.xlane.xlu0 %3529
    %3531 = vmax.xlane.f32.xlu0 %v2621
    %v3532 = vpop.xlane.xlu0 %3531
    %3533 = vmax.xlane.f32.xlu0 %v2626
    %v3534 = vpop.xlane.xlu0 %3533
    %3535 = vmax.xlane.f32.xlu0 %v2629
    %v3536 = vpop.xlane.xlu0 %3535
    %3537 = vmax.xlane.f32.xlu0 %v2634
    %v3538 = vpop.xlane.xlu0 %3537
    %3539 = vmax.xlane.f32.xlu0 %v2637
    %v3540 = vpop.xlane.xlu0 %3539
    %3541 = vmax.xlane.f32.xlu0 %v2642
    %v3542 = vpop.xlane.xlu0 %3541
    %3543 = vmax.xlane.f32.xlu0 %v2645
    %v3544 = vpop.xlane.xlu0 %3543
    %3545 = vmax.xlane.f32.xlu0 %v2650
    %v3546 = vpop.xlane.xlu0 %3545
    %3547 = vmax.xlane.f32.xlu0 %v2653
    %v3548 = vpop.xlane.xlu0 %3547
    %3549 = vmax.xlane.f32.xlu0 %v2658
    %v3550 = vpop.xlane.xlu0 %3549
    %3551 = vmax.xlane.f32.xlu0 %v2661
    %v3552 = vpop.xlane.xlu0 %3551
    %3553 = vmax.xlane.f32.xlu0 %v2666
    %v3554 = vpop.xlane.xlu0 %3553
    %3555 = vmax.xlane.f32.xlu0 %v2669
    %v3556 = vpop.xlane.xlu0 %3555
    %3557 = vmax.xlane.f32.xlu0 %v2674
    %v3558 = vpop.xlane.xlu0 %3557
    %3559 = vmax.xlane.f32.xlu0 %v2677
    %v3560 = vpop.xlane.xlu0 %3559
    %3561 = vmax.xlane.f32.xlu0 %v2682
    %v3562 = vpop.xlane.xlu0 %3561
    %3563 = vmax.xlane.f32.xlu0 %v2685
    %v3564 = vpop.xlane.xlu0 %3563
    %3565 = vmax.xlane.f32.xlu0 %v2690
    %v3566 = vpop.xlane.xlu0 %3565
    %3567 = vmax.xlane.f32.xlu0 %v2693
    %v3568 = vpop.xlane.xlu0 %3567
    %3569 = vmax.xlane.f32.xlu0 %v2698
    %v3570 = vpop.xlane.xlu0 %3569
    %3571 = vmax.xlane.f32.xlu0 %v2701
    %v3572 = vpop.xlane.xlu0 %3571
    %3573 = vmax.xlane.f32.xlu0 %v2706
    %v3574 = vpop.xlane.xlu0 %3573
    %3575 = vmax.xlane.f32.xlu0 %v2709
    %v3576 = vpop.xlane.xlu0 %3575
    %3577 = vmax.xlane.f32.xlu0 %v2714
    %v3578 = vpop.xlane.xlu0 %3577
    %3579 = vmax.xlane.f32.xlu0 %v2717
    %v3580 = vpop.xlane.xlu0 %3579
    %3581 = vmax.xlane.f32.xlu0 %v2722
    %v3582 = vpop.xlane.xlu0 %3581
    %3583 = vmax.xlane.f32.xlu0 %v2725
    %v3584 = vpop.xlane.xlu0 %3583
    %3585 = vmax.xlane.f32.xlu0 %v2730
    %v3586 = vpop.xlane.xlu0 %3585
    %3587 = vmax.xlane.f32.xlu0 %v2733
    %v3588 = vpop.xlane.xlu0 %3587
    %3589 = vmax.xlane.f32.xlu0 %v2738
    %v3590 = vpop.xlane.xlu0 %3589
    %3591 = vmax.xlane.f32.xlu0 %v2741
    %v3592 = vpop.xlane.xlu0 %3591
    %3593 = vmax.xlane.f32.xlu0 %v2746
    %v3594 = vpop.xlane.xlu0 %3593
    %3595 = vmax.xlane.f32.xlu0 %v2749
    %v3596 = vpop.xlane.xlu0 %3595
    %3597 = vmax.xlane.f32.xlu0 %v2754
    %v3598 = vpop.xlane.xlu0 %3597
    %3599 = vmax.xlane.f32.xlu0 %v2757
    %v3600 = vpop.xlane.xlu0 %3599
    %3601 = vmax.xlane.f32.xlu0 %v2762
    %v3602 = vpop.xlane.xlu0 %3601
    %3603 = vmax.xlane.f32.xlu0 %v2765
    %v3604 = vpop.xlane.xlu0 %3603
    %3605 = vmax.xlane.f32.xlu0 %v2770
    %v3606 = vpop.xlane.xlu0 %3605
    %3607 = vmax.xlane.f32.xlu0 %v2773
    %v3608 = vpop.xlane.xlu0 %3607
    %3609 = vmax.xlane.f32.xlu0 %v2778
    %v3610 = vpop.xlane.xlu0 %3609
    %3611 = vmax.xlane.f32.xlu0 %v2781
    %v3612 = vpop.xlane.xlu0 %3611
    %3613 = vmax.xlane.f32.xlu0 %v2786
    %v3614 = vpop.xlane.xlu0 %3613
    %3615 = vmax.xlane.f32.xlu0 %v2789
    %v3616 = vpop.xlane.xlu0 %3615
    %3617 = vmax.xlane.f32.xlu0 %v2794
    %v3618 = vpop.xlane.xlu0 %3617
    %3619 = vmax.xlane.f32.xlu0 %v2797
    %v3620 = vpop.xlane.xlu0 %3619
    %3621 = vmax.xlane.f32.xlu0 %v2802
    %v3622 = vpop.xlane.xlu0 %3621
    %3623 = vmax.xlane.f32.xlu0 %v2805
    %v3624 = vpop.xlane.xlu0 %3623
    %3625 = vmax.xlane.f32.xlu0 %v2810
    %v3626 = vpop.xlane.xlu0 %3625
    %3627 = vmax.xlane.f32.xlu0 %v2813
    %v3628 = vpop.xlane.xlu0 %3627
    %3629 = vmax.xlane.f32.xlu0 %v2818
    %v3630 = vpop.xlane.xlu0 %3629
    %3631 = vmax.xlane.f32.xlu0 %v2821
    %v3632 = vpop.xlane.xlu0 %3631
    %3633 = vmax.xlane.f32.xlu0 %v2826
    %v3634 = vpop.xlane.xlu0 %3633
    %3635 = vmax.xlane.f32.xlu0 %v2829
    %v3636 = vpop.xlane.xlu0 %3635
    %3637 = vmax.xlane.f32.xlu0 %v2834
    %v3638 = vpop.xlane.xlu0 %3637
    %3639 = vmax.xlane.f32.xlu0 %v2837
    %v3640 = vpop.xlane.xlu0 %3639
    %3641 = vmax.xlane.f32.xlu0 %v2842
    %v3642 = vpop.xlane.xlu0 %3641
    %3643 = vmax.xlane.f32.xlu0 %v2845
    %v3644 = vpop.xlane.xlu0 %3643
    %3645 = vmax.xlane.f32.xlu0 %v2850
    %v3646 = vpop.xlane.xlu0 %3645
    %3647 = vmax.xlane.f32.xlu0 %v2853
    %v3648 = vpop.xlane.xlu0 %3647
    %3649 = vmax.xlane.f32.xlu0 %v3011
    %v3650 = vpop.xlane.xlu0 %3649
    %3651 = vmax.xlane.f32.xlu0 %v3014
    %v3652 = vpop.xlane.xlu0 %3651
    %3653 = vmax.xlane.f32.xlu0 %v3019
    %v3654 = vpop.xlane.xlu0 %3653
    %3655 = vmax.xlane.f32.xlu0 %v3022
    %v3656 = vpop.xlane.xlu0 %3655
    %3657 = vmax.xlane.f32.xlu0 %v3027
    %v3658 = vpop.xlane.xlu0 %3657
    %3659 = vmax.xlane.f32.xlu0 %v3030
    %v3660 = vpop.xlane.xlu0 %3659
    %3661 = vmax.xlane.f32.xlu0 %v3035
    %v3662 = vpop.xlane.xlu0 %3661
    %3663 = vmax.xlane.f32.xlu0 %v3038
    %v3664 = vpop.xlane.xlu0 %3663
    %3665 = vmax.xlane.f32.xlu0 %v3043
    %v3666 = vpop.xlane.xlu0 %3665
    %3667 = vmax.xlane.f32.xlu0 %v3046
    %v3668 = vpop.xlane.xlu0 %3667
    %3669 = vmax.xlane.f32.xlu0 %v3051
    %v3670 = vpop.xlane.xlu0 %3669
    %3671 = vmax.xlane.f32.xlu0 %v3054
    %v3672 = vpop.xlane.xlu0 %3671
    %3673 = vmax.xlane.f32.xlu0 %v3059
    %v3674 = vpop.xlane.xlu0 %3673
    %3675 = vmax.xlane.f32.xlu0 %v3062
    %v3676 = vpop.xlane.xlu0 %3675
    %3677 = vmax.xlane.f32.xlu0 %v3067
    %v3678 = vpop.xlane.xlu0 %3677
    %3679 = vmax.xlane.f32.xlu0 %v3070
    %v3680 = vpop.xlane.xlu0 %3679
    %3681 = vmax.xlane.f32.xlu0 %v3075
    %v3682 = vpop.xlane.xlu0 %3681
    %3683 = vmax.xlane.f32.xlu0 %v3078
    %v3684 = vpop.xlane.xlu0 %3683
    %3685 = vmax.xlane.f32.xlu0 %v3083
    %v3686 = vpop.xlane.xlu0 %3685
    %3687 = vmax.xlane.f32.xlu0 %v3086
    %v3688 = vpop.xlane.xlu0 %3687
    %3689 = vmax.xlane.f32.xlu0 %v3091
    %v3690 = vpop.xlane.xlu0 %3689
    %3691 = vmax.xlane.f32.xlu0 %v3094
    %v3692 = vpop.xlane.xlu0 %3691
    %3693 = vmax.xlane.f32.xlu0 %v3099
    %v3694 = vpop.xlane.xlu0 %3693
    %3695 = vmax.xlane.f32.xlu0 %v3102
    %v3696 = vpop.xlane.xlu0 %3695
    %3697 = vmax.xlane.f32.xlu0 %v3107
    %v3698 = vpop.xlane.xlu0 %3697
    %3699 = vmax.xlane.f32.xlu0 %v3110
    %v3700 = vpop.xlane.xlu0 %3699
    %3701 = vmax.xlane.f32.xlu0 %v3115
    %v3702 = vpop.xlane.xlu0 %3701
    %3703 = vmax.xlane.f32.xlu0 %v3118
    %v3704 = vpop.xlane.xlu0 %3703
    %3705 = vmax.xlane.f32.xlu0 %v3123
    %v3706 = vpop.xlane.xlu0 %3705
    %3707 = vmax.xlane.f32.xlu0 %v3126
    %v3708 = vpop.xlane.xlu0 %3707
    %3709 = vmax.xlane.f32.xlu0 %v3131
    %v3710 = vpop.xlane.xlu0 %3709
    %3711 = vmax.xlane.f32.xlu0 %v3134
    %v3712 = vpop.xlane.xlu0 %3711
    %3713 = vmax.xlane.f32.xlu0 %v3139
    %v3714 = vpop.xlane.xlu0 %3713
    %3715 = vmax.xlane.f32.xlu0 %v3142
    %v3716 = vpop.xlane.xlu0 %3715
    %3717 = vmax.xlane.f32.xlu0 %v3147
    %v3718 = vpop.xlane.xlu0 %3717
    %3719 = vmax.xlane.f32.xlu0 %v3150
    %v3720 = vpop.xlane.xlu0 %3719
    %3721 = vmax.xlane.f32.xlu0 %v3155
    %v3722 = vpop.xlane.xlu0 %3721
    %3723 = vmax.xlane.f32.xlu0 %v3158
    %v3724 = vpop.xlane.xlu0 %3723
    %3725 = vmax.xlane.f32.xlu0 %v3163
    %v3726 = vpop.xlane.xlu0 %3725
    %3727 = vmax.xlane.f32.xlu0 %v3166
    %v3728 = vpop.xlane.xlu0 %3727
    %3729 = vmax.xlane.f32.xlu0 %v3171
    %v3730 = vpop.xlane.xlu0 %3729
    %3731 = vmax.xlane.f32.xlu0 %v3174
    %v3732 = vpop.xlane.xlu0 %3731
    %3733 = vmax.xlane.f32.xlu0 %v3179
    %v3734 = vpop.xlane.xlu0 %3733
    %3735 = vmax.xlane.f32.xlu0 %v3182
    %v3736 = vpop.xlane.xlu0 %3735
    %3737 = vmax.xlane.f32.xlu0 %v3187
    %v3738 = vpop.xlane.xlu0 %3737
    %3739 = vmax.xlane.f32.xlu0 %v3190
    %v3740 = vpop.xlane.xlu0 %3739
    %3741 = vmax.xlane.f32.xlu0 %v3195
    %v3742 = vpop.xlane.xlu0 %3741
    %3743 = vmax.xlane.f32.xlu0 %v3198
    %v3744 = vpop.xlane.xlu0 %3743
    %3745 = vmax.xlane.f32.xlu0 %v3203
    %v3746 = vpop.xlane.xlu0 %3745
    %3747 = vmax.xlane.f32.xlu0 %v3206
    %v3748 = vpop.xlane.xlu0 %3747
    %3749 = vmax.xlane.f32.xlu0 %v3211
    %v3750 = vpop.xlane.xlu0 %3749
    %3751 = vmax.xlane.f32.xlu0 %v3214
    %v3752 = vpop.xlane.xlu0 %3751
    %3753 = vmax.xlane.f32.xlu0 %v3219
    %v3754 = vpop.xlane.xlu0 %3753
    %3755 = vmax.xlane.f32.xlu0 %v3222
    %v3756 = vpop.xlane.xlu0 %3755
    %3757 = vmax.xlane.f32.xlu0 %v3227
    %v3758 = vpop.xlane.xlu0 %3757
    %3759 = vmax.xlane.f32.xlu0 %v3230
    %v3760 = vpop.xlane.xlu0 %3759
    %3761 = vmax.xlane.f32.xlu0 %v3235
    %v3762 = vpop.xlane.xlu0 %3761
    %3763 = vmax.xlane.f32.xlu0 %v3238
    %v3764 = vpop.xlane.xlu0 %3763
    %3765 = vmax.xlane.f32.xlu0 %v3243
    %v3766 = vpop.xlane.xlu0 %3765
    %3767 = vmax.xlane.f32.xlu0 %v3246
    %v3768 = vpop.xlane.xlu0 %3767
    %3769 = vmax.xlane.f32.xlu0 %v3251
    %v3770 = vpop.xlane.xlu0 %3769
    %3771 = vmax.xlane.f32.xlu0 %v3254
    %v3772 = vpop.xlane.xlu0 %3771
    %3773 = vmax.xlane.f32.xlu0 %v3259
    %v3774 = vpop.xlane.xlu0 %3773
    %3775 = vmax.xlane.f32.xlu0 %v3262
    %v3776 = vpop.xlane.xlu0 %3775
    %v3777 = vsub.f32 %v1784, %v3266
    %v3778 = vsub.f32 %v1787, %v3268
    %v3779 = vsub.f32 %v1792, %v3270
    %v3780 = vsub.f32 %v1795, %v3272
    %v3781 = vsub.f32 %v1800, %v3274
    %v3782 = vsub.f32 %v1803, %v3276
    %v3783 = vsub.f32 %v1808, %v3278
    %v3784 = vsub.f32 %v1811, %v3280
    %v3785 = vsub.f32 %v1816, %v3282
    %v3786 = vsub.f32 %v1819, %v3284
    %v3787 = vsub.f32 %v1824, %v3286
    %v3788 = vsub.f32 %v1827, %v3288
    %v3789 = vsub.f32 %v1832, %v3290
    %v3790 = vsub.f32 %v1835, %v3292
    %v3791 = vsub.f32 %v1840, %v3294
    %v3792 = vsub.f32 %v1843, %v3296
    %v3793 = vsub.f32 %v1848, %v3298
    %v3794 = vsub.f32 %v1851, %v3300
    %v3795 = vsub.f32 %v1856, %v3302
    %v3796 = vsub.f32 %v1859, %v3304
    %v3797 = vsub.f32 %v1864, %v3306
    %v3798 = vsub.f32 %v1867, %v3308
    %v3799 = vsub.f32 %v1872, %v3310
    %v3800 = vsub.f32 %v1875, %v3312
    %v3801 = vsub.f32 %v1880, %v3314
    %v3802 = vsub.f32 %v1883, %v3316
    %v3803 = vsub.f32 %v1888, %v3318
    %v3804 = vsub.f32 %v1891, %v3320
    %v3805 = vsub.f32 %v1896, %v3322
    %v3806 = vsub.f32 %v1899, %v3324
    %v3807 = vsub.f32 %v1904, %v3326
    %v3808 = vsub.f32 %v1907, %v3328
    %v3809 = vsub.f32 %v1912, %v3330
    %v3810 = vsub.f32 %v1915, %v3332
    %v3811 = vsub.f32 %v1920, %v3334
    %v3812 = vsub.f32 %v1923, %v3336
    %v3813 = vsub.f32 %v1928, %v3338
    %v3814 = vsub.f32 %v1931, %v3340
    %v3815 = vsub.f32 %v1936, %v3342
    %v3816 = vsub.f32 %v1939, %v3344
    %v3817 = vsub.f32 %v1944, %v3346
    %v3818 = vsub.f32 %v1947, %v3348
    %v3819 = vsub.f32 %v1952, %v3350
    %v3820 = vsub.f32 %v1955, %v3352
    %v3821 = vsub.f32 %v1960, %v3354
    %v3822 = vsub.f32 %v1963, %v3356
    %v3823 = vsub.f32 %v1968, %v3358
    %v3824 = vsub.f32 %v1971, %v3360
    %v3825 = vsub.f32 %v1976, %v3362
    %v3826 = vsub.f32 %v1979, %v3364
    %v3827 = vsub.f32 %v1984, %v3366
    %v3828 = vsub.f32 %v1987, %v3368
    %v3829 = vsub.f32 %v1992, %v3370
    %v3830 = vsub.f32 %v1995, %v3372
    %v3831 = vsub.f32 %v2000, %v3374
    %v3832 = vsub.f32 %v2003, %v3376
    %v3833 = vsub.f32 %v2008, %v3378
    %v3834 = vsub.f32 %v2011, %v3380
    %v3835 = vsub.f32 %v2016, %v3382
    %v3836 = vsub.f32 %v2019, %v3384
    %v3837 = vsub.f32 %v2024, %v3386
    %v3838 = vsub.f32 %v2027, %v3388
    %v3839 = vsub.f32 %v2032, %v3390
    %v3840 = vsub.f32 %v2035, %v3392
    %v3841 = vsub.f32 %v2193, %v3394
    %v3842 = vsub.f32 %v2196, %v3396
    %v3843 = vsub.f32 %v2201, %v3398
    %v3844 = vsub.f32 %v2204, %v3400
    %v3845 = vsub.f32 %v2209, %v3402
    %v3846 = vsub.f32 %v2212, %v3404
    %v3847 = vsub.f32 %v2217, %v3406
    %v3848 = vsub.f32 %v2220, %v3408
    %v3849 = vsub.f32 %v2225, %v3410
    %v3850 = vsub.f32 %v2228, %v3412
    %v3851 = vsub.f32 %v2233, %v3414
    %v3852 = vsub.f32 %v2236, %v3416
    %v3853 = vsub.f32 %v2241, %v3418
    %v3854 = vsub.f32 %v2244, %v3420
    %v3855 = vsub.f32 %v2249, %v3422
    %v3856 = vsub.f32 %v2252, %v3424
    %v3857 = vsub.f32 %v2257, %v3426
    %v3858 = vsub.f32 %v2260, %v3428
    %v3859 = vsub.f32 %v2265, %v3430
    %v3860 = vsub.f32 %v2268, %v3432
    %v3861 = vsub.f32 %v2273, %v3434
    %v3862 = vsub.f32 %v2276, %v3436
    %v3863 = vsub.f32 %v2281, %v3438
    %v3864 = vsub.f32 %v2284, %v3440
    %v3865 = vsub.f32 %v2289, %v3442
    %v3866 = vsub.f32 %v2292, %v3444
    %v3867 = vsub.f32 %v2297, %v3446
    %v3868 = vsub.f32 %v2300, %v3448
    %v3869 = vsub.f32 %v2305, %v3450
    %v3870 = vsub.f32 %v2308, %v3452
    %v3871 = vsub.f32 %v2313, %v3454
    %v3872 = vsub.f32 %v2316, %v3456
    %v3873 = vsub.f32 %v2321, %v3458
    %v3874 = vsub.f32 %v2324, %v3460
    %v3875 = vsub.f32 %v2329, %v3462
    %v3876 = vsub.f32 %v2332, %v3464
    %v3877 = vsub.f32 %v2337, %v3466
    %v3878 = vsub.f32 %v2340, %v3468
    %v3879 = vsub.f32 %v2345, %v3470
    %v3880 = vsub.f32 %v2348, %v3472
    %v3881 = vsub.f32 %v2353, %v3474
    %v3882 = vsub.f32 %v2356, %v3476
    %v3883 = vsub.f32 %v2361, %v3478
    %v3884 = vsub.f32 %v2364, %v3480
    %v3885 = vsub.f32 %v2369, %v3482
    %v3886 = vsub.f32 %v2372, %v3484
    %v3887 = vsub.f32 %v2377, %v3486
    %v3888 = vsub.f32 %v2380, %v3488
    %v3889 = vsub.f32 %v2385, %v3490
    %v3890 = vsub.f32 %v2388, %v3492
    %v3891 = vsub.f32 %v2393, %v3494
    %v3892 = vsub.f32 %v2396, %v3496
    %v3893 = vsub.f32 %v2401, %v3498
    %v3894 = vsub.f32 %v2404, %v3500
    %v3895 = vsub.f32 %v2409, %v3502
    %v3896 = vsub.f32 %v2412, %v3504
    %v3897 = vsub.f32 %v2417, %v3506
    %v3898 = vsub.f32 %v2420, %v3508
    %v3899 = vsub.f32 %v2425, %v3510
    %v3900 = vsub.f32 %v2428, %v3512
    %v3901 = vsub.f32 %v2433, %v3514
    %v3902 = vsub.f32 %v2436, %v3516
    %v3903 = vsub.f32 %v2441, %v3518
    %v3904 = vsub.f32 %v2444, %v3520
    %v3905 = vsub.f32 %v2602, %v3522
    %v3906 = vsub.f32 %v2605, %v3524
    %v3907 = vsub.f32 %v2610, %v3526
    %v3908 = vsub.f32 %v2613, %v3528
    %v3909 = vsub.f32 %v2618, %v3530
    %v3910 = vsub.f32 %v2621, %v3532
    %v3911 = vsub.f32 %v2626, %v3534
    %v3912 = vsub.f32 %v2629, %v3536
    %v3913 = vsub.f32 %v2634, %v3538
    %v3914 = vsub.f32 %v2637, %v3540
    %v3915 = vsub.f32 %v2642, %v3542
    %v3916 = vsub.f32 %v2645, %v3544
    %v3917 = vsub.f32 %v2650, %v3546
    %v3918 = vsub.f32 %v2653, %v3548
    %v3919 = vsub.f32 %v2658, %v3550
    %v3920 = vsub.f32 %v2661, %v3552
    %v3921 = vsub.f32 %v2666, %v3554
    %v3922 = vsub.f32 %v2669, %v3556
    %v3923 = vsub.f32 %v2674, %v3558
    %v3924 = vsub.f32 %v2677, %v3560
    %v3925 = vsub.f32 %v2682, %v3562
    %v3926 = vsub.f32 %v2685, %v3564
    %v3927 = vsub.f32 %v2690, %v3566
    %v3928 = vsub.f32 %v2693, %v3568
    %v3929 = vsub.f32 %v2698, %v3570
    %v3930 = vsub.f32 %v2701, %v3572
    %v3931 = vsub.f32 %v2706, %v3574
    %v3932 = vsub.f32 %v2709, %v3576
    %v3933 = vsub.f32 %v2714, %v3578
    %v3934 = vsub.f32 %v2717, %v3580
    %v3935 = vsub.f32 %v2722, %v3582
    %v3936 = vsub.f32 %v2725, %v3584
    %v3937 = vsub.f32 %v2730, %v3586
    %v3938 = vsub.f32 %v2733, %v3588
    %v3939 = vsub.f32 %v2738, %v3590
    %v3940 = vsub.f32 %v2741, %v3592
    %v3941 = vsub.f32 %v2746, %v3594
    %v3942 = vsub.f32 %v2749, %v3596
    %v3943 = vsub.f32 %v2754, %v3598
    %v3944 = vsub.f32 %v2757, %v3600
    %v3945 = vsub.f32 %v2762, %v3602
    %v3946 = vsub.f32 %v2765, %v3604
    %v3947 = vsub.f32 %v2770, %v3606
    %v3948 = vsub.f32 %v2773, %v3608
    %v3949 = vsub.f32 %v2778, %v3610
    %v3950 = vsub.f32 %v2781, %v3612
    %v3951 = vsub.f32 %v2786, %v3614
    %v3952 = vsub.f32 %v2789, %v3616
    %v3953 = vsub.f32 %v2794, %v3618
    %v3954 = vsub.f32 %v2797, %v3620
    %v3955 = vsub.f32 %v2802, %v3622
    %v3956 = vsub.f32 %v2805, %v3624
    %v3957 = vsub.f32 %v2810, %v3626
    %v3958 = vsub.f32 %v2813, %v3628
    %v3959 = vsub.f32 %v2818, %v3630
    %v3960 = vsub.f32 %v2821, %v3632
    %v3961 = vsub.f32 %v2826, %v3634
    %v3962 = vsub.f32 %v2829, %v3636
    %v3963 = vsub.f32 %v2834, %v3638
    %v3964 = vsub.f32 %v2837, %v3640
    %v3965 = vsub.f32 %v2842, %v3642
    %v3966 = vsub.f32 %v2845, %v3644
    %v3967 = vsub.f32 %v2850, %v3646
    %v3968 = vsub.f32 %v2853, %v3648
    %v3969 = vsub.f32 %v3011, %v3650
    %v3970 = vsub.f32 %v3014, %v3652
    %v3971 = vsub.f32 %v3019, %v3654
    %v3972 = vsub.f32 %v3022, %v3656
    %v3973 = vsub.f32 %v3027, %v3658
    %v3974 = vsub.f32 %v3030, %v3660
    %v3975 = vsub.f32 %v3035, %v3662
    %v3976 = vsub.f32 %v3038, %v3664
    %v3977 = vsub.f32 %v3043, %v3666
    %v3978 = vsub.f32 %v3046, %v3668
    %v3979 = vsub.f32 %v3051, %v3670
    %v3980 = vsub.f32 %v3054, %v3672
    %v3981 = vsub.f32 %v3059, %v3674
    %v3982 = vsub.f32 %v3062, %v3676
    %v3983 = vsub.f32 %v3067, %v3678
    %v3984 = vsub.f32 %v3070, %v3680
    %v3985 = vsub.f32 %v3075, %v3682
    %v3986 = vsub.f32 %v3078, %v3684
    %v3987 = vsub.f32 %v3083, %v3686
    %v3988 = vsub.f32 %v3086, %v3688
    %v3989 = vsub.f32 %v3091, %v3690
    %v3990 = vsub.f32 %v3094, %v3692
    %v3991 = vsub.f32 %v3099, %v3694
    %v3992 = vsub.f32 %v3102, %v3696
    %v3993 = vsub.f32 %v3107, %v3698
    %v3994 = vsub.f32 %v3110, %v3700
    %v3995 = vsub.f32 %v3115, %v3702
    %v3996 = vsub.f32 %v3118, %v3704
    %v3997 = vsub.f32 %v3123, %v3706
    %v3998 = vsub.f32 %v3126, %v3708
    %v3999 = vsub.f32 %v3131, %v3710
    %v4000 = vsub.f32 %v3134, %v3712
    %v4001 = vsub.f32 %v3139, %v3714
    %v4002 = vsub.f32 %v3142, %v3716
    %v4003 = vsub.f32 %v3147, %v3718
    %v4004 = vsub.f32 %v3150, %v3720
    %v4005 = vsub.f32 %v3155, %v3722
    %v4006 = vsub.f32 %v3158, %v3724
    %v4007 = vsub.f32 %v3163, %v3726
    %v4008 = vsub.f32 %v3166, %v3728
    %v4009 = vsub.f32 %v3171, %v3730
    %v4010 = vsub.f32 %v3174, %v3732
    %v4011 = vsub.f32 %v3179, %v3734
    %v4012 = vsub.f32 %v3182, %v3736
    %v4013 = vsub.f32 %v3187, %v3738
    %v4014 = vsub.f32 %v3190, %v3740
    %v4015 = vsub.f32 %v3195, %v3742
    %v4016 = vsub.f32 %v3198, %v3744
    %v4017 = vsub.f32 %v3203, %v3746
    %v4018 = vsub.f32 %v3206, %v3748
    %v4019 = vsub.f32 %v3211, %v3750
    %v4020 = vsub.f32 %v3214, %v3752
    %v4021 = vsub.f32 %v3219, %v3754
    %v4022 = vsub.f32 %v3222, %v3756
    %v4023 = vsub.f32 %v3227, %v3758
    %v4024 = vsub.f32 %v3230, %v3760
    %v4025 = vsub.f32 %v3235, %v3762
    %v4026 = vsub.f32 %v3238, %v3764
    %v4027 = vsub.f32 %v3243, %v3766
    %v4028 = vsub.f32 %v3246, %v3768
    %v4029 = vsub.f32 %v3251, %v3770
    %v4030 = vsub.f32 %v3254, %v3772
    %v4031 = vsub.f32 %v3259, %v3774
    %v4032 = vsub.f32 %v3262, %v3776
    %v4033 = vmul.f32 %v3777, 1.442695
    %v4034 = vpow.pop %v4033
    %v4035 = vmul.f32 %v3778, 1.442695
    %v4036 = vpow.pop %v4035
    %v4037 = vmul.f32 %v3779, 1.442695
    %v4038 = vpow.pop %v4037
    %v4039 = vmul.f32 %v3780, 1.442695
    %v4040 = vpow.pop %v4039
    %v4041 = vmul.f32 %v3781, 1.442695
    %v4042 = vpow.pop %v4041
    %v4043 = vmul.f32 %v3782, 1.442695
    %v4044 = vpow.pop %v4043
    %v4045 = vmul.f32 %v3783, 1.442695
    %v4046 = vpow.pop %v4045
    %v4047 = vmul.f32 %v3784, 1.442695
    %v4048 = vpow.pop %v4047
    %v4049 = vmul.f32 %v3785, 1.442695
    %v4050 = vpow.pop %v4049
    %v4051 = vmul.f32 %v3786, 1.442695
    %v4052 = vpow.pop %v4051
    %v4053 = vmul.f32 %v3787, 1.442695
    %v4054 = vpow.pop %v4053
    %v4055 = vmul.f32 %v3788, 1.442695
    %v4056 = vpow.pop %v4055
    %v4057 = vmul.f32 %v3789, 1.442695
    %v4058 = vpow.pop %v4057
    %v4059 = vmul.f32 %v3790, 1.442695
    %v4060 = vpow.pop %v4059
    %v4061 = vmul.f32 %v3791, 1.442695
    %v4062 = vpow.pop %v4061
    %v4063 = vmul.f32 %v3792, 1.442695
    %v4064 = vpow.pop %v4063
    %v4065 = vmul.f32 %v3793, 1.442695
    %v4066 = vpow.pop %v4065
    %v4067 = vmul.f32 %v3794, 1.442695
    %v4068 = vpow.pop %v4067
    %v4069 = vmul.f32 %v3795, 1.442695
    %v4070 = vpow.pop %v4069
    %v4071 = vmul.f32 %v3796, 1.442695
    %v4072 = vpow.pop %v4071
    %v4073 = vmul.f32 %v3797, 1.442695
    %v4074 = vpow.pop %v4073
    %v4075 = vmul.f32 %v3798, 1.442695
    %v4076 = vpow.pop %v4075
    %v4077 = vmul.f32 %v3799, 1.442695
    %v4078 = vpow.pop %v4077
    %v4079 = vmul.f32 %v3800, 1.442695
    %v4080 = vpow.pop %v4079
    %v4081 = vmul.f32 %v3801, 1.442695
    %v4082 = vpow.pop %v4081
    %v4083 = vmul.f32 %v3802, 1.442695
    %v4084 = vpow.pop %v4083
    %v4085 = vmul.f32 %v3803, 1.442695
    %v4086 = vpow.pop %v4085
    %v4087 = vmul.f32 %v3804, 1.442695
    %v4088 = vpow.pop %v4087
    %v4089 = vmul.f32 %v3805, 1.442695
    %v4090 = vpow.pop %v4089
    %v4091 = vmul.f32 %v3806, 1.442695
    %v4092 = vpow.pop %v4091
    %v4093 = vmul.f32 %v3807, 1.442695
    %v4094 = vpow.pop %v4093
    %v4095 = vmul.f32 %v3808, 1.442695
    %v4096 = vpow.pop %v4095
    %v4097 = vmul.f32 %v3809, 1.442695
    %v4098 = vpow.pop %v4097
    %v4099 = vmul.f32 %v3810, 1.442695
    %v4100 = vpow.pop %v4099
    %v4101 = vmul.f32 %v3811, 1.442695
    %v4102 = vpow.pop %v4101
    %v4103 = vmul.f32 %v3812, 1.442695
    %v4104 = vpow.pop %v4103
    %v4105 = vmul.f32 %v3813, 1.442695
    %v4106 = vpow.pop %v4105
    %v4107 = vmul.f32 %v3814, 1.442695
    %v4108 = vpow.pop %v4107
    %v4109 = vmul.f32 %v3815, 1.442695
    %v4110 = vpow.pop %v4109
    %v4111 = vmul.f32 %v3816, 1.442695
    %v4112 = vpow.pop %v4111
    %v4113 = vmul.f32 %v3817, 1.442695
    %v4114 = vpow.pop %v4113
    %v4115 = vmul.f32 %v3818, 1.442695
    %v4116 = vpow.pop %v4115
    %v4117 = vmul.f32 %v3819, 1.442695
    %v4118 = vpow.pop %v4117
    %v4119 = vmul.f32 %v3820, 1.442695
    %v4120 = vpow.pop %v4119
    %v4121 = vmul.f32 %v3821, 1.442695
    %v4122 = vpow.pop %v4121
    %v4123 = vmul.f32 %v3822, 1.442695
    %v4124 = vpow.pop %v4123
    %v4125 = vmul.f32 %v3823, 1.442695
    %v4126 = vpow.pop %v4125
    %v4127 = vmul.f32 %v3824, 1.442695
    %v4128 = vpow.pop %v4127
    %v4129 = vmul.f32 %v3825, 1.442695
    %v4130 = vpow.pop %v4129
    %v4131 = vmul.f32 %v3826, 1.442695
    %v4132 = vpow.pop %v4131
    %v4133 = vmul.f32 %v3827, 1.442695
    %v4134 = vpow.pop %v4133
    %v4135 = vmul.f32 %v3828, 1.442695
    %v4136 = vpow.pop %v4135
    %v4137 = vmul.f32 %v3829, 1.442695
    %v4138 = vpow.pop %v4137
    %v4139 = vmul.f32 %v3830, 1.442695
    %v4140 = vpow.pop %v4139
    %v4141 = vmul.f32 %v3831, 1.442695
    %v4142 = vpow.pop %v4141
    %v4143 = vmul.f32 %v3832, 1.442695
    %v4144 = vpow.pop %v4143
    %v4145 = vmul.f32 %v3833, 1.442695
    %v4146 = vpow.pop %v4145
    %v4147 = vmul.f32 %v3834, 1.442695
    %v4148 = vpow.pop %v4147
    %v4149 = vmul.f32 %v3835, 1.442695
    %v4150 = vpow.pop %v4149
    %v4151 = vmul.f32 %v3836, 1.442695
    %v4152 = vpow.pop %v4151
    %v4153 = vmul.f32 %v3837, 1.442695
    %v4154 = vpow.pop %v4153
    %v4155 = vmul.f32 %v3838, 1.442695
    %v4156 = vpow.pop %v4155
    %v4157 = vmul.f32 %v3839, 1.442695
    %v4158 = vpow.pop %v4157
    %v4159 = vmul.f32 %v3840, 1.442695
    %v4160 = vpow.pop %v4159
    %v4161 = vmul.f32 %v3841, 1.442695
    %v4162 = vpow.pop %v4161
    %v4163 = vmul.f32 %v3842, 1.442695
    %v4164 = vpow.pop %v4163
    %v4165 = vmul.f32 %v3843, 1.442695
    %v4166 = vpow.pop %v4165
    %v4167 = vmul.f32 %v3844, 1.442695
    %v4168 = vpow.pop %v4167
    %v4169 = vmul.f32 %v3845, 1.442695
    %v4170 = vpow.pop %v4169
    %v4171 = vmul.f32 %v3846, 1.442695
    %v4172 = vpow.pop %v4171
    %v4173 = vmul.f32 %v3847, 1.442695
    %v4174 = vpow.pop %v4173
    %v4175 = vmul.f32 %v3848, 1.442695
    %v4176 = vpow.pop %v4175
    %v4177 = vmul.f32 %v3849, 1.442695
    %v4178 = vpow.pop %v4177
    %v4179 = vmul.f32 %v3850, 1.442695
    %v4180 = vpow.pop %v4179
    %v4181 = vmul.f32 %v3851, 1.442695
    %v4182 = vpow.pop %v4181
    %v4183 = vmul.f32 %v3852, 1.442695
    %v4184 = vpow.pop %v4183
    %v4185 = vmul.f32 %v3853, 1.442695
    %v4186 = vpow.pop %v4185
    %v4187 = vmul.f32 %v3854, 1.442695
    %v4188 = vpow.pop %v4187
    %v4189 = vmul.f32 %v3855, 1.442695
    %v4190 = vpow.pop %v4189
    %v4191 = vmul.f32 %v3856, 1.442695
    %v4192 = vpow.pop %v4191
    %v4193 = vmul.f32 %v3857, 1.442695
    %v4194 = vpow.pop %v4193
    %v4195 = vmul.f32 %v3858, 1.442695
    %v4196 = vpow.pop %v4195
    %v4197 = vmul.f32 %v3859, 1.442695
    %v4198 = vpow.pop %v4197
    %v4199 = vmul.f32 %v3860, 1.442695
    %v4200 = vpow.pop %v4199
    %v4201 = vmul.f32 %v3861, 1.442695
    %v4202 = vpow.pop %v4201
    %v4203 = vmul.f32 %v3862, 1.442695
    %v4204 = vpow.pop %v4203
    %v4205 = vmul.f32 %v3863, 1.442695
    %v4206 = vpow.pop %v4205
    %v4207 = vmul.f32 %v3864, 1.442695
    %v4208 = vpow.pop %v4207
    %v4209 = vmul.f32 %v3865, 1.442695
    %v4210 = vpow.pop %v4209
    %v4211 = vmul.f32 %v3866, 1.442695
    %v4212 = vpow.pop %v4211
    %v4213 = vmul.f32 %v3867, 1.442695
    %v4214 = vpow.pop %v4213
    %v4215 = vmul.f32 %v3868, 1.442695
    %v4216 = vpow.pop %v4215
    %v4217 = vmul.f32 %v3869, 1.442695
    %v4218 = vpow.pop %v4217
    %v4219 = vmul.f32 %v3870, 1.442695
    %v4220 = vpow.pop %v4219
    %v4221 = vmul.f32 %v3871, 1.442695
    %v4222 = vpow.pop %v4221
    %v4223 = vmul.f32 %v3872, 1.442695
    %v4224 = vpow.pop %v4223
    %v4225 = vmul.f32 %v3873, 1.442695
    %v4226 = vpow.pop %v4225
    %v4227 = vmul.f32 %v3874, 1.442695
    %v4228 = vpow.pop %v4227
    %v4229 = vmul.f32 %v3875, 1.442695
    %v4230 = vpow.pop %v4229
    %v4231 = vmul.f32 %v3876, 1.442695
    %v4232 = vpow.pop %v4231
    %v4233 = vmul.f32 %v3877, 1.442695
    %v4234 = vpow.pop %v4233
    %v4235 = vmul.f32 %v3878, 1.442695
    %v4236 = vpow.pop %v4235
    %v4237 = vmul.f32 %v3879, 1.442695
    %v4238 = vpow.pop %v4237
    %v4239 = vmul.f32 %v3880, 1.442695
    %v4240 = vpow.pop %v4239
    %v4241 = vmul.f32 %v3881, 1.442695
    %v4242 = vpow.pop %v4241
    %v4243 = vmul.f32 %v3882, 1.442695
    %v4244 = vpow.pop %v4243
    %v4245 = vmul.f32 %v3883, 1.442695
    %v4246 = vpow.pop %v4245
    %v4247 = vmul.f32 %v3884, 1.442695
    %v4248 = vpow.pop %v4247
    %v4249 = vmul.f32 %v3885, 1.442695
    %v4250 = vpow.pop %v4249
    %v4251 = vmul.f32 %v3886, 1.442695
    %v4252 = vpow.pop %v4251
    %v4253 = vmul.f32 %v3887, 1.442695
    %v4254 = vpow.pop %v4253
    %v4255 = vmul.f32 %v3888, 1.442695
    %v4256 = vpow.pop %v4255
    %v4257 = vmul.f32 %v3889, 1.442695
    %v4258 = vpow.pop %v4257
    %v4259 = vmul.f32 %v3890, 1.442695
    %v4260 = vpow.pop %v4259
    %v4261 = vmul.f32 %v3891, 1.442695
    %v4262 = vpow.pop %v4261
    %v4263 = vmul.f32 %v3892, 1.442695
    %v4264 = vpow.pop %v4263
    %v4265 = vmul.f32 %v3893, 1.442695
    %v4266 = vpow.pop %v4265
    %v4267 = vmul.f32 %v3894, 1.442695
    %v4268 = vpow.pop %v4267
    %v4269 = vmul.f32 %v3895, 1.442695
    %v4270 = vpow.pop %v4269
    %v4271 = vmul.f32 %v3896, 1.442695
    %v4272 = vpow.pop %v4271
    %v4273 = vmul.f32 %v3897, 1.442695
    %v4274 = vpow.pop %v4273
    %v4275 = vmul.f32 %v3898, 1.442695
    %v4276 = vpow.pop %v4275
    %v4277 = vmul.f32 %v3899, 1.442695
    %v4278 = vpow.pop %v4277
    %v4279 = vmul.f32 %v3900, 1.442695
    %v4280 = vpow.pop %v4279
    %v4281 = vmul.f32 %v3901, 1.442695
    %v4282 = vpow.pop %v4281
    %v4283 = vmul.f32 %v3902, 1.442695
    %v4284 = vpow.pop %v4283
    %v4285 = vmul.f32 %v3903, 1.442695
    %v4286 = vpow.pop %v4285
    %v4287 = vmul.f32 %v3904, 1.442695
    %v4288 = vpow.pop %v4287
    %v4289 = vmul.f32 %v3905, 1.442695
    %v4290 = vpow.pop %v4289
    %v4291 = vmul.f32 %v3906, 1.442695
    %v4292 = vpow.pop %v4291
    %v4293 = vmul.f32 %v3907, 1.442695
    %v4294 = vpow.pop %v4293
    %v4295 = vmul.f32 %v3908, 1.442695
    %v4296 = vpow.pop %v4295
    %v4297 = vmul.f32 %v3909, 1.442695
    %v4298 = vpow.pop %v4297
    %v4299 = vmul.f32 %v3910, 1.442695
    %v4300 = vpow.pop %v4299
    %v4301 = vmul.f32 %v3911, 1.442695
    %v4302 = vpow.pop %v4301
    %v4303 = vmul.f32 %v3912, 1.442695
    %v4304 = vpow.pop %v4303
    %v4305 = vmul.f32 %v3913, 1.442695
    %v4306 = vpow.pop %v4305
    %v4307 = vmul.f32 %v3914, 1.442695
    %v4308 = vpow.pop %v4307
    %v4309 = vmul.f32 %v3915, 1.442695
    %v4310 = vpow.pop %v4309
    %v4311 = vmul.f32 %v3916, 1.442695
    %v4312 = vpow.pop %v4311
    %v4313 = vmul.f32 %v3917, 1.442695
    %v4314 = vpow.pop %v4313
    %v4315 = vmul.f32 %v3918, 1.442695
    %v4316 = vpow.pop %v4315
    %v4317 = vmul.f32 %v3919, 1.442695
    %v4318 = vpow.pop %v4317
    %v4319 = vmul.f32 %v3920, 1.442695
    %v4320 = vpow.pop %v4319
    %v4321 = vmul.f32 %v3921, 1.442695
    %v4322 = vpow.pop %v4321
    %v4323 = vmul.f32 %v3922, 1.442695
    %v4324 = vpow.pop %v4323
    %v4325 = vmul.f32 %v3923, 1.442695
    %v4326 = vpow.pop %v4325
    %v4327 = vmul.f32 %v3924, 1.442695
    %v4328 = vpow.pop %v4327
    %v4329 = vmul.f32 %v3925, 1.442695
    %v4330 = vpow.pop %v4329
    %v4331 = vmul.f32 %v3926, 1.442695
    %v4332 = vpow.pop %v4331
    %v4333 = vmul.f32 %v3927, 1.442695
    %v4334 = vpow.pop %v4333
    %v4335 = vmul.f32 %v3928, 1.442695
    %v4336 = vpow.pop %v4335
    %v4337 = vmul.f32 %v3929, 1.442695
    %v4338 = vpow.pop %v4337
    %v4339 = vmul.f32 %v3930, 1.442695
    %v4340 = vpow.pop %v4339
    %v4341 = vmul.f32 %v3931, 1.442695
    %v4342 = vpow.pop %v4341
    %v4343 = vmul.f32 %v3932, 1.442695
    %v4344 = vpow.pop %v4343
    %v4345 = vmul.f32 %v3933, 1.442695
    %v4346 = vpow.pop %v4345
    %v4347 = vmul.f32 %v3934, 1.442695
    %v4348 = vpow.pop %v4347
    %v4349 = vmul.f32 %v3935, 1.442695
    %v4350 = vpow.pop %v4349
    %v4351 = vmul.f32 %v3936, 1.442695
    %v4352 = vpow.pop %v4351
    %v4353 = vmul.f32 %v3937, 1.442695
    %v4354 = vpow.pop %v4353
    %v4355 = vmul.f32 %v3938, 1.442695
    %v4356 = vpow.pop %v4355
    %v4357 = vmul.f32 %v3939, 1.442695
    %v4358 = vpow.pop %v4357
    %v4359 = vmul.f32 %v3940, 1.442695
    %v4360 = vpow.pop %v4359
    %v4361 = vmul.f32 %v3941, 1.442695
    %v4362 = vpow.pop %v4361
    %v4363 = vmul.f32 %v3942, 1.442695
    %v4364 = vpow.pop %v4363
    %v4365 = vmul.f32 %v3943, 1.442695
    %v4366 = vpow.pop %v4365
    %v4367 = vmul.f32 %v3944, 1.442695
    %v4368 = vpow.pop %v4367
    %v4369 = vmul.f32 %v3945, 1.442695
    %v4370 = vpow.pop %v4369
    %v4371 = vmul.f32 %v3946, 1.442695
    %v4372 = vpow.pop %v4371
    %v4373 = vmul.f32 %v3947, 1.442695
    %v4374 = vpow.pop %v4373
    %v4375 = vmul.f32 %v3948, 1.442695
    %v4376 = vpow.pop %v4375
    %v4377 = vmul.f32 %v3949, 1.442695
    %v4378 = vpow.pop %v4377
    %v4379 = vmul.f32 %v3950, 1.442695
    %v4380 = vpow.pop %v4379
    %v4381 = vmul.f32 %v3951, 1.442695
    %v4382 = vpow.pop %v4381
    %v4383 = vmul.f32 %v3952, 1.442695
    %v4384 = vpow.pop %v4383
    %v4385 = vmul.f32 %v3953, 1.442695
    %v4386 = vpow.pop %v4385
    %v4387 = vmul.f32 %v3954, 1.442695
    %v4388 = vpow.pop %v4387
    %v4389 = vmul.f32 %v3955, 1.442695
    %v4390 = vpow.pop %v4389
    %v4391 = vmul.f32 %v3956, 1.442695
    %v4392 = vpow.pop %v4391
    %v4393 = vmul.f32 %v3957, 1.442695
    %v4394 = vpow.pop %v4393
    %v4395 = vmul.f32 %v3958, 1.442695
    %v4396 = vpow.pop %v4395
    %v4397 = vmul.f32 %v3959, 1.442695
    %v4398 = vpow.pop %v4397
    %v4399 = vmul.f32 %v3960, 1.442695
    %v4400 = vpow.pop %v4399
    %v4401 = vmul.f32 %v3961, 1.442695
    %v4402 = vpow.pop %v4401
    %v4403 = vmul.f32 %v3962, 1.442695
    %v4404 = vpow.pop %v4403
    %v4405 = vmul.f32 %v3963, 1.442695
    %v4406 = vpow.pop %v4405
    %v4407 = vmul.f32 %v3964, 1.442695
    %v4408 = vpow.pop %v4407
    %v4409 = vmul.f32 %v3965, 1.442695
    %v4410 = vpow.pop %v4409
    %v4411 = vmul.f32 %v3966, 1.442695
    %v4412 = vpow.pop %v4411
    %v4413 = vmul.f32 %v3967, 1.442695
    %v4414 = vpow.pop %v4413
    %v4415 = vmul.f32 %v3968, 1.442695
    %v4416 = vpow.pop %v4415
    %v4417 = vmul.f32 %v3969, 1.442695
    %v4418 = vpow.pop %v4417
    %v4419 = vmul.f32 %v3970, 1.442695
    %v4420 = vpow.pop %v4419
    %v4421 = vmul.f32 %v3971, 1.442695
    %v4422 = vpow.pop %v4421
    %v4423 = vmul.f32 %v3972, 1.442695
    %v4424 = vpow.pop %v4423
    %v4425 = vmul.f32 %v3973, 1.442695
    %v4426 = vpow.pop %v4425
    %v4427 = vmul.f32 %v3974, 1.442695
    %v4428 = vpow.pop %v4427
    %v4429 = vmul.f32 %v3975, 1.442695
    %v4430 = vpow.pop %v4429
    %v4431 = vmul.f32 %v3976, 1.442695
    %v4432 = vpow.pop %v4431
    %v4433 = vmul.f32 %v3977, 1.442695
    %v4434 = vpow.pop %v4433
    %v4435 = vmul.f32 %v3978, 1.442695
    %v4436 = vpow.pop %v4435
    %v4437 = vmul.f32 %v3979, 1.442695
    %v4438 = vpow.pop %v4437
    %v4439 = vmul.f32 %v3980, 1.442695
    %v4440 = vpow.pop %v4439
    %v4441 = vmul.f32 %v3981, 1.442695
    %v4442 = vpow.pop %v4441
    %v4443 = vmul.f32 %v3982, 1.442695
    %v4444 = vpow.pop %v4443
    %v4445 = vmul.f32 %v3983, 1.442695
    %v4446 = vpow.pop %v4445
    %v4447 = vmul.f32 %v3984, 1.442695
    %v4448 = vpow.pop %v4447
    %v4449 = vmul.f32 %v3985, 1.442695
    %v4450 = vpow.pop %v4449
    %v4451 = vmul.f32 %v3986, 1.442695
    %v4452 = vpow.pop %v4451
    %v4453 = vmul.f32 %v3987, 1.442695
    %v4454 = vpow.pop %v4453
    %v4455 = vmul.f32 %v3988, 1.442695
    %v4456 = vpow.pop %v4455
    %v4457 = vmul.f32 %v3989, 1.442695
    %v4458 = vpow.pop %v4457
    %v4459 = vmul.f32 %v3990, 1.442695
    %v4460 = vpow.pop %v4459
    %v4461 = vmul.f32 %v3991, 1.442695
    %v4462 = vpow.pop %v4461
    %v4463 = vmul.f32 %v3992, 1.442695
    %v4464 = vpow.pop %v4463
    %v4465 = vmul.f32 %v3993, 1.442695
    %v4466 = vpow.pop %v4465
    %v4467 = vmul.f32 %v3994, 1.442695
    %v4468 = vpow.pop %v4467
    %v4469 = vmul.f32 %v3995, 1.442695
    %v4470 = vpow.pop %v4469
    %v4471 = vmul.f32 %v3996, 1.442695
    %v4472 = vpow.pop %v4471
    %v4473 = vmul.f32 %v3997, 1.442695
    %v4474 = vpow.pop %v4473
    %v4475 = vmul.f32 %v3998, 1.442695
    %v4476 = vpow.pop %v4475
    %v4477 = vmul.f32 %v3999, 1.442695
    %v4478 = vpow.pop %v4477
    %v4479 = vmul.f32 %v4000, 1.442695
    %v4480 = vpow.pop %v4479
    %v4481 = vmul.f32 %v4001, 1.442695
    %v4482 = vpow.pop %v4481
    %v4483 = vmul.f32 %v4002, 1.442695
    %v4484 = vpow.pop %v4483
    %v4485 = vmul.f32 %v4003, 1.442695
    %v4486 = vpow.pop %v4485
    %v4487 = vmul.f32 %v4004, 1.442695
    %v4488 = vpow.pop %v4487
    %v4489 = vmul.f32 %v4005, 1.442695
    %v4490 = vpow.pop %v4489
    %v4491 = vmul.f32 %v4006, 1.442695
    %v4492 = vpow.pop %v4491
    %v4493 = vmul.f32 %v4007, 1.442695
    %v4494 = vpow.pop %v4493
    %v4495 = vmul.f32 %v4008, 1.442695
    %v4496 = vpow.pop %v4495
    %v4497 = vmul.f32 %v4009, 1.442695
    %v4498 = vpow.pop %v4497
    %v4499 = vmul.f32 %v4010, 1.442695
    %v4500 = vpow.pop %v4499
    %v4501 = vmul.f32 %v4011, 1.442695
    %v4502 = vpow.pop %v4501
    %v4503 = vmul.f32 %v4012, 1.442695
    %v4504 = vpow.pop %v4503
    %v4505 = vmul.f32 %v4013, 1.442695
    %v4506 = vpow.pop %v4505
    %v4507 = vmul.f32 %v4014, 1.442695
    %v4508 = vpow.pop %v4507
    %v4509 = vmul.f32 %v4015, 1.442695
    %v4510 = vpow.pop %v4509
    %v4511 = vmul.f32 %v4016, 1.442695
    %v4512 = vpow.pop %v4511
    %v4513 = vmul.f32 %v4017, 1.442695
    %v4514 = vpow.pop %v4513
    %v4515 = vmul.f32 %v4018, 1.442695
    %v4516 = vpow.pop %v4515
    %v4517 = vmul.f32 %v4019, 1.442695
    %v4518 = vpow.pop %v4517
    %v4519 = vmul.f32 %v4020, 1.442695
    %v4520 = vpow.pop %v4519
    %v4521 = vmul.f32 %v4021, 1.442695
    %v4522 = vpow.pop %v4521
    %v4523 = vmul.f32 %v4022, 1.442695
    %v4524 = vpow.pop %v4523
    %v4525 = vmul.f32 %v4023, 1.442695
    %v4526 = vpow.pop %v4525
    %v4527 = vmul.f32 %v4024, 1.442695
    %v4528 = vpow.pop %v4527
    %v4529 = vmul.f32 %v4025, 1.442695
    %v4530 = vpow.pop %v4529
    %v4531 = vmul.f32 %v4026, 1.442695
    %v4532 = vpow.pop %v4531
    %v4533 = vmul.f32 %v4027, 1.442695
    %v4534 = vpow.pop %v4533
    %v4535 = vmul.f32 %v4028, 1.442695
    %v4536 = vpow.pop %v4535
    %v4537 = vmul.f32 %v4029, 1.442695
    %v4538 = vpow.pop %v4537
    %v4539 = vmul.f32 %v4030, 1.442695
    %v4540 = vpow.pop %v4539
    %v4541 = vmul.f32 %v4031, 1.442695
    %v4542 = vpow.pop %v4541
    %v4543 = vmul.f32 %v4032, 1.442695
    %v4544 = vpow.pop %v4543
    %4545 = vadd.xlane.f32.xlu0 %v4034
    %v4546 = vpop.xlane.xlu0 %4545
    %4547 = vadd.xlane.f32.xlu0 %v4036
    %v4548 = vpop.xlane.xlu0 %4547
    %4549 = vadd.xlane.f32.xlu0 %v4038
    %v4550 = vpop.xlane.xlu0 %4549
    %4551 = vadd.xlane.f32.xlu0 %v4040
    %v4552 = vpop.xlane.xlu0 %4551
    %4553 = vadd.xlane.f32.xlu0 %v4042
    %v4554 = vpop.xlane.xlu0 %4553
    %4555 = vadd.xlane.f32.xlu0 %v4044
    %v4556 = vpop.xlane.xlu0 %4555
    %4557 = vadd.xlane.f32.xlu0 %v4046
    %v4558 = vpop.xlane.xlu0 %4557
    %4559 = vadd.xlane.f32.xlu0 %v4048
    %v4560 = vpop.xlane.xlu0 %4559
    %4561 = vadd.xlane.f32.xlu0 %v4050
    %v4562 = vpop.xlane.xlu0 %4561
    %4563 = vadd.xlane.f32.xlu0 %v4052
    %v4564 = vpop.xlane.xlu0 %4563
    %4565 = vadd.xlane.f32.xlu0 %v4054
    %v4566 = vpop.xlane.xlu0 %4565
    %4567 = vadd.xlane.f32.xlu0 %v4056
    %v4568 = vpop.xlane.xlu0 %4567
    %4569 = vadd.xlane.f32.xlu0 %v4058
    %v4570 = vpop.xlane.xlu0 %4569
    %4571 = vadd.xlane.f32.xlu0 %v4060
    %v4572 = vpop.xlane.xlu0 %4571
    %4573 = vadd.xlane.f32.xlu0 %v4062
    %v4574 = vpop.xlane.xlu0 %4573
    %4575 = vadd.xlane.f32.xlu0 %v4064
    %v4576 = vpop.xlane.xlu0 %4575
    %4577 = vadd.xlane.f32.xlu0 %v4066
    %v4578 = vpop.xlane.xlu0 %4577
    %4579 = vadd.xlane.f32.xlu0 %v4068
    %v4580 = vpop.xlane.xlu0 %4579
    %4581 = vadd.xlane.f32.xlu0 %v4070
    %v4582 = vpop.xlane.xlu0 %4581
    %4583 = vadd.xlane.f32.xlu0 %v4072
    %v4584 = vpop.xlane.xlu0 %4583
    %4585 = vadd.xlane.f32.xlu0 %v4074
    %v4586 = vpop.xlane.xlu0 %4585
    %4587 = vadd.xlane.f32.xlu0 %v4076
    %v4588 = vpop.xlane.xlu0 %4587
    %4589 = vadd.xlane.f32.xlu0 %v4078
    %v4590 = vpop.xlane.xlu0 %4589
    %4591 = vadd.xlane.f32.xlu0 %v4080
    %v4592 = vpop.xlane.xlu0 %4591
    %4593 = vadd.xlane.f32.xlu0 %v4082
    %v4594 = vpop.xlane.xlu0 %4593
    %4595 = vadd.xlane.f32.xlu0 %v4084
    %v4596 = vpop.xlane.xlu0 %4595
    %4597 = vadd.xlane.f32.xlu0 %v4086
    %v4598 = vpop.xlane.xlu0 %4597
    %4599 = vadd.xlane.f32.xlu0 %v4088
    %v4600 = vpop.xlane.xlu0 %4599
    %4601 = vadd.xlane.f32.xlu0 %v4090
    %v4602 = vpop.xlane.xlu0 %4601
    %4603 = vadd.xlane.f32.xlu0 %v4092
    %v4604 = vpop.xlane.xlu0 %4603
    %4605 = vadd.xlane.f32.xlu0 %v4094
    %v4606 = vpop.xlane.xlu0 %4605
    %4607 = vadd.xlane.f32.xlu0 %v4096
    %v4608 = vpop.xlane.xlu0 %4607
    %4609 = vadd.xlane.f32.xlu0 %v4098
    %v4610 = vpop.xlane.xlu0 %4609
    %4611 = vadd.xlane.f32.xlu0 %v4100
    %v4612 = vpop.xlane.xlu0 %4611
    %4613 = vadd.xlane.f32.xlu0 %v4102
    %v4614 = vpop.xlane.xlu0 %4613
    %4615 = vadd.xlane.f32.xlu0 %v4104
    %v4616 = vpop.xlane.xlu0 %4615
    %4617 = vadd.xlane.f32.xlu0 %v4106
    %v4618 = vpop.xlane.xlu0 %4617
    %4619 = vadd.xlane.f32.xlu0 %v4108
    %v4620 = vpop.xlane.xlu0 %4619
    %4621 = vadd.xlane.f32.xlu0 %v4110
    %v4622 = vpop.xlane.xlu0 %4621
    %4623 = vadd.xlane.f32.xlu0 %v4112
    %v4624 = vpop.xlane.xlu0 %4623
    %4625 = vadd.xlane.f32.xlu0 %v4114
    %v4626 = vpop.xlane.xlu0 %4625
    %4627 = vadd.xlane.f32.xlu0 %v4116
    %v4628 = vpop.xlane.xlu0 %4627
    %4629 = vadd.xlane.f32.xlu0 %v4118
    %v4630 = vpop.xlane.xlu0 %4629
    %4631 = vadd.xlane.f32.xlu0 %v4120
    %v4632 = vpop.xlane.xlu0 %4631
    %4633 = vadd.xlane.f32.xlu0 %v4122
    %v4634 = vpop.xlane.xlu0 %4633
    %4635 = vadd.xlane.f32.xlu0 %v4124
    %v4636 = vpop.xlane.xlu0 %4635
    %4637 = vadd.xlane.f32.xlu0 %v4126
    %v4638 = vpop.xlane.xlu0 %4637
    %4639 = vadd.xlane.f32.xlu0 %v4128
    %v4640 = vpop.xlane.xlu0 %4639
    %4641 = vadd.xlane.f32.xlu0 %v4130
    %v4642 = vpop.xlane.xlu0 %4641
    %4643 = vadd.xlane.f32.xlu0 %v4132
    %v4644 = vpop.xlane.xlu0 %4643
    %4645 = vadd.xlane.f32.xlu0 %v4134
    %v4646 = vpop.xlane.xlu0 %4645
    %4647 = vadd.xlane.f32.xlu0 %v4136
    %v4648 = vpop.xlane.xlu0 %4647
    %4649 = vadd.xlane.f32.xlu0 %v4138
    %v4650 = vpop.xlane.xlu0 %4649
    %4651 = vadd.xlane.f32.xlu0 %v4140
    %v4652 = vpop.xlane.xlu0 %4651
    %4653 = vadd.xlane.f32.xlu0 %v4142
    %v4654 = vpop.xlane.xlu0 %4653
    %4655 = vadd.xlane.f32.xlu0 %v4144
    %v4656 = vpop.xlane.xlu0 %4655
    %4657 = vadd.xlane.f32.xlu0 %v4146
    %v4658 = vpop.xlane.xlu0 %4657
    %4659 = vadd.xlane.f32.xlu0 %v4148
    %v4660 = vpop.xlane.xlu0 %4659
    %4661 = vadd.xlane.f32.xlu0 %v4150
    %v4662 = vpop.xlane.xlu0 %4661
    %4663 = vadd.xlane.f32.xlu0 %v4152
    %v4664 = vpop.xlane.xlu0 %4663
    %4665 = vadd.xlane.f32.xlu0 %v4154
    %v4666 = vpop.xlane.xlu0 %4665
    %4667 = vadd.xlane.f32.xlu0 %v4156
    %v4668 = vpop.xlane.xlu0 %4667
    %4669 = vadd.xlane.f32.xlu0 %v4158
    %v4670 = vpop.xlane.xlu0 %4669
    %4671 = vadd.xlane.f32.xlu0 %v4160
    %v4672 = vpop.xlane.xlu0 %4671
    %4673 = vadd.xlane.f32.xlu0 %v4162
    %v4674 = vpop.xlane.xlu0 %4673
    %4675 = vadd.xlane.f32.xlu0 %v4164
    %v4676 = vpop.xlane.xlu0 %4675
    %4677 = vadd.xlane.f32.xlu0 %v4166
    %v4678 = vpop.xlane.xlu0 %4677
    %4679 = vadd.xlane.f32.xlu0 %v4168
    %v4680 = vpop.xlane.xlu0 %4679
    %4681 = vadd.xlane.f32.xlu0 %v4170
    %v4682 = vpop.xlane.xlu0 %4681
    %4683 = vadd.xlane.f32.xlu0 %v4172
    %v4684 = vpop.xlane.xlu0 %4683
    %4685 = vadd.xlane.f32.xlu0 %v4174
    %v4686 = vpop.xlane.xlu0 %4685
    %4687 = vadd.xlane.f32.xlu0 %v4176
    %v4688 = vpop.xlane.xlu0 %4687
    %4689 = vadd.xlane.f32.xlu0 %v4178
    %v4690 = vpop.xlane.xlu0 %4689
    %4691 = vadd.xlane.f32.xlu0 %v4180
    %v4692 = vpop.xlane.xlu0 %4691
    %4693 = vadd.xlane.f32.xlu0 %v4182
    %v4694 = vpop.xlane.xlu0 %4693
    %4695 = vadd.xlane.f32.xlu0 %v4184
    %v4696 = vpop.xlane.xlu0 %4695
    %4697 = vadd.xlane.f32.xlu0 %v4186
    %v4698 = vpop.xlane.xlu0 %4697
    %4699 = vadd.xlane.f32.xlu0 %v4188
    %v4700 = vpop.xlane.xlu0 %4699
    %4701 = vadd.xlane.f32.xlu0 %v4190
    %v4702 = vpop.xlane.xlu0 %4701
    %4703 = vadd.xlane.f32.xlu0 %v4192
    %v4704 = vpop.xlane.xlu0 %4703
    %4705 = vadd.xlane.f32.xlu0 %v4194
    %v4706 = vpop.xlane.xlu0 %4705
    %4707 = vadd.xlane.f32.xlu0 %v4196
    %v4708 = vpop.xlane.xlu0 %4707
    %4709 = vadd.xlane.f32.xlu0 %v4198
    %v4710 = vpop.xlane.xlu0 %4709
    %4711 = vadd.xlane.f32.xlu0 %v4200
    %v4712 = vpop.xlane.xlu0 %4711
    %4713 = vadd.xlane.f32.xlu0 %v4202
    %v4714 = vpop.xlane.xlu0 %4713
    %4715 = vadd.xlane.f32.xlu0 %v4204
    %v4716 = vpop.xlane.xlu0 %4715
    %4717 = vadd.xlane.f32.xlu0 %v4206
    %v4718 = vpop.xlane.xlu0 %4717
    %4719 = vadd.xlane.f32.xlu0 %v4208
    %v4720 = vpop.xlane.xlu0 %4719
    %4721 = vadd.xlane.f32.xlu0 %v4210
    %v4722 = vpop.xlane.xlu0 %4721
    %4723 = vadd.xlane.f32.xlu0 %v4212
    %v4724 = vpop.xlane.xlu0 %4723
    %4725 = vadd.xlane.f32.xlu0 %v4214
    %v4726 = vpop.xlane.xlu0 %4725
    %4727 = vadd.xlane.f32.xlu0 %v4216
    %v4728 = vpop.xlane.xlu0 %4727
    %4729 = vadd.xlane.f32.xlu0 %v4218
    %v4730 = vpop.xlane.xlu0 %4729
    %4731 = vadd.xlane.f32.xlu0 %v4220
    %v4732 = vpop.xlane.xlu0 %4731
    %4733 = vadd.xlane.f32.xlu0 %v4222
    %v4734 = vpop.xlane.xlu0 %4733
    %4735 = vadd.xlane.f32.xlu0 %v4224
    %v4736 = vpop.xlane.xlu0 %4735
    %4737 = vadd.xlane.f32.xlu0 %v4226
    %v4738 = vpop.xlane.xlu0 %4737
    %4739 = vadd.xlane.f32.xlu0 %v4228
    %v4740 = vpop.xlane.xlu0 %4739
    %4741 = vadd.xlane.f32.xlu0 %v4230
    %v4742 = vpop.xlane.xlu0 %4741
    %4743 = vadd.xlane.f32.xlu0 %v4232
    %v4744 = vpop.xlane.xlu0 %4743
    %4745 = vadd.xlane.f32.xlu0 %v4234
    %v4746 = vpop.xlane.xlu0 %4745
    %4747 = vadd.xlane.f32.xlu0 %v4236
    %v4748 = vpop.xlane.xlu0 %4747
    %4749 = vadd.xlane.f32.xlu0 %v4238
    %v4750 = vpop.xlane.xlu0 %4749
    %4751 = vadd.xlane.f32.xlu0 %v4240
    %v4752 = vpop.xlane.xlu0 %4751
    %4753 = vadd.xlane.f32.xlu0 %v4242
    %v4754 = vpop.xlane.xlu0 %4753
    %4755 = vadd.xlane.f32.xlu0 %v4244
    %v4756 = vpop.xlane.xlu0 %4755
    %4757 = vadd.xlane.f32.xlu0 %v4246
    %v4758 = vpop.xlane.xlu0 %4757
    %4759 = vadd.xlane.f32.xlu0 %v4248
    %v4760 = vpop.xlane.xlu0 %4759
    %4761 = vadd.xlane.f32.xlu0 %v4250
    %v4762 = vpop.xlane.xlu0 %4761
    %4763 = vadd.xlane.f32.xlu0 %v4252
    %v4764 = vpop.xlane.xlu0 %4763
    %4765 = vadd.xlane.f32.xlu0 %v4254
    %v4766 = vpop.xlane.xlu0 %4765
    %4767 = vadd.xlane.f32.xlu0 %v4256
    %v4768 = vpop.xlane.xlu0 %4767
    %4769 = vadd.xlane.f32.xlu0 %v4258
    %v4770 = vpop.xlane.xlu0 %4769
    %4771 = vadd.xlane.f32.xlu0 %v4260
    %v4772 = vpop.xlane.xlu0 %4771
    %4773 = vadd.xlane.f32.xlu0 %v4262
    %v4774 = vpop.xlane.xlu0 %4773
    %4775 = vadd.xlane.f32.xlu0 %v4264
    %v4776 = vpop.xlane.xlu0 %4775
    %4777 = vadd.xlane.f32.xlu0 %v4266
    %v4778 = vpop.xlane.xlu0 %4777
    %4779 = vadd.xlane.f32.xlu0 %v4268
    %v4780 = vpop.xlane.xlu0 %4779
    %4781 = vadd.xlane.f32.xlu0 %v4270
    %v4782 = vpop.xlane.xlu0 %4781
    %4783 = vadd.xlane.f32.xlu0 %v4272
    %v4784 = vpop.xlane.xlu0 %4783
    %4785 = vadd.xlane.f32.xlu0 %v4274
    %v4786 = vpop.xlane.xlu0 %4785
    %4787 = vadd.xlane.f32.xlu0 %v4276
    %v4788 = vpop.xlane.xlu0 %4787
    %4789 = vadd.xlane.f32.xlu0 %v4278
    %v4790 = vpop.xlane.xlu0 %4789
    %4791 = vadd.xlane.f32.xlu0 %v4280
    %v4792 = vpop.xlane.xlu0 %4791
    %4793 = vadd.xlane.f32.xlu0 %v4282
    %v4794 = vpop.xlane.xlu0 %4793
    %4795 = vadd.xlane.f32.xlu0 %v4284
    %v4796 = vpop.xlane.xlu0 %4795
    %4797 = vadd.xlane.f32.xlu0 %v4286
    %v4798 = vpop.xlane.xlu0 %4797
    %4799 = vadd.xlane.f32.xlu0 %v4288
    %v4800 = vpop.xlane.xlu0 %4799
    %4801 = vadd.xlane.f32.xlu0 %v4290
    %v4802 = vpop.xlane.xlu0 %4801
    %4803 = vadd.xlane.f32.xlu0 %v4292
    %v4804 = vpop.xlane.xlu0 %4803
    %4805 = vadd.xlane.f32.xlu0 %v4294
    %v4806 = vpop.xlane.xlu0 %4805
    %4807 = vadd.xlane.f32.xlu0 %v4296
    %v4808 = vpop.xlane.xlu0 %4807
    %4809 = vadd.xlane.f32.xlu0 %v4298
    %v4810 = vpop.xlane.xlu0 %4809
    %4811 = vadd.xlane.f32.xlu0 %v4300
    %v4812 = vpop.xlane.xlu0 %4811
    %4813 = vadd.xlane.f32.xlu0 %v4302
    %v4814 = vpop.xlane.xlu0 %4813
    %4815 = vadd.xlane.f32.xlu0 %v4304
    %v4816 = vpop.xlane.xlu0 %4815
    %4817 = vadd.xlane.f32.xlu0 %v4306
    %v4818 = vpop.xlane.xlu0 %4817
    %4819 = vadd.xlane.f32.xlu0 %v4308
    %v4820 = vpop.xlane.xlu0 %4819
    %4821 = vadd.xlane.f32.xlu0 %v4310
    %v4822 = vpop.xlane.xlu0 %4821
    %4823 = vadd.xlane.f32.xlu0 %v4312
    %v4824 = vpop.xlane.xlu0 %4823
    %4825 = vadd.xlane.f32.xlu0 %v4314
    %v4826 = vpop.xlane.xlu0 %4825
    %4827 = vadd.xlane.f32.xlu0 %v4316
    %v4828 = vpop.xlane.xlu0 %4827
    %4829 = vadd.xlane.f32.xlu0 %v4318
    %v4830 = vpop.xlane.xlu0 %4829
    %4831 = vadd.xlane.f32.xlu0 %v4320
    %v4832 = vpop.xlane.xlu0 %4831
    %4833 = vadd.xlane.f32.xlu0 %v4322
    %v4834 = vpop.xlane.xlu0 %4833
    %4835 = vadd.xlane.f32.xlu0 %v4324
    %v4836 = vpop.xlane.xlu0 %4835
    %4837 = vadd.xlane.f32.xlu0 %v4326
    %v4838 = vpop.xlane.xlu0 %4837
    %4839 = vadd.xlane.f32.xlu0 %v4328
    %v4840 = vpop.xlane.xlu0 %4839
    %4841 = vadd.xlane.f32.xlu0 %v4330
    %v4842 = vpop.xlane.xlu0 %4841
    %4843 = vadd.xlane.f32.xlu0 %v4332
    %v4844 = vpop.xlane.xlu0 %4843
    %4845 = vadd.xlane.f32.xlu0 %v4334
    %v4846 = vpop.xlane.xlu0 %4845
    %4847 = vadd.xlane.f32.xlu0 %v4336
    %v4848 = vpop.xlane.xlu0 %4847
    %4849 = vadd.xlane.f32.xlu0 %v4338
    %v4850 = vpop.xlane.xlu0 %4849
    %4851 = vadd.xlane.f32.xlu0 %v4340
    %v4852 = vpop.xlane.xlu0 %4851
    %4853 = vadd.xlane.f32.xlu0 %v4342
    %v4854 = vpop.xlane.xlu0 %4853
    %4855 = vadd.xlane.f32.xlu0 %v4344
    %v4856 = vpop.xlane.xlu0 %4855
    %4857 = vadd.xlane.f32.xlu0 %v4346
    %v4858 = vpop.xlane.xlu0 %4857
    %4859 = vadd.xlane.f32.xlu0 %v4348
    %v4860 = vpop.xlane.xlu0 %4859
    %4861 = vadd.xlane.f32.xlu0 %v4350
    %v4862 = vpop.xlane.xlu0 %4861
    %4863 = vadd.xlane.f32.xlu0 %v4352
    %v4864 = vpop.xlane.xlu0 %4863
    %4865 = vadd.xlane.f32.xlu0 %v4354
    %v4866 = vpop.xlane.xlu0 %4865
    %4867 = vadd.xlane.f32.xlu0 %v4356
    %v4868 = vpop.xlane.xlu0 %4867
    %4869 = vadd.xlane.f32.xlu0 %v4358
    %v4870 = vpop.xlane.xlu0 %4869
    %4871 = vadd.xlane.f32.xlu0 %v4360
    %v4872 = vpop.xlane.xlu0 %4871
    %4873 = vadd.xlane.f32.xlu0 %v4362
    %v4874 = vpop.xlane.xlu0 %4873
    %4875 = vadd.xlane.f32.xlu0 %v4364
    %v4876 = vpop.xlane.xlu0 %4875
    %4877 = vadd.xlane.f32.xlu0 %v4366
    %v4878 = vpop.xlane.xlu0 %4877
    %4879 = vadd.xlane.f32.xlu0 %v4368
    %v4880 = vpop.xlane.xlu0 %4879
    %4881 = vadd.xlane.f32.xlu0 %v4370
    %v4882 = vpop.xlane.xlu0 %4881
    %4883 = vadd.xlane.f32.xlu0 %v4372
    %v4884 = vpop.xlane.xlu0 %4883
    %4885 = vadd.xlane.f32.xlu0 %v4374
    %v4886 = vpop.xlane.xlu0 %4885
    %4887 = vadd.xlane.f32.xlu0 %v4376
    %v4888 = vpop.xlane.xlu0 %4887
    %4889 = vadd.xlane.f32.xlu0 %v4378
    %v4890 = vpop.xlane.xlu0 %4889
    %4891 = vadd.xlane.f32.xlu0 %v4380
    %v4892 = vpop.xlane.xlu0 %4891
    %4893 = vadd.xlane.f32.xlu0 %v4382
    %v4894 = vpop.xlane.xlu0 %4893
    %4895 = vadd.xlane.f32.xlu0 %v4384
    %v4896 = vpop.xlane.xlu0 %4895
    %4897 = vadd.xlane.f32.xlu0 %v4386
    %v4898 = vpop.xlane.xlu0 %4897
    %4899 = vadd.xlane.f32.xlu0 %v4388
    %v4900 = vpop.xlane.xlu0 %4899
    %4901 = vadd.xlane.f32.xlu0 %v4390
    %v4902 = vpop.xlane.xlu0 %4901
    %4903 = vadd.xlane.f32.xlu0 %v4392
    %v4904 = vpop.xlane.xlu0 %4903
    %4905 = vadd.xlane.f32.xlu0 %v4394
    %v4906 = vpop.xlane.xlu0 %4905
    %4907 = vadd.xlane.f32.xlu0 %v4396
    %v4908 = vpop.xlane.xlu0 %4907
    %4909 = vadd.xlane.f32.xlu0 %v4398
    %v4910 = vpop.xlane.xlu0 %4909
    %4911 = vadd.xlane.f32.xlu0 %v4400
    %v4912 = vpop.xlane.xlu0 %4911
    %4913 = vadd.xlane.f32.xlu0 %v4402
    %v4914 = vpop.xlane.xlu0 %4913
    %4915 = vadd.xlane.f32.xlu0 %v4404
    %v4916 = vpop.xlane.xlu0 %4915
    %4917 = vadd.xlane.f32.xlu0 %v4406
    %v4918 = vpop.xlane.xlu0 %4917
    %4919 = vadd.xlane.f32.xlu0 %v4408
    %v4920 = vpop.xlane.xlu0 %4919
    %4921 = vadd.xlane.f32.xlu0 %v4410
    %v4922 = vpop.xlane.xlu0 %4921
    %4923 = vadd.xlane.f32.xlu0 %v4412
    %v4924 = vpop.xlane.xlu0 %4923
    %4925 = vadd.xlane.f32.xlu0 %v4414
    %v4926 = vpop.xlane.xlu0 %4925
    %4927 = vadd.xlane.f32.xlu0 %v4416
    %v4928 = vpop.xlane.xlu0 %4927
    %4929 = vadd.xlane.f32.xlu0 %v4418
    %v4930 = vpop.xlane.xlu0 %4929
    %4931 = vadd.xlane.f32.xlu0 %v4420
    %v4932 = vpop.xlane.xlu0 %4931
    %4933 = vadd.xlane.f32.xlu0 %v4422
    %v4934 = vpop.xlane.xlu0 %4933
    %4935 = vadd.xlane.f32.xlu0 %v4424
    %v4936 = vpop.xlane.xlu0 %4935
    %4937 = vadd.xlane.f32.xlu0 %v4426
    %v4938 = vpop.xlane.xlu0 %4937
    %4939 = vadd.xlane.f32.xlu0 %v4428
    %v4940 = vpop.xlane.xlu0 %4939
    %4941 = vadd.xlane.f32.xlu0 %v4430
    %v4942 = vpop.xlane.xlu0 %4941
    %4943 = vadd.xlane.f32.xlu0 %v4432
    %v4944 = vpop.xlane.xlu0 %4943
    %4945 = vadd.xlane.f32.xlu0 %v4434
    %v4946 = vpop.xlane.xlu0 %4945
    %4947 = vadd.xlane.f32.xlu0 %v4436
    %v4948 = vpop.xlane.xlu0 %4947
    %4949 = vadd.xlane.f32.xlu0 %v4438
    %v4950 = vpop.xlane.xlu0 %4949
    %4951 = vadd.xlane.f32.xlu0 %v4440
    %v4952 = vpop.xlane.xlu0 %4951
    %4953 = vadd.xlane.f32.xlu0 %v4442
    %v4954 = vpop.xlane.xlu0 %4953
    %4955 = vadd.xlane.f32.xlu0 %v4444
    %v4956 = vpop.xlane.xlu0 %4955
    %4957 = vadd.xlane.f32.xlu0 %v4446
    %v4958 = vpop.xlane.xlu0 %4957
    %4959 = vadd.xlane.f32.xlu0 %v4448
    %v4960 = vpop.xlane.xlu0 %4959
    %4961 = vadd.xlane.f32.xlu0 %v4450
    %v4962 = vpop.xlane.xlu0 %4961
    %4963 = vadd.xlane.f32.xlu0 %v4452
    %v4964 = vpop.xlane.xlu0 %4963
    %4965 = vadd.xlane.f32.xlu0 %v4454
    %v4966 = vpop.xlane.xlu0 %4965
    %4967 = vadd.xlane.f32.xlu0 %v4456
    %v4968 = vpop.xlane.xlu0 %4967
    %4969 = vadd.xlane.f32.xlu0 %v4458
    %v4970 = vpop.xlane.xlu0 %4969
    %4971 = vadd.xlane.f32.xlu0 %v4460
    %v4972 = vpop.xlane.xlu0 %4971
    %4973 = vadd.xlane.f32.xlu0 %v4462
    %v4974 = vpop.xlane.xlu0 %4973
    %4975 = vadd.xlane.f32.xlu0 %v4464
    %v4976 = vpop.xlane.xlu0 %4975
    %4977 = vadd.xlane.f32.xlu0 %v4466
    %v4978 = vpop.xlane.xlu0 %4977
    %4979 = vadd.xlane.f32.xlu0 %v4468
    %v4980 = vpop.xlane.xlu0 %4979
    %4981 = vadd.xlane.f32.xlu0 %v4470
    %v4982 = vpop.xlane.xlu0 %4981
    %4983 = vadd.xlane.f32.xlu0 %v4472
    %v4984 = vpop.xlane.xlu0 %4983
    %4985 = vadd.xlane.f32.xlu0 %v4474
    %v4986 = vpop.xlane.xlu0 %4985
    %4987 = vadd.xlane.f32.xlu0 %v4476
    %v4988 = vpop.xlane.xlu0 %4987
    %4989 = vadd.xlane.f32.xlu0 %v4478
    %v4990 = vpop.xlane.xlu0 %4989
    %4991 = vadd.xlane.f32.xlu0 %v4480
    %v4992 = vpop.xlane.xlu0 %4991
    %4993 = vadd.xlane.f32.xlu0 %v4482
    %v4994 = vpop.xlane.xlu0 %4993
    %4995 = vadd.xlane.f32.xlu0 %v4484
    %v4996 = vpop.xlane.xlu0 %4995
    %4997 = vadd.xlane.f32.xlu0 %v4486
    %v4998 = vpop.xlane.xlu0 %4997
    %4999 = vadd.xlane.f32.xlu0 %v4488
    %v5000 = vpop.xlane.xlu0 %4999
    %5001 = vadd.xlane.f32.xlu0 %v4490
    %v5002 = vpop.xlane.xlu0 %5001
    %5003 = vadd.xlane.f32.xlu0 %v4492
    %v5004 = vpop.xlane.xlu0 %5003
    %5005 = vadd.xlane.f32.xlu0 %v4494
    %v5006 = vpop.xlane.xlu0 %5005
    %5007 = vadd.xlane.f32.xlu0 %v4496
    %v5008 = vpop.xlane.xlu0 %5007
    %5009 = vadd.xlane.f32.xlu0 %v4498
    %v5010 = vpop.xlane.xlu0 %5009
    %5011 = vadd.xlane.f32.xlu0 %v4500
    %v5012 = vpop.xlane.xlu0 %5011
    %5013 = vadd.xlane.f32.xlu0 %v4502
    %v5014 = vpop.xlane.xlu0 %5013
    %5015 = vadd.xlane.f32.xlu0 %v4504
    %v5016 = vpop.xlane.xlu0 %5015
    %5017 = vadd.xlane.f32.xlu0 %v4506
    %v5018 = vpop.xlane.xlu0 %5017
    %5019 = vadd.xlane.f32.xlu0 %v4508
    %v5020 = vpop.xlane.xlu0 %5019
    %5021 = vadd.xlane.f32.xlu0 %v4510
    %v5022 = vpop.xlane.xlu0 %5021
    %5023 = vadd.xlane.f32.xlu0 %v4512
    %v5024 = vpop.xlane.xlu0 %5023
    %5025 = vadd.xlane.f32.xlu0 %v4514
    %v5026 = vpop.xlane.xlu0 %5025
    %5027 = vadd.xlane.f32.xlu0 %v4516
    %v5028 = vpop.xlane.xlu0 %5027
    %5029 = vadd.xlane.f32.xlu0 %v4518
    %v5030 = vpop.xlane.xlu0 %5029
    %5031 = vadd.xlane.f32.xlu0 %v4520
    %v5032 = vpop.xlane.xlu0 %5031
    %5033 = vadd.xlane.f32.xlu0 %v4522
    %v5034 = vpop.xlane.xlu0 %5033
    %5035 = vadd.xlane.f32.xlu0 %v4524
    %v5036 = vpop.xlane.xlu0 %5035
    %5037 = vadd.xlane.f32.xlu0 %v4526
    %v5038 = vpop.xlane.xlu0 %5037
    %5039 = vadd.xlane.f32.xlu0 %v4528
    %v5040 = vpop.xlane.xlu0 %5039
    %5041 = vadd.xlane.f32.xlu0 %v4530
    %v5042 = vpop.xlane.xlu0 %5041
    %5043 = vadd.xlane.f32.xlu0 %v4532
    %v5044 = vpop.xlane.xlu0 %5043
    %5045 = vadd.xlane.f32.xlu0 %v4534
    %v5046 = vpop.xlane.xlu0 %5045
    %5047 = vadd.xlane.f32.xlu0 %v4536
    %v5048 = vpop.xlane.xlu0 %5047
    %5049 = vadd.xlane.f32.xlu0 %v4538
    %v5050 = vpop.xlane.xlu0 %5049
    %5051 = vadd.xlane.f32.xlu0 %v4540
    %v5052 = vpop.xlane.xlu0 %5051
    %5053 = vadd.xlane.f32.xlu0 %v4542
    %v5054 = vpop.xlane.xlu0 %5053
    %5055 = vadd.xlane.f32.xlu0 %v4544
    %v5056 = vpop.xlane.xlu0 %5055
    %v5057 = vrcp.pop %v4546
    %v5058 = vrcp.pop %v4548
    %v5059 = vrcp.pop %v4550
    %v5060 = vrcp.pop %v4552
    %v5061 = vrcp.pop %v4554
    %v5062 = vrcp.pop %v4556
    %v5063 = vrcp.pop %v4558
    %v5064 = vrcp.pop %v4560
    %v5065 = vrcp.pop %v4562
    %v5066 = vrcp.pop %v4564
    %v5067 = vrcp.pop %v4566
    %v5068 = vrcp.pop %v4568
    %v5069 = vrcp.pop %v4570
    %v5070 = vrcp.pop %v4572
    %v5071 = vrcp.pop %v4574
    %v5072 = vrcp.pop %v4576
    %v5073 = vrcp.pop %v4578
    %v5074 = vrcp.pop %v4580
    %v5075 = vrcp.pop %v4582
    %v5076 = vrcp.pop %v4584
    %v5077 = vrcp.pop %v4586
    %v5078 = vrcp.pop %v4588
    %v5079 = vrcp.pop %v4590
    %v5080 = vrcp.pop %v4592
    %v5081 = vrcp.pop %v4594
    %v5082 = vrcp.pop %v4596
    %v5083 = vrcp.pop %v4598
    %v5084 = vrcp.pop %v4600
    %v5085 = vrcp.pop %v4602
    %v5086 = vrcp.pop %v4604
    %v5087 = vrcp.pop %v4606
    %v5088 = vrcp.pop %v4608
    %v5089 = vrcp.pop %v4610
    %v5090 = vrcp.pop %v4612
    %v5091 = vrcp.pop %v4614
    %v5092 = vrcp.pop %v4616
    %v5093 = vrcp.pop %v4618
    %v5094 = vrcp.pop %v4620
    %v5095 = vrcp.pop %v4622
    %v5096 = vrcp.pop %v4624
    %v5097 = vrcp.pop %v4626
    %v5098 = vrcp.pop %v4628
    %v5099 = vrcp.pop %v4630
    %v5100 = vrcp.pop %v4632
    %v5101 = vrcp.pop %v4634
    %v5102 = vrcp.pop %v4636
    %v5103 = vrcp.pop %v4638
    %v5104 = vrcp.pop %v4640
    %v5105 = vrcp.pop %v4642
    %v5106 = vrcp.pop %v4644
    %v5107 = vrcp.pop %v4646
    %v5108 = vrcp.pop %v4648
    %v5109 = vrcp.pop %v4650
    %v5110 = vrcp.pop %v4652
    %v5111 = vrcp.pop %v4654
    %v5112 = vrcp.pop %v4656
    %v5113 = vrcp.pop %v4658
    %v5114 = vrcp.pop %v4660
    %v5115 = vrcp.pop %v4662
    %v5116 = vrcp.pop %v4664
    %v5117 = vrcp.pop %v4666
    %v5118 = vrcp.pop %v4668
    %v5119 = vrcp.pop %v4670
    %v5120 = vrcp.pop %v4672
    %v5121 = vrcp.pop %v4674
    %v5122 = vrcp.pop %v4676
    %v5123 = vrcp.pop %v4678
    %v5124 = vrcp.pop %v4680
    %v5125 = vrcp.pop %v4682
    %v5126 = vrcp.pop %v4684
    %v5127 = vrcp.pop %v4686
    %v5128 = vrcp.pop %v4688
    %v5129 = vrcp.pop %v4690
    %v5130 = vrcp.pop %v4692
    %v5131 = vrcp.pop %v4694
    %v5132 = vrcp.pop %v4696
    %v5133 = vrcp.pop %v4698
    %v5134 = vrcp.pop %v4700
    %v5135 = vrcp.pop %v4702
    %v5136 = vrcp.pop %v4704
    %v5137 = vrcp.pop %v4706
    %v5138 = vrcp.pop %v4708
    %v5139 = vrcp.pop %v4710
    %v5140 = vrcp.pop %v4712
    %v5141 = vrcp.pop %v4714
    %v5142 = vrcp.pop %v4716
    %v5143 = vrcp.pop %v4718
    %v5144 = vrcp.pop %v4720
    %v5145 = vrcp.pop %v4722
    %v5146 = vrcp.pop %v4724
    %v5147 = vrcp.pop %v4726
    %v5148 = vrcp.pop %v4728
    %v5149 = vrcp.pop %v4730
    %v5150 = vrcp.pop %v4732
    %v5151 = vrcp.pop %v4734
    %v5152 = vrcp.pop %v4736
    %v5153 = vrcp.pop %v4738
    %v5154 = vrcp.pop %v4740
    %v5155 = vrcp.pop %v4742
    %v5156 = vrcp.pop %v4744
    %v5157 = vrcp.pop %v4746
    %v5158 = vrcp.pop %v4748
    %v5159 = vrcp.pop %v4750
    %v5160 = vrcp.pop %v4752
    %v5161 = vrcp.pop %v4754
    %v5162 = vrcp.pop %v4756
    %v5163 = vrcp.pop %v4758
    %v5164 = vrcp.pop %v4760
    %v5165 = vrcp.pop %v4762
    %v5166 = vrcp.pop %v4764
    %v5167 = vrcp.pop %v4766
    %v5168 = vrcp.pop %v4768
    %v5169 = vrcp.pop %v4770
    %v5170 = vrcp.pop %v4772
    %v5171 = vrcp.pop %v4774
    %v5172 = vrcp.pop %v4776
    %v5173 = vrcp.pop %v4778
    %v5174 = vrcp.pop %v4780
    %v5175 = vrcp.pop %v4782
    %v5176 = vrcp.pop %v4784
    %v5177 = vrcp.pop %v4786
    %v5178 = vrcp.pop %v4788
    %v5179 = vrcp.pop %v4790
    %v5180 = vrcp.pop %v4792
    %v5181 = vrcp.pop %v4794
    %v5182 = vrcp.pop %v4796
    %v5183 = vrcp.pop %v4798
    %v5184 = vrcp.pop %v4800
    %v5185 = vrcp.pop %v4802
    %v5186 = vrcp.pop %v4804
    %v5187 = vrcp.pop %v4806
    %v5188 = vrcp.pop %v4808
    %v5189 = vrcp.pop %v4810
    %v5190 = vrcp.pop %v4812
    %v5191 = vrcp.pop %v4814
    %v5192 = vrcp.pop %v4816
    %v5193 = vrcp.pop %v4818
    %v5194 = vrcp.pop %v4820
    %v5195 = vrcp.pop %v4822
    %v5196 = vrcp.pop %v4824
    %v5197 = vrcp.pop %v4826
    %v5198 = vrcp.pop %v4828
    %v5199 = vrcp.pop %v4830
    %v5200 = vrcp.pop %v4832
    %v5201 = vrcp.pop %v4834
    %v5202 = vrcp.pop %v4836
    %v5203 = vrcp.pop %v4838
    %v5204 = vrcp.pop %v4840
    %v5205 = vrcp.pop %v4842
    %v5206 = vrcp.pop %v4844
    %v5207 = vrcp.pop %v4846
    %v5208 = vrcp.pop %v4848
    %v5209 = vrcp.pop %v4850
    %v5210 = vrcp.pop %v4852
    %v5211 = vrcp.pop %v4854
    %v5212 = vrcp.pop %v4856
    %v5213 = vrcp.pop %v4858
    %v5214 = vrcp.pop %v4860
    %v5215 = vrcp.pop %v4862
    %v5216 = vrcp.pop %v4864
    %v5217 = vrcp.pop %v4866
    %v5218 = vrcp.pop %v4868
    %v5219 = vrcp.pop %v4870
    %v5220 = vrcp.pop %v4872
    %v5221 = vrcp.pop %v4874
    %v5222 = vrcp.pop %v4876
    %v5223 = vrcp.pop %v4878
    %v5224 = vrcp.pop %v4880
    %v5225 = vrcp.pop %v4882
    %v5226 = vrcp.pop %v4884
    %v5227 = vrcp.pop %v4886
    %v5228 = vrcp.pop %v4888
    %v5229 = vrcp.pop %v4890
    %v5230 = vrcp.pop %v4892
    %v5231 = vrcp.pop %v4894
    %v5232 = vrcp.pop %v4896
    %v5233 = vrcp.pop %v4898
    %v5234 = vrcp.pop %v4900
    %v5235 = vrcp.pop %v4902
    %v5236 = vrcp.pop %v4904
    %v5237 = vrcp.pop %v4906
    %v5238 = vrcp.pop %v4908
    %v5239 = vrcp.pop %v4910
    %v5240 = vrcp.pop %v4912
    %v5241 = vrcp.pop %v4914
    %v5242 = vrcp.pop %v4916
    %v5243 = vrcp.pop %v4918
    %v5244 = vrcp.pop %v4920
    %v5245 = vrcp.pop %v4922
    %v5246 = vrcp.pop %v4924
    %v5247 = vrcp.pop %v4926
    %v5248 = vrcp.pop %v4928
    %v5249 = vrcp.pop %v4930
    %v5250 = vrcp.pop %v4932
    %v5251 = vrcp.pop %v4934
    %v5252 = vrcp.pop %v4936
    %v5253 = vrcp.pop %v4938
    %v5254 = vrcp.pop %v4940
    %v5255 = vrcp.pop %v4942
    %v5256 = vrcp.pop %v4944
    %v5257 = vrcp.pop %v4946
    %v5258 = vrcp.pop %v4948
    %v5259 = vrcp.pop %v4950
    %v5260 = vrcp.pop %v4952
    %v5261 = vrcp.pop %v4954
    %v5262 = vrcp.pop %v4956
    %v5263 = vrcp.pop %v4958
    %v5264 = vrcp.pop %v4960
    %v5265 = vrcp.pop %v4962
    %v5266 = vrcp.pop %v4964
    %v5267 = vrcp.pop %v4966
    %v5268 = vrcp.pop %v4968
    %v5269 = vrcp.pop %v4970
    %v5270 = vrcp.pop %v4972
    %v5271 = vrcp.pop %v4974
    %v5272 = vrcp.pop %v4976
    %v5273 = vrcp.pop %v4978
    %v5274 = vrcp.pop %v4980
    %v5275 = vrcp.pop %v4982
    %v5276 = vrcp.pop %v4984
    %v5277 = vrcp.pop %v4986
    %v5278 = vrcp.pop %v4988
    %v5279 = vrcp.pop %v4990
    %v5280 = vrcp.pop %v4992
    %v5281 = vrcp.pop %v4994
    %v5282 = vrcp.pop %v4996
    %v5283 = vrcp.pop %v4998
    %v5284 = vrcp.pop %v5000
    %v5285 = vrcp.pop %v5002
    %v5286 = vrcp.pop %v5004
    %v5287 = vrcp.pop %v5006
    %v5288 = vrcp.pop %v5008
    %v5289 = vrcp.pop %v5010
    %v5290 = vrcp.pop %v5012
    %v5291 = vrcp.pop %v5014
    %v5292 = vrcp.pop %v5016
    %v5293 = vrcp.pop %v5018
    %v5294 = vrcp.pop %v5020
    %v5295 = vrcp.pop %v5022
    %v5296 = vrcp.pop %v5024
    %v5297 = vrcp.pop %v5026
    %v5298 = vrcp.pop %v5028
    %v5299 = vrcp.pop %v5030
    %v5300 = vrcp.pop %v5032
    %v5301 = vrcp.pop %v5034
    %v5302 = vrcp.pop %v5036
    %v5303 = vrcp.pop %v5038
    %v5304 = vrcp.pop %v5040
    %v5305 = vrcp.pop %v5042
    %v5306 = vrcp.pop %v5044
    %v5307 = vrcp.pop %v5046
    %v5308 = vrcp.pop %v5048
    %v5309 = vrcp.pop %v5050
    %v5310 = vrcp.pop %v5052
    %v5311 = vrcp.pop %v5054
    %v5312 = vrcp.pop %v5056
    %v5313 = vmul.f32 %v4034, %v5057
    %v5314 = vmul.f32 %v4036, %v5058
    %v5315 = vmul.f32 %v4038, %v5059
    %v5316 = vmul.f32 %v4040, %v5060
    %v5317 = vmul.f32 %v4042, %v5061
    %v5318 = vmul.f32 %v4044, %v5062
    %v5319 = vmul.f32 %v4046, %v5063
    %v5320 = vmul.f32 %v4048, %v5064
    %v5321 = vmul.f32 %v4050, %v5065
    %v5322 = vmul.f32 %v4052, %v5066
    %v5323 = vmul.f32 %v4054, %v5067
    %v5324 = vmul.f32 %v4056, %v5068
    %v5325 = vmul.f32 %v4058, %v5069
    %v5326 = vmul.f32 %v4060, %v5070
    %v5327 = vmul.f32 %v4062, %v5071
    %v5328 = vmul.f32 %v4064, %v5072
    %v5329 = vmul.f32 %v4066, %v5073
    %v5330 = vmul.f32 %v4068, %v5074
    %v5331 = vmul.f32 %v4070, %v5075
    %v5332 = vmul.f32 %v4072, %v5076
    %v5333 = vmul.f32 %v4074, %v5077
    %v5334 = vmul.f32 %v4076, %v5078
    %v5335 = vmul.f32 %v4078, %v5079
    %v5336 = vmul.f32 %v4080, %v5080
    %v5337 = vmul.f32 %v4082, %v5081
    %v5338 = vmul.f32 %v4084, %v5082
    %v5339 = vmul.f32 %v4086, %v5083
    %v5340 = vmul.f32 %v4088, %v5084
    %v5341 = vmul.f32 %v4090, %v5085
    %v5342 = vmul.f32 %v4092, %v5086
    %v5343 = vmul.f32 %v4094, %v5087
    %v5344 = vmul.f32 %v4096, %v5088
    %v5345 = vmul.f32 %v4098, %v5089
    %v5346 = vmul.f32 %v4100, %v5090
    %v5347 = vmul.f32 %v4102, %v5091
    %v5348 = vmul.f32 %v4104, %v5092
    %v5349 = vmul.f32 %v4106, %v5093
    %v5350 = vmul.f32 %v4108, %v5094
    %v5351 = vmul.f32 %v4110, %v5095
    %v5352 = vmul.f32 %v4112, %v5096
    %v5353 = vmul.f32 %v4114, %v5097
    %v5354 = vmul.f32 %v4116, %v5098
    %v5355 = vmul.f32 %v4118, %v5099
    %v5356 = vmul.f32 %v4120, %v5100
    %v5357 = vmul.f32 %v4122, %v5101
    %v5358 = vmul.f32 %v4124, %v5102
    %v5359 = vmul.f32 %v4126, %v5103
    %v5360 = vmul.f32 %v4128, %v5104
    %v5361 = vmul.f32 %v4130, %v5105
    %v5362 = vmul.f32 %v4132, %v5106
    %v5363 = vmul.f32 %v4134, %v5107
    %v5364 = vmul.f32 %v4136, %v5108
    %v5365 = vmul.f32 %v4138, %v5109
    %v5366 = vmul.f32 %v4140, %v5110
    %v5367 = vmul.f32 %v4142, %v5111
    %v5368 = vmul.f32 %v4144, %v5112
    %v5369 = vmul.f32 %v4146, %v5113
    %v5370 = vmul.f32 %v4148, %v5114
    %v5371 = vmul.f32 %v4150, %v5115
    %v5372 = vmul.f32 %v4152, %v5116
    %v5373 = vmul.f32 %v4154, %v5117
    %v5374 = vmul.f32 %v4156, %v5118
    %v5375 = vmul.f32 %v4158, %v5119
    %v5376 = vmul.f32 %v4160, %v5120
    %v5377 = vmul.f32 %v4162, %v5121
    %v5378 = vmul.f32 %v4164, %v5122
    %v5379 = vmul.f32 %v4166, %v5123
    %v5380 = vmul.f32 %v4168, %v5124
    %v5381 = vmul.f32 %v4170, %v5125
    %v5382 = vmul.f32 %v4172, %v5126
    %v5383 = vmul.f32 %v4174, %v5127
    %v5384 = vmul.f32 %v4176, %v5128
    %v5385 = vmul.f32 %v4178, %v5129
    %v5386 = vmul.f32 %v4180, %v5130
    %v5387 = vmul.f32 %v4182, %v5131
    %v5388 = vmul.f32 %v4184, %v5132
    %v5389 = vmul.f32 %v4186, %v5133
    %v5390 = vmul.f32 %v4188, %v5134
    %v5391 = vmul.f32 %v4190, %v5135
    %v5392 = vmul.f32 %v4192, %v5136
    %v5393 = vmul.f32 %v4194, %v5137
    %v5394 = vmul.f32 %v4196, %v5138
    %v5395 = vmul.f32 %v4198, %v5139
    %v5396 = vmul.f32 %v4200, %v5140
    %v5397 = vmul.f32 %v4202, %v5141
    %v5398 = vmul.f32 %v4204, %v5142
    %v5399 = vmul.f32 %v4206, %v5143
    %v5400 = vmul.f32 %v4208, %v5144
    %v5401 = vmul.f32 %v4210, %v5145
    %v5402 = vmul.f32 %v4212, %v5146
    %v5403 = vmul.f32 %v4214, %v5147
    %v5404 = vmul.f32 %v4216, %v5148
    %v5405 = vmul.f32 %v4218, %v5149
    %v5406 = vmul.f32 %v4220, %v5150
    %v5407 = vmul.f32 %v4222, %v5151
    %v5408 = vmul.f32 %v4224, %v5152
    %v5409 = vmul.f32 %v4226, %v5153
    %v5410 = vmul.f32 %v4228, %v5154
    %v5411 = vmul.f32 %v4230, %v5155
    %v5412 = vmul.f32 %v4232, %v5156
    %v5413 = vmul.f32 %v4234, %v5157
    %v5414 = vmul.f32 %v4236, %v5158
    %v5415 = vmul.f32 %v4238, %v5159
    %v5416 = vmul.f32 %v4240, %v5160
    %v5417 = vmul.f32 %v4242, %v5161
    %v5418 = vmul.f32 %v4244, %v5162
    %v5419 = vmul.f32 %v4246, %v5163
    %v5420 = vmul.f32 %v4248, %v5164
    %v5421 = vmul.f32 %v4250, %v5165
    %v5422 = vmul.f32 %v4252, %v5166
    %v5423 = vmul.f32 %v4254, %v5167
    %v5424 = vmul.f32 %v4256, %v5168
    %v5425 = vmul.f32 %v4258, %v5169
    %v5426 = vmul.f32 %v4260, %v5170
    %v5427 = vmul.f32 %v4262, %v5171
    %v5428 = vmul.f32 %v4264, %v5172
    %v5429 = vmul.f32 %v4266, %v5173
    %v5430 = vmul.f32 %v4268, %v5174
    %v5431 = vmul.f32 %v4270, %v5175
    %v5432 = vmul.f32 %v4272, %v5176
    %v5433 = vmul.f32 %v4274, %v5177
    %v5434 = vmul.f32 %v4276, %v5178
    %v5435 = vmul.f32 %v4278, %v5179
    %v5436 = vmul.f32 %v4280, %v5180
    %v5437 = vmul.f32 %v4282, %v5181
    %v5438 = vmul.f32 %v4284, %v5182
    %v5439 = vmul.f32 %v4286, %v5183
    %v5440 = vmul.f32 %v4288, %v5184
    %v5441 = vmul.f32 %v4290, %v5185
    %v5442 = vmul.f32 %v4292, %v5186
    %v5443 = vmul.f32 %v4294, %v5187
    %v5444 = vmul.f32 %v4296, %v5188
    %v5445 = vmul.f32 %v4298, %v5189
    %v5446 = vmul.f32 %v4300, %v5190
    %v5447 = vmul.f32 %v4302, %v5191
    %v5448 = vmul.f32 %v4304, %v5192
    %v5449 = vmul.f32 %v4306, %v5193
    %v5450 = vmul.f32 %v4308, %v5194
    %v5451 = vmul.f32 %v4310, %v5195
    %v5452 = vmul.f32 %v4312, %v5196
    %v5453 = vmul.f32 %v4314, %v5197
    %v5454 = vmul.f32 %v4316, %v5198
    %v5455 = vmul.f32 %v4318, %v5199
    %v5456 = vmul.f32 %v4320, %v5200
    %v5457 = vmul.f32 %v4322, %v5201
    %v5458 = vmul.f32 %v4324, %v5202
    %v5459 = vmul.f32 %v4326, %v5203
    %v5460 = vmul.f32 %v4328, %v5204
    %v5461 = vmul.f32 %v4330, %v5205
    %v5462 = vmul.f32 %v4332, %v5206
    %v5463 = vmul.f32 %v4334, %v5207
    %v5464 = vmul.f32 %v4336, %v5208
    %v5465 = vmul.f32 %v4338, %v5209
    %v5466 = vmul.f32 %v4340, %v5210
    %v5467 = vmul.f32 %v4342, %v5211
    %v5468 = vmul.f32 %v4344, %v5212
    %v5469 = vmul.f32 %v4346, %v5213
    %v5470 = vmul.f32 %v4348, %v5214
    %v5471 = vmul.f32 %v4350, %v5215
    %v5472 = vmul.f32 %v4352, %v5216
    %v5473 = vmul.f32 %v4354, %v5217
    %v5474 = vmul.f32 %v4356, %v5218
    %v5475 = vmul.f32 %v4358, %v5219
    %v5476 = vmul.f32 %v4360, %v5220
    %v5477 = vmul.f32 %v4362, %v5221
    %v5478 = vmul.f32 %v4364, %v5222
    %v5479 = vmul.f32 %v4366, %v5223
    %v5480 = vmul.f32 %v4368, %v5224
    %v5481 = vmul.f32 %v4370, %v5225
    %v5482 = vmul.f32 %v4372, %v5226
    %v5483 = vmul.f32 %v4374, %v5227
    %v5484 = vmul.f32 %v4376, %v5228
    %v5485 = vmul.f32 %v4378, %v5229
    %v5486 = vmul.f32 %v4380, %v5230
    %v5487 = vmul.f32 %v4382, %v5231
    %v5488 = vmul.f32 %v4384, %v5232
    %v5489 = vmul.f32 %v4386, %v5233
    %v5490 = vmul.f32 %v4388, %v5234
    %v5491 = vmul.f32 %v4390, %v5235
    %v5492 = vmul.f32 %v4392, %v5236
    %v5493 = vmul.f32 %v4394, %v5237
    %v5494 = vmul.f32 %v4396, %v5238
    %v5495 = vmul.f32 %v4398, %v5239
    %v5496 = vmul.f32 %v4400, %v5240
    %v5497 = vmul.f32 %v4402, %v5241
    %v5498 = vmul.f32 %v4404, %v5242
    %v5499 = vmul.f32 %v4406, %v5243
    %v5500 = vmul.f32 %v4408, %v5244
    %v5501 = vmul.f32 %v4410, %v5245
    %v5502 = vmul.f32 %v4412, %v5246
    %v5503 = vmul.f32 %v4414, %v5247
    %v5504 = vmul.f32 %v4416, %v5248
    %v5505 = vmul.f32 %v4418, %v5249
    %v5506 = vmul.f32 %v4420, %v5250
    %v5507 = vmul.f32 %v4422, %v5251
    %v5508 = vmul.f32 %v4424, %v5252
    %v5509 = vmul.f32 %v4426, %v5253
    %v5510 = vmul.f32 %v4428, %v5254
    %v5511 = vmul.f32 %v4430, %v5255
    %v5512 = vmul.f32 %v4432, %v5256
    %v5513 = vmul.f32 %v4434, %v5257
    %v5514 = vmul.f32 %v4436, %v5258
    %v5515 = vmul.f32 %v4438, %v5259
    %v5516 = vmul.f32 %v4440, %v5260
    %v5517 = vmul.f32 %v4442, %v5261
    %v5518 = vmul.f32 %v4444, %v5262
    %v5519 = vmul.f32 %v4446, %v5263
    %v5520 = vmul.f32 %v4448, %v5264
    %v5521 = vmul.f32 %v4450, %v5265
    %v5522 = vmul.f32 %v4452, %v5266
    %v5523 = vmul.f32 %v4454, %v5267
    %v5524 = vmul.f32 %v4456, %v5268
    %v5525 = vmul.f32 %v4458, %v5269
    %v5526 = vmul.f32 %v4460, %v5270
    %v5527 = vmul.f32 %v4462, %v5271
    %v5528 = vmul.f32 %v4464, %v5272
    %v5529 = vmul.f32 %v4466, %v5273
    %v5530 = vmul.f32 %v4468, %v5274
    %v5531 = vmul.f32 %v4470, %v5275
    %v5532 = vmul.f32 %v4472, %v5276
    %v5533 = vmul.f32 %v4474, %v5277
    %v5534 = vmul.f32 %v4476, %v5278
    %v5535 = vmul.f32 %v4478, %v5279
    %v5536 = vmul.f32 %v4480, %v5280
    %v5537 = vmul.f32 %v4482, %v5281
    %v5538 = vmul.f32 %v4484, %v5282
    %v5539 = vmul.f32 %v4486, %v5283
    %v5540 = vmul.f32 %v4488, %v5284
    %v5541 = vmul.f32 %v4490, %v5285
    %v5542 = vmul.f32 %v4492, %v5286
    %v5543 = vmul.f32 %v4494, %v5287
    %v5544 = vmul.f32 %v4496, %v5288
    %v5545 = vmul.f32 %v4498, %v5289
    %v5546 = vmul.f32 %v4500, %v5290
    %v5547 = vmul.f32 %v4502, %v5291
    %v5548 = vmul.f32 %v4504, %v5292
    %v5549 = vmul.f32 %v4506, %v5293
    %v5550 = vmul.f32 %v4508, %v5294
    %v5551 = vmul.f32 %v4510, %v5295
    %v5552 = vmul.f32 %v4512, %v5296
    %v5553 = vmul.f32 %v4514, %v5297
    %v5554 = vmul.f32 %v4516, %v5298
    %v5555 = vmul.f32 %v4518, %v5299
    %v5556 = vmul.f32 %v4520, %v5300
    %v5557 = vmul.f32 %v4522, %v5301
    %v5558 = vmul.f32 %v4524, %v5302
    %v5559 = vmul.f32 %v4526, %v5303
    %v5560 = vmul.f32 %v4528, %v5304
    %v5561 = vmul.f32 %v4530, %v5305
    %v5562 = vmul.f32 %v4532, %v5306
    %v5563 = vmul.f32 %v4534, %v5307
    %v5564 = vmul.f32 %v4536, %v5308
    %v5565 = vmul.f32 %v4538, %v5309
    %v5566 = vmul.f32 %v4540, %v5310
    %v5567 = vmul.f32 %v4542, %v5311
    %v5568 = vmul.f32 %v4544, %v5312
    %v5569 = vpack.c.bf16 %v5314, %v5313
    %v5570 = vpack.c.bf16 %v5316, %v5315
    %v5571 = vpack.c.bf16 %v5318, %v5317
    %v5572 = vpack.c.bf16 %v5320, %v5319
    %v5573 = vpack.c.bf16 %v5322, %v5321
    %v5574 = vpack.c.bf16 %v5324, %v5323
    %v5575 = vpack.c.bf16 %v5326, %v5325
    %v5576 = vpack.c.bf16 %v5328, %v5327
    %v5577 = vpack.c.bf16 %v5330, %v5329
    %v5578 = vpack.c.bf16 %v5332, %v5331
    %v5579 = vpack.c.bf16 %v5334, %v5333
    %v5580 = vpack.c.bf16 %v5336, %v5335
    %v5581 = vpack.c.bf16 %v5338, %v5337
    %v5582 = vpack.c.bf16 %v5340, %v5339
    %v5583 = vpack.c.bf16 %v5342, %v5341
    %v5584 = vpack.c.bf16 %v5344, %v5343
    %v5585 = vpack.c.bf16 %v5346, %v5345
    %v5586 = vpack.c.bf16 %v5348, %v5347
    %v5587 = vpack.c.bf16 %v5350, %v5349
    %v5588 = vpack.c.bf16 %v5352, %v5351
    %v5589 = vpack.c.bf16 %v5354, %v5353
    %v5590 = vpack.c.bf16 %v5356, %v5355
    %v5591 = vpack.c.bf16 %v5358, %v5357
    %v5592 = vpack.c.bf16 %v5360, %v5359
    %v5593 = vpack.c.bf16 %v5362, %v5361
    %v5594 = vpack.c.bf16 %v5364, %v5363
    %v5595 = vpack.c.bf16 %v5366, %v5365
    %v5596 = vpack.c.bf16 %v5368, %v5367
    %v5597 = vpack.c.bf16 %v5370, %v5369
    %v5598 = vpack.c.bf16 %v5372, %v5371
    %v5599 = vpack.c.bf16 %v5374, %v5373
    %v5600 = vpack.c.bf16 %v5376, %v5375
    %v5601 = vpack.c.bf16 %v5378, %v5377
    %v5602 = vpack.c.bf16 %v5380, %v5379
    %v5603 = vpack.c.bf16 %v5382, %v5381
    %v5604 = vpack.c.bf16 %v5384, %v5383
    %v5605 = vpack.c.bf16 %v5386, %v5385
    %v5606 = vpack.c.bf16 %v5388, %v5387
    %v5607 = vpack.c.bf16 %v5390, %v5389
    %v5608 = vpack.c.bf16 %v5392, %v5391
    %v5609 = vpack.c.bf16 %v5394, %v5393
    %v5610 = vpack.c.bf16 %v5396, %v5395
    %v5611 = vpack.c.bf16 %v5398, %v5397
    %v5612 = vpack.c.bf16 %v5400, %v5399
    %v5613 = vpack.c.bf16 %v5402, %v5401
    %v5614 = vpack.c.bf16 %v5404, %v5403
    %v5615 = vpack.c.bf16 %v5406, %v5405
    %v5616 = vpack.c.bf16 %v5408, %v5407
    %v5617 = vpack.c.bf16 %v5410, %v5409
    %v5618 = vpack.c.bf16 %v5412, %v5411
    %v5619 = vpack.c.bf16 %v5414, %v5413
    %v5620 = vpack.c.bf16 %v5416, %v5415
    %v5621 = vpack.c.bf16 %v5418, %v5417
    %v5622 = vpack.c.bf16 %v5420, %v5419
    %v5623 = vpack.c.bf16 %v5422, %v5421
    %v5624 = vpack.c.bf16 %v5424, %v5423
    %v5625 = vpack.c.bf16 %v5426, %v5425
    %v5626 = vpack.c.bf16 %v5428, %v5427
    %v5627 = vpack.c.bf16 %v5430, %v5429
    %v5628 = vpack.c.bf16 %v5432, %v5431
    %v5629 = vpack.c.bf16 %v5434, %v5433
    %v5630 = vpack.c.bf16 %v5436, %v5435
    %v5631 = vpack.c.bf16 %v5438, %v5437
    %v5632 = vpack.c.bf16 %v5440, %v5439
    %v5633 = vpack.c.bf16 %v5442, %v5441
    %v5634 = vpack.c.bf16 %v5444, %v5443
    %v5635 = vpack.c.bf16 %v5446, %v5445
    %v5636 = vpack.c.bf16 %v5448, %v5447
    %v5637 = vpack.c.bf16 %v5450, %v5449
    %v5638 = vpack.c.bf16 %v5452, %v5451
    %v5639 = vpack.c.bf16 %v5454, %v5453
    %v5640 = vpack.c.bf16 %v5456, %v5455
    %v5641 = vpack.c.bf16 %v5458, %v5457
    %v5642 = vpack.c.bf16 %v5460, %v5459
    %v5643 = vpack.c.bf16 %v5462, %v5461
    %v5644 = vpack.c.bf16 %v5464, %v5463
    %v5645 = vpack.c.bf16 %v5466, %v5465
    %v5646 = vpack.c.bf16 %v5468, %v5467
    %v5647 = vpack.c.bf16 %v5470, %v5469
    %v5648 = vpack.c.bf16 %v5472, %v5471
    %v5649 = vpack.c.bf16 %v5474, %v5473
    %v5650 = vpack.c.bf16 %v5476, %v5475
    %v5651 = vpack.c.bf16 %v5478, %v5477
    %v5652 = vpack.c.bf16 %v5480, %v5479
    %v5653 = vpack.c.bf16 %v5482, %v5481
    %v5654 = vpack.c.bf16 %v5484, %v5483
    %v5655 = vpack.c.bf16 %v5486, %v5485
    %v5656 = vpack.c.bf16 %v5488, %v5487
    %v5657 = vpack.c.bf16 %v5490, %v5489
    %v5658 = vpack.c.bf16 %v5492, %v5491
    %v5659 = vpack.c.bf16 %v5494, %v5493
    %v5660 = vpack.c.bf16 %v5496, %v5495
    %v5661 = vpack.c.bf16 %v5498, %v5497
    %v5662 = vpack.c.bf16 %v5500, %v5499
    %v5663 = vpack.c.bf16 %v5502, %v5501
    %v5664 = vpack.c.bf16 %v5504, %v5503
    %v5665 = vpack.c.bf16 %v5506, %v5505
    %v5666 = vpack.c.bf16 %v5508, %v5507
    %v5667 = vpack.c.bf16 %v5510, %v5509
    %v5668 = vpack.c.bf16 %v5512, %v5511
    %v5669 = vpack.c.bf16 %v5514, %v5513
    %v5670 = vpack.c.bf16 %v5516, %v5515
    %v5671 = vpack.c.bf16 %v5518, %v5517
    %v5672 = vpack.c.bf16 %v5520, %v5519
    %v5673 = vpack.c.bf16 %v5522, %v5521
    %v5674 = vpack.c.bf16 %v5524, %v5523
    %v5675 = vpack.c.bf16 %v5526, %v5525
    %v5676 = vpack.c.bf16 %v5528, %v5527
    %v5677 = vpack.c.bf16 %v5530, %v5529
    %v5678 = vpack.c.bf16 %v5532, %v5531
    %v5679 = vpack.c.bf16 %v5534, %v5533
    %v5680 = vpack.c.bf16 %v5536, %v5535
    %v5681 = vpack.c.bf16 %v5538, %v5537
    %v5682 = vpack.c.bf16 %v5540, %v5539
    %v5683 = vpack.c.bf16 %v5542, %v5541
    %v5684 = vpack.c.bf16 %v5544, %v5543
    %v5685 = vpack.c.bf16 %v5546, %v5545
    %v5686 = vpack.c.bf16 %v5548, %v5547
    %v5687 = vpack.c.bf16 %v5550, %v5549
    %v5688 = vpack.c.bf16 %v5552, %v5551
    %v5689 = vpack.c.bf16 %v5554, %v5553
    %v5690 = vpack.c.bf16 %v5556, %v5555
    %v5691 = vpack.c.bf16 %v5558, %v5557
    %v5692 = vpack.c.bf16 %v5560, %v5559
    %v5693 = vpack.c.bf16 %v5562, %v5561
    %v5694 = vpack.c.bf16 %v5564, %v5563
    %v5695 = vpack.c.bf16 %v5566, %v5565
    %v5696 = vpack.c.bf16 %v5568, %v5567
    %5705 = vrot.lane.b32.xlu0 %v1596, 96
    %v5706 = vpop.permute.xlu0 %5705
    %5707 = vrot.lane.b32.xlu0 %v1597, 96
    %v5708 = vpop.permute.xlu0 %5707
    %5709 = vrot.lane.b32.xlu0 %v1598, 96
    %v5710 = vpop.permute.xlu0 %5709
    %5711 = vrot.lane.b32.xlu0 %v1599, 96
    %v5712 = vpop.permute.xlu0 %5711
    %5713 = vrot.lane.b32.xlu0 %v1600, 96
    %v5714 = vpop.permute.xlu0 %5713
    %5715 = vrot.lane.b32.xlu0 %v1601, 96
    %v5716 = vpop.permute.xlu0 %5715
    %5717 = vrot.lane.b32.xlu0 %v1602, 96
    %v5718 = vpop.permute.xlu0 %5717
    %5719 = vrot.lane.b32.xlu0 %v1603, 96
    %v5720 = vpop.permute.xlu0 %5719
    %5729 = vmatprep.subr.bf16.mxu0 0
    %5730 = vmatpush1.bf16.msra.mxu0 %v5720
    %5731 = vmatprep.subr.bf16.mxu0 0
    %5732 = vmatpush1.bf16.msra.mxu0 %v5718
    %5733 = vmatprep.subr.bf16.mxu0 0
    %5734 = vmatpush1.bf16.msra.mxu0 %v5716
    %5735 = vmatprep.subr.bf16.mxu0 0
    %5736 = vmatpush1.bf16.msra.mxu0 %v5714
    %5737 = vmatprep.subr.bf16.mxu0 0
    %5738 = vmatpush1.bf16.msra.mxu0 %v5712
    %5739 = vmatprep.subr.bf16.mxu0 0
    %5740 = vmatpush1.bf16.msra.mxu0 %v5710
    %5741 = vmatprep.subr.bf16.mxu0 0
    %5742 = vmatpush1.bf16.msra.mxu0 %v5708
    %5743 = vmatprep.subr.bf16.mxu0 0
    %5744 = vmatpush1.bf16.msra.mxu0 %v5706
    %5745 = vmatprep.subr.bf16.mxu0 0
    %5746 = vmatpush2.bf16.msra.mxu0 0
    %5747 = vmatprep.subr.bf16.mxu0 0
    %5748 = vmatpush2.bf16.msra.mxu0 0
    %5749 = vmatprep.subr.bf16.mxu0 0
    %5750 = vmatpush2.bf16.msra.mxu0 0
    %5751 = vmatprep.subr.bf16.mxu0 0
    %5752 = vmatpush2.bf16.msra.mxu0 0
    %5753 = vmatprep.subr.bf16.mxu0 0
    %5754 = vmatpush2.bf16.msra.mxu0 0
    %5755 = vmatprep.subr.bf16.mxu0 0
    %5756 = vmatpush2.bf16.msra.mxu0 0
    %5757 = vmatprep.subr.bf16.mxu0 0
    %5758 = vmatpush2.bf16.msra.mxu0 0
    %5759 = vmatprep.subr.bf16.mxu0 0
    %5760 = vmatpush2.bf16.msra.mxu0 0
    %5761 = vmatprep.mubr.bf16.mxu0 0
    %5762 = vmatmul.mubr.bf16.gmra.mxu0 %v5569
    %v5763 = vpop.f32.mrf.mxu0
    %v5764 = vadd.f32 0.0, %v5763
    %v5765 = vpop.f32.mrf.mxu0
    %v5766 = vpop.f32.mrf.mxu0
    %v5767 = vadd.f32 0.0, %v5766
    %v5768 = vpop.f32.mrf.mxu0
    %5769 = vmatprep.mubr.bf16.mxu0 0
    %5770 = vmatmul.mubr.bf16.gmra.mxu0 %v5570
    %v5771 = vpop.f32.mrf.mxu0
    %v5772 = vadd.f32 0.0, %v5771
    %v5773 = vpop.f32.mrf.mxu0
    %v5774 = vpop.f32.mrf.mxu0
    %v5775 = vadd.f32 0.0, %v5774
    %v5776 = vpop.f32.mrf.mxu0
    %5777 = vmatprep.mubr.bf16.mxu0 0
    %5778 = vmatmul.mubr.bf16.gmra.mxu0 %v5571
    %v5779 = vpop.f32.mrf.mxu0
    %v5780 = vadd.f32 0.0, %v5779
    %v5781 = vpop.f32.mrf.mxu0
    %v5782 = vpop.f32.mrf.mxu0
    %v5783 = vadd.f32 0.0, %v5782
    %v5784 = vpop.f32.mrf.mxu0
    %5785 = vmatprep.mubr.bf16.mxu0 0
    %5786 = vmatmul.mubr.bf16.gmra.mxu0 %v5572
    %v5787 = vpop.f32.mrf.mxu0
    %v5788 = vadd.f32 0.0, %v5787
    %v5789 = vpop.f32.mrf.mxu0
    %v5790 = vpop.f32.mrf.mxu0
    %v5791 = vadd.f32 0.0, %v5790
    %v5792 = vpop.f32.mrf.mxu0
    %5793 = vmatprep.mubr.bf16.mxu0 0
    %5794 = vmatmul.mubr.bf16.gmra.mxu0 %v5573
    %v5795 = vpop.f32.mrf.mxu0
    %v5796 = vadd.f32 0.0, %v5795
    %v5797 = vpop.f32.mrf.mxu0
    %v5798 = vpop.f32.mrf.mxu0
    %v5799 = vadd.f32 0.0, %v5798
    %v5800 = vpop.f32.mrf.mxu0
    %5801 = vmatprep.mubr.bf16.mxu0 0
    %5802 = vmatmul.mubr.bf16.gmra.mxu0 %v5574
    %v5803 = vpop.f32.mrf.mxu0
    %v5804 = vadd.f32 0.0, %v5803
    %v5805 = vpop.f32.mrf.mxu0
    %v5806 = vpop.f32.mrf.mxu0
    %v5807 = vadd.f32 0.0, %v5806
    %v5808 = vpop.f32.mrf.mxu0
    %5809 = vmatprep.mubr.bf16.mxu0 0
    %5810 = vmatmul.mubr.bf16.gmra.mxu0 %v5575
    %v5811 = vpop.f32.mrf.mxu0
    %v5812 = vadd.f32 0.0, %v5811
    %v5813 = vpop.f32.mrf.mxu0
    %v5814 = vpop.f32.mrf.mxu0
    %v5815 = vadd.f32 0.0, %v5814
    %v5816 = vpop.f32.mrf.mxu0
    %5817 = vmatprep.mubr.bf16.mxu0 0
    %5818 = vmatmul.mubr.bf16.gmra.mxu0 %v5576
    %v5819 = vpop.f32.mrf.mxu0
    %v5820 = vadd.f32 0.0, %v5819
    %v5821 = vpop.f32.mrf.mxu0
    %v5822 = vpop.f32.mrf.mxu0
    %v5823 = vadd.f32 0.0, %v5822
    %v5824 = vpop.f32.mrf.mxu0
    %5825 = vmatprep.mubr.bf16.mxu0 0
    %5826 = vmatmul.mubr.bf16.gmra.mxu0 %v5577
    %v5827 = vpop.f32.mrf.mxu0
    %v5828 = vadd.f32 0.0, %v5827
    %v5829 = vpop.f32.mrf.mxu0
    %v5830 = vpop.f32.mrf.mxu0
    %v5831 = vadd.f32 0.0, %v5830
    %v5832 = vpop.f32.mrf.mxu0
    %5833 = vmatprep.mubr.bf16.mxu0 0
    %5834 = vmatmul.mubr.bf16.gmra.mxu0 %v5578
    %v5835 = vpop.f32.mrf.mxu0
    %v5836 = vadd.f32 0.0, %v5835
    %v5837 = vpop.f32.mrf.mxu0
    %v5838 = vpop.f32.mrf.mxu0
    %v5839 = vadd.f32 0.0, %v5838
    %v5840 = vpop.f32.mrf.mxu0
    %5841 = vmatprep.mubr.bf16.mxu0 0
    %5842 = vmatmul.mubr.bf16.gmra.mxu0 %v5579
    %v5843 = vpop.f32.mrf.mxu0
    %v5844 = vadd.f32 0.0, %v5843
    %v5845 = vpop.f32.mrf.mxu0
    %v5846 = vpop.f32.mrf.mxu0
    %v5847 = vadd.f32 0.0, %v5846
    %v5848 = vpop.f32.mrf.mxu0
    %5849 = vmatprep.mubr.bf16.mxu0 0
    %5850 = vmatmul.mubr.bf16.gmra.mxu0 %v5580
    %v5851 = vpop.f32.mrf.mxu0
    %v5852 = vadd.f32 0.0, %v5851
    %v5853 = vpop.f32.mrf.mxu0
    %v5854 = vpop.f32.mrf.mxu0
    %v5855 = vadd.f32 0.0, %v5854
    %v5856 = vpop.f32.mrf.mxu0
    %5857 = vmatprep.mubr.bf16.mxu0 0
    %5858 = vmatmul.mubr.bf16.gmra.mxu0 %v5581
    %v5859 = vpop.f32.mrf.mxu0
    %v5860 = vadd.f32 0.0, %v5859
    %v5861 = vpop.f32.mrf.mxu0
    %v5862 = vpop.f32.mrf.mxu0
    %v5863 = vadd.f32 0.0, %v5862
    %v5864 = vpop.f32.mrf.mxu0
    %5865 = vmatprep.mubr.bf16.mxu0 0
    %5866 = vmatmul.mubr.bf16.gmra.mxu0 %v5582
    %v5867 = vpop.f32.mrf.mxu0
    %v5868 = vadd.f32 0.0, %v5867
    %v5869 = vpop.f32.mrf.mxu0
    %v5870 = vpop.f32.mrf.mxu0
    %v5871 = vadd.f32 0.0, %v5870
    %v5872 = vpop.f32.mrf.mxu0
    %5873 = vmatprep.mubr.bf16.mxu0 0
    %5874 = vmatmul.mubr.bf16.gmra.mxu0 %v5583
    %v5875 = vpop.f32.mrf.mxu0
    %v5876 = vadd.f32 0.0, %v5875
    %v5877 = vpop.f32.mrf.mxu0
    %v5878 = vpop.f32.mrf.mxu0
    %v5879 = vadd.f32 0.0, %v5878
    %v5880 = vpop.f32.mrf.mxu0
    %5881 = vmatprep.mubr.bf16.mxu0 0
    %5882 = vmatmul.mubr.bf16.gmra.mxu0 %v5584
    %v5883 = vpop.f32.mrf.mxu0
    %v5884 = vadd.f32 0.0, %v5883
    %v5885 = vpop.f32.mrf.mxu0
    %v5886 = vpop.f32.mrf.mxu0
    %v5887 = vadd.f32 0.0, %v5886
    %v5888 = vpop.f32.mrf.mxu0
    %5889 = vmatprep.mubr.bf16.mxu0 0
    %5890 = vmatmul.mubr.bf16.gmra.mxu0 %v5585
    %v5891 = vpop.f32.mrf.mxu0
    %v5892 = vadd.f32 0.0, %v5891
    %v5893 = vpop.f32.mrf.mxu0
    %v5894 = vpop.f32.mrf.mxu0
    %v5895 = vadd.f32 0.0, %v5894
    %v5896 = vpop.f32.mrf.mxu0
    %5897 = vmatprep.mubr.bf16.mxu0 0
    %5898 = vmatmul.mubr.bf16.gmra.mxu0 %v5586
    %v5899 = vpop.f32.mrf.mxu0
    %v5900 = vadd.f32 0.0, %v5899
    %v5901 = vpop.f32.mrf.mxu0
    %v5902 = vpop.f32.mrf.mxu0
    %v5903 = vadd.f32 0.0, %v5902
    %v5904 = vpop.f32.mrf.mxu0
    %5905 = vmatprep.mubr.bf16.mxu0 0
    %5906 = vmatmul.mubr.bf16.gmra.mxu0 %v5587
    %v5907 = vpop.f32.mrf.mxu0
    %v5908 = vadd.f32 0.0, %v5907
    %v5909 = vpop.f32.mrf.mxu0
    %v5910 = vpop.f32.mrf.mxu0
    %v5911 = vadd.f32 0.0, %v5910
    %v5912 = vpop.f32.mrf.mxu0
    %5913 = vmatprep.mubr.bf16.mxu0 0
    %5914 = vmatmul.mubr.bf16.gmra.mxu0 %v5588
    %v5915 = vpop.f32.mrf.mxu0
    %v5916 = vadd.f32 0.0, %v5915
    %v5917 = vpop.f32.mrf.mxu0
    %v5918 = vpop.f32.mrf.mxu0
    %v5919 = vadd.f32 0.0, %v5918
    %v5920 = vpop.f32.mrf.mxu0
    %5921 = vmatprep.mubr.bf16.mxu0 0
    %5922 = vmatmul.mubr.bf16.gmra.mxu0 %v5589
    %v5923 = vpop.f32.mrf.mxu0
    %v5924 = vadd.f32 0.0, %v5923
    %v5925 = vpop.f32.mrf.mxu0
    %v5926 = vpop.f32.mrf.mxu0
    %v5927 = vadd.f32 0.0, %v5926
    %v5928 = vpop.f32.mrf.mxu0
    %5929 = vmatprep.mubr.bf16.mxu0 0
    %5930 = vmatmul.mubr.bf16.gmra.mxu0 %v5590
    %v5931 = vpop.f32.mrf.mxu0
    %v5932 = vadd.f32 0.0, %v5931
    %v5933 = vpop.f32.mrf.mxu0
    %v5934 = vpop.f32.mrf.mxu0
    %v5935 = vadd.f32 0.0, %v5934
    %v5936 = vpop.f32.mrf.mxu0
    %5937 = vmatprep.mubr.bf16.mxu0 0
    %5938 = vmatmul.mubr.bf16.gmra.mxu0 %v5591
    %v5939 = vpop.f32.mrf.mxu0
    %v5940 = vadd.f32 0.0, %v5939
    %v5941 = vpop.f32.mrf.mxu0
    %v5942 = vpop.f32.mrf.mxu0
    %v5943 = vadd.f32 0.0, %v5942
    %v5944 = vpop.f32.mrf.mxu0
    %5945 = vmatprep.mubr.bf16.mxu0 0
    %5946 = vmatmul.mubr.bf16.gmra.mxu0 %v5592
    %v5947 = vpop.f32.mrf.mxu0
    %v5948 = vadd.f32 0.0, %v5947
    %v5949 = vpop.f32.mrf.mxu0
    %v5950 = vpop.f32.mrf.mxu0
    %v5951 = vadd.f32 0.0, %v5950
    %v5952 = vpop.f32.mrf.mxu0
    %5953 = vmatprep.mubr.bf16.mxu0 0
    %5954 = vmatmul.mubr.bf16.gmra.mxu0 %v5593
    %v5955 = vpop.f32.mrf.mxu0
    %v5956 = vadd.f32 0.0, %v5955
    %v5957 = vpop.f32.mrf.mxu0
    %v5958 = vpop.f32.mrf.mxu0
    %v5959 = vadd.f32 0.0, %v5958
    %v5960 = vpop.f32.mrf.mxu0
    %5961 = vmatprep.mubr.bf16.mxu0 0
    %5962 = vmatmul.mubr.bf16.gmra.mxu0 %v5594
    %v5963 = vpop.f32.mrf.mxu0
    %v5964 = vadd.f32 0.0, %v5963
    %v5965 = vpop.f32.mrf.mxu0
    %v5966 = vpop.f32.mrf.mxu0
    %v5967 = vadd.f32 0.0, %v5966
    %v5968 = vpop.f32.mrf.mxu0
    %5969 = vmatprep.mubr.bf16.mxu0 0
    %5970 = vmatmul.mubr.bf16.gmra.mxu0 %v5595
    %v5971 = vpop.f32.mrf.mxu0
    %v5972 = vadd.f32 0.0, %v5971
    %v5973 = vpop.f32.mrf.mxu0
    %v5974 = vpop.f32.mrf.mxu0
    %v5975 = vadd.f32 0.0, %v5974
    %v5976 = vpop.f32.mrf.mxu0
    %5977 = vmatprep.mubr.bf16.mxu0 0
    %5978 = vmatmul.mubr.bf16.gmra.mxu0 %v5596
    %v5979 = vpop.f32.mrf.mxu0
    %v5980 = vadd.f32 0.0, %v5979
    %v5981 = vpop.f32.mrf.mxu0
    %v5982 = vpop.f32.mrf.mxu0
    %v5983 = vadd.f32 0.0, %v5982
    %v5984 = vpop.f32.mrf.mxu0
    %5985 = vmatprep.mubr.bf16.mxu0 0
    %5986 = vmatmul.mubr.bf16.gmra.mxu0 %v5597
    %v5987 = vpop.f32.mrf.mxu0
    %v5988 = vadd.f32 0.0, %v5987
    %v5989 = vpop.f32.mrf.mxu0
    %v5990 = vpop.f32.mrf.mxu0
    %v5991 = vadd.f32 0.0, %v5990
    %v5992 = vpop.f32.mrf.mxu0
    %5993 = vmatprep.mubr.bf16.mxu0 0
    %5994 = vmatmul.mubr.bf16.gmra.mxu0 %v5598
    %v5995 = vpop.f32.mrf.mxu0
    %v5996 = vadd.f32 0.0, %v5995
    %v5997 = vpop.f32.mrf.mxu0
    %v5998 = vpop.f32.mrf.mxu0
    %v5999 = vadd.f32 0.0, %v5998
    %v6000 = vpop.f32.mrf.mxu0
    %6001 = vmatprep.mubr.bf16.mxu0 0
    %6002 = vmatmul.mubr.bf16.gmra.mxu0 %v5599
    %v6003 = vpop.f32.mrf.mxu0
    %v6004 = vadd.f32 0.0, %v6003
    %v6005 = vpop.f32.mrf.mxu0
    %v6006 = vpop.f32.mrf.mxu0
    %v6007 = vadd.f32 0.0, %v6006
    %v6008 = vpop.f32.mrf.mxu0
    %6009 = vmatprep.mubr.bf16.mxu0 0
    %6010 = vmatmul.mubr.bf16.gmra.mxu0 %v5600
    %v6011 = vpop.f32.mrf.mxu0
    %v6012 = vadd.f32 0.0, %v6011
    %v6013 = vpop.f32.mrf.mxu0
    %v6014 = vpop.f32.mrf.mxu0
    %v6015 = vadd.f32 0.0, %v6014
    %v6016 = vpop.f32.mrf.mxu0
    %6017 = vdwg.mxu0
    %6026 = vrot.lane.b32.xlu0 %v1604, 96
    %v6027 = vpop.permute.xlu0 %6026
    %6028 = vrot.lane.b32.xlu0 %v1605, 96
    %v6029 = vpop.permute.xlu0 %6028
    %6030 = vrot.lane.b32.xlu0 %v1606, 96
    %v6031 = vpop.permute.xlu0 %6030
    %6032 = vrot.lane.b32.xlu0 %v1607, 96
    %v6033 = vpop.permute.xlu0 %6032
    %6034 = vrot.lane.b32.xlu0 %v1608, 96
    %v6035 = vpop.permute.xlu0 %6034
    %6036 = vrot.lane.b32.xlu0 %v1609, 96
    %v6037 = vpop.permute.xlu0 %6036
    %6038 = vrot.lane.b32.xlu0 %v1610, 96
    %v6039 = vpop.permute.xlu0 %6038
    %6040 = vrot.lane.b32.xlu0 %v1611, 96
    %v6041 = vpop.permute.xlu0 %6040
    %6050 = vmatprep.subr.bf16.mxu0 0
    %6051 = vmatpush1.bf16.msra.mxu0 %v6041
    %6052 = vmatprep.subr.bf16.mxu0 0
    %6053 = vmatpush1.bf16.msra.mxu0 %v6039
    %6054 = vmatprep.subr.bf16.mxu0 0
    %6055 = vmatpush1.bf16.msra.mxu0 %v6037
    %6056 = vmatprep.subr.bf16.mxu0 0
    %6057 = vmatpush1.bf16.msra.mxu0 %v6035
    %6058 = vmatprep.subr.bf16.mxu0 0
    %6059 = vmatpush1.bf16.msra.mxu0 %v6033
    %6060 = vmatprep.subr.bf16.mxu0 0
    %6061 = vmatpush1.bf16.msra.mxu0 %v6031
    %6062 = vmatprep.subr.bf16.mxu0 0
    %6063 = vmatpush1.bf16.msra.mxu0 %v6029
    %6064 = vmatprep.subr.bf16.mxu0 0
    %6065 = vmatpush1.bf16.msra.mxu0 %v6027
    %6066 = vmatprep.subr.bf16.mxu0 0
    %6067 = vmatpush2.bf16.msra.mxu0 0
    %6068 = vmatprep.subr.bf16.mxu0 0
    %6069 = vmatpush2.bf16.msra.mxu0 0
    %6070 = vmatprep.subr.bf16.mxu0 0
    %6071 = vmatpush2.bf16.msra.mxu0 0
    %6072 = vmatprep.subr.bf16.mxu0 0
    %6073 = vmatpush2.bf16.msra.mxu0 0
    %6074 = vmatprep.subr.bf16.mxu0 0
    %6075 = vmatpush2.bf16.msra.mxu0 0
    %6076 = vmatprep.subr.bf16.mxu0 0
    %6077 = vmatpush2.bf16.msra.mxu0 0
    %6078 = vmatprep.subr.bf16.mxu0 0
    %6079 = vmatpush2.bf16.msra.mxu0 0
    %6080 = vmatprep.subr.bf16.mxu0 0
    %6081 = vmatpush2.bf16.msra.mxu0 0
    %6082 = vmatprep.mubr.bf16.mxu0 0
    %6083 = vmatmul.mubr.bf16.gmra.mxu0 %v5601
    %v6084 = vpop.f32.mrf.mxu0
    %v6085 = vadd.f32 0.0, %v6084
    %v6086 = vpop.f32.mrf.mxu0
    %v6087 = vpop.f32.mrf.mxu0
    %v6088 = vadd.f32 0.0, %v6087
    %v6089 = vpop.f32.mrf.mxu0
    %6090 = vmatprep.mubr.bf16.mxu0 0
    %6091 = vmatmul.mubr.bf16.gmra.mxu0 %v5602
    %v6092 = vpop.f32.mrf.mxu0
    %v6093 = vadd.f32 0.0, %v6092
    %v6094 = vpop.f32.mrf.mxu0
    %v6095 = vpop.f32.mrf.mxu0
    %v6096 = vadd.f32 0.0, %v6095
    %v6097 = vpop.f32.mrf.mxu0
    %6098 = vmatprep.mubr.bf16.mxu0 0
    %6099 = vmatmul.mubr.bf16.gmra.mxu0 %v5603
    %v6100 = vpop.f32.mrf.mxu0
    %v6101 = vadd.f32 0.0, %v6100
    %v6102 = vpop.f32.mrf.mxu0
    %v6103 = vpop.f32.mrf.mxu0
    %v6104 = vadd.f32 0.0, %v6103
    %v6105 = vpop.f32.mrf.mxu0
    %6106 = vmatprep.mubr.bf16.mxu0 0
    %6107 = vmatmul.mubr.bf16.gmra.mxu0 %v5604
    %v6108 = vpop.f32.mrf.mxu0
    %v6109 = vadd.f32 0.0, %v6108
    %v6110 = vpop.f32.mrf.mxu0
    %v6111 = vpop.f32.mrf.mxu0
    %v6112 = vadd.f32 0.0, %v6111
    %v6113 = vpop.f32.mrf.mxu0
    %6114 = vmatprep.mubr.bf16.mxu0 0
    %6115 = vmatmul.mubr.bf16.gmra.mxu0 %v5605
    %v6116 = vpop.f32.mrf.mxu0
    %v6117 = vadd.f32 0.0, %v6116
    %v6118 = vpop.f32.mrf.mxu0
    %v6119 = vpop.f32.mrf.mxu0
    %v6120 = vadd.f32 0.0, %v6119
    %v6121 = vpop.f32.mrf.mxu0
    %6122 = vmatprep.mubr.bf16.mxu0 0
    %6123 = vmatmul.mubr.bf16.gmra.mxu0 %v5606
    %v6124 = vpop.f32.mrf.mxu0
    %v6125 = vadd.f32 0.0, %v6124
    %v6126 = vpop.f32.mrf.mxu0
    %v6127 = vpop.f32.mrf.mxu0
    %v6128 = vadd.f32 0.0, %v6127
    %v6129 = vpop.f32.mrf.mxu0
    %6130 = vmatprep.mubr.bf16.mxu0 0
    %6131 = vmatmul.mubr.bf16.gmra.mxu0 %v5607
    %v6132 = vpop.f32.mrf.mxu0
    %v6133 = vadd.f32 0.0, %v6132
    %v6134 = vpop.f32.mrf.mxu0
    %v6135 = vpop.f32.mrf.mxu0
    %v6136 = vadd.f32 0.0, %v6135
    %v6137 = vpop.f32.mrf.mxu0
    %6138 = vmatprep.mubr.bf16.mxu0 0
    %6139 = vmatmul.mubr.bf16.gmra.mxu0 %v5608
    %v6140 = vpop.f32.mrf.mxu0
    %v6141 = vadd.f32 0.0, %v6140
    %v6142 = vpop.f32.mrf.mxu0
    %v6143 = vpop.f32.mrf.mxu0
    %v6144 = vadd.f32 0.0, %v6143
    %v6145 = vpop.f32.mrf.mxu0
    %6146 = vmatprep.mubr.bf16.mxu0 0
    %6147 = vmatmul.mubr.bf16.gmra.mxu0 %v5609
    %v6148 = vpop.f32.mrf.mxu0
    %v6149 = vadd.f32 0.0, %v6148
    %v6150 = vpop.f32.mrf.mxu0
    %v6151 = vpop.f32.mrf.mxu0
    %v6152 = vadd.f32 0.0, %v6151
    %v6153 = vpop.f32.mrf.mxu0
    %6154 = vmatprep.mubr.bf16.mxu0 0
    %6155 = vmatmul.mubr.bf16.gmra.mxu0 %v5610
    %v6156 = vpop.f32.mrf.mxu0
    %v6157 = vadd.f32 0.0, %v6156
    %v6158 = vpop.f32.mrf.mxu0
    %v6159 = vpop.f32.mrf.mxu0
    %v6160 = vadd.f32 0.0, %v6159
    %v6161 = vpop.f32.mrf.mxu0
    %6162 = vmatprep.mubr.bf16.mxu0 0
    %6163 = vmatmul.mubr.bf16.gmra.mxu0 %v5611
    %v6164 = vpop.f32.mrf.mxu0
    %v6165 = vadd.f32 0.0, %v6164
    %v6166 = vpop.f32.mrf.mxu0
    %v6167 = vpop.f32.mrf.mxu0
    %v6168 = vadd.f32 0.0, %v6167
    %v6169 = vpop.f32.mrf.mxu0
    %6170 = vmatprep.mubr.bf16.mxu0 0
    %6171 = vmatmul.mubr.bf16.gmra.mxu0 %v5612
    %v6172 = vpop.f32.mrf.mxu0
    %v6173 = vadd.f32 0.0, %v6172
    %v6174 = vpop.f32.mrf.mxu0
    %v6175 = vpop.f32.mrf.mxu0
    %v6176 = vadd.f32 0.0, %v6175
    %v6177 = vpop.f32.mrf.mxu0
    %6178 = vmatprep.mubr.bf16.mxu0 0
    %6179 = vmatmul.mubr.bf16.gmra.mxu0 %v5613
    %v6180 = vpop.f32.mrf.mxu0
    %v6181 = vadd.f32 0.0, %v6180
    %v6182 = vpop.f32.mrf.mxu0
    %v6183 = vpop.f32.mrf.mxu0
    %v6184 = vadd.f32 0.0, %v6183
    %v6185 = vpop.f32.mrf.mxu0
    %6186 = vmatprep.mubr.bf16.mxu0 0
    %6187 = vmatmul.mubr.bf16.gmra.mxu0 %v5614
    %v6188 = vpop.f32.mrf.mxu0
    %v6189 = vadd.f32 0.0, %v6188
    %v6190 = vpop.f32.mrf.mxu0
    %v6191 = vpop.f32.mrf.mxu0
    %v6192 = vadd.f32 0.0, %v6191
    %v6193 = vpop.f32.mrf.mxu0
    %6194 = vmatprep.mubr.bf16.mxu0 0
    %6195 = vmatmul.mubr.bf16.gmra.mxu0 %v5615
    %v6196 = vpop.f32.mrf.mxu0
    %v6197 = vadd.f32 0.0, %v6196
    %v6198 = vpop.f32.mrf.mxu0
    %v6199 = vpop.f32.mrf.mxu0
    %v6200 = vadd.f32 0.0, %v6199
    %v6201 = vpop.f32.mrf.mxu0
    %6202 = vmatprep.mubr.bf16.mxu0 0
    %6203 = vmatmul.mubr.bf16.gmra.mxu0 %v5616
    %v6204 = vpop.f32.mrf.mxu0
    %v6205 = vadd.f32 0.0, %v6204
    %v6206 = vpop.f32.mrf.mxu0
    %v6207 = vpop.f32.mrf.mxu0
    %v6208 = vadd.f32 0.0, %v6207
    %v6209 = vpop.f32.mrf.mxu0
    %6210 = vmatprep.mubr.bf16.mxu0 0
    %6211 = vmatmul.mubr.bf16.gmra.mxu0 %v5617
    %v6212 = vpop.f32.mrf.mxu0
    %v6213 = vadd.f32 0.0, %v6212
    %v6214 = vpop.f32.mrf.mxu0
    %v6215 = vpop.f32.mrf.mxu0
    %v6216 = vadd.f32 0.0, %v6215
    %v6217 = vpop.f32.mrf.mxu0
    %6218 = vmatprep.mubr.bf16.mxu0 0
    %6219 = vmatmul.mubr.bf16.gmra.mxu0 %v5618
    %v6220 = vpop.f32.mrf.mxu0
    %v6221 = vadd.f32 0.0, %v6220
    %v6222 = vpop.f32.mrf.mxu0
    %v6223 = vpop.f32.mrf.mxu0
    %v6224 = vadd.f32 0.0, %v6223
    %v6225 = vpop.f32.mrf.mxu0
    %6226 = vmatprep.mubr.bf16.mxu0 0
    %6227 = vmatmul.mubr.bf16.gmra.mxu0 %v5619
    %v6228 = vpop.f32.mrf.mxu0
    %v6229 = vadd.f32 0.0, %v6228
    %v6230 = vpop.f32.mrf.mxu0
    %v6231 = vpop.f32.mrf.mxu0
    %v6232 = vadd.f32 0.0, %v6231
    %v6233 = vpop.f32.mrf.mxu0
    %6234 = vmatprep.mubr.bf16.mxu0 0
    %6235 = vmatmul.mubr.bf16.gmra.mxu0 %v5620
    %v6236 = vpop.f32.mrf.mxu0
    %v6237 = vadd.f32 0.0, %v6236
    %v6238 = vpop.f32.mrf.mxu0
    %v6239 = vpop.f32.mrf.mxu0
    %v6240 = vadd.f32 0.0, %v6239
    %v6241 = vpop.f32.mrf.mxu0
    %6242 = vmatprep.mubr.bf16.mxu0 0
    %6243 = vmatmul.mubr.bf16.gmra.mxu0 %v5621
    %v6244 = vpop.f32.mrf.mxu0
    %v6245 = vadd.f32 0.0, %v6244
    %v6246 = vpop.f32.mrf.mxu0
    %v6247 = vpop.f32.mrf.mxu0
    %v6248 = vadd.f32 0.0, %v6247
    %v6249 = vpop.f32.mrf.mxu0
    %6250 = vmatprep.mubr.bf16.mxu0 0
    %6251 = vmatmul.mubr.bf16.gmra.mxu0 %v5622
    %v6252 = vpop.f32.mrf.mxu0
    %v6253 = vadd.f32 0.0, %v6252
    %v6254 = vpop.f32.mrf.mxu0
    %v6255 = vpop.f32.mrf.mxu0
    %v6256 = vadd.f32 0.0, %v6255
    %v6257 = vpop.f32.mrf.mxu0
    %6258 = vmatprep.mubr.bf16.mxu0 0
    %6259 = vmatmul.mubr.bf16.gmra.mxu0 %v5623
    %v6260 = vpop.f32.mrf.mxu0
    %v6261 = vadd.f32 0.0, %v6260
    %v6262 = vpop.f32.mrf.mxu0
    %v6263 = vpop.f32.mrf.mxu0
    %v6264 = vadd.f32 0.0, %v6263
    %v6265 = vpop.f32.mrf.mxu0
    %6266 = vmatprep.mubr.bf16.mxu0 0
    %6267 = vmatmul.mubr.bf16.gmra.mxu0 %v5624
    %v6268 = vpop.f32.mrf.mxu0
    %v6269 = vadd.f32 0.0, %v6268
    %v6270 = vpop.f32.mrf.mxu0
    %v6271 = vpop.f32.mrf.mxu0
    %v6272 = vadd.f32 0.0, %v6271
    %v6273 = vpop.f32.mrf.mxu0
    %6274 = vmatprep.mubr.bf16.mxu0 0
    %6275 = vmatmul.mubr.bf16.gmra.mxu0 %v5625
    %v6276 = vpop.f32.mrf.mxu0
    %v6277 = vadd.f32 0.0, %v6276
    %v6278 = vpop.f32.mrf.mxu0
    %v6279 = vpop.f32.mrf.mxu0
    %v6280 = vadd.f32 0.0, %v6279
    %v6281 = vpop.f32.mrf.mxu0
    %6282 = vmatprep.mubr.bf16.mxu0 0
    %6283 = vmatmul.mubr.bf16.gmra.mxu0 %v5626
    %v6284 = vpop.f32.mrf.mxu0
    %v6285 = vadd.f32 0.0, %v6284
    %v6286 = vpop.f32.mrf.mxu0
    %v6287 = vpop.f32.mrf.mxu0
    %v6288 = vadd.f32 0.0, %v6287
    %v6289 = vpop.f32.mrf.mxu0
    %6290 = vmatprep.mubr.bf16.mxu0 0
    %6291 = vmatmul.mubr.bf16.gmra.mxu0 %v5627
    %v6292 = vpop.f32.mrf.mxu0
    %v6293 = vadd.f32 0.0, %v6292
    %v6294 = vpop.f32.mrf.mxu0
    %v6295 = vpop.f32.mrf.mxu0
    %v6296 = vadd.f32 0.0, %v6295
    %v6297 = vpop.f32.mrf.mxu0
    %6298 = vmatprep.mubr.bf16.mxu0 0
    %6299 = vmatmul.mubr.bf16.gmra.mxu0 %v5628
    %v6300 = vpop.f32.mrf.mxu0
    %v6301 = vadd.f32 0.0, %v6300
    %v6302 = vpop.f32.mrf.mxu0
    %v6303 = vpop.f32.mrf.mxu0
    %v6304 = vadd.f32 0.0, %v6303
    %v6305 = vpop.f32.mrf.mxu0
    %6306 = vmatprep.mubr.bf16.mxu0 0
    %6307 = vmatmul.mubr.bf16.gmra.mxu0 %v5629
    %v6308 = vpop.f32.mrf.mxu0
    %v6309 = vadd.f32 0.0, %v6308
    %v6310 = vpop.f32.mrf.mxu0
    %v6311 = vpop.f32.mrf.mxu0
    %v6312 = vadd.f32 0.0, %v6311
    %v6313 = vpop.f32.mrf.mxu0
    %6314 = vmatprep.mubr.bf16.mxu0 0
    %6315 = vmatmul.mubr.bf16.gmra.mxu0 %v5630
    %v6316 = vpop.f32.mrf.mxu0
    %v6317 = vadd.f32 0.0, %v6316
    %v6318 = vpop.f32.mrf.mxu0
    %v6319 = vpop.f32.mrf.mxu0
    %v6320 = vadd.f32 0.0, %v6319
    %v6321 = vpop.f32.mrf.mxu0
    %6322 = vmatprep.mubr.bf16.mxu0 0
    %6323 = vmatmul.mubr.bf16.gmra.mxu0 %v5631
    %v6324 = vpop.f32.mrf.mxu0
    %v6325 = vadd.f32 0.0, %v6324
    %v6326 = vpop.f32.mrf.mxu0
    %v6327 = vpop.f32.mrf.mxu0
    %v6328 = vadd.f32 0.0, %v6327
    %v6329 = vpop.f32.mrf.mxu0
    %6330 = vmatprep.mubr.bf16.mxu0 0
    %6331 = vmatmul.mubr.bf16.gmra.mxu0 %v5632
    %v6332 = vpop.f32.mrf.mxu0
    %v6333 = vadd.f32 0.0, %v6332
    %v6334 = vpop.f32.mrf.mxu0
    %v6335 = vpop.f32.mrf.mxu0
    %v6336 = vadd.f32 0.0, %v6335
    %v6337 = vpop.f32.mrf.mxu0
    %6338 = vdwg.mxu0
    %6347 = vrot.lane.b32.xlu0 %v1612, 96
    %v6348 = vpop.permute.xlu0 %6347
    %6349 = vrot.lane.b32.xlu0 %v1613, 96
    %v6350 = vpop.permute.xlu0 %6349
    %6351 = vrot.lane.b32.xlu0 %v1614, 96
    %v6352 = vpop.permute.xlu0 %6351
    %6353 = vrot.lane.b32.xlu0 %v1615, 96
    %v6354 = vpop.permute.xlu0 %6353
    %6355 = vrot.lane.b32.xlu0 %v1616, 96
    %v6356 = vpop.permute.xlu0 %6355
    %6357 = vrot.lane.b32.xlu0 %v1617, 96
    %v6358 = vpop.permute.xlu0 %6357
    %6359 = vrot.lane.b32.xlu0 %v1618, 96
    %v6360 = vpop.permute.xlu0 %6359
    %6361 = vrot.lane.b32.xlu0 %v1619, 96
    %v6362 = vpop.permute.xlu0 %6361
    %6371 = vmatprep.subr.bf16.mxu0 0
    %6372 = vmatpush1.bf16.msra.mxu0 %v6362
    %6373 = vmatprep.subr.bf16.mxu0 0
    %6374 = vmatpush1.bf16.msra.mxu0 %v6360
    %6375 = vmatprep.subr.bf16.mxu0 0
    %6376 = vmatpush1.bf16.msra.mxu0 %v6358
    %6377 = vmatprep.subr.bf16.mxu0 0
    %6378 = vmatpush1.bf16.msra.mxu0 %v6356
    %6379 = vmatprep.subr.bf16.mxu0 0
    %6380 = vmatpush1.bf16.msra.mxu0 %v6354
    %6381 = vmatprep.subr.bf16.mxu0 0
    %6382 = vmatpush1.bf16.msra.mxu0 %v6352
    %6383 = vmatprep.subr.bf16.mxu0 0
    %6384 = vmatpush1.bf16.msra.mxu0 %v6350
    %6385 = vmatprep.subr.bf16.mxu0 0
    %6386 = vmatpush1.bf16.msra.mxu0 %v6348
    %6387 = vmatprep.subr.bf16.mxu0 0
    %6388 = vmatpush2.bf16.msra.mxu0 0
    %6389 = vmatprep.subr.bf16.mxu0 0
    %6390 = vmatpush2.bf16.msra.mxu0 0
    %6391 = vmatprep.subr.bf16.mxu0 0
    %6392 = vmatpush2.bf16.msra.mxu0 0
    %6393 = vmatprep.subr.bf16.mxu0 0
    %6394 = vmatpush2.bf16.msra.mxu0 0
    %6395 = vmatprep.subr.bf16.mxu0 0
    %6396 = vmatpush2.bf16.msra.mxu0 0
    %6397 = vmatprep.subr.bf16.mxu0 0
    %6398 = vmatpush2.bf16.msra.mxu0 0
    %6399 = vmatprep.subr.bf16.mxu0 0
    %6400 = vmatpush2.bf16.msra.mxu0 0
    %6401 = vmatprep.subr.bf16.mxu0 0
    %6402 = vmatpush2.bf16.msra.mxu0 0
    %6403 = vmatprep.mubr.bf16.mxu0 0
    %6404 = vmatmul.mubr.bf16.gmra.mxu0 %v5633
    %v6405 = vpop.f32.mrf.mxu0
    %v6406 = vadd.f32 0.0, %v6405
    %v6407 = vpop.f32.mrf.mxu0
    %v6408 = vpop.f32.mrf.mxu0
    %v6409 = vadd.f32 0.0, %v6408
    %v6410 = vpop.f32.mrf.mxu0
    %6411 = vmatprep.mubr.bf16.mxu0 0
    %6412 = vmatmul.mubr.bf16.gmra.mxu0 %v5634
    %v6413 = vpop.f32.mrf.mxu0
    %v6414 = vadd.f32 0.0, %v6413
    %v6415 = vpop.f32.mrf.mxu0
    %v6416 = vpop.f32.mrf.mxu0
    %v6417 = vadd.f32 0.0, %v6416
    %v6418 = vpop.f32.mrf.mxu0
    %6419 = vmatprep.mubr.bf16.mxu0 0
    %6420 = vmatmul.mubr.bf16.gmra.mxu0 %v5635
    %v6421 = vpop.f32.mrf.mxu0
    %v6422 = vadd.f32 0.0, %v6421
    %v6423 = vpop.f32.mrf.mxu0
    %v6424 = vpop.f32.mrf.mxu0
    %v6425 = vadd.f32 0.0, %v6424
    %v6426 = vpop.f32.mrf.mxu0
    %6427 = vmatprep.mubr.bf16.mxu0 0
    %6428 = vmatmul.mubr.bf16.gmra.mxu0 %v5636
    %v6429 = vpop.f32.mrf.mxu0
    %v6430 = vadd.f32 0.0, %v6429
    %v6431 = vpop.f32.mrf.mxu0
    %v6432 = vpop.f32.mrf.mxu0
    %v6433 = vadd.f32 0.0, %v6432
    %v6434 = vpop.f32.mrf.mxu0
    %6435 = vmatprep.mubr.bf16.mxu0 0
    %6436 = vmatmul.mubr.bf16.gmra.mxu0 %v5637
    %v6437 = vpop.f32.mrf.mxu0
    %v6438 = vadd.f32 0.0, %v6437
    %v6439 = vpop.f32.mrf.mxu0
    %v6440 = vpop.f32.mrf.mxu0
    %v6441 = vadd.f32 0.0, %v6440
    %v6442 = vpop.f32.mrf.mxu0
    %6443 = vmatprep.mubr.bf16.mxu0 0
    %6444 = vmatmul.mubr.bf16.gmra.mxu0 %v5638
    %v6445 = vpop.f32.mrf.mxu0
    %v6446 = vadd.f32 0.0, %v6445
    %v6447 = vpop.f32.mrf.mxu0
    %v6448 = vpop.f32.mrf.mxu0
    %v6449 = vadd.f32 0.0, %v6448
    %v6450 = vpop.f32.mrf.mxu0
    %6451 = vmatprep.mubr.bf16.mxu0 0
    %6452 = vmatmul.mubr.bf16.gmra.mxu0 %v5639
    %v6453 = vpop.f32.mrf.mxu0
    %v6454 = vadd.f32 0.0, %v6453
    %v6455 = vpop.f32.mrf.mxu0
    %v6456 = vpop.f32.mrf.mxu0
    %v6457 = vadd.f32 0.0, %v6456
    %v6458 = vpop.f32.mrf.mxu0
    %6459 = vmatprep.mubr.bf16.mxu0 0
    %6460 = vmatmul.mubr.bf16.gmra.mxu0 %v5640
    %v6461 = vpop.f32.mrf.mxu0
    %v6462 = vadd.f32 0.0, %v6461
    %v6463 = vpop.f32.mrf.mxu0
    %v6464 = vpop.f32.mrf.mxu0
    %v6465 = vadd.f32 0.0, %v6464
    %v6466 = vpop.f32.mrf.mxu0
    %6467 = vmatprep.mubr.bf16.mxu0 0
    %6468 = vmatmul.mubr.bf16.gmra.mxu0 %v5641
    %v6469 = vpop.f32.mrf.mxu0
    %v6470 = vadd.f32 0.0, %v6469
    %v6471 = vpop.f32.mrf.mxu0
    %v6472 = vpop.f32.mrf.mxu0
    %v6473 = vadd.f32 0.0, %v6472
    %v6474 = vpop.f32.mrf.mxu0
    %6475 = vmatprep.mubr.bf16.mxu0 0
    %6476 = vmatmul.mubr.bf16.gmra.mxu0 %v5642
    %v6477 = vpop.f32.mrf.mxu0
    %v6478 = vadd.f32 0.0, %v6477
    %v6479 = vpop.f32.mrf.mxu0
    %v6480 = vpop.f32.mrf.mxu0
    %v6481 = vadd.f32 0.0, %v6480
    %v6482 = vpop.f32.mrf.mxu0
    %6483 = vmatprep.mubr.bf16.mxu0 0
    %6484 = vmatmul.mubr.bf16.gmra.mxu0 %v5643
    %v6485 = vpop.f32.mrf.mxu0
    %v6486 = vadd.f32 0.0, %v6485
    %v6487 = vpop.f32.mrf.mxu0
    %v6488 = vpop.f32.mrf.mxu0
    %v6489 = vadd.f32 0.0, %v6488
    %v6490 = vpop.f32.mrf.mxu0
    %6491 = vmatprep.mubr.bf16.mxu0 0
    %6492 = vmatmul.mubr.bf16.gmra.mxu0 %v5644
    %v6493 = vpop.f32.mrf.mxu0
    %v6494 = vadd.f32 0.0, %v6493
    %v6495 = vpop.f32.mrf.mxu0
    %v6496 = vpop.f32.mrf.mxu0
    %v6497 = vadd.f32 0.0, %v6496
    %v6498 = vpop.f32.mrf.mxu0
    %6499 = vmatprep.mubr.bf16.mxu0 0
    %6500 = vmatmul.mubr.bf16.gmra.mxu0 %v5645
    %v6501 = vpop.f32.mrf.mxu0
    %v6502 = vadd.f32 0.0, %v6501
    %v6503 = vpop.f32.mrf.mxu0
    %v6504 = vpop.f32.mrf.mxu0
    %v6505 = vadd.f32 0.0, %v6504
    %v6506 = vpop.f32.mrf.mxu0
    %6507 = vmatprep.mubr.bf16.mxu0 0
    %6508 = vmatmul.mubr.bf16.gmra.mxu0 %v5646
    %v6509 = vpop.f32.mrf.mxu0
    %v6510 = vadd.f32 0.0, %v6509
    %v6511 = vpop.f32.mrf.mxu0
    %v6512 = vpop.f32.mrf.mxu0
    %v6513 = vadd.f32 0.0, %v6512
    %v6514 = vpop.f32.mrf.mxu0
    %6515 = vmatprep.mubr.bf16.mxu0 0
    %6516 = vmatmul.mubr.bf16.gmra.mxu0 %v5647
    %v6517 = vpop.f32.mrf.mxu0
    %v6518 = vadd.f32 0.0, %v6517
    %v6519 = vpop.f32.mrf.mxu0
    %v6520 = vpop.f32.mrf.mxu0
    %v6521 = vadd.f32 0.0, %v6520
    %v6522 = vpop.f32.mrf.mxu0
    %6523 = vmatprep.mubr.bf16.mxu0 0
    %6524 = vmatmul.mubr.bf16.gmra.mxu0 %v5648
    %v6525 = vpop.f32.mrf.mxu0
    %v6526 = vadd.f32 0.0, %v6525
    %v6527 = vpop.f32.mrf.mxu0
    %v6528 = vpop.f32.mrf.mxu0
    %v6529 = vadd.f32 0.0, %v6528
    %v6530 = vpop.f32.mrf.mxu0
    %6531 = vmatprep.mubr.bf16.mxu0 0
    %6532 = vmatmul.mubr.bf16.gmra.mxu0 %v5649
    %v6533 = vpop.f32.mrf.mxu0
    %v6534 = vadd.f32 0.0, %v6533
    %v6535 = vpop.f32.mrf.mxu0
    %v6536 = vpop.f32.mrf.mxu0
    %v6537 = vadd.f32 0.0, %v6536
    %v6538 = vpop.f32.mrf.mxu0
    %6539 = vmatprep.mubr.bf16.mxu0 0
    %6540 = vmatmul.mubr.bf16.gmra.mxu0 %v5650
    %v6541 = vpop.f32.mrf.mxu0
    %v6542 = vadd.f32 0.0, %v6541
    %v6543 = vpop.f32.mrf.mxu0
    %v6544 = vpop.f32.mrf.mxu0
    %v6545 = vadd.f32 0.0, %v6544
    %v6546 = vpop.f32.mrf.mxu0
    %6547 = vmatprep.mubr.bf16.mxu0 0
    %6548 = vmatmul.mubr.bf16.gmra.mxu0 %v5651
    %v6549 = vpop.f32.mrf.mxu0
    %v6550 = vadd.f32 0.0, %v6549
    %v6551 = vpop.f32.mrf.mxu0
    %v6552 = vpop.f32.mrf.mxu0
    %v6553 = vadd.f32 0.0, %v6552
    %v6554 = vpop.f32.mrf.mxu0
    %6555 = vmatprep.mubr.bf16.mxu0 0
    %6556 = vmatmul.mubr.bf16.gmra.mxu0 %v5652
    %v6557 = vpop.f32.mrf.mxu0
    %v6558 = vadd.f32 0.0, %v6557
    %v6559 = vpop.f32.mrf.mxu0
    %v6560 = vpop.f32.mrf.mxu0
    %v6561 = vadd.f32 0.0, %v6560
    %v6562 = vpop.f32.mrf.mxu0
    %6563 = vmatprep.mubr.bf16.mxu0 0
    %6564 = vmatmul.mubr.bf16.gmra.mxu0 %v5653
    %v6565 = vpop.f32.mrf.mxu0
    %v6566 = vadd.f32 0.0, %v6565
    %v6567 = vpop.f32.mrf.mxu0
    %v6568 = vpop.f32.mrf.mxu0
    %v6569 = vadd.f32 0.0, %v6568
    %v6570 = vpop.f32.mrf.mxu0
    %6571 = vmatprep.mubr.bf16.mxu0 0
    %6572 = vmatmul.mubr.bf16.gmra.mxu0 %v5654
    %v6573 = vpop.f32.mrf.mxu0
    %v6574 = vadd.f32 0.0, %v6573
    %v6575 = vpop.f32.mrf.mxu0
    %v6576 = vpop.f32.mrf.mxu0
    %v6577 = vadd.f32 0.0, %v6576
    %v6578 = vpop.f32.mrf.mxu0
    %6579 = vmatprep.mubr.bf16.mxu0 0
    %6580 = vmatmul.mubr.bf16.gmra.mxu0 %v5655
    %v6581 = vpop.f32.mrf.mxu0
    %v6582 = vadd.f32 0.0, %v6581
    %v6583 = vpop.f32.mrf.mxu0
    %v6584 = vpop.f32.mrf.mxu0
    %v6585 = vadd.f32 0.0, %v6584
    %v6586 = vpop.f32.mrf.mxu0
    %6587 = vmatprep.mubr.bf16.mxu0 0
    %6588 = vmatmul.mubr.bf16.gmra.mxu0 %v5656
    %v6589 = vpop.f32.mrf.mxu0
    %v6590 = vadd.f32 0.0, %v6589
    %v6591 = vpop.f32.mrf.mxu0
    %v6592 = vpop.f32.mrf.mxu0
    %v6593 = vadd.f32 0.0, %v6592
    %v6594 = vpop.f32.mrf.mxu0
    %6595 = vmatprep.mubr.bf16.mxu0 0
    %6596 = vmatmul.mubr.bf16.gmra.mxu0 %v5657
    %v6597 = vpop.f32.mrf.mxu0
    %v6598 = vadd.f32 0.0, %v6597
    %v6599 = vpop.f32.mrf.mxu0
    %v6600 = vpop.f32.mrf.mxu0
    %v6601 = vadd.f32 0.0, %v6600
    %v6602 = vpop.f32.mrf.mxu0
    %6603 = vmatprep.mubr.bf16.mxu0 0
    %6604 = vmatmul.mubr.bf16.gmra.mxu0 %v5658
    %v6605 = vpop.f32.mrf.mxu0
    %v6606 = vadd.f32 0.0, %v6605
    %v6607 = vpop.f32.mrf.mxu0
    %v6608 = vpop.f32.mrf.mxu0
    %v6609 = vadd.f32 0.0, %v6608
    %v6610 = vpop.f32.mrf.mxu0
    %6611 = vmatprep.mubr.bf16.mxu0 0
    %6612 = vmatmul.mubr.bf16.gmra.mxu0 %v5659
    %v6613 = vpop.f32.mrf.mxu0
    %v6614 = vadd.f32 0.0, %v6613
    %v6615 = vpop.f32.mrf.mxu0
    %v6616 = vpop.f32.mrf.mxu0
    %v6617 = vadd.f32 0.0, %v6616
    %v6618 = vpop.f32.mrf.mxu0
    %6619 = vmatprep.mubr.bf16.mxu0 0
    %6620 = vmatmul.mubr.bf16.gmra.mxu0 %v5660
    %v6621 = vpop.f32.mrf.mxu0
    %v6622 = vadd.f32 0.0, %v6621
    %v6623 = vpop.f32.mrf.mxu0
    %v6624 = vpop.f32.mrf.mxu0
    %v6625 = vadd.f32 0.0, %v6624
    %v6626 = vpop.f32.mrf.mxu0
    %6627 = vmatprep.mubr.bf16.mxu0 0
    %6628 = vmatmul.mubr.bf16.gmra.mxu0 %v5661
    %v6629 = vpop.f32.mrf.mxu0
    %v6630 = vadd.f32 0.0, %v6629
    %v6631 = vpop.f32.mrf.mxu0
    %v6632 = vpop.f32.mrf.mxu0
    %v6633 = vadd.f32 0.0, %v6632
    %v6634 = vpop.f32.mrf.mxu0
    %6635 = vmatprep.mubr.bf16.mxu0 0
    %6636 = vmatmul.mubr.bf16.gmra.mxu0 %v5662
    %v6637 = vpop.f32.mrf.mxu0
    %v6638 = vadd.f32 0.0, %v6637
    %v6639 = vpop.f32.mrf.mxu0
    %v6640 = vpop.f32.mrf.mxu0
    %v6641 = vadd.f32 0.0, %v6640
    %v6642 = vpop.f32.mrf.mxu0
    %6643 = vmatprep.mubr.bf16.mxu0 0
    %6644 = vmatmul.mubr.bf16.gmra.mxu0 %v5663
    %v6645 = vpop.f32.mrf.mxu0
    %v6646 = vadd.f32 0.0, %v6645
    %v6647 = vpop.f32.mrf.mxu0
    %v6648 = vpop.f32.mrf.mxu0
    %v6649 = vadd.f32 0.0, %v6648
    %v6650 = vpop.f32.mrf.mxu0
    %6651 = vmatprep.mubr.bf16.mxu0 0
    %6652 = vmatmul.mubr.bf16.gmra.mxu0 %v5664
    %v6653 = vpop.f32.mrf.mxu0
    %v6654 = vadd.f32 0.0, %v6653
    %v6655 = vpop.f32.mrf.mxu0
    %v6656 = vpop.f32.mrf.mxu0
    %v6657 = vadd.f32 0.0, %v6656
    %v6658 = vpop.f32.mrf.mxu0
    %6659 = vdwg.mxu0
    %6668 = vrot.lane.b32.xlu0 %v1620, 96
    %v6669 = vpop.permute.xlu0 %6668
    %6670 = vrot.lane.b32.xlu0 %v1621, 96
    %v6671 = vpop.permute.xlu0 %6670
    %6672 = vrot.lane.b32.xlu0 %v1622, 96
    %v6673 = vpop.permute.xlu0 %6672
    %6674 = vrot.lane.b32.xlu0 %v1623, 96
    %v6675 = vpop.permute.xlu0 %6674
    %6676 = vrot.lane.b32.xlu0 %v1624, 96
    %v6677 = vpop.permute.xlu0 %6676
    %6678 = vrot.lane.b32.xlu0 %v1625, 96
    %v6679 = vpop.permute.xlu0 %6678
    %6680 = vrot.lane.b32.xlu0 %v1626, 96
    %v6681 = vpop.permute.xlu0 %6680
    %6682 = vrot.lane.b32.xlu0 %v1627, 96
    %v6683 = vpop.permute.xlu0 %6682
    %6692 = vmatprep.subr.bf16.mxu0 0
    %6693 = vmatpush1.bf16.msra.mxu0 %v6683
    %6694 = vmatprep.subr.bf16.mxu0 0
    %6695 = vmatpush1.bf16.msra.mxu0 %v6681
    %6696 = vmatprep.subr.bf16.mxu0 0
    %6697 = vmatpush1.bf16.msra.mxu0 %v6679
    %6698 = vmatprep.subr.bf16.mxu0 0
    %6699 = vmatpush1.bf16.msra.mxu0 %v6677
    %6700 = vmatprep.subr.bf16.mxu0 0
    %6701 = vmatpush1.bf16.msra.mxu0 %v6675
    %6702 = vmatprep.subr.bf16.mxu0 0
    %6703 = vmatpush1.bf16.msra.mxu0 %v6673
    %6704 = vmatprep.subr.bf16.mxu0 0
    %6705 = vmatpush1.bf16.msra.mxu0 %v6671
    %6706 = vmatprep.subr.bf16.mxu0 0
    %6707 = vmatpush1.bf16.msra.mxu0 %v6669
    %6708 = vmatprep.subr.bf16.mxu0 0
    %6709 = vmatpush2.bf16.msra.mxu0 0
    %6710 = vmatprep.subr.bf16.mxu0 0
    %6711 = vmatpush2.bf16.msra.mxu0 0
    %6712 = vmatprep.subr.bf16.mxu0 0
    %6713 = vmatpush2.bf16.msra.mxu0 0
    %6714 = vmatprep.subr.bf16.mxu0 0
    %6715 = vmatpush2.bf16.msra.mxu0 0
    %6716 = vmatprep.subr.bf16.mxu0 0
    %6717 = vmatpush2.bf16.msra.mxu0 0
    %6718 = vmatprep.subr.bf16.mxu0 0
    %6719 = vmatpush2.bf16.msra.mxu0 0
    %6720 = vmatprep.subr.bf16.mxu0 0
    %6721 = vmatpush2.bf16.msra.mxu0 0
    %6722 = vmatprep.subr.bf16.mxu0 0
    %6723 = vmatpush2.bf16.msra.mxu0 0
    %6724 = vmatprep.mubr.bf16.mxu0 0
    %6725 = vmatmul.mubr.bf16.gmra.mxu0 %v5665
    %v6726 = vpop.f32.mrf.mxu0
    %v6727 = vadd.f32 0.0, %v6726
    %v6728 = vpop.f32.mrf.mxu0
    %v6729 = vpop.f32.mrf.mxu0
    %v6730 = vadd.f32 0.0, %v6729
    %v6731 = vpop.f32.mrf.mxu0
    %6732 = vmatprep.mubr.bf16.mxu0 0
    %6733 = vmatmul.mubr.bf16.gmra.mxu0 %v5666
    %v6734 = vpop.f32.mrf.mxu0
    %v6735 = vadd.f32 0.0, %v6734
    %v6736 = vpop.f32.mrf.mxu0
    %v6737 = vpop.f32.mrf.mxu0
    %v6738 = vadd.f32 0.0, %v6737
    %v6739 = vpop.f32.mrf.mxu0
    %6740 = vmatprep.mubr.bf16.mxu0 0
    %6741 = vmatmul.mubr.bf16.gmra.mxu0 %v5667
    %v6742 = vpop.f32.mrf.mxu0
    %v6743 = vadd.f32 0.0, %v6742
    %v6744 = vpop.f32.mrf.mxu0
    %v6745 = vpop.f32.mrf.mxu0
    %v6746 = vadd.f32 0.0, %v6745
    %v6747 = vpop.f32.mrf.mxu0
    %6748 = vmatprep.mubr.bf16.mxu0 0
    %6749 = vmatmul.mubr.bf16.gmra.mxu0 %v5668
    %v6750 = vpop.f32.mrf.mxu0
    %v6751 = vadd.f32 0.0, %v6750
    %v6752 = vpop.f32.mrf.mxu0
    %v6753 = vpop.f32.mrf.mxu0
    %v6754 = vadd.f32 0.0, %v6753
    %v6755 = vpop.f32.mrf.mxu0
    %6756 = vmatprep.mubr.bf16.mxu0 0
    %6757 = vmatmul.mubr.bf16.gmra.mxu0 %v5669
    %v6758 = vpop.f32.mrf.mxu0
    %v6759 = vadd.f32 0.0, %v6758
    %v6760 = vpop.f32.mrf.mxu0
    %v6761 = vpop.f32.mrf.mxu0
    %v6762 = vadd.f32 0.0, %v6761
    %v6763 = vpop.f32.mrf.mxu0
    %6764 = vmatprep.mubr.bf16.mxu0 0
    %6765 = vmatmul.mubr.bf16.gmra.mxu0 %v5670
    %v6766 = vpop.f32.mrf.mxu0
    %v6767 = vadd.f32 0.0, %v6766
    %v6768 = vpop.f32.mrf.mxu0
    %v6769 = vpop.f32.mrf.mxu0
    %v6770 = vadd.f32 0.0, %v6769
    %v6771 = vpop.f32.mrf.mxu0
    %6772 = vmatprep.mubr.bf16.mxu0 0
    %6773 = vmatmul.mubr.bf16.gmra.mxu0 %v5671
    %v6774 = vpop.f32.mrf.mxu0
    %v6775 = vadd.f32 0.0, %v6774
    %v6776 = vpop.f32.mrf.mxu0
    %v6777 = vpop.f32.mrf.mxu0
    %v6778 = vadd.f32 0.0, %v6777
    %v6779 = vpop.f32.mrf.mxu0
    %6780 = vmatprep.mubr.bf16.mxu0 0
    %6781 = vmatmul.mubr.bf16.gmra.mxu0 %v5672
    %v6782 = vpop.f32.mrf.mxu0
    %v6783 = vadd.f32 0.0, %v6782
    %v6784 = vpop.f32.mrf.mxu0
    %v6785 = vpop.f32.mrf.mxu0
    %v6786 = vadd.f32 0.0, %v6785
    %v6787 = vpop.f32.mrf.mxu0
    %6788 = vmatprep.mubr.bf16.mxu0 0
    %6789 = vmatmul.mubr.bf16.gmra.mxu0 %v5673
    %v6790 = vpop.f32.mrf.mxu0
    %v6791 = vadd.f32 0.0, %v6790
    %v6792 = vpop.f32.mrf.mxu0
    %v6793 = vpop.f32.mrf.mxu0
    %v6794 = vadd.f32 0.0, %v6793
    %v6795 = vpop.f32.mrf.mxu0
    %6796 = vmatprep.mubr.bf16.mxu0 0
    %6797 = vmatmul.mubr.bf16.gmra.mxu0 %v5674
    %v6798 = vpop.f32.mrf.mxu0
    %v6799 = vadd.f32 0.0, %v6798
    %v6800 = vpop.f32.mrf.mxu0
    %v6801 = vpop.f32.mrf.mxu0
    %v6802 = vadd.f32 0.0, %v6801
    %v6803 = vpop.f32.mrf.mxu0
    %6804 = vmatprep.mubr.bf16.mxu0 0
    %6805 = vmatmul.mubr.bf16.gmra.mxu0 %v5675
    %v6806 = vpop.f32.mrf.mxu0
    %v6807 = vadd.f32 0.0, %v6806
    %v6808 = vpop.f32.mrf.mxu0
    %v6809 = vpop.f32.mrf.mxu0
    %v6810 = vadd.f32 0.0, %v6809
    %v6811 = vpop.f32.mrf.mxu0
    %6812 = vmatprep.mubr.bf16.mxu0 0
    %6813 = vmatmul.mubr.bf16.gmra.mxu0 %v5676
    %v6814 = vpop.f32.mrf.mxu0
    %v6815 = vadd.f32 0.0, %v6814
    %v6816 = vpop.f32.mrf.mxu0
    %v6817 = vpop.f32.mrf.mxu0
    %v6818 = vadd.f32 0.0, %v6817
    %v6819 = vpop.f32.mrf.mxu0
    %6820 = vmatprep.mubr.bf16.mxu0 0
    %6821 = vmatmul.mubr.bf16.gmra.mxu0 %v5677
    %v6822 = vpop.f32.mrf.mxu0
    %v6823 = vadd.f32 0.0, %v6822
    %v6824 = vpop.f32.mrf.mxu0
    %v6825 = vpop.f32.mrf.mxu0
    %v6826 = vadd.f32 0.0, %v6825
    %v6827 = vpop.f32.mrf.mxu0
    %6828 = vmatprep.mubr.bf16.mxu0 0
    %6829 = vmatmul.mubr.bf16.gmra.mxu0 %v5678
    %v6830 = vpop.f32.mrf.mxu0
    %v6831 = vadd.f32 0.0, %v6830
    %v6832 = vpop.f32.mrf.mxu0
    %v6833 = vpop.f32.mrf.mxu0
    %v6834 = vadd.f32 0.0, %v6833
    %v6835 = vpop.f32.mrf.mxu0
    %6836 = vmatprep.mubr.bf16.mxu0 0
    %6837 = vmatmul.mubr.bf16.gmra.mxu0 %v5679
    %v6838 = vpop.f32.mrf.mxu0
    %v6839 = vadd.f32 0.0, %v6838
    %v6840 = vpop.f32.mrf.mxu0
    %v6841 = vpop.f32.mrf.mxu0
    %v6842 = vadd.f32 0.0, %v6841
    %v6843 = vpop.f32.mrf.mxu0
    %6844 = vmatprep.mubr.bf16.mxu0 0
    %6845 = vmatmul.mubr.bf16.gmra.mxu0 %v5680
    %v6846 = vpop.f32.mrf.mxu0
    %v6847 = vadd.f32 0.0, %v6846
    %v6848 = vpop.f32.mrf.mxu0
    %v6849 = vpop.f32.mrf.mxu0
    %v6850 = vadd.f32 0.0, %v6849
    %v6851 = vpop.f32.mrf.mxu0
    %6852 = vmatprep.mubr.bf16.mxu0 0
    %6853 = vmatmul.mubr.bf16.gmra.mxu0 %v5681
    %v6854 = vpop.f32.mrf.mxu0
    %v6855 = vadd.f32 0.0, %v6854
    %v6856 = vpop.f32.mrf.mxu0
    %v6857 = vpop.f32.mrf.mxu0
    %v6858 = vadd.f32 0.0, %v6857
    %v6859 = vpop.f32.mrf.mxu0
    %6860 = vmatprep.mubr.bf16.mxu0 0
    %6861 = vmatmul.mubr.bf16.gmra.mxu0 %v5682
    %v6862 = vpop.f32.mrf.mxu0
    %v6863 = vadd.f32 0.0, %v6862
    %v6864 = vpop.f32.mrf.mxu0
    %v6865 = vpop.f32.mrf.mxu0
    %v6866 = vadd.f32 0.0, %v6865
    %v6867 = vpop.f32.mrf.mxu0
    %6868 = vmatprep.mubr.bf16.mxu0 0
    %6869 = vmatmul.mubr.bf16.gmra.mxu0 %v5683
    %v6870 = vpop.f32.mrf.mxu0
    %v6871 = vadd.f32 0.0, %v6870
    %v6872 = vpop.f32.mrf.mxu0
    %v6873 = vpop.f32.mrf.mxu0
    %v6874 = vadd.f32 0.0, %v6873
    %v6875 = vpop.f32.mrf.mxu0
    %6876 = vmatprep.mubr.bf16.mxu0 0
    %6877 = vmatmul.mubr.bf16.gmra.mxu0 %v5684
    %v6878 = vpop.f32.mrf.mxu0
    %v6879 = vadd.f32 0.0, %v6878
    %v6880 = vpop.f32.mrf.mxu0
    %v6881 = vpop.f32.mrf.mxu0
    %v6882 = vadd.f32 0.0, %v6881
    %v6883 = vpop.f32.mrf.mxu0
    %6884 = vmatprep.mubr.bf16.mxu0 0
    %6885 = vmatmul.mubr.bf16.gmra.mxu0 %v5685
    %v6886 = vpop.f32.mrf.mxu0
    %v6887 = vadd.f32 0.0, %v6886
    %v6888 = vpop.f32.mrf.mxu0
    %v6889 = vpop.f32.mrf.mxu0
    %v6890 = vadd.f32 0.0, %v6889
    %v6891 = vpop.f32.mrf.mxu0
    %6892 = vmatprep.mubr.bf16.mxu0 0
    %6893 = vmatmul.mubr.bf16.gmra.mxu0 %v5686
    %v6894 = vpop.f32.mrf.mxu0
    %v6895 = vadd.f32 0.0, %v6894
    %v6896 = vpop.f32.mrf.mxu0
    %v6897 = vpop.f32.mrf.mxu0
    %v6898 = vadd.f32 0.0, %v6897
    %v6899 = vpop.f32.mrf.mxu0
    %6900 = vmatprep.mubr.bf16.mxu0 0
    %6901 = vmatmul.mubr.bf16.gmra.mxu0 %v5687
    %v6902 = vpop.f32.mrf.mxu0
    %v6903 = vadd.f32 0.0, %v6902
    %v6904 = vpop.f32.mrf.mxu0
    %v6905 = vpop.f32.mrf.mxu0
    %v6906 = vadd.f32 0.0, %v6905
    %v6907 = vpop.f32.mrf.mxu0
    %6908 = vmatprep.mubr.bf16.mxu0 0
    %6909 = vmatmul.mubr.bf16.gmra.mxu0 %v5688
    %v6910 = vpop.f32.mrf.mxu0
    %v6911 = vadd.f32 0.0, %v6910
    %v6912 = vpop.f32.mrf.mxu0
    %v6913 = vpop.f32.mrf.mxu0
    %v6914 = vadd.f32 0.0, %v6913
    %v6915 = vpop.f32.mrf.mxu0
    %6916 = vmatprep.mubr.bf16.mxu0 0
    %6917 = vmatmul.mubr.bf16.gmra.mxu0 %v5689
    %v6918 = vpop.f32.mrf.mxu0
    %v6919 = vadd.f32 0.0, %v6918
    %v6920 = vpop.f32.mrf.mxu0
    %v6921 = vpop.f32.mrf.mxu0
    %v6922 = vadd.f32 0.0, %v6921
    %v6923 = vpop.f32.mrf.mxu0
    %6924 = vmatprep.mubr.bf16.mxu0 0
    %6925 = vmatmul.mubr.bf16.gmra.mxu0 %v5690
    %v6926 = vpop.f32.mrf.mxu0
    %v6927 = vadd.f32 0.0, %v6926
    %v6928 = vpop.f32.mrf.mxu0
    %v6929 = vpop.f32.mrf.mxu0
    %v6930 = vadd.f32 0.0, %v6929
    %v6931 = vpop.f32.mrf.mxu0
    %6932 = vmatprep.mubr.bf16.mxu0 0
    %6933 = vmatmul.mubr.bf16.gmra.mxu0 %v5691
    %v6934 = vpop.f32.mrf.mxu0
    %v6935 = vadd.f32 0.0, %v6934
    %v6936 = vpop.f32.mrf.mxu0
    %v6937 = vpop.f32.mrf.mxu0
    %v6938 = vadd.f32 0.0, %v6937
    %v6939 = vpop.f32.mrf.mxu0
    %6940 = vmatprep.mubr.bf16.mxu0 0
    %6941 = vmatmul.mubr.bf16.gmra.mxu0 %v5692
    %v6942 = vpop.f32.mrf.mxu0
    %v6943 = vadd.f32 0.0, %v6942
    %v6944 = vpop.f32.mrf.mxu0
    %v6945 = vpop.f32.mrf.mxu0
    %v6946 = vadd.f32 0.0, %v6945
    %v6947 = vpop.f32.mrf.mxu0
    %6948 = vmatprep.mubr.bf16.mxu0 0
    %6949 = vmatmul.mubr.bf16.gmra.mxu0 %v5693
    %v6950 = vpop.f32.mrf.mxu0
    %v6951 = vadd.f32 0.0, %v6950
    %v6952 = vpop.f32.mrf.mxu0
    %v6953 = vpop.f32.mrf.mxu0
    %v6954 = vadd.f32 0.0, %v6953
    %v6955 = vpop.f32.mrf.mxu0
    %6956 = vmatprep.mubr.bf16.mxu0 0
    %6957 = vmatmul.mubr.bf16.gmra.mxu0 %v5694
    %v6958 = vpop.f32.mrf.mxu0
    %v6959 = vadd.f32 0.0, %v6958
    %v6960 = vpop.f32.mrf.mxu0
    %v6961 = vpop.f32.mrf.mxu0
    %v6962 = vadd.f32 0.0, %v6961
    %v6963 = vpop.f32.mrf.mxu0
    %6964 = vmatprep.mubr.bf16.mxu0 0
    %6965 = vmatmul.mubr.bf16.gmra.mxu0 %v5695
    %v6966 = vpop.f32.mrf.mxu0
    %v6967 = vadd.f32 0.0, %v6966
    %v6968 = vpop.f32.mrf.mxu0
    %v6969 = vpop.f32.mrf.mxu0
    %v6970 = vadd.f32 0.0, %v6969
    %v6971 = vpop.f32.mrf.mxu0
    %6972 = vmatprep.mubr.bf16.mxu0 0
    %6973 = vmatmul.mubr.bf16.gmra.mxu0 %v5696
    %v6974 = vpop.f32.mrf.mxu0
    %v6975 = vadd.f32 0.0, %v6974
    %v6976 = vpop.f32.mrf.mxu0
    %v6977 = vpop.f32.mrf.mxu0
    %v6978 = vadd.f32 0.0, %v6977
    %v6979 = vpop.f32.mrf.mxu0
    %6980 = vdwg.mxu0
    %6997 = vrot.lane.b32.xlu0 %v5828, 16
    %v6998 = vpop.permute.xlu0 %6997
    %6999 = vrot.lane.b32.xlu0 %v5831, 16
    %v7000 = vpop.permute.xlu0 %6999
    %7001 = vrot.lane.b32.xlu0 %v5836, 16
    %v7002 = vpop.permute.xlu0 %7001
    %7003 = vrot.lane.b32.xlu0 %v5839, 16
    %v7004 = vpop.permute.xlu0 %7003
    %7005 = vrot.lane.b32.xlu0 %v5844, 16
    %v7006 = vpop.permute.xlu0 %7005
    %7007 = vrot.lane.b32.xlu0 %v5847, 16
    %v7008 = vpop.permute.xlu0 %7007
    %7009 = vrot.lane.b32.xlu0 %v5852, 16
    %v7010 = vpop.permute.xlu0 %7009
    %7011 = vrot.lane.b32.xlu0 %v5855, 16
    %v7012 = vpop.permute.xlu0 %7011
    %7013 = vrot.lane.b32.xlu0 %v5860, 16
    %v7014 = vpop.permute.xlu0 %7013
    %7015 = vrot.lane.b32.xlu0 %v5863, 16
    %v7016 = vpop.permute.xlu0 %7015
    %7017 = vrot.lane.b32.xlu0 %v5868, 16
    %v7018 = vpop.permute.xlu0 %7017
    %7019 = vrot.lane.b32.xlu0 %v5871, 16
    %v7020 = vpop.permute.xlu0 %7019
    %7021 = vrot.lane.b32.xlu0 %v5876, 16
    %v7022 = vpop.permute.xlu0 %7021
    %7023 = vrot.lane.b32.xlu0 %v5879, 16
    %v7024 = vpop.permute.xlu0 %7023
    %7025 = vrot.lane.b32.xlu0 %v5884, 16
    %v7026 = vpop.permute.xlu0 %7025
    %7027 = vrot.lane.b32.xlu0 %v5887, 16
    %v7028 = vpop.permute.xlu0 %7027
    %7061 = vrot.lane.b32.xlu0 %v5892, 32
    %v7062 = vpop.permute.xlu0 %7061
    %7063 = vrot.lane.b32.xlu0 %v5895, 32
    %v7064 = vpop.permute.xlu0 %7063
    %7065 = vrot.lane.b32.xlu0 %v5900, 32
    %v7066 = vpop.permute.xlu0 %7065
    %7067 = vrot.lane.b32.xlu0 %v5903, 32
    %v7068 = vpop.permute.xlu0 %7067
    %7069 = vrot.lane.b32.xlu0 %v5908, 32
    %v7070 = vpop.permute.xlu0 %7069
    %7071 = vrot.lane.b32.xlu0 %v5911, 32
    %v7072 = vpop.permute.xlu0 %7071
    %7073 = vrot.lane.b32.xlu0 %v5916, 32
    %v7074 = vpop.permute.xlu0 %7073
    %7075 = vrot.lane.b32.xlu0 %v5919, 32
    %v7076 = vpop.permute.xlu0 %7075
    %7077 = vrot.lane.b32.xlu0 %v5924, 32
    %v7078 = vpop.permute.xlu0 %7077
    %7079 = vrot.lane.b32.xlu0 %v5927, 32
    %v7080 = vpop.permute.xlu0 %7079
    %7081 = vrot.lane.b32.xlu0 %v5932, 32
    %v7082 = vpop.permute.xlu0 %7081
    %7083 = vrot.lane.b32.xlu0 %v5935, 32
    %v7084 = vpop.permute.xlu0 %7083
    %7085 = vrot.lane.b32.xlu0 %v5940, 32
    %v7086 = vpop.permute.xlu0 %7085
    %7087 = vrot.lane.b32.xlu0 %v5943, 32
    %v7088 = vpop.permute.xlu0 %7087
    %7089 = vrot.lane.b32.xlu0 %v5948, 32
    %v7090 = vpop.permute.xlu0 %7089
    %7091 = vrot.lane.b32.xlu0 %v5951, 32
    %v7092 = vpop.permute.xlu0 %7091
    %7125 = vrot.lane.b32.xlu0 %v5956, 48
    %v7126 = vpop.permute.xlu0 %7125
    %7127 = vrot.lane.b32.xlu0 %v5959, 48
    %v7128 = vpop.permute.xlu0 %7127
    %7129 = vrot.lane.b32.xlu0 %v5964, 48
    %v7130 = vpop.permute.xlu0 %7129
    %7131 = vrot.lane.b32.xlu0 %v5967, 48
    %v7132 = vpop.permute.xlu0 %7131
    %7133 = vrot.lane.b32.xlu0 %v5972, 48
    %v7134 = vpop.permute.xlu0 %7133
    %7135 = vrot.lane.b32.xlu0 %v5975, 48
    %v7136 = vpop.permute.xlu0 %7135
    %7137 = vrot.lane.b32.xlu0 %v5980, 48
    %v7138 = vpop.permute.xlu0 %7137
    %7139 = vrot.lane.b32.xlu0 %v5983, 48
    %v7140 = vpop.permute.xlu0 %7139
    %7141 = vrot.lane.b32.xlu0 %v5988, 48
    %v7142 = vpop.permute.xlu0 %7141
    %7143 = vrot.lane.b32.xlu0 %v5991, 48
    %v7144 = vpop.permute.xlu0 %7143
    %7145 = vrot.lane.b32.xlu0 %v5996, 48
    %v7146 = vpop.permute.xlu0 %7145
    %7147 = vrot.lane.b32.xlu0 %v5999, 48
    %v7148 = vpop.permute.xlu0 %7147
    %7149 = vrot.lane.b32.xlu0 %v6004, 48
    %v7150 = vpop.permute.xlu0 %7149
    %7151 = vrot.lane.b32.xlu0 %v6007, 48
    %v7152 = vpop.permute.xlu0 %7151
    %7153 = vrot.lane.b32.xlu0 %v6012, 48
    %v7154 = vpop.permute.xlu0 %7153
    %7155 = vrot.lane.b32.xlu0 %v6015, 48
    %v7156 = vpop.permute.xlu0 %7155
    %7189 = vrot.lane.b32.xlu0 %v6085, 64
    %v7190 = vpop.permute.xlu0 %7189
    %7191 = vrot.lane.b32.xlu0 %v6088, 64
    %v7192 = vpop.permute.xlu0 %7191
    %7193 = vrot.lane.b32.xlu0 %v6093, 64
    %v7194 = vpop.permute.xlu0 %7193
    %7195 = vrot.lane.b32.xlu0 %v6096, 64
    %v7196 = vpop.permute.xlu0 %7195
    %7197 = vrot.lane.b32.xlu0 %v6101, 64
    %v7198 = vpop.permute.xlu0 %7197
    %7199 = vrot.lane.b32.xlu0 %v6104, 64
    %v7200 = vpop.permute.xlu0 %7199
    %7201 = vrot.lane.b32.xlu0 %v6109, 64
    %v7202 = vpop.permute.xlu0 %7201
    %7203 = vrot.lane.b32.xlu0 %v6112, 64
    %v7204 = vpop.permute.xlu0 %7203
    %7205 = vrot.lane.b32.xlu0 %v6117, 64
    %v7206 = vpop.permute.xlu0 %7205
    %7207 = vrot.lane.b32.xlu0 %v6120, 64
    %v7208 = vpop.permute.xlu0 %7207
    %7209 = vrot.lane.b32.xlu0 %v6125, 64
    %v7210 = vpop.permute.xlu0 %7209
    %7211 = vrot.lane.b32.xlu0 %v6128, 64
    %v7212 = vpop.permute.xlu0 %7211
    %7213 = vrot.lane.b32.xlu0 %v6133, 64
    %v7214 = vpop.permute.xlu0 %7213
    %7215 = vrot.lane.b32.xlu0 %v6136, 64
    %v7216 = vpop.permute.xlu0 %7215
    %7217 = vrot.lane.b32.xlu0 %v6141, 64
    %v7218 = vpop.permute.xlu0 %7217
    %7219 = vrot.lane.b32.xlu0 %v6144, 64
    %v7220 = vpop.permute.xlu0 %7219
    %7253 = vrot.lane.b32.xlu0 %v6149, 80
    %v7254 = vpop.permute.xlu0 %7253
    %7255 = vrot.lane.b32.xlu0 %v6152, 80
    %v7256 = vpop.permute.xlu0 %7255
    %7257 = vrot.lane.b32.xlu0 %v6157, 80
    %v7258 = vpop.permute.xlu0 %7257
    %7259 = vrot.lane.b32.xlu0 %v6160, 80
    %v7260 = vpop.permute.xlu0 %7259
    %7261 = vrot.lane.b32.xlu0 %v6165, 80
    %v7262 = vpop.permute.xlu0 %7261
    %7263 = vrot.lane.b32.xlu0 %v6168, 80
    %v7264 = vpop.permute.xlu0 %7263
    %7265 = vrot.lane.b32.xlu0 %v6173, 80
    %v7266 = vpop.permute.xlu0 %7265
    %7267 = vrot.lane.b32.xlu0 %v6176, 80
    %v7268 = vpop.permute.xlu0 %7267
    %7269 = vrot.lane.b32.xlu0 %v6181, 80
    %v7270 = vpop.permute.xlu0 %7269
    %7271 = vrot.lane.b32.xlu0 %v6184, 80
    %v7272 = vpop.permute.xlu0 %7271
    %7273 = vrot.lane.b32.xlu0 %v6189, 80
    %v7274 = vpop.permute.xlu0 %7273
    %7275 = vrot.lane.b32.xlu0 %v6192, 80
    %v7276 = vpop.permute.xlu0 %7275
    %7277 = vrot.lane.b32.xlu0 %v6197, 80
    %v7278 = vpop.permute.xlu0 %7277
    %7279 = vrot.lane.b32.xlu0 %v6200, 80
    %v7280 = vpop.permute.xlu0 %7279
    %7281 = vrot.lane.b32.xlu0 %v6205, 80
    %v7282 = vpop.permute.xlu0 %7281
    %7283 = vrot.lane.b32.xlu0 %v6208, 80
    %v7284 = vpop.permute.xlu0 %7283
    %7317 = vrot.lane.b32.xlu0 %v6213, 96
    %v7318 = vpop.permute.xlu0 %7317
    %7319 = vrot.lane.b32.xlu0 %v6216, 96
    %v7320 = vpop.permute.xlu0 %7319
    %7321 = vrot.lane.b32.xlu0 %v6221, 96
    %v7322 = vpop.permute.xlu0 %7321
    %7323 = vrot.lane.b32.xlu0 %v6224, 96
    %v7324 = vpop.permute.xlu0 %7323
    %7325 = vrot.lane.b32.xlu0 %v6229, 96
    %v7326 = vpop.permute.xlu0 %7325
    %7327 = vrot.lane.b32.xlu0 %v6232, 96
    %v7328 = vpop.permute.xlu0 %7327
    %7329 = vrot.lane.b32.xlu0 %v6237, 96
    %v7330 = vpop.permute.xlu0 %7329
    %7331 = vrot.lane.b32.xlu0 %v6240, 96
    %v7332 = vpop.permute.xlu0 %7331
    %7333 = vrot.lane.b32.xlu0 %v6245, 96
    %v7334 = vpop.permute.xlu0 %7333
    %7335 = vrot.lane.b32.xlu0 %v6248, 96
    %v7336 = vpop.permute.xlu0 %7335
    %7337 = vrot.lane.b32.xlu0 %v6253, 96
    %v7338 = vpop.permute.xlu0 %7337
    %7339 = vrot.lane.b32.xlu0 %v6256, 96
    %v7340 = vpop.permute.xlu0 %7339
    %7341 = vrot.lane.b32.xlu0 %v6261, 96
    %v7342 = vpop.permute.xlu0 %7341
    %7343 = vrot.lane.b32.xlu0 %v6264, 96
    %v7344 = vpop.permute.xlu0 %7343
    %7345 = vrot.lane.b32.xlu0 %v6269, 96
    %v7346 = vpop.permute.xlu0 %7345
    %7347 = vrot.lane.b32.xlu0 %v6272, 96
    %v7348 = vpop.permute.xlu0 %7347
    %7381 = vrot.lane.b32.xlu0 %v6277, 112
    %v7382 = vpop.permute.xlu0 %7381
    %7383 = vrot.lane.b32.xlu0 %v6280, 112
    %v7384 = vpop.permute.xlu0 %7383
    %7385 = vrot.lane.b32.xlu0 %v6285, 112
    %v7386 = vpop.permute.xlu0 %7385
    %7387 = vrot.lane.b32.xlu0 %v6288, 112
    %v7388 = vpop.permute.xlu0 %7387
    %7389 = vrot.lane.b32.xlu0 %v6293, 112
    %v7390 = vpop.permute.xlu0 %7389
    %7391 = vrot.lane.b32.xlu0 %v6296, 112
    %v7392 = vpop.permute.xlu0 %7391
    %7393 = vrot.lane.b32.xlu0 %v6301, 112
    %v7394 = vpop.permute.xlu0 %7393
    %7395 = vrot.lane.b32.xlu0 %v6304, 112
    %v7396 = vpop.permute.xlu0 %7395
    %7397 = vrot.lane.b32.xlu0 %v6309, 112
    %v7398 = vpop.permute.xlu0 %7397
    %7399 = vrot.lane.b32.xlu0 %v6312, 112
    %v7400 = vpop.permute.xlu0 %7399
    %7401 = vrot.lane.b32.xlu0 %v6317, 112
    %v7402 = vpop.permute.xlu0 %7401
    %7403 = vrot.lane.b32.xlu0 %v6320, 112
    %v7404 = vpop.permute.xlu0 %7403
    %7405 = vrot.lane.b32.xlu0 %v6325, 112
    %v7406 = vpop.permute.xlu0 %7405
    %7407 = vrot.lane.b32.xlu0 %v6328, 112
    %v7408 = vpop.permute.xlu0 %7407
    %7409 = vrot.lane.b32.xlu0 %v6333, 112
    %v7410 = vpop.permute.xlu0 %7409
    %7411 = vrot.lane.b32.xlu0 %v6336, 112
    %v7412 = vpop.permute.xlu0 %7411
    %v7429 = vsel %vm1628, %v5764, %v6998
    %v7430 = vsel %vm1628, %v5767, %v7000
    %v7431 = vsel %vm1628, %v5772, %v7002
    %v7432 = vsel %vm1628, %v5775, %v7004
    %v7433 = vsel %vm1628, %v5780, %v7006
    %v7434 = vsel %vm1628, %v5783, %v7008
    %v7435 = vsel %vm1628, %v5788, %v7010
    %v7436 = vsel %vm1628, %v5791, %v7012
    %v7437 = vsel %vm1628, %v5796, %v7014
    %v7438 = vsel %vm1628, %v5799, %v7016
    %v7439 = vsel %vm1628, %v5804, %v7018
    %v7440 = vsel %vm1628, %v5807, %v7020
    %v7441 = vsel %vm1628, %v5812, %v7022
    %v7442 = vsel %vm1628, %v5815, %v7024
    %v7443 = vsel %vm1628, %v5820, %v7026
    %v7444 = vsel %vm1628, %v5823, %v7028
    %vm7445 = vcmask 261120
    %v7446 = vsel %vm7445, %v7429, %v7062
    %v7447 = vsel %vm7445, %v7430, %v7064
    %v7448 = vsel %vm7445, %v7431, %v7066
    %v7449 = vsel %vm7445, %v7432, %v7068
    %v7450 = vsel %vm7445, %v7433, %v7070
    %v7451 = vsel %vm7445, %v7434, %v7072
    %v7452 = vsel %vm7445, %v7435, %v7074
    %v7453 = vsel %vm7445, %v7436, %v7076
    %v7454 = vsel %vm7445, %v7437, %v7078
    %v7455 = vsel %vm7445, %v7438, %v7080
    %v7456 = vsel %vm7445, %v7439, %v7082
    %v7457 = vsel %vm7445, %v7440, %v7084
    %v7458 = vsel %vm7445, %v7441, %v7086
    %v7459 = vsel %vm7445, %v7442, %v7088
    %v7460 = vsel %vm7445, %v7443, %v7090
    %v7461 = vsel %vm7445, %v7444, %v7092
    %vm7462 = vcmask 392192
    %v7463 = vsel %vm7462, %v7446, %v7126
    %v7464 = vsel %vm7462, %v7447, %v7128
    %v7465 = vsel %vm7462, %v7448, %v7130
    %v7466 = vsel %vm7462, %v7449, %v7132
    %v7467 = vsel %vm7462, %v7450, %v7134
    %v7468 = vsel %vm7462, %v7451, %v7136
    %v7469 = vsel %vm7462, %v7452, %v7138
    %v7470 = vsel %vm7462, %v7453, %v7140
    %v7471 = vsel %vm7462, %v7454, %v7142
    %v7472 = vsel %vm7462, %v7455, %v7144
    %v7473 = vsel %vm7462, %v7456, %v7146
    %v7474 = vsel %vm7462, %v7457, %v7148
    %v7475 = vsel %vm7462, %v7458, %v7150
    %v7476 = vsel %vm7462, %v7459, %v7152
    %v7477 = vsel %vm7462, %v7460, %v7154
    %v7478 = vsel %vm7462, %v7461, %v7156
    %vm7479 = vcmask 523264
    %v7480 = vsel %vm7479, %v7463, %v7190
    %v7481 = vsel %vm7479, %v7464, %v7192
    %v7482 = vsel %vm7479, %v7465, %v7194
    %v7483 = vsel %vm7479, %v7466, %v7196
    %v7484 = vsel %vm7479, %v7467, %v7198
    %v7485 = vsel %vm7479, %v7468, %v7200
    %v7486 = vsel %vm7479, %v7469, %v7202
    %v7487 = vsel %vm7479, %v7470, %v7204
    %v7488 = vsel %vm7479, %v7471, %v7206
    %v7489 = vsel %vm7479, %v7472, %v7208
    %v7490 = vsel %vm7479, %v7473, %v7210
    %v7491 = vsel %vm7479, %v7474, %v7212
    %v7492 = vsel %vm7479, %v7475, %v7214
    %v7493 = vsel %vm7479, %v7476, %v7216
    %v7494 = vsel %vm7479, %v7477, %v7218
    %v7495 = vsel %vm7479, %v7478, %v7220
    %vm7496 = vcmask 654336
    %v7497 = vsel %vm7496, %v7480, %v7254
    %v7498 = vsel %vm7496, %v7481, %v7256
    %v7499 = vsel %vm7496, %v7482, %v7258
    %v7500 = vsel %vm7496, %v7483, %v7260
    %v7501 = vsel %vm7496, %v7484, %v7262
    %v7502 = vsel %vm7496, %v7485, %v7264
    %v7503 = vsel %vm7496, %v7486, %v7266
    %v7504 = vsel %vm7496, %v7487, %v7268
    %v7505 = vsel %vm7496, %v7488, %v7270
    %v7506 = vsel %vm7496, %v7489, %v7272
    %v7507 = vsel %vm7496, %v7490, %v7274
    %v7508 = vsel %vm7496, %v7491, %v7276
    %v7509 = vsel %vm7496, %v7492, %v7278
    %v7510 = vsel %vm7496, %v7493, %v7280
    %v7511 = vsel %vm7496, %v7494, %v7282
    %v7512 = vsel %vm7496, %v7495, %v7284
    %vm7513 = vcmask 785408
    %v7514 = vsel %vm7513, %v7497, %v7318
    %v7515 = vsel %vm7513, %v7498, %v7320
    %v7516 = vsel %vm7513, %v7499, %v7322
    %v7517 = vsel %vm7513, %v7500, %v7324
    %v7518 = vsel %vm7513, %v7501, %v7326
    %v7519 = vsel %vm7513, %v7502, %v7328
    %v7520 = vsel %vm7513, %v7503, %v7330
    %v7521 = vsel %vm7513, %v7504, %v7332
    %v7522 = vsel %vm7513, %v7505, %v7334
    %v7523 = vsel %vm7513, %v7506, %v7336
    %v7524 = vsel %vm7513, %v7507, %v7338
    %v7525 = vsel %vm7513, %v7508, %v7340
    %v7526 = vsel %vm7513, %v7509, %v7342
    %v7527 = vsel %vm7513, %v7510, %v7344
    %v7528 = vsel %vm7513, %v7511, %v7346
    %v7529 = vsel %vm7513, %v7512, %v7348
    %vm7530 = vcmask 916480
    %v7531 = vsel %vm7530, %v7514, %v7382
    %v7532 = vsel %vm7530, %v7515, %v7384
    %v7533 = vsel %vm7530, %v7516, %v7386
    %v7534 = vsel %vm7530, %v7517, %v7388
    %v7535 = vsel %vm7530, %v7518, %v7390
    %v7536 = vsel %vm7530, %v7519, %v7392
    %v7537 = vsel %vm7530, %v7520, %v7394
    %v7538 = vsel %vm7530, %v7521, %v7396
    %v7539 = vsel %vm7530, %v7522, %v7398
    %v7540 = vsel %vm7530, %v7523, %v7400
    %v7541 = vsel %vm7530, %v7524, %v7402
    %v7542 = vsel %vm7530, %v7525, %v7404
    %v7543 = vsel %vm7530, %v7526, %v7406
    %v7544 = vsel %vm7530, %v7527, %v7408
    %v7545 = vsel %vm7530, %v7528, %v7410
    %v7546 = vsel %vm7530, %v7529, %v7412
    %7563 = vrot.lane.b32.xlu0 %v6470, 16
    %v7564 = vpop.permute.xlu0 %7563
    %7565 = vrot.lane.b32.xlu0 %v6473, 16
    %v7566 = vpop.permute.xlu0 %7565
    %7567 = vrot.lane.b32.xlu0 %v6478, 16
    %v7568 = vpop.permute.xlu0 %7567
    %7569 = vrot.lane.b32.xlu0 %v6481, 16
    %v7570 = vpop.permute.xlu0 %7569
    %7571 = vrot.lane.b32.xlu0 %v6486, 16
    %v7572 = vpop.permute.xlu0 %7571
    %7573 = vrot.lane.b32.xlu0 %v6489, 16
    %v7574 = vpop.permute.xlu0 %7573
    %7575 = vrot.lane.b32.xlu0 %v6494, 16
    %v7576 = vpop.permute.xlu0 %7575
    %7577 = vrot.lane.b32.xlu0 %v6497, 16
    %v7578 = vpop.permute.xlu0 %7577
    %7579 = vrot.lane.b32.xlu0 %v6502, 16
    %v7580 = vpop.permute.xlu0 %7579
    %7581 = vrot.lane.b32.xlu0 %v6505, 16
    %v7582 = vpop.permute.xlu0 %7581
    %7583 = vrot.lane.b32.xlu0 %v6510, 16
    %v7584 = vpop.permute.xlu0 %7583
    %7585 = vrot.lane.b32.xlu0 %v6513, 16
    %v7586 = vpop.permute.xlu0 %7585
    %7587 = vrot.lane.b32.xlu0 %v6518, 16
    %v7588 = vpop.permute.xlu0 %7587
    %7589 = vrot.lane.b32.xlu0 %v6521, 16
    %v7590 = vpop.permute.xlu0 %7589
    %7591 = vrot.lane.b32.xlu0 %v6526, 16
    %v7592 = vpop.permute.xlu0 %7591
    %7593 = vrot.lane.b32.xlu0 %v6529, 16
    %v7594 = vpop.permute.xlu0 %7593
    %7627 = vrot.lane.b32.xlu0 %v6534, 32
    %v7628 = vpop.permute.xlu0 %7627
    %7629 = vrot.lane.b32.xlu0 %v6537, 32
    %v7630 = vpop.permute.xlu0 %7629
    %7631 = vrot.lane.b32.xlu0 %v6542, 32
    %v7632 = vpop.permute.xlu0 %7631
    %7633 = vrot.lane.b32.xlu0 %v6545, 32
    %v7634 = vpop.permute.xlu0 %7633
    %7635 = vrot.lane.b32.xlu0 %v6550, 32
    %v7636 = vpop.permute.xlu0 %7635
    %7637 = vrot.lane.b32.xlu0 %v6553, 32
    %v7638 = vpop.permute.xlu0 %7637
    %7639 = vrot.lane.b32.xlu0 %v6558, 32
    %v7640 = vpop.permute.xlu0 %7639
    %7641 = vrot.lane.b32.xlu0 %v6561, 32
    %v7642 = vpop.permute.xlu0 %7641
    %7643 = vrot.lane.b32.xlu0 %v6566, 32
    %v7644 = vpop.permute.xlu0 %7643
    %7645 = vrot.lane.b32.xlu0 %v6569, 32
    %v7646 = vpop.permute.xlu0 %7645
    %7647 = vrot.lane.b32.xlu0 %v6574, 32
    %v7648 = vpop.permute.xlu0 %7647
    %7649 = vrot.lane.b32.xlu0 %v6577, 32
    %v7650 = vpop.permute.xlu0 %7649
    %7651 = vrot.lane.b32.xlu0 %v6582, 32
    %v7652 = vpop.permute.xlu0 %7651
    %7653 = vrot.lane.b32.xlu0 %v6585, 32
    %v7654 = vpop.permute.xlu0 %7653
    %7655 = vrot.lane.b32.xlu0 %v6590, 32
    %v7656 = vpop.permute.xlu0 %7655
    %7657 = vrot.lane.b32.xlu0 %v6593, 32
    %v7658 = vpop.permute.xlu0 %7657
    %7691 = vrot.lane.b32.xlu0 %v6598, 48
    %v7692 = vpop.permute.xlu0 %7691
    %7693 = vrot.lane.b32.xlu0 %v6601, 48
    %v7694 = vpop.permute.xlu0 %7693
    %7695 = vrot.lane.b32.xlu0 %v6606, 48
    %v7696 = vpop.permute.xlu0 %7695
    %7697 = vrot.lane.b32.xlu0 %v6609, 48
    %v7698 = vpop.permute.xlu0 %7697
    %7699 = vrot.lane.b32.xlu0 %v6614, 48
    %v7700 = vpop.permute.xlu0 %7699
    %7701 = vrot.lane.b32.xlu0 %v6617, 48
    %v7702 = vpop.permute.xlu0 %7701
    %7703 = vrot.lane.b32.xlu0 %v6622, 48
    %v7704 = vpop.permute.xlu0 %7703
    %7705 = vrot.lane.b32.xlu0 %v6625, 48
    %v7706 = vpop.permute.xlu0 %7705
    %7707 = vrot.lane.b32.xlu0 %v6630, 48
    %v7708 = vpop.permute.xlu0 %7707
    %7709 = vrot.lane.b32.xlu0 %v6633, 48
    %v7710 = vpop.permute.xlu0 %7709
    %7711 = vrot.lane.b32.xlu0 %v6638, 48
    %v7712 = vpop.permute.xlu0 %7711
    %7713 = vrot.lane.b32.xlu0 %v6641, 48
    %v7714 = vpop.permute.xlu0 %7713
    %7715 = vrot.lane.b32.xlu0 %v6646, 48
    %v7716 = vpop.permute.xlu0 %7715
    %7717 = vrot.lane.b32.xlu0 %v6649, 48
    %v7718 = vpop.permute.xlu0 %7717
    %7719 = vrot.lane.b32.xlu0 %v6654, 48
    %v7720 = vpop.permute.xlu0 %7719
    %7721 = vrot.lane.b32.xlu0 %v6657, 48
    %v7722 = vpop.permute.xlu0 %7721
    %7755 = vrot.lane.b32.xlu0 %v6727, 64
    %v7756 = vpop.permute.xlu0 %7755
    %7757 = vrot.lane.b32.xlu0 %v6730, 64
    %v7758 = vpop.permute.xlu0 %7757
    %7759 = vrot.lane.b32.xlu0 %v6735, 64
    %v7760 = vpop.permute.xlu0 %7759
    %7761 = vrot.lane.b32.xlu0 %v6738, 64
    %v7762 = vpop.permute.xlu0 %7761
    %7763 = vrot.lane.b32.xlu0 %v6743, 64
    %v7764 = vpop.permute.xlu0 %7763
    %7765 = vrot.lane.b32.xlu0 %v6746, 64
    %v7766 = vpop.permute.xlu0 %7765
    %7767 = vrot.lane.b32.xlu0 %v6751, 64
    %v7768 = vpop.permute.xlu0 %7767
    %7769 = vrot.lane.b32.xlu0 %v6754, 64
    %v7770 = vpop.permute.xlu0 %7769
    %7771 = vrot.lane.b32.xlu0 %v6759, 64
    %v7772 = vpop.permute.xlu0 %7771
    %7773 = vrot.lane.b32.xlu0 %v6762, 64
    %v7774 = vpop.permute.xlu0 %7773
    %7775 = vrot.lane.b32.xlu0 %v6767, 64
    %v7776 = vpop.permute.xlu0 %7775
    %7777 = vrot.lane.b32.xlu0 %v6770, 64
    %v7778 = vpop.permute.xlu0 %7777
    %7779 = vrot.lane.b32.xlu0 %v6775, 64
    %v7780 = vpop.permute.xlu0 %7779
    %7781 = vrot.lane.b32.xlu0 %v6778, 64
    %v7782 = vpop.permute.xlu0 %7781
    %7783 = vrot.lane.b32.xlu0 %v6783, 64
    %v7784 = vpop.permute.xlu0 %7783
    %7785 = vrot.lane.b32.xlu0 %v6786, 64
    %v7786 = vpop.permute.xlu0 %7785
    %7819 = vrot.lane.b32.xlu0 %v6791, 80
    %v7820 = vpop.permute.xlu0 %7819
    %7821 = vrot.lane.b32.xlu0 %v6794, 80
    %v7822 = vpop.permute.xlu0 %7821
    %7823 = vrot.lane.b32.xlu0 %v6799, 80
    %v7824 = vpop.permute.xlu0 %7823
    %7825 = vrot.lane.b32.xlu0 %v6802, 80
    %v7826 = vpop.permute.xlu0 %7825
    %7827 = vrot.lane.b32.xlu0 %v6807, 80
    %v7828 = vpop.permute.xlu0 %7827
    %7829 = vrot.lane.b32.xlu0 %v6810, 80
    %v7830 = vpop.permute.xlu0 %7829
    %7831 = vrot.lane.b32.xlu0 %v6815, 80
    %v7832 = vpop.permute.xlu0 %7831
    %7833 = vrot.lane.b32.xlu0 %v6818, 80
    %v7834 = vpop.permute.xlu0 %7833
    %7835 = vrot.lane.b32.xlu0 %v6823, 80
    %v7836 = vpop.permute.xlu0 %7835
    %7837 = vrot.lane.b32.xlu0 %v6826, 80
    %v7838 = vpop.permute.xlu0 %7837
    %7839 = vrot.lane.b32.xlu0 %v6831, 80
    %v7840 = vpop.permute.xlu0 %7839
    %7841 = vrot.lane.b32.xlu0 %v6834, 80
    %v7842 = vpop.permute.xlu0 %7841
    %7843 = vrot.lane.b32.xlu0 %v6839, 80
    %v7844 = vpop.permute.xlu0 %7843
    %7845 = vrot.lane.b32.xlu0 %v6842, 80
    %v7846 = vpop.permute.xlu0 %7845
    %7847 = vrot.lane.b32.xlu0 %v6847, 80
    %v7848 = vpop.permute.xlu0 %7847
    %7849 = vrot.lane.b32.xlu0 %v6850, 80
    %v7850 = vpop.permute.xlu0 %7849
    %7883 = vrot.lane.b32.xlu0 %v6855, 96
    %v7884 = vpop.permute.xlu0 %7883
    %7885 = vrot.lane.b32.xlu0 %v6858, 96
    %v7886 = vpop.permute.xlu0 %7885
    %7887 = vrot.lane.b32.xlu0 %v6863, 96
    %v7888 = vpop.permute.xlu0 %7887
    %7889 = vrot.lane.b32.xlu0 %v6866, 96
    %v7890 = vpop.permute.xlu0 %7889
    %7891 = vrot.lane.b32.xlu0 %v6871, 96
    %v7892 = vpop.permute.xlu0 %7891
    %7893 = vrot.lane.b32.xlu0 %v6874, 96
    %v7894 = vpop.permute.xlu0 %7893
    %7895 = vrot.lane.b32.xlu0 %v6879, 96
    %v7896 = vpop.permute.xlu0 %7895
    %7897 = vrot.lane.b32.xlu0 %v6882, 96
    %v7898 = vpop.permute.xlu0 %7897
    %7899 = vrot.lane.b32.xlu0 %v6887, 96
    %v7900 = vpop.permute.xlu0 %7899
    %7901 = vrot.lane.b32.xlu0 %v6890, 96
    %v7902 = vpop.permute.xlu0 %7901
    %7903 = vrot.lane.b32.xlu0 %v6895, 96
    %v7904 = vpop.permute.xlu0 %7903
    %7905 = vrot.lane.b32.xlu0 %v6898, 96
    %v7906 = vpop.permute.xlu0 %7905
    %7907 = vrot.lane.b32.xlu0 %v6903, 96
    %v7908 = vpop.permute.xlu0 %7907
    %7909 = vrot.lane.b32.xlu0 %v6906, 96
    %v7910 = vpop.permute.xlu0 %7909
    %7911 = vrot.lane.b32.xlu0 %v6911, 96
    %v7912 = vpop.permute.xlu0 %7911
    %7913 = vrot.lane.b32.xlu0 %v6914, 96
    %v7914 = vpop.permute.xlu0 %7913
    %7947 = vrot.lane.b32.xlu0 %v6919, 112
    %v7948 = vpop.permute.xlu0 %7947
    %7949 = vrot.lane.b32.xlu0 %v6922, 112
    %v7950 = vpop.permute.xlu0 %7949
    %7951 = vrot.lane.b32.xlu0 %v6927, 112
    %v7952 = vpop.permute.xlu0 %7951
    %7953 = vrot.lane.b32.xlu0 %v6930, 112
    %v7954 = vpop.permute.xlu0 %7953
    %7955 = vrot.lane.b32.xlu0 %v6935, 112
    %v7956 = vpop.permute.xlu0 %7955
    %7957 = vrot.lane.b32.xlu0 %v6938, 112
    %v7958 = vpop.permute.xlu0 %7957
    %7959 = vrot.lane.b32.xlu0 %v6943, 112
    %v7960 = vpop.permute.xlu0 %7959
    %7961 = vrot.lane.b32.xlu0 %v6946, 112
    %v7962 = vpop.permute.xlu0 %7961
    %7963 = vrot.lane.b32.xlu0 %v6951, 112
    %v7964 = vpop.permute.xlu0 %7963
    %7965 = vrot.lane.b32.xlu0 %v6954, 112
    %v7966 = vpop.permute.xlu0 %7965
    %7967 = vrot.lane.b32.xlu0 %v6959, 112
    %v7968 = vpop.permute.xlu0 %7967
    %7969 = vrot.lane.b32.xlu0 %v6962, 112
    %v7970 = vpop.permute.xlu0 %7969
    %7971 = vrot.lane.b32.xlu0 %v6967, 112
    %v7972 = vpop.permute.xlu0 %7971
    %7973 = vrot.lane.b32.xlu0 %v6970, 112
    %v7974 = vpop.permute.xlu0 %7973
    %7975 = vrot.lane.b32.xlu0 %v6975, 112
    %v7976 = vpop.permute.xlu0 %7975
    %7977 = vrot.lane.b32.xlu0 %v6978, 112
    %v7978 = vpop.permute.xlu0 %7977
    %v7995 = vsel %vm1628, %v6406, %v7564
    %v7996 = vsel %vm1628, %v6409, %v7566
    %v7997 = vsel %vm1628, %v6414, %v7568
    %v7998 = vsel %vm1628, %v6417, %v7570
    %v7999 = vsel %vm1628, %v6422, %v7572
    %v8000 = vsel %vm1628, %v6425, %v7574
    %v8001 = vsel %vm1628, %v6430, %v7576
    %v8002 = vsel %vm1628, %v6433, %v7578
    %v8003 = vsel %vm1628, %v6438, %v7580
    %v8004 = vsel %vm1628, %v6441, %v7582
    %v8005 = vsel %vm1628, %v6446, %v7584
    %v8006 = vsel %vm1628, %v6449, %v7586
    %v8007 = vsel %vm1628, %v6454, %v7588
    %v8008 = vsel %vm1628, %v6457, %v7590
    %v8009 = vsel %vm1628, %v6462, %v7592
    %v8010 = vsel %vm1628, %v6465, %v7594
    %v8011 = vsel %vm7445, %v7995, %v7628
    %v8012 = vsel %vm7445, %v7996, %v7630
    %v8013 = vsel %vm7445, %v7997, %v7632
    %v8014 = vsel %vm7445, %v7998, %v7634
    %v8015 = vsel %vm7445, %v7999, %v7636
    %v8016 = vsel %vm7445, %v8000, %v7638
    %v8017 = vsel %vm7445, %v8001, %v7640
    %v8018 = vsel %vm7445, %v8002, %v7642
    %v8019 = vsel %vm7445, %v8003, %v7644
    %v8020 = vsel %vm7445, %v8004, %v7646
    %v8021 = vsel %vm7445, %v8005, %v7648
    %v8022 = vsel %vm7445, %v8006, %v7650
    %v8023 = vsel %vm7445, %v8007, %v7652
    %v8024 = vsel %vm7445, %v8008, %v7654
    %v8025 = vsel %vm7445, %v8009, %v7656
    %v8026 = vsel %vm7445, %v8010, %v7658
    %v8027 = vsel %vm7462, %v8011, %v7692
    %v8028 = vsel %vm7462, %v8012, %v7694
    %v8029 = vsel %vm7462, %v8013, %v7696
    %v8030 = vsel %vm7462, %v8014, %v7698
    %v8031 = vsel %vm7462, %v8015, %v7700
    %v8032 = vsel %vm7462, %v8016, %v7702
    %v8033 = vsel %vm7462, %v8017, %v7704
    %v8034 = vsel %vm7462, %v8018, %v7706
    %v8035 = vsel %vm7462, %v8019, %v7708
    %v8036 = vsel %vm7462, %v8020, %v7710
    %v8037 = vsel %vm7462, %v8021, %v7712
    %v8038 = vsel %vm7462, %v8022, %v7714
    %v8039 = vsel %vm7462, %v8023, %v7716
    %v8040 = vsel %vm7462, %v8024, %v7718
    %v8041 = vsel %vm7462, %v8025, %v7720
    %v8042 = vsel %vm7462, %v8026, %v7722
    %v8043 = vsel %vm7479, %v8027, %v7756
    %v8044 = vsel %vm7479, %v8028, %v7758
    %v8045 = vsel %vm7479, %v8029, %v7760
    %v8046 = vsel %vm7479, %v8030, %v7762
    %v8047 = vsel %vm7479, %v8031, %v7764
    %v8048 = vsel %vm7479, %v8032, %v7766
    %v8049 = vsel %vm7479, %v8033, %v7768
    %v8050 = vsel %vm7479, %v8034, %v7770
    %v8051 = vsel %vm7479, %v8035, %v7772
    %v8052 = vsel %vm7479, %v8036, %v7774
    %v8053 = vsel %vm7479, %v8037, %v7776
    %v8054 = vsel %vm7479, %v8038, %v7778
    %v8055 = vsel %vm7479, %v8039, %v7780
    %v8056 = vsel %vm7479, %v8040, %v7782
    %v8057 = vsel %vm7479, %v8041, %v7784
    %v8058 = vsel %vm7479, %v8042, %v7786
    %v8059 = vsel %vm7496, %v8043, %v7820
    %v8060 = vsel %vm7496, %v8044, %v7822
    %v8061 = vsel %vm7496, %v8045, %v7824
    %v8062 = vsel %vm7496, %v8046, %v7826
    %v8063 = vsel %vm7496, %v8047, %v7828
    %v8064 = vsel %vm7496, %v8048, %v7830
    %v8065 = vsel %vm7496, %v8049, %v7832
    %v8066 = vsel %vm7496, %v8050, %v7834
    %v8067 = vsel %vm7496, %v8051, %v7836
    %v8068 = vsel %vm7496, %v8052, %v7838
    %v8069 = vsel %vm7496, %v8053, %v7840
    %v8070 = vsel %vm7496, %v8054, %v7842
    %v8071 = vsel %vm7496, %v8055, %v7844
    %v8072 = vsel %vm7496, %v8056, %v7846
    %v8073 = vsel %vm7496, %v8057, %v7848
    %v8074 = vsel %vm7496, %v8058, %v7850
    %v8075 = vsel %vm7513, %v8059, %v7884
    %v8076 = vsel %vm7513, %v8060, %v7886
    %v8077 = vsel %vm7513, %v8061, %v7888
    %v8078 = vsel %vm7513, %v8062, %v7890
    %v8079 = vsel %vm7513, %v8063, %v7892
    %v8080 = vsel %vm7513, %v8064, %v7894
    %v8081 = vsel %vm7513, %v8065, %v7896
    %v8082 = vsel %vm7513, %v8066, %v7898
    %v8083 = vsel %vm7513, %v8067, %v7900
    %v8084 = vsel %vm7513, %v8068, %v7902
    %v8085 = vsel %vm7513, %v8069, %v7904
    %v8086 = vsel %vm7513, %v8070, %v7906
    %v8087 = vsel %vm7513, %v8071, %v7908
    %v8088 = vsel %vm7513, %v8072, %v7910
    %v8089 = vsel %vm7513, %v8073, %v7912
    %v8090 = vsel %vm7513, %v8074, %v7914
    %v8091 = vsel %vm7530, %v8075, %v7948
    %v8092 = vsel %vm7530, %v8076, %v7950
    %v8093 = vsel %vm7530, %v8077, %v7952
    %v8094 = vsel %vm7530, %v8078, %v7954
    %v8095 = vsel %vm7530, %v8079, %v7956
    %v8096 = vsel %vm7530, %v8080, %v7958
    %v8097 = vsel %vm7530, %v8081, %v7960
    %v8098 = vsel %vm7530, %v8082, %v7962
    %v8099 = vsel %vm7530, %v8083, %v7964
    %v8100 = vsel %vm7530, %v8084, %v7966
    %v8101 = vsel %vm7530, %v8085, %v7968
    %v8102 = vsel %vm7530, %v8086, %v7970
    %v8103 = vsel %vm7530, %v8087, %v7972
    %v8104 = vsel %vm7530, %v8088, %v7974
    %v8105 = vsel %vm7530, %v8089, %v7976
    %v8106 = vsel %vm7530, %v8090, %v7978
    %v8107 = vpack.c.bf16 %v7532, %v7531
    %v8108 = vpack.c.bf16 %v7534, %v7533
    %v8109 = vpack.c.bf16 %v7536, %v7535
    %v8110 = vpack.c.bf16 %v7538, %v7537
    %v8111 = vpack.c.bf16 %v7540, %v7539
    %v8112 = vpack.c.bf16 %v7542, %v7541
    %v8113 = vpack.c.bf16 %v7544, %v7543
    %v8114 = vpack.c.bf16 %v7546, %v7545
    %v8115 = vpack.c.bf16 %v8092, %v8091
    %v8116 = vpack.c.bf16 %v8094, %v8093
    %v8117 = vpack.c.bf16 %v8096, %v8095
    %v8118 = vpack.c.bf16 %v8098, %v8097
    %v8119 = vpack.c.bf16 %v8100, %v8099
    %v8120 = vpack.c.bf16 %v8102, %v8101
    %v8121 = vpack.c.bf16 %v8104, %v8103
    %v8122 = vpack.c.bf16 %v8106, %v8105
    %v8123 = vld [vmem:[%s3] sm:$0xf]
    %v8124 = vld [vmem:[%s3 + $0x4] sm:$0xf]
    %v8125 = vld [vmem:[%s3 + $0x8] sm:$0xf]
    %v8126 = vld [vmem:[%s3 + $0xc] sm:$0xf]
    %v8127 = vld [vmem:[%s3 + $0x10] sm:$0xf]
    %v8128 = vld [vmem:[%s3 + $0x14] sm:$0xf]
    %v8129 = vld [vmem:[%s3 + $0x18] sm:$0xf]
    %v8130 = vld [vmem:[%s3 + $0x1c] sm:$0xf]
    %v8131 = vld [vmem:[%s3 + $0x20] sm:$0xf]
    %v8132 = vld [vmem:[%s3 + $0x24] sm:$0xf]
    %v8133 = vld [vmem:[%s3 + $0x28] sm:$0xf]
    %v8134 = vld [vmem:[%s3 + $0x2c] sm:$0xf]
    %v8135 = vld [vmem:[%s3 + $0x30] sm:$0xf]
    %v8136 = vld [vmem:[%s3 + $0x34] sm:$0xf]
    %v8137 = vld [vmem:[%s3 + $0x38] sm:$0xf]
    %v8138 = vld [vmem:[%s3 + $0x3c] sm:$0xf]
    %v8139 = vld [vmem:[%s4] sm:$0x1]
    %v8141 = vlaneseq
    %v8142 = vshrl.u32 %v8141, 7
    %v8143 = vsub.s32 0, %v8142
    %v8144 = vrot.slane %v8139, %v8143
    %v8162 = vunpack.c.l.b16 %v8123
    %v8163 = vunpack.c.l.b16 %v8124
    %v8164 = vunpack.c.l.b16 %v8125
    %v8165 = vunpack.c.l.b16 %v8126
    %v8166 = vunpack.c.l.b16 %v8127
    %v8167 = vunpack.c.l.b16 %v8128
    %v8168 = vunpack.c.l.b16 %v8129
    %v8169 = vunpack.c.l.b16 %v8130
    %v8170 = vunpack.c.l.b16 %v8131
    %v8171 = vunpack.c.l.b16 %v8132
    %v8172 = vunpack.c.l.b16 %v8133
    %v8173 = vunpack.c.l.b16 %v8134
    %v8174 = vunpack.c.l.b16 %v8135
    %v8175 = vunpack.c.l.b16 %v8136
    %v8176 = vunpack.c.l.b16 %v8137
    %v8177 = vunpack.c.l.b16 %v8138
    %v8178 = vpack.c.b16 %v8163, %v8162
    %v8179 = vpack.c.b16 %v8165, %v8164
    %v8180 = vpack.c.b16 %v8167, %v8166
    %v8181 = vpack.c.b16 %v8169, %v8168
    %v8182 = vpack.c.b16 %v8171, %v8170
    %v8183 = vpack.c.b16 %v8173, %v8172
    %v8184 = vpack.c.b16 %v8175, %v8174
    %v8185 = vpack.c.b16 %v8177, %v8176
    %8194 = vmatprep.subr.bf16.mxu0 0
    %8195 = vmatpush1.bf16.msra.mxu0 %v8185
    %8196 = vmatprep.subr.bf16.mxu0 0
    %8197 = vmatpush1.bf16.msra.mxu0 %v8184
    %8198 = vmatprep.subr.bf16.mxu0 0
    %8199 = vmatpush1.bf16.msra.mxu0 %v8183
    %8200 = vmatprep.subr.bf16.mxu0 0
    %8201 = vmatpush1.bf16.msra.mxu0 %v8182
    %8202 = vmatprep.subr.bf16.mxu0 0
    %8203 = vmatpush1.bf16.msra.mxu0 %v8181
    %8204 = vmatprep.subr.bf16.mxu0 0
    %8205 = vmatpush1.bf16.msra.mxu0 %v8180
    %8206 = vmatprep.subr.bf16.mxu0 0
    %8207 = vmatpush1.bf16.msra.mxu0 %v8179
    %8208 = vmatprep.subr.bf16.mxu0 0
    %8209 = vmatpush1.bf16.msra.mxu0 %v8178
    %8210 = vmatprep.subr.bf16.mxu0 0
    %8211 = vmatpush2.bf16.msra.mxu0 0
    %8212 = vmatprep.subr.bf16.mxu0 0
    %8213 = vmatpush2.bf16.msra.mxu0 0
    %8214 = vmatprep.subr.bf16.mxu0 0
    %8215 = vmatpush2.bf16.msra.mxu0 0
    %8216 = vmatprep.subr.bf16.mxu0 0
    %8217 = vmatpush2.bf16.msra.mxu0 0
    %8218 = vmatprep.subr.bf16.mxu0 0
    %8219 = vmatpush2.bf16.msra.mxu0 0
    %8220 = vmatprep.subr.bf16.mxu0 0
    %8221 = vmatpush2.bf16.msra.mxu0 0
    %8222 = vmatprep.subr.bf16.mxu0 0
    %8223 = vmatpush2.bf16.msra.mxu0 0
    %8224 = vmatprep.subr.bf16.mxu0 0
    %8225 = vmatpush2.bf16.msra.mxu0 0
    %8226 = vmatprep.mubr.bf16.mxu0 0
    %8227 = vmatmul.mubr.bf16.gmra.mxu0 %v8107
    %v8228 = vpop.f32.mrf.mxu0
    %v8229 = vadd.f32 %v8144, %v8228
    %v8230 = vpop.f32.mrf.mxu0
    %v8231 = vpop.f32.mrf.mxu0
    %v8232 = vadd.f32 %v8144, %v8231
    %v8233 = vpop.f32.mrf.mxu0
    %8234 = vmatprep.mubr.bf16.mxu0 0
    %8235 = vmatmul.mubr.bf16.gmra.mxu0 %v8108
    %v8236 = vpop.f32.mrf.mxu0
    %v8237 = vadd.f32 %v8144, %v8236
    %v8238 = vpop.f32.mrf.mxu0
    %v8239 = vpop.f32.mrf.mxu0
    %v8240 = vadd.f32 %v8144, %v8239
    %v8241 = vpop.f32.mrf.mxu0
    %8242 = vmatprep.mubr.bf16.mxu0 0
    %8243 = vmatmul.mubr.bf16.gmra.mxu0 %v8109
    %v8244 = vpop.f32.mrf.mxu0
    %v8245 = vadd.f32 %v8144, %v8244
    %v8246 = vpop.f32.mrf.mxu0
    %v8247 = vpop.f32.mrf.mxu0
    %v8248 = vadd.f32 %v8144, %v8247
    %v8249 = vpop.f32.mrf.mxu0
    %8250 = vmatprep.mubr.bf16.mxu0 0
    %8251 = vmatmul.mubr.bf16.gmra.mxu0 %v8110
    %v8252 = vpop.f32.mrf.mxu0
    %v8253 = vadd.f32 %v8144, %v8252
    %v8254 = vpop.f32.mrf.mxu0
    %v8255 = vpop.f32.mrf.mxu0
    %v8256 = vadd.f32 %v8144, %v8255
    %v8257 = vpop.f32.mrf.mxu0
    %8258 = vmatprep.mubr.bf16.mxu0 0
    %8259 = vmatmul.mubr.bf16.gmra.mxu0 %v8111
    %v8260 = vpop.f32.mrf.mxu0
    %v8261 = vadd.f32 %v8144, %v8260
    %v8262 = vpop.f32.mrf.mxu0
    %v8263 = vpop.f32.mrf.mxu0
    %v8264 = vadd.f32 %v8144, %v8263
    %v8265 = vpop.f32.mrf.mxu0
    %8266 = vmatprep.mubr.bf16.mxu0 0
    %8267 = vmatmul.mubr.bf16.gmra.mxu0 %v8112
    %v8268 = vpop.f32.mrf.mxu0
    %v8269 = vadd.f32 %v8144, %v8268
    %v8270 = vpop.f32.mrf.mxu0
    %v8271 = vpop.f32.mrf.mxu0
    %v8272 = vadd.f32 %v8144, %v8271
    %v8273 = vpop.f32.mrf.mxu0
    %8274 = vmatprep.mubr.bf16.mxu0 0
    %8275 = vmatmul.mubr.bf16.gmra.mxu0 %v8113
    %v8276 = vpop.f32.mrf.mxu0
    %v8277 = vadd.f32 %v8144, %v8276
    %v8278 = vpop.f32.mrf.mxu0
    %v8279 = vpop.f32.mrf.mxu0
    %v8280 = vadd.f32 %v8144, %v8279
    %v8281 = vpop.f32.mrf.mxu0
    %8282 = vmatprep.mubr.bf16.mxu0 0
    %8283 = vmatmul.mubr.bf16.gmra.mxu0 %v8114
    %v8284 = vpop.f32.mrf.mxu0
    %v8285 = vadd.f32 %v8144, %v8284
    %v8286 = vpop.f32.mrf.mxu0
    %v8287 = vpop.f32.mrf.mxu0
    %v8288 = vadd.f32 %v8144, %v8287
    %v8289 = vpop.f32.mrf.mxu0
    %8290 = vmatprep.mubr.bf16.mxu0 0
    %8291 = vmatmul.mubr.bf16.gmra.mxu0 %v8115
    %v8292 = vpop.f32.mrf.mxu0
    %v8293 = vadd.f32 %v8144, %v8292
    %v8294 = vpop.f32.mrf.mxu0
    %v8295 = vpop.f32.mrf.mxu0
    %v8296 = vadd.f32 %v8144, %v8295
    %v8297 = vpop.f32.mrf.mxu0
    %8298 = vmatprep.mubr.bf16.mxu0 0
    %8299 = vmatmul.mubr.bf16.gmra.mxu0 %v8116
    %v8300 = vpop.f32.mrf.mxu0
    %v8301 = vadd.f32 %v8144, %v8300
    %v8302 = vpop.f32.mrf.mxu0
    %v8303 = vpop.f32.mrf.mxu0
    %v8304 = vadd.f32 %v8144, %v8303
    %v8305 = vpop.f32.mrf.mxu0
    %8306 = vmatprep.mubr.bf16.mxu0 0
    %8307 = vmatmul.mubr.bf16.gmra.mxu0 %v8117
    %v8308 = vpop.f32.mrf.mxu0
    %v8309 = vadd.f32 %v8144, %v8308
    %v8310 = vpop.f32.mrf.mxu0
    %v8311 = vpop.f32.mrf.mxu0
    %v8312 = vadd.f32 %v8144, %v8311
    %v8313 = vpop.f32.mrf.mxu0
    %8314 = vmatprep.mubr.bf16.mxu0 0
    %8315 = vmatmul.mubr.bf16.gmra.mxu0 %v8118
    %v8316 = vpop.f32.mrf.mxu0
    %v8317 = vadd.f32 %v8144, %v8316
    %v8318 = vpop.f32.mrf.mxu0
    %v8319 = vpop.f32.mrf.mxu0
    %v8320 = vadd.f32 %v8144, %v8319
    %v8321 = vpop.f32.mrf.mxu0
    %8322 = vmatprep.mubr.bf16.mxu0 0
    %8323 = vmatmul.mubr.bf16.gmra.mxu0 %v8119
    %v8324 = vpop.f32.mrf.mxu0
    %v8325 = vadd.f32 %v8144, %v8324
    %v8326 = vpop.f32.mrf.mxu0
    %v8327 = vpop.f32.mrf.mxu0
    %v8328 = vadd.f32 %v8144, %v8327
    %v8329 = vpop.f32.mrf.mxu0
    %8330 = vmatprep.mubr.bf16.mxu0 0
    %8331 = vmatmul.mubr.bf16.gmra.mxu0 %v8120
    %v8332 = vpop.f32.mrf.mxu0
    %v8333 = vadd.f32 %v8144, %v8332
    %v8334 = vpop.f32.mrf.mxu0
    %v8335 = vpop.f32.mrf.mxu0
    %v8336 = vadd.f32 %v8144, %v8335
    %v8337 = vpop.f32.mrf.mxu0
    %8338 = vmatprep.mubr.bf16.mxu0 0
    %8339 = vmatmul.mubr.bf16.gmra.mxu0 %v8121
    %v8340 = vpop.f32.mrf.mxu0
    %v8341 = vadd.f32 %v8144, %v8340
    %v8342 = vpop.f32.mrf.mxu0
    %v8343 = vpop.f32.mrf.mxu0
    %v8344 = vadd.f32 %v8144, %v8343
    %v8345 = vpop.f32.mrf.mxu0
    %8346 = vmatprep.mubr.bf16.mxu0 0
    %8347 = vmatmul.mubr.bf16.gmra.mxu0 %v8122
    %v8348 = vpop.f32.mrf.mxu0
    %v8349 = vadd.f32 %v8144, %v8348
    %v8350 = vpop.f32.mrf.mxu0
    %v8351 = vpop.f32.mrf.mxu0
    %v8352 = vadd.f32 %v8144, %v8351
    %v8353 = vpop.f32.mrf.mxu0
    %8354 = vdwg.mxu0
    %v8355 = vadd.f32 %v62, %v8229
    %v8356 = vadd.f32 %v63, %v8232
    %v8357 = vadd.f32 %v64, %v8237
    %v8358 = vadd.f32 %v65, %v8240
    %v8359 = vadd.f32 %v66, %v8245
    %v8360 = vadd.f32 %v67, %v8248
    %v8361 = vadd.f32 %v68, %v8253
    %v8362 = vadd.f32 %v69, %v8256
    %v8363 = vadd.f32 %v70, %v8261
    %v8364 = vadd.f32 %v71, %v8264
    %v8365 = vadd.f32 %v72, %v8269
    %v8366 = vadd.f32 %v73, %v8272
    %v8367 = vadd.f32 %v74, %v8277
    %v8368 = vadd.f32 %v75, %v8280
    %v8369 = vadd.f32 %v76, %v8285
    %v8370 = vadd.f32 %v77, %v8288
    %v8371 = vadd.f32 %v78, %v8293
    %v8372 = vadd.f32 %v79, %v8296
    %v8373 = vadd.f32 %v80, %v8301
    %v8374 = vadd.f32 %v81, %v8304
    %v8375 = vadd.f32 %v82, %v8309
    %v8376 = vadd.f32 %v83, %v8312
    %v8377 = vadd.f32 %v84, %v8317
    %v8378 = vadd.f32 %v85, %v8320
    %v8379 = vadd.f32 %v86, %v8325
    %v8380 = vadd.f32 %v87, %v8328
    %v8381 = vadd.f32 %v88, %v8333
    %v8382 = vadd.f32 %v89, %v8336
    %v8383 = vadd.f32 %v90, %v8341
    %v8384 = vadd.f32 %v91, %v8344
    %v8385 = vadd.f32 %v92, %v8349
    %v8386 = vadd.f32 %v93, %v8352
    %v8387 = vld [vmem:[%s5] sm:$0xff]
    %v8388 = vld [vmem:[%s5 + $0x8] sm:$0xff]
    %v8389 = vld [vmem:[%s5 + $0x10] sm:$0xff]
    %v8390 = vld [vmem:[%s5 + $0x18] sm:$0xff]
    %v8391 = vld [vmem:[%s5 + $0x20] sm:$0xff]
    %v8392 = vld [vmem:[%s5 + $0x28] sm:$0xff]
    %v8393 = vld [vmem:[%s5 + $0x30] sm:$0xff]
    %v8394 = vld [vmem:[%s5 + $0x38] sm:$0xff]
    %v8395 = vld [vmem:[%s5 + $0x40] sm:$0xff]
    %v8396 = vld [vmem:[%s5 + $0x48] sm:$0xff]
    %v8397 = vld [vmem:[%s5 + $0x50] sm:$0xff]
    %v8398 = vld [vmem:[%s5 + $0x58] sm:$0xff]
    %v8399 = vld [vmem:[%s5 + $0x60] sm:$0xff]
    %v8400 = vld [vmem:[%s5 + $0x68] sm:$0xff]
    %v8401 = vld [vmem:[%s5 + $0x70] sm:$0xff]
    %v8402 = vld [vmem:[%s5 + $0x78] sm:$0xff]
    %v8403 = vld [vmem:[%s6] sm:$0x3]
    %v8405 = vlaneseq
    %v8406 = vshrl.u32 %v8405, 7
    %v8407 = vsub.s32 0, %v8406
    %v8408 = vrot.slane %v8403, %v8407
    %v8409 = vlaneseq
    %v8410 = vshrl.u32 %v8409, 7
    %v8411 = vsub.s32 1, %v8410
    %v8412 = vrot.slane %v8403, %v8411
    %v8431 = vunpack.c.l.b16 %v8387
    %v8432 = vunpack.c.h.b16 %v8387
    %v8433 = vunpack.c.l.b16 %v8388
    %v8434 = vunpack.c.h.b16 %v8388
    %v8435 = vunpack.c.l.b16 %v8389
    %v8436 = vunpack.c.h.b16 %v8389
    %v8437 = vunpack.c.l.b16 %v8390
    %v8438 = vunpack.c.h.b16 %v8390
    %v8439 = vunpack.c.l.b16 %v8391
    %v8440 = vunpack.c.h.b16 %v8391
    %v8441 = vunpack.c.l.b16 %v8392
    %v8442 = vunpack.c.h.b16 %v8392
    %v8443 = vunpack.c.l.b16 %v8393
    %v8444 = vunpack.c.h.b16 %v8393
    %v8445 = vunpack.c.l.b16 %v8394
    %v8446 = vunpack.c.h.b16 %v8394
    %v8447 = vunpack.c.l.b16 %v8395
    %v8448 = vunpack.c.h.b16 %v8395
    %v8449 = vunpack.c.l.b16 %v8396
    %v8450 = vunpack.c.h.b16 %v8396
    %v8451 = vunpack.c.l.b16 %v8397
    %v8452 = vunpack.c.h.b16 %v8397
    %v8453 = vunpack.c.l.b16 %v8398
    %v8454 = vunpack.c.h.b16 %v8398
    %v8455 = vunpack.c.l.b16 %v8399
    %v8456 = vunpack.c.h.b16 %v8399
    %v8457 = vunpack.c.l.b16 %v8400
    %v8458 = vunpack.c.h.b16 %v8400
    %v8459 = vunpack.c.l.b16 %v8401
    %v8460 = vunpack.c.h.b16 %v8401
    %v8461 = vunpack.c.l.b16 %v8402
    %v8462 = vunpack.c.h.b16 %v8402
    %v8463 = vpack.c.b16 %v8433, %v8431
    %v8464 = vpack.c.b16 %v8434, %v8432
    %v8465 = vpack.c.b16 %v8437, %v8435
    %v8466 = vpack.c.b16 %v8438, %v8436
    %v8467 = vpack.c.b16 %v8441, %v8439
    %v8468 = vpack.c.b16 %v8442, %v8440
    %v8469 = vpack.c.b16 %v8445, %v8443
    %v8470 = vpack.c.b16 %v8446, %v8444
    %v8471 = vpack.c.b16 %v8449, %v8447
    %v8472 = vpack.c.b16 %v8450, %v8448
    %v8473 = vpack.c.b16 %v8453, %v8451
    %v8474 = vpack.c.b16 %v8454, %v8452
    %v8475 = vpack.c.b16 %v8457, %v8455
    %v8476 = vpack.c.b16 %v8458, %v8456
    %v8477 = vpack.c.b16 %v8461, %v8459
    %v8478 = vpack.c.b16 %v8462, %v8460
    %8495 = vmatprep.subr.bf16.mxu0 %v8478
    %8496 = vmatpush1.bf16.msra.mxu0 %v8477
    %8497 = vmatprep.subr.bf16.mxu0 %v8476
    %8498 = vmatpush1.bf16.msra.mxu0 %v8475
    %8499 = vmatprep.subr.bf16.mxu0 %v8474
    %8500 = vmatpush1.bf16.msra.mxu0 %v8473
    %8501 = vmatprep.subr.bf16.mxu0 %v8472
    %8502 = vmatpush1.bf16.msra.mxu0 %v8471
    %8503 = vmatprep.subr.bf16.mxu0 %v8470
    %8504 = vmatpush1.bf16.msra.mxu0 %v8469
    %8505 = vmatprep.subr.bf16.mxu0 %v8468
    %8506 = vmatpush1.bf16.msra.mxu0 %v8467
    %8507 = vmatprep.subr.bf16.mxu0 %v8466
    %8508 = vmatpush1.bf16.msra.mxu0 %v8465
    %8509 = vmatprep.subr.bf16.mxu0 %v8464
    %8510 = vmatpush1.bf16.msra.mxu0 %v8463
    %8511 = vmatprep.subr.bf16.mxu0 0
    %8512 = vmatpush2.bf16.msra.mxu0 0
    %8513 = vmatprep.subr.bf16.mxu0 0
    %8514 = vmatpush2.bf16.msra.mxu0 0
    %8515 = vmatprep.subr.bf16.mxu0 0
    %8516 = vmatpush2.bf16.msra.mxu0 0
    %8517 = vmatprep.subr.bf16.mxu0 0
    %8518 = vmatpush2.bf16.msra.mxu0 0
    %8519 = vmatprep.subr.bf16.mxu0 0
    %8520 = vmatpush2.bf16.msra.mxu0 0
    %8521 = vmatprep.subr.bf16.mxu0 0
    %8522 = vmatpush2.bf16.msra.mxu0 0
    %8523 = vmatprep.subr.bf16.mxu0 0
    %8524 = vmatpush2.bf16.msra.mxu0 0
    %8525 = vmatprep.subr.bf16.mxu0 0
    %8526 = vmatpush2.bf16.msra.mxu0 0
    %8527 = vmatprep.mubr.bf16.mxu0 0
    %8528 = vmatmul.mubr.bf16.gmra.mxu0 %v319
    %v8529 = vpop.f32.mrf.mxu0
    %v8530 = vadd.f32 %v8408, %v8529
    %v8531 = vpop.f32.mrf.mxu0
    %v8532 = vadd.f32 %v8412, %v8531
    %v8533 = vpop.f32.mrf.mxu0
    %v8534 = vadd.f32 %v8408, %v8533
    %v8535 = vpop.f32.mrf.mxu0
    %v8536 = vadd.f32 %v8412, %v8535
    %8537 = vmatprep.mubr.bf16.mxu0 0
    %8538 = vmatmul.mubr.bf16.gmra.mxu0 %v320
    %v8539 = vpop.f32.mrf.mxu0
    %v8540 = vadd.f32 %v8408, %v8539
    %v8541 = vpop.f32.mrf.mxu0
    %v8542 = vadd.f32 %v8412, %v8541
    %v8543 = vpop.f32.mrf.mxu0
    %v8544 = vadd.f32 %v8408, %v8543
    %v8545 = vpop.f32.mrf.mxu0
    %v8546 = vadd.f32 %v8412, %v8545
    %8547 = vmatprep.mubr.bf16.mxu0 0
    %8548 = vmatmul.mubr.bf16.gmra.mxu0 %v321
    %v8549 = vpop.f32.mrf.mxu0
    %v8550 = vadd.f32 %v8408, %v8549
    %v8551 = vpop.f32.mrf.mxu0
    %v8552 = vadd.f32 %v8412, %v8551
    %v8553 = vpop.f32.mrf.mxu0
    %v8554 = vadd.f32 %v8408, %v8553
    %v8555 = vpop.f32.mrf.mxu0
    %v8556 = vadd.f32 %v8412, %v8555
    %8557 = vmatprep.mubr.bf16.mxu0 0
    %8558 = vmatmul.mubr.bf16.gmra.mxu0 %v322
    %v8559 = vpop.f32.mrf.mxu0
    %v8560 = vadd.f32 %v8408, %v8559
    %v8561 = vpop.f32.mrf.mxu0
    %v8562 = vadd.f32 %v8412, %v8561
    %v8563 = vpop.f32.mrf.mxu0
    %v8564 = vadd.f32 %v8408, %v8563
    %v8565 = vpop.f32.mrf.mxu0
    %v8566 = vadd.f32 %v8412, %v8565
    %8567 = vmatprep.mubr.bf16.mxu0 0
    %8568 = vmatmul.mubr.bf16.gmra.mxu0 %v323
    %v8569 = vpop.f32.mrf.mxu0
    %v8570 = vadd.f32 %v8408, %v8569
    %v8571 = vpop.f32.mrf.mxu0
    %v8572 = vadd.f32 %v8412, %v8571
    %v8573 = vpop.f32.mrf.mxu0
    %v8574 = vadd.f32 %v8408, %v8573
    %v8575 = vpop.f32.mrf.mxu0
    %v8576 = vadd.f32 %v8412, %v8575
    %8577 = vmatprep.mubr.bf16.mxu0 0
    %8578 = vmatmul.mubr.bf16.gmra.mxu0 %v324
    %v8579 = vpop.f32.mrf.mxu0
    %v8580 = vadd.f32 %v8408, %v8579
    %v8581 = vpop.f32.mrf.mxu0
    %v8582 = vadd.f32 %v8412, %v8581
    %v8583 = vpop.f32.mrf.mxu0
    %v8584 = vadd.f32 %v8408, %v8583
    %v8585 = vpop.f32.mrf.mxu0
    %v8586 = vadd.f32 %v8412, %v8585
    %8587 = vmatprep.mubr.bf16.mxu0 0
    %8588 = vmatmul.mubr.bf16.gmra.mxu0 %v325
    %v8589 = vpop.f32.mrf.mxu0
    %v8590 = vadd.f32 %v8408, %v8589
    %v8591 = vpop.f32.mrf.mxu0
    %v8592 = vadd.f32 %v8412, %v8591
    %v8593 = vpop.f32.mrf.mxu0
    %v8594 = vadd.f32 %v8408, %v8593
    %v8595 = vpop.f32.mrf.mxu0
    %v8596 = vadd.f32 %v8412, %v8595
    %8597 = vmatprep.mubr.bf16.mxu0 0
    %8598 = vmatmul.mubr.bf16.gmra.mxu0 %v326
    %v8599 = vpop.f32.mrf.mxu0
    %v8600 = vadd.f32 %v8408, %v8599
    %v8601 = vpop.f32.mrf.mxu0
    %v8602 = vadd.f32 %v8412, %v8601
    %v8603 = vpop.f32.mrf.mxu0
    %v8604 = vadd.f32 %v8408, %v8603
    %v8605 = vpop.f32.mrf.mxu0
    %v8606 = vadd.f32 %v8412, %v8605
    %8607 = vmatprep.mubr.bf16.mxu0 0
    %8608 = vmatmul.mubr.bf16.gmra.mxu0 %v327
    %v8609 = vpop.f32.mrf.mxu0
    %v8610 = vadd.f32 %v8408, %v8609
    %v8611 = vpop.f32.mrf.mxu0
    %v8612 = vadd.f32 %v8412, %v8611
    %v8613 = vpop.f32.mrf.mxu0
    %v8614 = vadd.f32 %v8408, %v8613
    %v8615 = vpop.f32.mrf.mxu0
    %v8616 = vadd.f32 %v8412, %v8615
    %8617 = vmatprep.mubr.bf16.mxu0 0
    %8618 = vmatmul.mubr.bf16.gmra.mxu0 %v328
    %v8619 = vpop.f32.mrf.mxu0
    %v8620 = vadd.f32 %v8408, %v8619
    %v8621 = vpop.f32.mrf.mxu0
    %v8622 = vadd.f32 %v8412, %v8621
    %v8623 = vpop.f32.mrf.mxu0
    %v8624 = vadd.f32 %v8408, %v8623
    %v8625 = vpop.f32.mrf.mxu0
    %v8626 = vadd.f32 %v8412, %v8625
    %8627 = vmatprep.mubr.bf16.mxu0 0
    %8628 = vmatmul.mubr.bf16.gmra.mxu0 %v329
    %v8629 = vpop.f32.mrf.mxu0
    %v8630 = vadd.f32 %v8408, %v8629
    %v8631 = vpop.f32.mrf.mxu0
    %v8632 = vadd.f32 %v8412, %v8631
    %v8633 = vpop.f32.mrf.mxu0
    %v8634 = vadd.f32 %v8408, %v8633
    %v8635 = vpop.f32.mrf.mxu0
    %v8636 = vadd.f32 %v8412, %v8635
    %8637 = vmatprep.mubr.bf16.mxu0 0
    %8638 = vmatmul.mubr.bf16.gmra.mxu0 %v330
    %v8639 = vpop.f32.mrf.mxu0
    %v8640 = vadd.f32 %v8408, %v8639
    %v8641 = vpop.f32.mrf.mxu0
    %v8642 = vadd.f32 %v8412, %v8641
    %v8643 = vpop.f32.mrf.mxu0
    %v8644 = vadd.f32 %v8408, %v8643
    %v8645 = vpop.f32.mrf.mxu0
    %v8646 = vadd.f32 %v8412, %v8645
    %8647 = vmatprep.mubr.bf16.mxu0 0
    %8648 = vmatmul.mubr.bf16.gmra.mxu0 %v331
    %v8649 = vpop.f32.mrf.mxu0
    %v8650 = vadd.f32 %v8408, %v8649
    %v8651 = vpop.f32.mrf.mxu0
    %v8652 = vadd.f32 %v8412, %v8651
    %v8653 = vpop.f32.mrf.mxu0
    %v8654 = vadd.f32 %v8408, %v8653
    %v8655 = vpop.f32.mrf.mxu0
    %v8656 = vadd.f32 %v8412, %v8655
    %8657 = vmatprep.mubr.bf16.mxu0 0
    %8658 = vmatmul.mubr.bf16.gmra.mxu0 %v332
    %v8659 = vpop.f32.mrf.mxu0
    %v8660 = vadd.f32 %v8408, %v8659
    %v8661 = vpop.f32.mrf.mxu0
    %v8662 = vadd.f32 %v8412, %v8661
    %v8663 = vpop.f32.mrf.mxu0
    %v8664 = vadd.f32 %v8408, %v8663
    %v8665 = vpop.f32.mrf.mxu0
    %v8666 = vadd.f32 %v8412, %v8665
    %8667 = vmatprep.mubr.bf16.mxu0 0
    %8668 = vmatmul.mubr.bf16.gmra.mxu0 %v333
    %v8669 = vpop.f32.mrf.mxu0
    %v8670 = vadd.f32 %v8408, %v8669
    %v8671 = vpop.f32.mrf.mxu0
    %v8672 = vadd.f32 %v8412, %v8671
    %v8673 = vpop.f32.mrf.mxu0
    %v8674 = vadd.f32 %v8408, %v8673
    %v8675 = vpop.f32.mrf.mxu0
    %v8676 = vadd.f32 %v8412, %v8675
    %8677 = vmatprep.mubr.bf16.mxu0 0
    %8678 = vmatmul.mubr.bf16.gmra.mxu0 %v334
    %v8679 = vpop.f32.mrf.mxu0
    %v8680 = vadd.f32 %v8408, %v8679
    %v8681 = vpop.f32.mrf.mxu0
    %v8682 = vadd.f32 %v8412, %v8681
    %v8683 = vpop.f32.mrf.mxu0
    %v8684 = vadd.f32 %v8408, %v8683
    %v8685 = vpop.f32.mrf.mxu0
    %v8686 = vadd.f32 %v8412, %v8685
    %8687 = vdwg.mxu0
    %v8688 = vxor.u32 %v8530, 2147483648
    %v8689 = vxor.u32 %v8532, 2147483648
    %v8690 = vxor.u32 %v8534, 2147483648
    %v8691 = vxor.u32 %v8536, 2147483648
    %v8692 = vxor.u32 %v8540, 2147483648
    %v8693 = vxor.u32 %v8542, 2147483648
    %v8694 = vxor.u32 %v8544, 2147483648
    %v8695 = vxor.u32 %v8546, 2147483648
    %v8696 = vxor.u32 %v8550, 2147483648
    %v8697 = vxor.u32 %v8552, 2147483648
    %v8698 = vxor.u32 %v8554, 2147483648
    %v8699 = vxor.u32 %v8556, 2147483648
    %v8700 = vxor.u32 %v8560, 2147483648
    %v8701 = vxor.u32 %v8562, 2147483648
    %v8702 = vxor.u32 %v8564, 2147483648
    %v8703 = vxor.u32 %v8566, 2147483648
    %v8704 = vxor.u32 %v8570, 2147483648
    %v8705 = vxor.u32 %v8572, 2147483648
    %v8706 = vxor.u32 %v8574, 2147483648
    %v8707 = vxor.u32 %v8576, 2147483648
    %v8708 = vxor.u32 %v8580, 2147483648
    %v8709 = vxor.u32 %v8582, 2147483648
    %v8710 = vxor.u32 %v8584, 2147483648
    %v8711 = vxor.u32 %v8586, 2147483648
    %v8712 = vxor.u32 %v8590, 2147483648
    %v8713 = vxor.u32 %v8592, 2147483648
    %v8714 = vxor.u32 %v8594, 2147483648
    %v8715 = vxor.u32 %v8596, 2147483648
    %v8716 = vxor.u32 %v8600, 2147483648
    %v8717 = vxor.u32 %v8602, 2147483648
    %v8718 = vxor.u32 %v8604, 2147483648
    %v8719 = vxor.u32 %v8606, 2147483648
    %v8720 = vxor.u32 %v8610, 2147483648
    %v8721 = vxor.u32 %v8612, 2147483648
    %v8722 = vxor.u32 %v8614, 2147483648
    %v8723 = vxor.u32 %v8616, 2147483648
    %v8724 = vxor.u32 %v8620, 2147483648
    %v8725 = vxor.u32 %v8622, 2147483648
    %v8726 = vxor.u32 %v8624, 2147483648
    %v8727 = vxor.u32 %v8626, 2147483648
    %v8728 = vxor.u32 %v8630, 2147483648
    %v8729 = vxor.u32 %v8632, 2147483648
    %v8730 = vxor.u32 %v8634, 2147483648
    %v8731 = vxor.u32 %v8636, 2147483648
    %v8732 = vxor.u32 %v8640, 2147483648
    %v8733 = vxor.u32 %v8642, 2147483648
    %v8734 = vxor.u32 %v8644, 2147483648
    %v8735 = vxor.u32 %v8646, 2147483648
    %v8736 = vxor.u32 %v8650, 2147483648
    %v8737 = vxor.u32 %v8652, 2147483648
    %v8738 = vxor.u32 %v8654, 2147483648
    %v8739 = vxor.u32 %v8656, 2147483648
    %v8740 = vxor.u32 %v8660, 2147483648
    %v8741 = vxor.u32 %v8662, 2147483648
    %v8742 = vxor.u32 %v8664, 2147483648
    %v8743 = vxor.u32 %v8666, 2147483648
    %v8744 = vxor.u32 %v8670, 2147483648
    %v8745 = vxor.u32 %v8672, 2147483648
    %v8746 = vxor.u32 %v8674, 2147483648
    %v8747 = vxor.u32 %v8676, 2147483648
    %v8748 = vxor.u32 %v8680, 2147483648
    %v8749 = vxor.u32 %v8682, 2147483648
    %v8750 = vxor.u32 %v8684, 2147483648
    %v8751 = vxor.u32 %v8686, 2147483648
    %v8752 = vmul.f32 %v8688, 1.442695
    %v8753 = vpow.pop %v8752
    %v8754 = vmul.f32 %v8689, 1.442695
    %v8755 = vpow.pop %v8754
    %v8756 = vmul.f32 %v8690, 1.442695
    %v8757 = vpow.pop %v8756
    %v8758 = vmul.f32 %v8691, 1.442695
    %v8759 = vpow.pop %v8758
    %v8760 = vmul.f32 %v8692, 1.442695
    %v8761 = vpow.pop %v8760
    %v8762 = vmul.f32 %v8693, 1.442695
    %v8763 = vpow.pop %v8762
    %v8764 = vmul.f32 %v8694, 1.442695
    %v8765 = vpow.pop %v8764
    %v8766 = vmul.f32 %v8695, 1.442695
    %v8767 = vpow.pop %v8766
    %v8768 = vmul.f32 %v8696, 1.442695
    %v8769 = vpow.pop %v8768
    %v8770 = vmul.f32 %v8697, 1.442695
    %v8771 = vpow.pop %v8770
    %v8772 = vmul.f32 %v8698, 1.442695
    %v8773 = vpow.pop %v8772
    %v8774 = vmul.f32 %v8699, 1.442695
    %v8775 = vpow.pop %v8774
    %v8776 = vmul.f32 %v8700, 1.442695
    %v8777 = vpow.pop %v8776
    %v8778 = vmul.f32 %v8701, 1.442695
    %v8779 = vpow.pop %v8778
    %v8780 = vmul.f32 %v8702, 1.442695
    %v8781 = vpow.pop %v8780
    %v8782 = vmul.f32 %v8703, 1.442695
    %v8783 = vpow.pop %v8782
    %v8784 = vmul.f32 %v8704, 1.442695
    %v8785 = vpow.pop %v8784
    %v8786 = vmul.f32 %v8705, 1.442695
    %v8787 = vpow.pop %v8786
    %v8788 = vmul.f32 %v8706, 1.442695
    %v8789 = vpow.pop %v8788
    %v8790 = vmul.f32 %v8707, 1.442695
    %v8791 = vpow.pop %v8790
    %v8792 = vmul.f32 %v8708, 1.442695
    %v8793 = vpow.pop %v8792
    %v8794 = vmul.f32 %v8709, 1.442695
    %v8795 = vpow.pop %v8794
    %v8796 = vmul.f32 %v8710, 1.442695
    %v8797 = vpow.pop %v8796
    %v8798 = vmul.f32 %v8711, 1.442695
    %v8799 = vpow.pop %v8798
    %v8800 = vmul.f32 %v8712, 1.442695
    %v8801 = vpow.pop %v8800
    %v8802 = vmul.f32 %v8713, 1.442695
    %v8803 = vpow.pop %v8802
    %v8804 = vmul.f32 %v8714, 1.442695
    %v8805 = vpow.pop %v8804
    %v8806 = vmul.f32 %v8715, 1.442695
    %v8807 = vpow.pop %v8806
    %v8808 = vmul.f32 %v8716, 1.442695
    %v8809 = vpow.pop %v8808
    %v8810 = vmul.f32 %v8717, 1.442695
    %v8811 = vpow.pop %v8810
    %v8812 = vmul.f32 %v8718, 1.442695
    %v8813 = vpow.pop %v8812
    %v8814 = vmul.f32 %v8719, 1.442695
    %v8815 = vpow.pop %v8814
    %v8816 = vmul.f32 %v8720, 1.442695
    %v8817 = vpow.pop %v8816
    %v8818 = vmul.f32 %v8721, 1.442695
    %v8819 = vpow.pop %v8818
    %v8820 = vmul.f32 %v8722, 1.442695
    %v8821 = vpow.pop %v8820
    %v8822 = vmul.f32 %v8723, 1.442695
    %v8823 = vpow.pop %v8822
    %v8824 = vmul.f32 %v8724, 1.442695
    %v8825 = vpow.pop %v8824
    %v8826 = vmul.f32 %v8725, 1.442695
    %v8827 = vpow.pop %v8826
    %v8828 = vmul.f32 %v8726, 1.442695
    %v8829 = vpow.pop %v8828
    %v8830 = vmul.f32 %v8727, 1.442695
    %v8831 = vpow.pop %v8830
    %v8832 = vmul.f32 %v8728, 1.442695
    %v8833 = vpow.pop %v8832
    %v8834 = vmul.f32 %v8729, 1.442695
    %v8835 = vpow.pop %v8834
    %v8836 = vmul.f32 %v8730, 1.442695
    %v8837 = vpow.pop %v8836
    %v8838 = vmul.f32 %v8731, 1.442695
    %v8839 = vpow.pop %v8838
    %v8840 = vmul.f32 %v8732, 1.442695
    %v8841 = vpow.pop %v8840
    %v8842 = vmul.f32 %v8733, 1.442695
    %v8843 = vpow.pop %v8842
    %v8844 = vmul.f32 %v8734, 1.442695
    %v8845 = vpow.pop %v8844
    %v8846 = vmul.f32 %v8735, 1.442695
    %v8847 = vpow.pop %v8846
    %v8848 = vmul.f32 %v8736, 1.442695
    %v8849 = vpow.pop %v8848
    %v8850 = vmul.f32 %v8737, 1.442695
    %v8851 = vpow.pop %v8850
    %v8852 = vmul.f32 %v8738, 1.442695
    %v8853 = vpow.pop %v8852
    %v8854 = vmul.f32 %v8739, 1.442695
    %v8855 = vpow.pop %v8854
    %v8856 = vmul.f32 %v8740, 1.442695
    %v8857 = vpow.pop %v8856
    %v8858 = vmul.f32 %v8741, 1.442695
    %v8859 = vpow.pop %v8858
    %v8860 = vmul.f32 %v8742, 1.442695
    %v8861 = vpow.pop %v8860
    %v8862 = vmul.f32 %v8743, 1.442695
    %v8863 = vpow.pop %v8862
    %v8864 = vmul.f32 %v8744, 1.442695
    %v8865 = vpow.pop %v8864
    %v8866 = vmul.f32 %v8745, 1.442695
    %v8867 = vpow.pop %v8866
    %v8868 = vmul.f32 %v8746, 1.442695
    %v8869 = vpow.pop %v8868
    %v8870 = vmul.f32 %v8747, 1.442695
    %v8871 = vpow.pop %v8870
    %v8872 = vmul.f32 %v8748, 1.442695
    %v8873 = vpow.pop %v8872
    %v8874 = vmul.f32 %v8749, 1.442695
    %v8875 = vpow.pop %v8874
    %v8876 = vmul.f32 %v8750, 1.442695
    %v8877 = vpow.pop %v8876
    %v8878 = vmul.f32 %v8751, 1.442695
    %v8879 = vpow.pop %v8878
    %v8880 = vadd.f32 %v8753, 1.0
    %v8881 = vadd.f32 %v8755, 1.0
    %v8882 = vadd.f32 %v8757, 1.0
    %v8883 = vadd.f32 %v8759, 1.0
    %v8884 = vadd.f32 %v8761, 1.0
    %v8885 = vadd.f32 %v8763, 1.0
    %v8886 = vadd.f32 %v8765, 1.0
    %v8887 = vadd.f32 %v8767, 1.0
    %v8888 = vadd.f32 %v8769, 1.0
    %v8889 = vadd.f32 %v8771, 1.0
    %v8890 = vadd.f32 %v8773, 1.0
    %v8891 = vadd.f32 %v8775, 1.0
    %v8892 = vadd.f32 %v8777, 1.0
    %v8893 = vadd.f32 %v8779, 1.0
    %v8894 = vadd.f32 %v8781, 1.0
    %v8895 = vadd.f32 %v8783, 1.0
    %v8896 = vadd.f32 %v8785, 1.0
    %v8897 = vadd.f32 %v8787, 1.0
    %v8898 = vadd.f32 %v8789, 1.0
    %v8899 = vadd.f32 %v8791, 1.0
    %v8900 = vadd.f32 %v8793, 1.0
    %v8901 = vadd.f32 %v8795, 1.0
    %v8902 = vadd.f32 %v8797, 1.0
    %v8903 = vadd.f32 %v8799, 1.0
    %v8904 = vadd.f32 %v8801, 1.0
    %v8905 = vadd.f32 %v8803, 1.0
    %v8906 = vadd.f32 %v8805, 1.0
    %v8907 = vadd.f32 %v8807, 1.0
    %v8908 = vadd.f32 %v8809, 1.0
    %v8909 = vadd.f32 %v8811, 1.0
    %v8910 = vadd.f32 %v8813, 1.0
    %v8911 = vadd.f32 %v8815, 1.0
    %v8912 = vadd.f32 %v8817, 1.0
    %v8913 = vadd.f32 %v8819, 1.0
    %v8914 = vadd.f32 %v8821, 1.0
    %v8915 = vadd.f32 %v8823, 1.0
    %v8916 = vadd.f32 %v8825, 1.0
    %v8917 = vadd.f32 %v8827, 1.0
    %v8918 = vadd.f32 %v8829, 1.0
    %v8919 = vadd.f32 %v8831, 1.0
    %v8920 = vadd.f32 %v8833, 1.0
    %v8921 = vadd.f32 %v8835, 1.0
    %v8922 = vadd.f32 %v8837, 1.0
    %v8923 = vadd.f32 %v8839, 1.0
    %v8924 = vadd.f32 %v8841, 1.0
    %v8925 = vadd.f32 %v8843, 1.0
    %v8926 = vadd.f32 %v8845, 1.0
    %v8927 = vadd.f32 %v8847, 1.0
    %v8928 = vadd.f32 %v8849, 1.0
    %v8929 = vadd.f32 %v8851, 1.0
    %v8930 = vadd.f32 %v8853, 1.0
    %v8931 = vadd.f32 %v8855, 1.0
    %v8932 = vadd.f32 %v8857, 1.0
    %v8933 = vadd.f32 %v8859, 1.0
    %v8934 = vadd.f32 %v8861, 1.0
    %v8935 = vadd.f32 %v8863, 1.0
    %v8936 = vadd.f32 %v8865, 1.0
    %v8937 = vadd.f32 %v8867, 1.0
    %v8938 = vadd.f32 %v8869, 1.0
    %v8939 = vadd.f32 %v8871, 1.0
    %v8940 = vadd.f32 %v8873, 1.0
    %v8941 = vadd.f32 %v8875, 1.0
    %v8942 = vadd.f32 %v8877, 1.0
    %v8943 = vadd.f32 %v8879, 1.0
    %v8944 = vrcp.pop %v8880
    %v8945 = vmul.f32 1.0, %v8944
    %v8946 = vrcp.pop %v8881
    %v8947 = vmul.f32 1.0, %v8946
    %v8948 = vrcp.pop %v8882
    %v8949 = vmul.f32 1.0, %v8948
    %v8950 = vrcp.pop %v8883
    %v8951 = vmul.f32 1.0, %v8950
    %v8952 = vrcp.pop %v8884
    %v8953 = vmul.f32 1.0, %v8952
    %v8954 = vrcp.pop %v8885
    %v8955 = vmul.f32 1.0, %v8954
    %v8956 = vrcp.pop %v8886
    %v8957 = vmul.f32 1.0, %v8956
    %v8958 = vrcp.pop %v8887
    %v8959 = vmul.f32 1.0, %v8958
    %v8960 = vrcp.pop %v8888
    %v8961 = vmul.f32 1.0, %v8960
    %v8962 = vrcp.pop %v8889
    %v8963 = vmul.f32 1.0, %v8962
    %v8964 = vrcp.pop %v8890
    %v8965 = vmul.f32 1.0, %v8964
    %v8966 = vrcp.pop %v8891
    %v8967 = vmul.f32 1.0, %v8966
    %v8968 = vrcp.pop %v8892
    %v8969 = vmul.f32 1.0, %v8968
    %v8970 = vrcp.pop %v8893
    %v8971 = vmul.f32 1.0, %v8970
    %v8972 = vrcp.pop %v8894
    %v8973 = vmul.f32 1.0, %v8972
    %v8974 = vrcp.pop %v8895
    %v8975 = vmul.f32 1.0, %v8974
    %v8976 = vrcp.pop %v8896
    %v8977 = vmul.f32 1.0, %v8976
    %v8978 = vrcp.pop %v8897
    %v8979 = vmul.f32 1.0, %v8978
    %v8980 = vrcp.pop %v8898
    %v8981 = vmul.f32 1.0, %v8980
    %v8982 = vrcp.pop %v8899
    %v8983 = vmul.f32 1.0, %v8982
    %v8984 = vrcp.pop %v8900
    %v8985 = vmul.f32 1.0, %v8984
    %v8986 = vrcp.pop %v8901
    %v8987 = vmul.f32 1.0, %v8986
    %v8988 = vrcp.pop %v8902
    %v8989 = vmul.f32 1.0, %v8988
    %v8990 = vrcp.pop %v8903
    %v8991 = vmul.f32 1.0, %v8990
    %v8992 = vrcp.pop %v8904
    %v8993 = vmul.f32 1.0, %v8992
    %v8994 = vrcp.pop %v8905
    %v8995 = vmul.f32 1.0, %v8994
    %v8996 = vrcp.pop %v8906
    %v8997 = vmul.f32 1.0, %v8996
    %v8998 = vrcp.pop %v8907
    %v8999 = vmul.f32 1.0, %v8998
    %v9000 = vrcp.pop %v8908
    %v9001 = vmul.f32 1.0, %v9000
    %v9002 = vrcp.pop %v8909
    %v9003 = vmul.f32 1.0, %v9002
    %v9004 = vrcp.pop %v8910
    %v9005 = vmul.f32 1.0, %v9004
    %v9006 = vrcp.pop %v8911
    %v9007 = vmul.f32 1.0, %v9006
    %v9008 = vrcp.pop %v8912
    %v9009 = vmul.f32 1.0, %v9008
    %v9010 = vrcp.pop %v8913
    %v9011 = vmul.f32 1.0, %v9010
    %v9012 = vrcp.pop %v8914
    %v9013 = vmul.f32 1.0, %v9012
    %v9014 = vrcp.pop %v8915
    %v9015 = vmul.f32 1.0, %v9014
    %v9016 = vrcp.pop %v8916
    %v9017 = vmul.f32 1.0, %v9016
    %v9018 = vrcp.pop %v8917
    %v9019 = vmul.f32 1.0, %v9018
    %v9020 = vrcp.pop %v8918
    %v9021 = vmul.f32 1.0, %v9020
    %v9022 = vrcp.pop %v8919
    %v9023 = vmul.f32 1.0, %v9022
    %v9024 = vrcp.pop %v8920
    %v9025 = vmul.f32 1.0, %v9024
    %v9026 = vrcp.pop %v8921
    %v9027 = vmul.f32 1.0, %v9026
    %v9028 = vrcp.pop %v8922
    %v9029 = vmul.f32 1.0, %v9028
    %v9030 = vrcp.pop %v8923
    %v9031 = vmul.f32 1.0, %v9030
    %v9032 = vrcp.pop %v8924
    %v9033 = vmul.f32 1.0, %v9032
    %v9034 = vrcp.pop %v8925
    %v9035 = vmul.f32 1.0, %v9034
    %v9036 = vrcp.pop %v8926
    %v9037 = vmul.f32 1.0, %v9036
    %v9038 = vrcp.pop %v8927
    %v9039 = vmul.f32 1.0, %v9038
    %v9040 = vrcp.pop %v8928
    %v9041 = vmul.f32 1.0, %v9040
    %v9042 = vrcp.pop %v8929
    %v9043 = vmul.f32 1.0, %v9042
    %v9044 = vrcp.pop %v8930
    %v9045 = vmul.f32 1.0, %v9044
    %v9046 = vrcp.pop %v8931
    %v9047 = vmul.f32 1.0, %v9046
    %v9048 = vrcp.pop %v8932
    %v9049 = vmul.f32 1.0, %v9048
    %v9050 = vrcp.pop %v8933
    %v9051 = vmul.f32 1.0, %v9050
    %v9052 = vrcp.pop %v8934
    %v9053 = vmul.f32 1.0, %v9052
    %v9054 = vrcp.pop %v8935
    %v9055 = vmul.f32 1.0, %v9054
    %v9056 = vrcp.pop %v8936
    %v9057 = vmul.f32 1.0, %v9056
    %v9058 = vrcp.pop %v8937
    %v9059 = vmul.f32 1.0, %v9058
    %v9060 = vrcp.pop %v8938
    %v9061 = vmul.f32 1.0, %v9060
    %v9062 = vrcp.pop %v8939
    %v9063 = vmul.f32 1.0, %v9062
    %v9064 = vrcp.pop %v8940
    %v9065 = vmul.f32 1.0, %v9064
    %v9066 = vrcp.pop %v8941
    %v9067 = vmul.f32 1.0, %v9066
    %v9068 = vrcp.pop %v8942
    %v9069 = vmul.f32 1.0, %v9068
    %v9070 = vrcp.pop %v8943
    %v9071 = vmul.f32 1.0, %v9070
    %v9072 = vmul.f32 %v8530, %v8945
    %v9073 = vmul.f32 %v8532, %v8947
    %v9074 = vmul.f32 %v8534, %v8949
    %v9075 = vmul.f32 %v8536, %v8951
    %v9076 = vmul.f32 %v8540, %v8953
    %v9077 = vmul.f32 %v8542, %v8955
    %v9078 = vmul.f32 %v8544, %v8957
    %v9079 = vmul.f32 %v8546, %v8959
    %v9080 = vmul.f32 %v8550, %v8961
    %v9081 = vmul.f32 %v8552, %v8963
    %v9082 = vmul.f32 %v8554, %v8965
    %v9083 = vmul.f32 %v8556, %v8967
    %v9084 = vmul.f32 %v8560, %v8969
    %v9085 = vmul.f32 %v8562, %v8971
    %v9086 = vmul.f32 %v8564, %v8973
    %v9087 = vmul.f32 %v8566, %v8975
    %v9088 = vmul.f32 %v8570, %v8977
    %v9089 = vmul.f32 %v8572, %v8979
    %v9090 = vmul.f32 %v8574, %v8981
    %v9091 = vmul.f32 %v8576, %v8983
    %v9092 = vmul.f32 %v8580, %v8985
    %v9093 = vmul.f32 %v8582, %v8987
    %v9094 = vmul.f32 %v8584, %v8989
    %v9095 = vmul.f32 %v8586, %v8991
    %v9096 = vmul.f32 %v8590, %v8993
    %v9097 = vmul.f32 %v8592, %v8995
    %v9098 = vmul.f32 %v8594, %v8997
    %v9099 = vmul.f32 %v8596, %v8999
    %v9100 = vmul.f32 %v8600, %v9001
    %v9101 = vmul.f32 %v8602, %v9003
    %v9102 = vmul.f32 %v8604, %v9005
    %v9103 = vmul.f32 %v8606, %v9007
    %v9104 = vmul.f32 %v8610, %v9009
    %v9105 = vmul.f32 %v8612, %v9011
    %v9106 = vmul.f32 %v8614, %v9013
    %v9107 = vmul.f32 %v8616, %v9015
    %v9108 = vmul.f32 %v8620, %v9017
    %v9109 = vmul.f32 %v8622, %v9019
    %v9110 = vmul.f32 %v8624, %v9021
    %v9111 = vmul.f32 %v8626, %v9023
    %v9112 = vmul.f32 %v8630, %v9025
    %v9113 = vmul.f32 %v8632, %v9027
    %v9114 = vmul.f32 %v8634, %v9029
    %v9115 = vmul.f32 %v8636, %v9031
    %v9116 = vmul.f32 %v8640, %v9033
    %v9117 = vmul.f32 %v8642, %v9035
    %v9118 = vmul.f32 %v8644, %v9037
    %v9119 = vmul.f32 %v8646, %v9039
    %v9120 = vmul.f32 %v8650, %v9041
    %v9121 = vmul.f32 %v8652, %v9043
    %v9122 = vmul.f32 %v8654, %v9045
    %v9123 = vmul.f32 %v8656, %v9047
    %v9124 = vmul.f32 %v8660, %v9049
    %v9125 = vmul.f32 %v8662, %v9051
    %v9126 = vmul.f32 %v8664, %v9053
    %v9127 = vmul.f32 %v8666, %v9055
    %v9128 = vmul.f32 %v8670, %v9057
    %v9129 = vmul.f32 %v8672, %v9059
    %v9130 = vmul.f32 %v8674, %v9061
    %v9131 = vmul.f32 %v8676, %v9063
    %v9132 = vmul.f32 %v8680, %v9065
    %v9133 = vmul.f32 %v8682, %v9067
    %v9134 = vmul.f32 %v8684, %v9069
    %v9135 = vmul.f32 %v8686, %v9071
    %v9136 = vmul.f32 %v8530, %v9072
    %v9137 = vmul.f32 %v8532, %v9073
    %v9138 = vmul.f32 %v8534, %v9074
    %v9139 = vmul.f32 %v8536, %v9075
    %v9140 = vmul.f32 %v8540, %v9076
    %v9141 = vmul.f32 %v8542, %v9077
    %v9142 = vmul.f32 %v8544, %v9078
    %v9143 = vmul.f32 %v8546, %v9079
    %v9144 = vmul.f32 %v8550, %v9080
    %v9145 = vmul.f32 %v8552, %v9081
    %v9146 = vmul.f32 %v8554, %v9082
    %v9147 = vmul.f32 %v8556, %v9083
    %v9148 = vmul.f32 %v8560, %v9084
    %v9149 = vmul.f32 %v8562, %v9085
    %v9150 = vmul.f32 %v8564, %v9086
    %v9151 = vmul.f32 %v8566, %v9087
    %v9152 = vmul.f32 %v8570, %v9088
    %v9153 = vmul.f32 %v8572, %v9089
    %v9154 = vmul.f32 %v8574, %v9090
    %v9155 = vmul.f32 %v8576, %v9091
    %v9156 = vmul.f32 %v8580, %v9092
    %v9157 = vmul.f32 %v8582, %v9093
    %v9158 = vmul.f32 %v8584, %v9094
    %v9159 = vmul.f32 %v8586, %v9095
    %v9160 = vmul.f32 %v8590, %v9096
    %v9161 = vmul.f32 %v8592, %v9097
    %v9162 = vmul.f32 %v8594, %v9098
    %v9163 = vmul.f32 %v8596, %v9099
    %v9164 = vmul.f32 %v8600, %v9100
    %v9165 = vmul.f32 %v8602, %v9101
    %v9166 = vmul.f32 %v8604, %v9102
    %v9167 = vmul.f32 %v8606, %v9103
    %v9168 = vmul.f32 %v8610, %v9104
    %v9169 = vmul.f32 %v8612, %v9105
    %v9170 = vmul.f32 %v8614, %v9106
    %v9171 = vmul.f32 %v8616, %v9107
    %v9172 = vmul.f32 %v8620, %v9108
    %v9173 = vmul.f32 %v8622, %v9109
    %v9174 = vmul.f32 %v8624, %v9110
    %v9175 = vmul.f32 %v8626, %v9111
    %v9176 = vmul.f32 %v8630, %v9112
    %v9177 = vmul.f32 %v8632, %v9113
    %v9178 = vmul.f32 %v8634, %v9114
    %v9179 = vmul.f32 %v8636, %v9115
    %v9180 = vmul.f32 %v8640, %v9116
    %v9181 = vmul.f32 %v8642, %v9117
    %v9182 = vmul.f32 %v8644, %v9118
    %v9183 = vmul.f32 %v8646, %v9119
    %v9184 = vmul.f32 %v8650, %v9120
    %v9185 = vmul.f32 %v8652, %v9121
    %v9186 = vmul.f32 %v8654, %v9122
    %v9187 = vmul.f32 %v8656, %v9123
    %v9188 = vmul.f32 %v8660, %v9124
    %v9189 = vmul.f32 %v8662, %v9125
    %v9190 = vmul.f32 %v8664, %v9126
    %v9191 = vmul.f32 %v8666, %v9127
    %v9192 = vmul.f32 %v8670, %v9128
    %v9193 = vmul.f32 %v8672, %v9129
    %v9194 = vmul.f32 %v8674, %v9130
    %v9195 = vmul.f32 %v8676, %v9131
    %v9196 = vmul.f32 %v8680, %v9132
    %v9197 = vmul.f32 %v8682, %v9133
    %v9198 = vmul.f32 %v8684, %v9134
    %v9199 = vmul.f32 %v8686, %v9135
    %v9200 = vpack.c.bf16 %v9138, %v9136
    %v9201 = vpack.c.bf16 %v9139, %v9137
    %v9202 = vpack.c.bf16 %v9142, %v9140
    %v9203 = vpack.c.bf16 %v9143, %v9141
    %v9204 = vpack.c.bf16 %v9146, %v9144
    %v9205 = vpack.c.bf16 %v9147, %v9145
    %v9206 = vpack.c.bf16 %v9150, %v9148
    %v9207 = vpack.c.bf16 %v9151, %v9149
    %v9208 = vpack.c.bf16 %v9154, %v9152
    %v9209 = vpack.c.bf16 %v9155, %v9153
    %v9210 = vpack.c.bf16 %v9158, %v9156
    %v9211 = vpack.c.bf16 %v9159, %v9157
    %v9212 = vpack.c.bf16 %v9162, %v9160
    %v9213 = vpack.c.bf16 %v9163, %v9161
    %v9214 = vpack.c.bf16 %v9166, %v9164
    %v9215 = vpack.c.bf16 %v9167, %v9165
    %v9216 = vpack.c.bf16 %v9170, %v9168
    %v9217 = vpack.c.bf16 %v9171, %v9169
    %v9218 = vpack.c.bf16 %v9174, %v9172
    %v9219 = vpack.c.bf16 %v9175, %v9173
    %v9220 = vpack.c.bf16 %v9178, %v9176
    %v9221 = vpack.c.bf16 %v9179, %v9177
    %v9222 = vpack.c.bf16 %v9182, %v9180
    %v9223 = vpack.c.bf16 %v9183, %v9181
    %v9224 = vpack.c.bf16 %v9186, %v9184
    %v9225 = vpack.c.bf16 %v9187, %v9185
    %v9226 = vpack.c.bf16 %v9190, %v9188
    %v9227 = vpack.c.bf16 %v9191, %v9189
    %v9228 = vpack.c.bf16 %v9194, %v9192
    %v9229 = vpack.c.bf16 %v9195, %v9193
    %v9230 = vpack.c.bf16 %v9198, %v9196
    %v9231 = vpack.c.bf16 %v9199, %v9197
    %v9232 = vld [vmem:[#allocation5] sm:$0xf]
    %v9233 = vld [vmem:[#allocation5 + $0x4] sm:$0xf]
    %v9234 = vld [vmem:[#allocation5 + $0x8] sm:$0xf]
    %v9235 = vld [vmem:[#allocation5 + $0xc] sm:$0xf]
    %v9236 = vld [vmem:[#allocation5 + $0x10] sm:$0xf]
    %v9237 = vld [vmem:[#allocation5 + $0x14] sm:$0xf]
    %v9238 = vld [vmem:[#allocation5 + $0x18] sm:$0xf]
    %v9239 = vld [vmem:[#allocation5 + $0x1c] sm:$0xf]
    %v9240 = vld [vmem:[#allocation5 + $0x20] sm:$0xf]
    %v9241 = vld [vmem:[#allocation5 + $0x24] sm:$0xf]
    %v9242 = vld [vmem:[#allocation5 + $0x28] sm:$0xf]
    %v9243 = vld [vmem:[#allocation5 + $0x2c] sm:$0xf]
    %v9244 = vld [vmem:[#allocation5 + $0x30] sm:$0xf]
    %v9245 = vld [vmem:[#allocation5 + $0x34] sm:$0xf]
    %v9246 = vld [vmem:[#allocation5 + $0x38] sm:$0xf]
    %v9247 = vld [vmem:[#allocation5 + $0x3c] sm:$0xf]
    %v9248 = vld [vmem:[#allocation5 + $0x40] sm:$0xf]
    %v9249 = vld [vmem:[#allocation5 + $0x44] sm:$0xf]
    %v9250 = vld [vmem:[#allocation5 + $0x48] sm:$0xf]
    %v9251 = vld [vmem:[#allocation5 + $0x4c] sm:$0xf]
    %v9252 = vld [vmem:[#allocation5 + $0x50] sm:$0xf]
    %v9253 = vld [vmem:[#allocation5 + $0x54] sm:$0xf]
    %v9254 = vld [vmem:[#allocation5 + $0x58] sm:$0xf]
    %v9255 = vld [vmem:[#allocation5 + $0x5c] sm:$0xf]
    %v9256 = vld [vmem:[#allocation5 + $0x60] sm:$0xf]
    %v9257 = vld [vmem:[#allocation5 + $0x64] sm:$0xf]
    %v9258 = vld [vmem:[#allocation5 + $0x68] sm:$0xf]
    %v9259 = vld [vmem:[#allocation5 + $0x6c] sm:$0xf]
    %v9260 = vld [vmem:[#allocation5 + $0x70] sm:$0xf]
    %v9261 = vld [vmem:[#allocation5 + $0x74] sm:$0xf]
    %v9262 = vld [vmem:[#allocation5 + $0x78] sm:$0xf]
    %v9263 = vld [vmem:[#allocation5 + $0x7c] sm:$0xf]
    %v9264 = vld [vmem:[%s8] sm:$0x1]
    %v9266 = vlaneseq
    %v9267 = vshrl.u32 %v9266, 7
    %v9268 = vsub.s32 0, %v9267
    %v9269 = vrot.slane %v9264, %v9268
    %v9303 = vunpack.c.l.b16 %v9232
    %v9304 = vunpack.c.l.b16 %v9233
    %v9305 = vunpack.c.l.b16 %v9234
    %v9306 = vunpack.c.l.b16 %v9235
    %v9307 = vunpack.c.l.b16 %v9236
    %v9308 = vunpack.c.l.b16 %v9237
    %v9309 = vunpack.c.l.b16 %v9238
    %v9310 = vunpack.c.l.b16 %v9239
    %v9311 = vunpack.c.l.b16 %v9240
    %v9312 = vunpack.c.l.b16 %v9241
    %v9313 = vunpack.c.l.b16 %v9242
    %v9314 = vunpack.c.l.b16 %v9243
    %v9315 = vunpack.c.l.b16 %v9244
    %v9316 = vunpack.c.l.b16 %v9245
    %v9317 = vunpack.c.l.b16 %v9246
    %v9318 = vunpack.c.l.b16 %v9247
    %v9319 = vunpack.c.l.b16 %v9248
    %v9320 = vunpack.c.l.b16 %v9249
    %v9321 = vunpack.c.l.b16 %v9250
    %v9322 = vunpack.c.l.b16 %v9251
    %v9323 = vunpack.c.l.b16 %v9252
    %v9324 = vunpack.c.l.b16 %v9253
    %v9325 = vunpack.c.l.b16 %v9254
    %v9326 = vunpack.c.l.b16 %v9255
    %v9327 = vunpack.c.l.b16 %v9256
    %v9328 = vunpack.c.l.b16 %v9257
    %v9329 = vunpack.c.l.b16 %v9258
    %v9330 = vunpack.c.l.b16 %v9259
    %v9331 = vunpack.c.l.b16 %v9260
    %v9332 = vunpack.c.l.b16 %v9261
    %v9333 = vunpack.c.l.b16 %v9262
    %v9334 = vunpack.c.l.b16 %v9263
    %v9335 = vpack.c.b16 %v9304, %v9303
    %v9336 = vpack.c.b16 %v9306, %v9305
    %v9337 = vpack.c.b16 %v9308, %v9307
    %v9338 = vpack.c.b16 %v9310, %v9309
    %v9339 = vpack.c.b16 %v9312, %v9311
    %v9340 = vpack.c.b16 %v9314, %v9313
    %v9341 = vpack.c.b16 %v9316, %v9315
    %v9342 = vpack.c.b16 %v9318, %v9317
    %v9343 = vpack.c.b16 %v9320, %v9319
    %v9344 = vpack.c.b16 %v9322, %v9321
    %v9345 = vpack.c.b16 %v9324, %v9323
    %v9346 = vpack.c.b16 %v9326, %v9325
    %v9347 = vpack.c.b16 %v9328, %v9327
    %v9348 = vpack.c.b16 %v9330, %v9329
    %v9349 = vpack.c.b16 %v9332, %v9331
    %v9350 = vpack.c.b16 %v9334, %v9333
    %9367 = vmatprep.subr.bf16.mxu0 0
    %9368 = vmatpush1.bf16.msra.mxu0 %v9342
    %9369 = vmatprep.subr.bf16.mxu0 0
    %9370 = vmatpush1.bf16.msra.mxu0 %v9341
    %9371 = vmatprep.subr.bf16.mxu0 0
    %9372 = vmatpush1.bf16.msra.mxu0 %v9340
    %9373 = vmatprep.subr.bf16.mxu0 0
    %9374 = vmatpush1.bf16.msra.mxu0 %v9339
    %9375 = vmatprep.subr.bf16.mxu0 0
    %9376 = vmatpush1.bf16.msra.mxu0 %v9338
    %9377 = vmatprep.subr.bf16.mxu0 0
    %9378 = vmatpush1.bf16.msra.mxu0 %v9337
    %9379 = vmatprep.subr.bf16.mxu0 0
    %9380 = vmatpush1.bf16.msra.mxu0 %v9336
    %9381 = vmatprep.subr.bf16.mxu0 0
    %9382 = vmatpush1.bf16.msra.mxu0 %v9335
    %9383 = vmatprep.subr.bf16.mxu0 0
    %9384 = vmatpush2.bf16.msra.mxu0 %v9350
    %9385 = vmatprep.subr.bf16.mxu0 0
    %9386 = vmatpush2.bf16.msra.mxu0 %v9349
    %9387 = vmatprep.subr.bf16.mxu0 0
    %9388 = vmatpush2.bf16.msra.mxu0 %v9348
    %9389 = vmatprep.subr.bf16.mxu0 0
    %9390 = vmatpush2.bf16.msra.mxu0 %v9347
    %9391 = vmatprep.subr.bf16.mxu0 0
    %9392 = vmatpush2.bf16.msra.mxu0 %v9346
    %9393 = vmatprep.subr.bf16.mxu0 0
    %9394 = vmatpush2.bf16.msra.mxu0 %v9345
    %9395 = vmatprep.subr.bf16.mxu0 0
    %9396 = vmatpush2.bf16.msra.mxu0 %v9344
    %9397 = vmatprep.subr.bf16.mxu0 0
    %9398 = vmatpush2.bf16.msra.mxu0 %v9343
    %9399 = vmatprep.mubr.bf16.mxu0 %v9201
    %9400 = vmatmul.mubr.bf16.gmra.mxu0 %v9200
    %v9401 = vpop.f32.mrf.mxu0
    %v9402 = vadd.f32 %v9269, %v9401
    %v9403 = vpop.f32.mrf.mxu0
    %v9404 = vpop.f32.mrf.mxu0
    %v9405 = vadd.f32 %v9269, %v9404
    %v9406 = vpop.f32.mrf.mxu0
    %9407 = vmatprep.mubr.bf16.mxu0 %v9203
    %9408 = vmatmul.mubr.bf16.gmra.mxu0 %v9202
    %v9409 = vpop.f32.mrf.mxu0
    %v9410 = vadd.f32 %v9269, %v9409
    %v9411 = vpop.f32.mrf.mxu0
    %v9412 = vpop.f32.mrf.mxu0
    %v9413 = vadd.f32 %v9269, %v9412
    %v9414 = vpop.f32.mrf.mxu0
    %9415 = vmatprep.mubr.bf16.mxu0 %v9205
    %9416 = vmatmul.mubr.bf16.gmra.mxu0 %v9204
    %v9417 = vpop.f32.mrf.mxu0
    %v9418 = vadd.f32 %v9269, %v9417
    %v9419 = vpop.f32.mrf.mxu0
    %v9420 = vpop.f32.mrf.mxu0
    %v9421 = vadd.f32 %v9269, %v9420
    %v9422 = vpop.f32.mrf.mxu0
    %9423 = vmatprep.mubr.bf16.mxu0 %v9207
    %9424 = vmatmul.mubr.bf16.gmra.mxu0 %v9206
    %v9425 = vpop.f32.mrf.mxu0
    %v9426 = vadd.f32 %v9269, %v9425
    %v9427 = vpop.f32.mrf.mxu0
    %v9428 = vpop.f32.mrf.mxu0
    %v9429 = vadd.f32 %v9269, %v9428
    %v9430 = vpop.f32.mrf.mxu0
    %9431 = vmatprep.mubr.bf16.mxu0 %v9209
    %9432 = vmatmul.mubr.bf16.gmra.mxu0 %v9208
    %v9433 = vpop.f32.mrf.mxu0
    %v9434 = vadd.f32 %v9269, %v9433
    %v9435 = vpop.f32.mrf.mxu0
    %v9436 = vpop.f32.mrf.mxu0
    %v9437 = vadd.f32 %v9269, %v9436
    %v9438 = vpop.f32.mrf.mxu0
    %9439 = vmatprep.mubr.bf16.mxu0 %v9211
    %9440 = vmatmul.mubr.bf16.gmra.mxu0 %v9210
    %v9441 = vpop.f32.mrf.mxu0
    %v9442 = vadd.f32 %v9269, %v9441
    %v9443 = vpop.f32.mrf.mxu0
    %v9444 = vpop.f32.mrf.mxu0
    %v9445 = vadd.f32 %v9269, %v9444
    %v9446 = vpop.f32.mrf.mxu0
    %9447 = vmatprep.mubr.bf16.mxu0 %v9213
    %9448 = vmatmul.mubr.bf16.gmra.mxu0 %v9212
    %v9449 = vpop.f32.mrf.mxu0
    %v9450 = vadd.f32 %v9269, %v9449
    %v9451 = vpop.f32.mrf.mxu0
    %v9452 = vpop.f32.mrf.mxu0
    %v9453 = vadd.f32 %v9269, %v9452
    %v9454 = vpop.f32.mrf.mxu0
    %9455 = vmatprep.mubr.bf16.mxu0 %v9215
    %9456 = vmatmul.mubr.bf16.gmra.mxu0 %v9214
    %v9457 = vpop.f32.mrf.mxu0
    %v9458 = vadd.f32 %v9269, %v9457
    %v9459 = vpop.f32.mrf.mxu0
    %v9460 = vpop.f32.mrf.mxu0
    %v9461 = vadd.f32 %v9269, %v9460
    %v9462 = vpop.f32.mrf.mxu0
    %9463 = vmatprep.mubr.bf16.mxu0 %v9217
    %9464 = vmatmul.mubr.bf16.gmra.mxu0 %v9216
    %v9465 = vpop.f32.mrf.mxu0
    %v9466 = vadd.f32 %v9269, %v9465
    %v9467 = vpop.f32.mrf.mxu0
    %v9468 = vpop.f32.mrf.mxu0
    %v9469 = vadd.f32 %v9269, %v9468
    %v9470 = vpop.f32.mrf.mxu0
    %9471 = vmatprep.mubr.bf16.mxu0 %v9219
    %9472 = vmatmul.mubr.bf16.gmra.mxu0 %v9218
    %v9473 = vpop.f32.mrf.mxu0
    %v9474 = vadd.f32 %v9269, %v9473
    %v9475 = vpop.f32.mrf.mxu0
    %v9476 = vpop.f32.mrf.mxu0
    %v9477 = vadd.f32 %v9269, %v9476
    %v9478 = vpop.f32.mrf.mxu0
    %9479 = vmatprep.mubr.bf16.mxu0 %v9221
    %9480 = vmatmul.mubr.bf16.gmra.mxu0 %v9220
    %v9481 = vpop.f32.mrf.mxu0
    %v9482 = vadd.f32 %v9269, %v9481
    %v9483 = vpop.f32.mrf.mxu0
    %v9484 = vpop.f32.mrf.mxu0
    %v9485 = vadd.f32 %v9269, %v9484
    %v9486 = vpop.f32.mrf.mxu0
    %9487 = vmatprep.mubr.bf16.mxu0 %v9223
    %9488 = vmatmul.mubr.bf16.gmra.mxu0 %v9222
    %v9489 = vpop.f32.mrf.mxu0
    %v9490 = vadd.f32 %v9269, %v9489
    %v9491 = vpop.f32.mrf.mxu0
    %v9492 = vpop.f32.mrf.mxu0
    %v9493 = vadd.f32 %v9269, %v9492
    %v9494 = vpop.f32.mrf.mxu0
    %9495 = vmatprep.mubr.bf16.mxu0 %v9225
    %9496 = vmatmul.mubr.bf16.gmra.mxu0 %v9224
    %v9497 = vpop.f32.mrf.mxu0
    %v9498 = vadd.f32 %v9269, %v9497
    %v9499 = vpop.f32.mrf.mxu0
    %v9500 = vpop.f32.mrf.mxu0
    %v9501 = vadd.f32 %v9269, %v9500
    %v9502 = vpop.f32.mrf.mxu0
    %9503 = vmatprep.mubr.bf16.mxu0 %v9227
    %9504 = vmatmul.mubr.bf16.gmra.mxu0 %v9226
    %v9505 = vpop.f32.mrf.mxu0
    %v9506 = vadd.f32 %v9269, %v9505
    %v9507 = vpop.f32.mrf.mxu0
    %v9508 = vpop.f32.mrf.mxu0
    %v9509 = vadd.f32 %v9269, %v9508
    %v9510 = vpop.f32.mrf.mxu0
    %9511 = vmatprep.mubr.bf16.mxu0 %v9229
    %9512 = vmatmul.mubr.bf16.gmra.mxu0 %v9228
    %v9513 = vpop.f32.mrf.mxu0
    %v9514 = vadd.f32 %v9269, %v9513
    %v9515 = vpop.f32.mrf.mxu0
    %v9516 = vpop.f32.mrf.mxu0
    %v9517 = vadd.f32 %v9269, %v9516
    %v9518 = vpop.f32.mrf.mxu0
    %9519 = vmatprep.mubr.bf16.mxu0 %v9231
    %9520 = vmatmul.mubr.bf16.gmra.mxu0 %v9230
    %v9521 = vpop.f32.mrf.mxu0
    %v9522 = vadd.f32 %v9269, %v9521
    %v9523 = vpop.f32.mrf.mxu0
    %v9524 = vpop.f32.mrf.mxu0
    %v9525 = vadd.f32 %v9269, %v9524
    %v9526 = vpop.f32.mrf.mxu0
    %9527 = vdwg.mxu0
    %v9528 = vadd.f32 %v8355, %v9402
    %v9529 = vadd.f32 %v8356, %v9405
    %v9530 = vadd.f32 %v8357, %v9410
    %v9531 = vadd.f32 %v8358, %v9413
    %v9532 = vadd.f32 %v8359, %v9418
    %v9533 = vadd.f32 %v8360, %v9421
    %v9534 = vadd.f32 %v8361, %v9426
    %v9535 = vadd.f32 %v8362, %v9429
    %v9536 = vadd.f32 %v8363, %v9434
    %v9537 = vadd.f32 %v8364, %v9437
    %v9538 = vadd.f32 %v8365, %v9442
    %v9539 = vadd.f32 %v8366, %v9445
    %v9540 = vadd.f32 %v8367, %v9450
    %v9541 = vadd.f32 %v8368, %v9453
    %v9542 = vadd.f32 %v8369, %v9458
    %v9543 = vadd.f32 %v8370, %v9461
    %v9544 = vadd.f32 %v8371, %v9466
    %v9545 = vadd.f32 %v8372, %v9469
    %v9546 = vadd.f32 %v8373, %v9474
    %v9547 = vadd.f32 %v8374, %v9477
    %v9548 = vadd.f32 %v8375, %v9482
    %v9549 = vadd.f32 %v8376, %v9485
    %v9550 = vadd.f32 %v8377, %v9490
    %v9551 = vadd.f32 %v8378, %v9493
    %v9552 = vadd.f32 %v8379, %v9498
    %v9553 = vadd.f32 %v8380, %v9501
    %v9554 = vadd.f32 %v8381, %v9506
    %v9555 = vadd.f32 %v8382, %v9509
    %v9556 = vadd.f32 %v8383, %v9514
    %v9557 = vadd.f32 %v8384, %v9517
    %v9558 = vadd.f32 %v8385, %v9522
    %v9559 = vadd.f32 %v8386, %v9525
    %9560 = vst [vmem:[#allocation7] sm:$0xff] %v9528
    %9561 = vst [vmem:[#allocation7 + $0x8] sm:$0xff] %v9529
    %9562 = vst [vmem:[#allocation7 + $0x10] sm:$0xff] %v9530
    %9563 = vst [vmem:[#allocation7 + $0x18] sm:$0xff] %v9531
    %9564 = vst [vmem:[#allocation7 + $0x20] sm:$0xff] %v9532
    %9565 = vst [vmem:[#allocation7 + $0x28] sm:$0xff] %v9533
    %9566 = vst [vmem:[#allocation7 + $0x30] sm:$0xff] %v9534
    %9567 = vst [vmem:[#allocation7 + $0x38] sm:$0xff] %v9535
    %9568 = vst [vmem:[#allocation7 + $0x40] sm:$0xff] %v9536
    %9569 = vst [vmem:[#allocation7 + $0x48] sm:$0xff] %v9537
    %9570 = vst [vmem:[#allocation7 + $0x50] sm:$0xff] %v9538
    %9571 = vst [vmem:[#allocation7 + $0x58] sm:$0xff] %v9539
    %9572 = vst [vmem:[#allocation7 + $0x60] sm:$0xff] %v9540
    %9573 = vst [vmem:[#allocation7 + $0x68] sm:$0xff] %v9541
    %9574 = vst [vmem:[#allocation7 + $0x70] sm:$0xff] %v9542
    %9575 = vst [vmem:[#allocation7 + $0x78] sm:$0xff] %v9543
    %9576 = vst [vmem:[#allocation7 + $0x80] sm:$0xff] %v9544
    %9577 = vst [vmem:[#allocation7 + $0x88] sm:$0xff] %v9545
    %9578 = vst [vmem:[#allocation7 + $0x90] sm:$0xff] %v9546
    %9579 = vst [vmem:[#allocation7 + $0x98] sm:$0xff] %v9547
    %9580 = vst [vmem:[#allocation7 + $0xa0] sm:$0xff] %v9548
    %9581 = vst [vmem:[#allocation7 + $0xa8] sm:$0xff] %v9549
    %9582 = vst [vmem:[#allocation7 + $0xb0] sm:$0xff] %v9550
    %9583 = vst [vmem:[#allocation7 + $0xb8] sm:$0xff] %v9551
    %9584 = vst [vmem:[#allocation7 + $0xc0] sm:$0xff] %v9552
    %9585 = vst [vmem:[#allocation7 + $0xc8] sm:$0xff] %v9553
    %9586 = vst [vmem:[#allocation7 + $0xd0] sm:$0xff] %v9554
    %9587 = vst [vmem:[#allocation7 + $0xd8] sm:$0xff] %v9555
    %9588 = vst [vmem:[#allocation7 + $0xe0] sm:$0xff] %v9556
    %9589 = vst [vmem:[#allocation7 + $0xe8] sm:$0xff] %v9557
    %9590 = vst [vmem:[#allocation7 + $0xf0] sm:$0xff] %v9558
    %9591 = vst [vmem:[#allocation7 + $0xf8] sm:$0xff] %v9559
    // Predicated region
    $region46: #{tpu_custom_call.1} parent=1 // pred_check
      _
    $region47: #{tpu_custom_call.1} parent=1 // pred_check_branch
      %9593 = sbr.rel (0) target = $region49
    $region48: #{tpu_custom_call.1} parent=1 // pred_region
      %s9595 = ssub.s32 4096, 4096
      %9596 = vsyncadd [#allocation4], %s9595
      %s9597 = sshll.u32 [#allocation7], 4
      %s9598 = int_to_ptr.vmem [resolvable:$true] %s9597
      %9603 = dma.vmem_to_hbm [thread:$0]  %s9598, 4096, %s9, [#allocation4], 128, 128, 8
    $region49: #{tpu_custom_call.1} parent=1 // pred_fallthru
      _
    // Predicated region
    $region50: #{tpu_custom_call.1} parent=1 // pred_check
      _
    $region51: #{tpu_custom_call.1} parent=1 // pred_check_branch
      %9605 = sbr.rel (0) target = $region53
    $region52: #{tpu_custom_call.1} parent=1 // pred_region
      %9606 = dma.done [#allocation4], 4096
    $region53: #{tpu_custom_call.1} parent=1 // pred_fallthru
      _
    %9607 = vsyncpa [#allocation3], 1
    %9608 = vsyncpa [#allocation6], 1
    %9609 = vsyncpa [#allocation4], 1

</llo_original>
